<compile_context>
chip_gen: v7x
topology: tpu7x:2x2x1
jax: 0.10.0
libtpu: 0.0.40
codegen_flags: <defaults>
</compile_context>

<pallas_src>
import numpy as np
import jax
import jax.numpy as jnp
from jax.experimental import pallas as pl
from jax.experimental.pallas import tpu as pltpu

EPS = 1e-5  # torch.nn.LayerNorm default eps


def _full_spec(shape):
    """BlockSpec covering the whole array (used with grid=(1,))."""
    n = len(shape)
    return pl.BlockSpec(tuple(shape), lambda i, _n=n: (0,) * _n)


def _layernorm(x, gamma, beta):
    # two-pass (x - mu) variance, eps inside the sqrt (torch.nn.LayerNorm)
    mu = jnp.mean(x, axis=-1, keepdims=True)
    xc = x - mu
    var = jnp.mean(xc * xc, axis=-1, keepdims=True)
    return xc * jax.lax.rsqrt(var + EPS) * gamma + beta


# ---------------------------------------------------------------------------
# Fully fused kernel: GCN + gather + stacked LayerNorm-LSTM + FC + reorder.
# ---------------------------------------------------------------------------
def make_fused_kernel(M, N, B, T, d, E, Hg, H, depth, C):

    def kernel(*args):
        it = iter(args)
        s_ref = next(it)       # (M, N, 1)
        a_ref = next(it)       # (M, N, N)
        w1_ref = next(it)      # (1, Hg)
        b1_ref = next(it)      # (1, Hg)
        w2_ref = next(it)      # (Hg, E)
        b2_ref = next(it)      # (1, E)
        sel_ref = next(it)     # (T*B, M)  one-hot graph->sequence gather (0-rows = pad)
        x_ref = next(it)       # (T*B, d)  time-major input features
        w0e_ref = next(it)     # (E, 4H)   emb-columns of layer-0 W_ih
        layer_refs = [tuple(next(it) for _ in range(10)) for _ in range(depth)]
        fcw_ref = next(it)     # (H, C)
        fcb_ref = next(it)     # (1, C)
        pout_ref = next(it)    # (B*T, T*B) time-major -> batch-major permutation
        out_ref = next(it)     # (B*T, C)
        r0s = next(it)         # VMEM (M, Hg)    node-0 rows of gc2 input
        hseq = next(it)        # VMEM (T*B, H)   time-major hidden sequence

        f32 = jnp.float32

        # ---------------- GCN (all graphs), node-0 embedding -----------------
        w1 = w1_ref[...]
        b1 = b1_ref[...]
        for m in range(M):                        # static; all graphs in VMEM
            a_m = a_ref[m]                        # (N, N)
            sup1 = s_ref[m] * w1                  # (N,1)*(1,Hg) -> (N,Hg)
            h1 = jnp.maximum(
                jnp.dot(a_m, sup1, preferred_element_type=f32) + b1, 0.0)
            # only node 0 of gc2 is ever used -> contract with A[m,0,:] first
            r0s[m:m + 1, :] = jnp.dot(a_m[0:1, :], h1,
                                      preferred_element_type=f32)          # (1, Hg)
        # ONE (M,Hg)@(Hg,E) matmul; embedding stays resident in VMEM
        emb = (jnp.dot(r0s[...], w2_ref[...], preferred_element_type=f32)
               + b2_ref[...])                                               # (M, E)

        # graph embeddings -> zero-padded time-major sequence (single matmul)
        emb_tm = jnp.dot(sel_ref[...], emb, preferred_element_type=f32)     # (T*B, E)

        # ------------- stacked LayerNorm-LSTM (layer-major) ------------------
        for l in range(depth):
            (wih_ref, bih_ref, whh_ref, bhh_ref,
             gih_ref, eih_ref, ghh_ref, ehh_ref, gho_ref, eho_ref) = layer_refs[l]

            # input projection + ln_ih for all T*B rows, hoisted off the
            # serial recurrence (one batched matmul per layer).
            if l == 0:
                gi_all = (jnp.dot(x_ref[...], wih_ref[...],
                                  preferred_element_type=f32)
                          + jnp.dot(emb_tm, w0e_ref[...],
                                    preferred_element_type=f32)
                          + bih_ref[...])
            else:
                gi_all = (jnp.dot(hseq[...], wih_ref[...],
                                  preferred_element_type=f32)
                          + bih_ref[...])
            lni_all = _layernorm(gi_all, gih_ref[...], eih_ref[...])        # (T*B, 4H)

            whh = whh_ref[...]
            bhh = bhh_ref[...]
            ghh = ghh_ref[...]
            ehh = ehh_ref[...]
            gho = gho_ref[...]
            eho = eho_ref[...]

            h = jnp.zeros((B, H), f32)
            c = jnp.zeros((B, H), f32)
            for t in range(T):                    # static unroll (T small, static)
                lni = lni_all[t * B:(t + 1) * B, :]                         # (B, 4H)
                gh = jnp.dot(h, whh, preferred_element_type=f32) + bhh
                gates = lni + _layernorm(gh, ghh, ehh)                      # (B, 4H)
                sg = jax.nn.sigmoid(gates[:, 0:3 * H])
                i_g = sg[:, 0:H]
                f_g = sg[:, H:2 * H]
                o_g = sg[:, 2 * H:3 * H]
                g_g = jnp.tanh(gates[:, 3 * H:4 * H])
                c = f_g * c + i_g * g_g
                h = o_g * jnp.tanh(_layernorm(c, gho, eho))
                hseq[t * B:(t + 1) * B, :] = h    # LockedDropout = identity (eval)

        # ---------------- FC epilogue + output reorder ------------------------
        logits_tm = (jnp.dot(hseq[...], fcw_ref[...],
                             preferred_element_type=f32) + fcb_ref[...])    # (T*B, C)
        out_ref[...] = jnp.dot(pout_ref[...], logits_tm,
                               preferred_element_type=f32)                  # (B*T, C)

    return kernel


# ---------------------------------------------------------------------------
# Forward wrapper (jitted): only free layout plumbing + one pallas_call.
# ---------------------------------------------------------------------------
def gcn_lstm_forward(params, X, S, A, sel, pout):
    B, T, d = X.shape
    M, N, _ = A.shape
    E = params['gc2_w'].shape[1]
    Hg = params['gc1_w'].shape[1]
    H, C = params['fc_w'].shape
    depth = len(params['lstm_layers'])

    # free layout ops, fused into the same jitted executable
    X_tm = jnp.transpose(X, (1, 0, 2)).reshape(T * B, d)      # time-major rows
    l0 = params['lstm_layers'][0]
    w0 = l0[0]                                                # (d+E, 4H)
    w0x, w0e = w0[:d, :], w0[d:, :]

    flat = [S, A, params['gc1_w'], params['gc1_b'],
            params['gc2_w'], params['gc2_b'],
            sel, X_tm, w0e,
            w0x, *l0[1:]]                                      # layer 0 (10 entries)
    for lp in params['lstm_layers'][1:]:
        flat.extend(lp)                                        # layers >=1 (10 each)
    flat += [params['fc_w'], params['fc_b'], pout]

    kernel = make_fused_kernel(M, N, B, T, d, E, Hg, H, depth, C)
    out = pl.pallas_call(
        kernel,
        out_shape=jax.ShapeDtypeStruct((B * T, C), jnp.float32),
        grid=(1,),
        in_specs=[_full_spec(a.shape) for a in flat],
        out_specs=_full_spec((B * T, C)),
        scratch_shapes=[pltpu.VMEM((M, Hg), jnp.float32),
                        pltpu.VMEM((T * B, H), jnp.float32)],
        compiler_params=pltpu.CompilerParams(
            dimension_semantics=("arbitrary",)),
    )(*flat)
    return out.reshape(B, T, C)


# ---------------------------------------------------------------------------
# Host-built static tables (sequence gather + output permutation).
# ---------------------------------------------------------------------------
def build_static_tables(seqlen, B, T, M):
    seqlen = [int(k) for k in seqlen]
    assert sum(seqlen) == M
    assert all(0 <= k <= T for k in seqlen), "seqlen entries must be <= T"
    # Sel: (T*B, M) maps graph-embedding rows to the zero-padded time-major seq
    sel = np.zeros((T * B, M), np.float32)
    off = 0
    for b, k in enumerate(seqlen):
        for t in range(k):
            sel[t * B + b, off + t] = 1.0
        off += k
    # Pout: (B*T, T*B) permutation, time-major row (t*B+b) -> batch-major (b*T+t)
    pout = np.zeros((B * T, T * B), np.float32)
    for b in range(B):
        for t in range(T):
            pout[b * T + t, t * B + b] = 1.0
    return jnp.asarray(sel), jnp.asarray(pout)


# ---------------------------------------------------------------------------
# Deterministic parameter init (shapes from the module __init__)
# ---------------------------------------------------------------------------
def init_params(key, d, Hg, E, H, depth, C):
    ks = list(jax.random.split(key, 8 + 4 * depth))
    kit = iter(ks)

    def u(shape, stdv):
        return jax.random.uniform(next(kit), shape, jnp.float32, -stdv, stdv)

    p = {}
    stdv1 = 1.0 / np.sqrt(Hg)
    p['gc1_w'] = u((1, Hg), stdv1)              # GraphConvolution(1, Hg)
    p['gc1_b'] = u((1, Hg), stdv1)
    stdv2 = 1.0 / np.sqrt(E)
    p['gc2_w'] = u((Hg, E), stdv2)              # GraphConvolution(Hg, E)
    p['gc2_b'] = u((1, E), stdv2)

    d_total = d + E
    layers = []
    for l in range(depth):
        Din = d_total if l == 0 else H
        stdv = 1.0 / np.sqrt(H)
        wih = u((4 * H, Din), stdv)             # nn.LSTMCell weight_ih
        whh = u((4 * H, H), stdv)               # nn.LSTMCell weight_hh
        bih = u((1, 4 * H), stdv)
        bhh = u((1, 4 * H), stdv)
        layers.append((
            wih.T, bih, whh.T, bhh,
            jnp.ones((1, 4 * H), jnp.float32), jnp.zeros((1, 4 * H), jnp.float32),  # ln_ih
            jnp.ones((1, 4 * H), jnp.float32), jnp.zeros((1, 4 * H), jnp.float32),  # ln_hh
            jnp.ones((1, H), jnp.float32), jnp.zeros((1, H), jnp.float32),          # ln_ho
        ))
    p['lstm_layers'] = layers

    stdv_fc = 1.0 / np.sqrt(H)
    p['fc_w'] = u((H, C), stdv_fc)              # nn.Linear(H, C) (stored transposed)
    p['fc_b'] = u((1, C), stdv_fc)
    return p


# ---------------------------------------------------------------------------
# Pure-JAX reference (mirrors the PyTorch module, eval mode)
# ---------------------------------------------------------------------------
def reference_forward(params, X, S, A, seqlen):
    B, T, d = X.shape
    E = params['gc2_w'].shape[1]
    H, C = params['fc_w'].shape
    sup1 = S * params['gc1_w']                                  # (M,N,Hg)
    h1 = jax.nn.relu(jnp.einsum('mij,mjh->mih', A, sup1) + params['gc1_b'])
    h2 = jnp.einsum('mij,mje->mie', A, h1 @ params['gc2_w']) + params['gc2_b']
    emb = h2[:, 0, :]                                           # (M, E)
    rows, off = [], 0
    for k in seqlen:
        rows.append(jnp.concatenate(
            [emb[off:off + k], jnp.zeros((T - k, E), jnp.float32)], axis=0))
        off += k
    emb_seq = jnp.stack(rows, axis=0)                           # (B, T, E)
    Xc = jnp.concatenate([X, emb_seq], axis=2)                  # (B, T, d+E)

    def ln(x, g, b):
        mu = jnp.mean(x, -1, keepdims=True)
        xc = x - mu
        var = jnp.mean(xc * xc, -1, keepdims=True)
        return xc / jnp.sqrt(var + EPS) * g + b

    depth = len(params['lstm_layers'])
    h = [jnp.zeros((B, H), jnp.float32) for _ in range(depth)]
    c = [jnp.zeros((B, H), jnp.float32) for _ in range(depth)]
    outs = []
    for t in range(T):
        x = Xc[:, t, :]
        for l, (wih, bih, whh, bhh, gih, eih, ghh, ehh, gho, eho) in enumerate(
                params['lstm_layers']):
            gates = ln(x @ wih + bih, gih, eih) + ln(h[l] @ whh + bhh, ghh, ehh)
            sg = jax.nn.sigmoid(gates[:, :3 * H])
            i, f, o = sg[:, :H], sg[:, H:2 * H], sg[:, 2 * H:3 * H]
            g = jnp.tanh(gates[:, 3 * H:])
            c[l] = f * c[l] + i * g
            h[l] = o * jnp.tanh(ln(c[l], gho, eho))
            x = h[l]
        outs.append(x)
    hs = jnp.stack(outs, axis=1)                                # (B, T, H)
    return hs @ params['fc_w'] + params['fc_b']                 # (B, T, C)


if __name__ == "__main__":
    # args: d=4, hidden_size_gcn=16, embedding_size=8, hidden_size=32,
    #       depth=2, num_classes=4, T=8, batch=2, N=16 graph nodes.
    B, T, d = 2, 8, 4
    N = 16
    Hg, E, H, depth, C = 16, 8, 32, 2, 4
    seqlen = [5, 3]
    M = sum(seqlen)

    key = jax.random.PRNGKey(0)
    k1, k2, k3, kp = jax.random.split(key, 4)
    X = jax.random.normal(k1, (B, T, d), jnp.float32)
    S = jax.random.normal(k2, (M, N, 1), jnp.float32)
    A_raw = jax.random.uniform(k3, (M, N, N), jnp.float32)
    A = 0.5 * (A_raw + jnp.transpose(A_raw, (0, 2, 1)))   # symmetric adjacency

    params = init_params(kp, d, Hg, E, H, depth, C)
    sel, pout = build_static_tables(seqlen, B, T, M)

    fwd = jax.jit(gcn_lstm_forward)
    out = fwd(params, X, S, A, sel, pout)
    jax.block_until_ready(out)
    assert out.shape == (B, T, C), out.shape
    assert bool(jnp.all(jnp.isfinite(out)))

    # correctness check against a pure-JAX reference of the PyTorch module
    ref = reference_forward(params, X, S, A, seqlen)
    assert bool(jnp.allclose(out, ref, rtol=1e-4, atol=1e-4)), (
        "max abs err = %g" % float(jnp.max(jnp.abs(out - ref))))
    print("KERNEL_OK")
</pallas_src>

<mosaic_0001>
module attributes {stable_mosaic.version = 11 : i64} {
  func.func @kernel(%arg0: i32, %arg1: memref<8x16x1xf32, #tpu.memory_space<vmem>>, %arg2: memref<8x16x16xf32, #tpu.memory_space<vmem>>, %arg3: memref<1x16xf32, #tpu.memory_space<vmem>>, %arg4: memref<1x16xf32, #tpu.memory_space<vmem>>, %arg5: memref<16x8xf32, #tpu.memory_space<vmem>>, %arg6: memref<1x8xf32, #tpu.memory_space<vmem>>, %arg7: memref<16x8xf32, #tpu.memory_space<vmem>>, %arg8: memref<16x4xf32, #tpu.memory_space<vmem>>, %arg9: memref<8x128xf32, #tpu.memory_space<vmem>>, %arg10: memref<4x128xf32, #tpu.memory_space<vmem>>, %arg11: memref<1x128xf32, #tpu.memory_space<vmem>>, %arg12: memref<32x128xf32, #tpu.memory_space<vmem>>, %arg13: memref<1x128xf32, #tpu.memory_space<vmem>>, %arg14: memref<1x128xf32, #tpu.memory_space<vmem>>, %arg15: memref<1x128xf32, #tpu.memory_space<vmem>>, %arg16: memref<1x128xf32, #tpu.memory_space<vmem>>, %arg17: memref<1x128xf32, #tpu.memory_space<vmem>>, %arg18: memref<1x32xf32, #tpu.memory_space<vmem>>, %arg19: memref<1x32xf32, #tpu.memory_space<vmem>>, %arg20: memref<32x128xf32, #tpu.memory_space<vmem>>, %arg21: memref<1x128xf32, #tpu.memory_space<vmem>>, %arg22: memref<32x128xf32, #tpu.memory_space<vmem>>, %arg23: memref<1x128xf32, #tpu.memory_space<vmem>>, %arg24: memref<1x128xf32, #tpu.memory_space<vmem>>, %arg25: memref<1x128xf32, #tpu.memory_space<vmem>>, %arg26: memref<1x128xf32, #tpu.memory_space<vmem>>, %arg27: memref<1x128xf32, #tpu.memory_space<vmem>>, %arg28: memref<1x32xf32, #tpu.memory_space<vmem>>, %arg29: memref<1x32xf32, #tpu.memory_space<vmem>>, %arg30: memref<32x4xf32, #tpu.memory_space<vmem>>, %arg31: memref<1x4xf32, #tpu.memory_space<vmem>>, %arg32: memref<16x16xf32, #tpu.memory_space<vmem>>, %arg33: memref<16x4xf32, #tpu.memory_space<vmem>>, %arg34: memref<8x16xf32, #tpu.memory_space<vmem>>, %arg35: memref<16x32xf32, #tpu.memory_space<vmem>>) attributes {dimension_semantics = [#tpu.dimension_semantics<arbitrary>], iteration_bounds = array<i64: 1>, scalar_prefetch = 0 : i64, scratch_operands = 2 : i64, tpu.core_type = #tpu.core_type<tc>, window_params = [{pipeline_mode = #tpu.pipeline_mode<synchronous>, transform_indices = @transform_0, window_bounds = array<i64: 8, 16, 1>}, {pipeline_mode = #tpu.pipeline_mode<synchronous>, transform_indices = @transform_1, window_bounds = array<i64: 8, 16, 16>}, {pipeline_mode = #tpu.pipeline_mode<synchronous>, transform_indices = @transform_2, window_bounds = array<i64: 1, 16>}, {pipeline_mode = #tpu.pipeline_mode<synchronous>, transform_indices = @transform_3, window_bounds = array<i64: 1, 16>}, {pipeline_mode = #tpu.pipeline_mode<synchronous>, transform_indices = @transform_4, window_bounds = array<i64: 16, 8>}, {pipeline_mode = #tpu.pipeline_mode<synchronous>, transform_indices = @transform_5, window_bounds = array<i64: 1, 8>}, {pipeline_mode = #tpu.pipeline_mode<synchronous>, transform_indices = @transform_6, window_bounds = array<i64: 16, 8>}, {pipeline_mode = #tpu.pipeline_mode<synchronous>, transform_indices = @transform_7, window_bounds = array<i64: 16, 4>}, {pipeline_mode = #tpu.pipeline_mode<synchronous>, transform_indices = @transform_8, window_bounds = array<i64: 8, 128>}, {pipeline_mode = #tpu.pipeline_mode<synchronous>, transform_indices = @transform_9, window_bounds = array<i64: 4, 128>}, {pipeline_mode = #tpu.pipeline_mode<synchronous>, transform_indices = @transform_10, window_bounds = array<i64: 1, 128>}, {pipeline_mode = #tpu.pipeline_mode<synchronous>, transform_indices = @transform_11, window_bounds = array<i64: 32, 128>}, {pipeline_mode = #tpu.pipeline_mode<synchronous>, transform_indices = @transform_12, window_bounds = array<i64: 1, 128>}, {pipeline_mode = #tpu.pipeline_mode<synchronous>, transform_indices = @transform_13, window_bounds = array<i64: 1, 128>}, {pipeline_mode = #tpu.pipeline_mode<synchronous>, transform_indices = @transform_14, window_bounds = array<i64: 1, 128>}, {pipeline_mode = #tpu.pipeline_mode<synchronous>, transform_indices = @transform_15, window_bounds = array<i64: 1, 128>}, {pipeline_mode = #tpu.pipeline_mode<synchronous>, transform_indices = @transform_16, window_bounds = array<i64: 1, 128>}, {pipeline_mode = #tpu.pipeline_mode<synchronous>, transform_indices = @transform_17, window_bounds = array<i64: 1, 32>}, {pipeline_mode = #tpu.pipeline_mode<synchronous>, transform_indices = @transform_18, window_bounds = array<i64: 1, 32>}, {pipeline_mode = #tpu.pipeline_mode<synchronous>, transform_indices = @transform_19, window_bounds = array<i64: 32, 128>}, {pipeline_mode = #tpu.pipeline_mode<synchronous>, transform_indices = @transform_20, window_bounds = array<i64: 1, 128>}, {pipeline_mode = #tpu.pipeline_mode<synchronous>, transform_indices = @transform_21, window_bounds = array<i64: 32, 128>}, {pipeline_mode = #tpu.pipeline_mode<synchronous>, transform_indices = @transform_22, window_bounds = array<i64: 1, 128>}, {pipeline_mode = #tpu.pipeline_mode<synchronous>, transform_indices = @transform_23, window_bounds = array<i64: 1, 128>}, {pipeline_mode = #tpu.pipeline_mode<synchronous>, transform_indices = @transform_24, window_bounds = array<i64: 1, 128>}, {pipeline_mode = #tpu.pipeline_mode<synchronous>, transform_indices = @transform_25, window_bounds = array<i64: 1, 128>}, {pipeline_mode = #tpu.pipeline_mode<synchronous>, transform_indices = @transform_26, window_bounds = array<i64: 1, 128>}, {pipeline_mode = #tpu.pipeline_mode<synchronous>, transform_indices = @transform_27, window_bounds = array<i64: 1, 32>}, {pipeline_mode = #tpu.pipeline_mode<synchronous>, transform_indices = @transform_28, window_bounds = array<i64: 1, 32>}, {pipeline_mode = #tpu.pipeline_mode<synchronous>, transform_indices = @transform_29, window_bounds = array<i64: 32, 4>}, {pipeline_mode = #tpu.pipeline_mode<synchronous>, transform_indices = @transform_30, window_bounds = array<i64: 1, 4>}, {pipeline_mode = #tpu.pipeline_mode<synchronous>, transform_indices = @transform_31, window_bounds = array<i64: 16, 16>}, {pipeline_mode = #tpu.pipeline_mode<synchronous>, transform_indices = @transform_32, window_bounds = array<i64: 16, 4>}]} {
    %c0 = arith.constant 0 : index
    %c0_0 = arith.constant 0 : index
    %0 = vector.load %arg3[%c0, %c0_0] : memref<1x16xf32, #tpu.memory_space<vmem>>, vector<1x16xf32>
    %c0_1 = arith.constant 0 : index
    %c0_2 = arith.constant 0 : index
    %1 = vector.load %arg4[%c0_1, %c0_2] : memref<1x16xf32, #tpu.memory_space<vmem>>, vector<1x16xf32>
    %c0_3 = arith.constant 0 : index
    %c0_4 = arith.constant 0 : index
    %c0_5 = arith.constant 0 : index
    %2 = vector.load %arg2[%c0_3, %c0_4, %c0_5] : memref<8x16x16xf32, #tpu.memory_space<vmem>>, vector<1x16x16xf32>
    %3 = vector.shape_cast %2 : vector<1x16x16xf32> to vector<16x16xf32>
    %c0_6 = arith.constant 0 : index
    %c0_7 = arith.constant 0 : index
    %c0_8 = arith.constant 0 : index
    %4 = vector.load %arg1[%c0_6, %c0_7, %c0_8] : memref<8x16x1xf32, #tpu.memory_space<vmem>>, vector<1x16x1xf32>
    %5 = vector.shape_cast %4 : vector<1x16x1xf32> to vector<16x1xf32>
    %6 = vector.broadcast %5 : vector<16x1xf32> to vector<16x16xf32>
    %7 = vector.broadcast %0 : vector<1x16xf32> to vector<16x16xf32>
    %8 = arith.mulf %6, %7 : vector<16x16xf32>
    %cst = arith.constant dense<0.000000e+00> : vector<16x16xf32>
    %9 = tpu.matmul %3, %8, %cst {dimension_numbers = #tpu.dot_dimension_numbers<[1], [0], [0], [1], [0, 0, 1, 1], [], []>} : vector<16x16xf32>, vector<16x16xf32>, vector<16x16xf32> -> vector<16x16xf32>
    %10 = vector.broadcast %1 : vector<1x16xf32> to vector<16x16xf32>
    %11 = arith.addf %9, %10 : vector<16x16xf32>
    %cst_9 = arith.constant 0.000000e+00 : f32
    %12 = vector.broadcast %cst_9 : f32 to vector<16x16xf32>
    %13 = arith.maximumf %11, %12 : vector<16x16xf32>
    %14 = vector.extract_strided_slice %3 {offsets = [0, 0], sizes = [1, 16], strides = [1, 1]} : vector<16x16xf32> to vector<1x16xf32>
    %cst_10 = arith.constant dense<0.000000e+00> : vector<1x16xf32>
    %15 = tpu.matmul %14, %13, %cst_10 {dimension_numbers = #tpu.dot_dimension_numbers<[1], [0], [0], [1], [0, 0, 1, 1], [], []>} : vector<1x16xf32>, vector<16x16xf32>, vector<1x16xf32> -> vector<1x16xf32>
    %c0_11 = arith.constant 0 : index
    %c0_12 = arith.constant 0 : index
    %16 = vector.load %arg34[%c0_11, %c0_12] : memref<8x16xf32, #tpu.memory_space<vmem>>, vector<1x16xf32>
    tpu.vector_store %arg34[%c0_11, %c0_12], %15 {strides = array<i32>} : memref<8x16xf32, #tpu.memory_space<vmem>>, vector<1x16xf32>,
    %c1 = arith.constant 1 : index
    %c0_13 = arith.constant 0 : index
    %c0_14 = arith.constant 0 : index
    %17 = vector.load %arg2[%c1, %c0_13, %c0_14] : memref<8x16x16xf32, #tpu.memory_space<vmem>>, vector<1x16x16xf32>
    %18 = vector.shape_cast %17 : vector<1x16x16xf32> to vector<16x16xf32>
    %c1_15 = arith.constant 1 : index
    %c0_16 = arith.constant 0 : index
    %c0_17 = arith.constant 0 : index
    %19 = vector.load %arg1[%c1_15, %c0_16, %c0_17] : memref<8x16x1xf32, #tpu.memory_space<vmem>>, vector<1x16x1xf32>
    %20 = vector.shape_cast %19 : vector<1x16x1xf32> to vector<16x1xf32>
    %21 = vector.broadcast %20 : vector<16x1xf32> to vector<16x16xf32>
    %22 = vector.broadcast %0 : vector<1x16xf32> to vector<16x16xf32>
    %23 = arith.mulf %21, %22 : vector<16x16xf32>
    %cst_18 = arith.constant dense<0.000000e+00> : vector<16x16xf32>
    %24 = tpu.matmul %18, %23, %cst_18 {dimension_numbers = #tpu.dot_dimension_numbers<[1], [0], [0], [1], [0, 0, 1, 1], [], []>} : vector<16x16xf32>, vector<16x16xf32>, vector<16x16xf32> -> vector<16x16xf32>
    %25 = vector.broadcast %1 : vector<1x16xf32> to vector<16x16xf32>
    %26 = arith.addf %24, %25 : vector<16x16xf32>
    %cst_19 = arith.constant 0.000000e+00 : f32
    %27 = vector.broadcast %cst_19 : f32 to vector<16x16xf32>
    %28 = arith.maximumf %26, %27 : vector<16x16xf32>
    %29 = vector.extract_strided_slice %18 {offsets = [0, 0], sizes = [1, 16], strides = [1, 1]} : vector<16x16xf32> to vector<1x16xf32>
    %cst_20 = arith.constant dense<0.000000e+00> : vector<1x16xf32>
    %30 = tpu.matmul %29, %28, %cst_20 {dimension_numbers = #tpu.dot_dimension_numbers<[1], [0], [0], [1], [0, 0, 1, 1], [], []>} : vector<1x16xf32>, vector<16x16xf32>, vector<1x16xf32> -> vector<1x16xf32>
    %c1_21 = arith.constant 1 : index
    %c0_22 = arith.constant 0 : index
    %31 = vector.load %arg34[%c1_21, %c0_22] : memref<8x16xf32, #tpu.memory_space<vmem>>, vector<1x16xf32>
    tpu.vector_store %arg34[%c1_21, %c0_22], %30 {strides = array<i32>} : memref<8x16xf32, #tpu.memory_space<vmem>>, vector<1x16xf32>,
    %c2 = arith.constant 2 : index
    %c0_23 = arith.constant 0 : index
    %c0_24 = arith.constant 0 : index
    %32 = vector.load %arg2[%c2, %c0_23, %c0_24] : memref<8x16x16xf32, #tpu.memory_space<vmem>>, vector<1x16x16xf32>
    %33 = vector.shape_cast %32 : vector<1x16x16xf32> to vector<16x16xf32>
    %c2_25 = arith.constant 2 : index
    %c0_26 = arith.constant 0 : index
    %c0_27 = arith.constant 0 : index
    %34 = vector.load %arg1[%c2_25, %c0_26, %c0_27] : memref<8x16x1xf32, #tpu.memory_space<vmem>>, vector<1x16x1xf32>
    %35 = vector.shape_cast %34 : vector<1x16x1xf32> to vector<16x1xf32>
    %36 = vector.broadcast %35 : vector<16x1xf32> to vector<16x16xf32>
    %37 = vector.broadcast %0 : vector<1x16xf32> to vector<16x16xf32>
    %38 = arith.mulf %36, %37 : vector<16x16xf32>
    %cst_28 = arith.constant dense<0.000000e+00> : vector<16x16xf32>
    %39 = tpu.matmul %33, %38, %cst_28 {dimension_numbers = #tpu.dot_dimension_numbers<[1], [0], [0], [1], [0, 0, 1, 1], [], []>} : vector<16x16xf32>, vector<16x16xf32>, vector<16x16xf32> -> vector<16x16xf32>
    %40 = vector.broadcast %1 : vector<1x16xf32> to vector<16x16xf32>
    %41 = arith.addf %39, %40 : vector<16x16xf32>
    %cst_29 = arith.constant 0.000000e+00 : f32
    %42 = vector.broadcast %cst_29 : f32 to vector<16x16xf32>
    %43 = arith.maximumf %41, %42 : vector<16x16xf32>
    %44 = vector.extract_strided_slice %33 {offsets = [0, 0], sizes = [1, 16], strides = [1, 1]} : vector<16x16xf32> to vector<1x16xf32>
    %cst_30 = arith.constant dense<0.000000e+00> : vector<1x16xf32>
    %45 = tpu.matmul %44, %43, %cst_30 {dimension_numbers = #tpu.dot_dimension_numbers<[1], [0], [0], [1], [0, 0, 1, 1], [], []>} : vector<1x16xf32>, vector<16x16xf32>, vector<1x16xf32> -> vector<1x16xf32>
    %c2_31 = arith.constant 2 : index
    %c0_32 = arith.constant 0 : index
    %46 = vector.load %arg34[%c2_31, %c0_32] : memref<8x16xf32, #tpu.memory_space<vmem>>, vector<1x16xf32>
    tpu.vector_store %arg34[%c2_31, %c0_32], %45 {strides = array<i32>} : memref<8x16xf32, #tpu.memory_space<vmem>>, vector<1x16xf32>,
    %c3 = arith.constant 3 : index
    %c0_33 = arith.constant 0 : index
    %c0_34 = arith.constant 0 : index
    %47 = vector.load %arg2[%c3, %c0_33, %c0_34] : memref<8x16x16xf32, #tpu.memory_space<vmem>>, vector<1x16x16xf32>
    %48 = vector.shape_cast %47 : vector<1x16x16xf32> to vector<16x16xf32>
    %c3_35 = arith.constant 3 : index
    %c0_36 = arith.constant 0 : index
    %c0_37 = arith.constant 0 : index
    %49 = vector.load %arg1[%c3_35, %c0_36, %c0_37] : memref<8x16x1xf32, #tpu.memory_space<vmem>>, vector<1x16x1xf32>
    %50 = vector.shape_cast %49 : vector<1x16x1xf32> to vector<16x1xf32>
    %51 = vector.broadcast %50 : vector<16x1xf32> to vector<16x16xf32>
    %52 = vector.broadcast %0 : vector<1x16xf32> to vector<16x16xf32>
    %53 = arith.mulf %51, %52 : vector<16x16xf32>
    %cst_38 = arith.constant dense<0.000000e+00> : vector<16x16xf32>
    %54 = tpu.matmul %48, %53, %cst_38 {dimension_numbers = #tpu.dot_dimension_numbers<[1], [0], [0], [1], [0, 0, 1, 1], [], []>} : vector<16x16xf32>, vector<16x16xf32>, vector<16x16xf32> -> vector<16x16xf32>
    %55 = vector.broadcast %1 : vector<1x16xf32> to vector<16x16xf32>
    %56 = arith.addf %54, %55 : vector<16x16xf32>
    %cst_39 = arith.constant 0.000000e+00 : f32
    %57 = vector.broadcast %cst_39 : f32 to vector<16x16xf32>
    %58 = arith.maximumf %56, %57 : vector<16x16xf32>
    %59 = vector.extract_strided_slice %48 {offsets = [0, 0], sizes = [1, 16], strides = [1, 1]} : vector<16x16xf32> to vector<1x16xf32>
    %cst_40 = arith.constant dense<0.000000e+00> : vector<1x16xf32>
    %60 = tpu.matmul %59, %58, %cst_40 {dimension_numbers = #tpu.dot_dimension_numbers<[1], [0], [0], [1], [0, 0, 1, 1], [], []>} : vector<1x16xf32>, vector<16x16xf32>, vector<1x16xf32> -> vector<1x16xf32>
    %c3_41 = arith.constant 3 : index
    %c0_42 = arith.constant 0 : index
    %61 = vector.load %arg34[%c3_41, %c0_42] : memref<8x16xf32, #tpu.memory_space<vmem>>, vector<1x16xf32>
    tpu.vector_store %arg34[%c3_41, %c0_42], %60 {strides = array<i32>} : memref<8x16xf32, #tpu.memory_space<vmem>>, vector<1x16xf32>,
    %c4 = arith.constant 4 : index
    %c0_43 = arith.constant 0 : index
    %c0_44 = arith.constant 0 : index
    %62 = vector.load %arg2[%c4, %c0_43, %c0_44] : memref<8x16x16xf32, #tpu.memory_space<vmem>>, vector<1x16x16xf32>
    %63 = vector.shape_cast %62 : vector<1x16x16xf32> to vector<16x16xf32>
    %c4_45 = arith.constant 4 : index
    %c0_46 = arith.constant 0 : index
    %c0_47 = arith.constant 0 : index
    %64 = vector.load %arg1[%c4_45, %c0_46, %c0_47] : memref<8x16x1xf32, #tpu.memory_space<vmem>>, vector<1x16x1xf32>
    %65 = vector.shape_cast %64 : vector<1x16x1xf32> to vector<16x1xf32>
    %66 = vector.broadcast %65 : vector<16x1xf32> to vector<16x16xf32>
    %67 = vector.broadcast %0 : vector<1x16xf32> to vector<16x16xf32>
    %68 = arith.mulf %66, %67 : vector<16x16xf32>
    %cst_48 = arith.constant dense<0.000000e+00> : vector<16x16xf32>
    %69 = tpu.matmul %63, %68, %cst_48 {dimension_numbers = #tpu.dot_dimension_numbers<[1], [0], [0], [1], [0, 0, 1, 1], [], []>} : vector<16x16xf32>, vector<16x16xf32>, vector<16x16xf32> -> vector<16x16xf32>
    %70 = vector.broadcast %1 : vector<1x16xf32> to vector<16x16xf32>
    %71 = arith.addf %69, %70 : vector<16x16xf32>
    %cst_49 = arith.constant 0.000000e+00 : f32
    %72 = vector.broadcast %cst_49 : f32 to vector<16x16xf32>
    %73 = arith.maximumf %71, %72 : vector<16x16xf32>
    %74 = vector.extract_strided_slice %63 {offsets = [0, 0], sizes = [1, 16], strides = [1, 1]} : vector<16x16xf32> to vector<1x16xf32>
    %cst_50 = arith.constant dense<0.000000e+00> : vector<1x16xf32>
    %75 = tpu.matmul %74, %73, %cst_50 {dimension_numbers = #tpu.dot_dimension_numbers<[1], [0], [0], [1], [0, 0, 1, 1], [], []>} : vector<1x16xf32>, vector<16x16xf32>, vector<1x16xf32> -> vector<1x16xf32>
    %c4_51 = arith.constant 4 : index
    %c0_52 = arith.constant 0 : index
    %76 = vector.load %arg34[%c4_51, %c0_52] : memref<8x16xf32, #tpu.memory_space<vmem>>, vector<1x16xf32>
    tpu.vector_store %arg34[%c4_51, %c0_52], %75 {strides = array<i32>} : memref<8x16xf32, #tpu.memory_space<vmem>>, vector<1x16xf32>,
    %c5 = arith.constant 5 : index
    %c0_53 = arith.constant 0 : index
    %c0_54 = arith.constant 0 : index
    %77 = vector.load %arg2[%c5, %c0_53, %c0_54] : memref<8x16x16xf32, #tpu.memory_space<vmem>>, vector<1x16x16xf32>
    %78 = vector.shape_cast %77 : vector<1x16x16xf32> to vector<16x16xf32>
    %c5_55 = arith.constant 5 : index
    %c0_56 = arith.constant 0 : index
    %c0_57 = arith.constant 0 : index
    %79 = vector.load %arg1[%c5_55, %c0_56, %c0_57] : memref<8x16x1xf32, #tpu.memory_space<vmem>>, vector<1x16x1xf32>
    %80 = vector.shape_cast %79 : vector<1x16x1xf32> to vector<16x1xf32>
    %81 = vector.broadcast %80 : vector<16x1xf32> to vector<16x16xf32>
    %82 = vector.broadcast %0 : vector<1x16xf32> to vector<16x16xf32>
    %83 = arith.mulf %81, %82 : vector<16x16xf32>
    %cst_58 = arith.constant dense<0.000000e+00> : vector<16x16xf32>
    %84 = tpu.matmul %78, %83, %cst_58 {dimension_numbers = #tpu.dot_dimension_numbers<[1], [0], [0], [1], [0, 0, 1, 1], [], []>} : vector<16x16xf32>, vector<16x16xf32>, vector<16x16xf32> -> vector<16x16xf32>
    %85 = vector.broadcast %1 : vector<1x16xf32> to vector<16x16xf32>
    %86 = arith.addf %84, %85 : vector<16x16xf32>
    %cst_59 = arith.constant 0.000000e+00 : f32
    %87 = vector.broadcast %cst_59 : f32 to vector<16x16xf32>
    %88 = arith.maximumf %86, %87 : vector<16x16xf32>
    %89 = vector.extract_strided_slice %78 {offsets = [0, 0], sizes = [1, 16], strides = [1, 1]} : vector<16x16xf32> to vector<1x16xf32>
    %cst_60 = arith.constant dense<0.000000e+00> : vector<1x16xf32>
    %90 = tpu.matmul %89, %88, %cst_60 {dimension_numbers = #tpu.dot_dimension_numbers<[1], [0], [0], [1], [0, 0, 1, 1], [], []>} : vector<1x16xf32>, vector<16x16xf32>, vector<1x16xf32> -> vector<1x16xf32>
    %c5_61 = arith.constant 5 : index
    %c0_62 = arith.constant 0 : index
    %91 = vector.load %arg34[%c5_61, %c0_62] : memref<8x16xf32, #tpu.memory_space<vmem>>, vector<1x16xf32>
    tpu.vector_store %arg34[%c5_61, %c0_62], %90 {strides = array<i32>} : memref<8x16xf32, #tpu.memory_space<vmem>>, vector<1x16xf32>,
    %c6 = arith.constant 6 : index
    %c0_63 = arith.constant 0 : index
    %c0_64 = arith.constant 0 : index
    %92 = vector.load %arg2[%c6, %c0_63, %c0_64] : memref<8x16x16xf32, #tpu.memory_space<vmem>>, vector<1x16x16xf32>
    %93 = vector.shape_cast %92 : vector<1x16x16xf32> to vector<16x16xf32>
    %c6_65 = arith.constant 6 : index
    %c0_66 = arith.constant 0 : index
    %c0_67 = arith.constant 0 : index
    %94 = vector.load %arg1[%c6_65, %c0_66, %c0_67] : memref<8x16x1xf32, #tpu.memory_space<vmem>>, vector<1x16x1xf32>
    %95 = vector.shape_cast %94 : vector<1x16x1xf32> to vector<16x1xf32>
    %96 = vector.broadcast %95 : vector<16x1xf32> to vector<16x16xf32>
    %97 = vector.broadcast %0 : vector<1x16xf32> to vector<16x16xf32>
    %98 = arith.mulf %96, %97 : vector<16x16xf32>
    %cst_68 = arith.constant dense<0.000000e+00> : vector<16x16xf32>
    %99 = tpu.matmul %93, %98, %cst_68 {dimension_numbers = #tpu.dot_dimension_numbers<[1], [0], [0], [1], [0, 0, 1, 1], [], []>} : vector<16x16xf32>, vector<16x16xf32>, vector<16x16xf32> -> vector<16x16xf32>
    %100 = vector.broadcast %1 : vector<1x16xf32> to vector<16x16xf32>
    %101 = arith.addf %99, %100 : vector<16x16xf32>
    %cst_69 = arith.constant 0.000000e+00 : f32
    %102 = vector.broadcast %cst_69 : f32 to vector<16x16xf32>
    %103 = arith.maximumf %101, %102 : vector<16x16xf32>
    %104 = vector.extract_strided_slice %93 {offsets = [0, 0], sizes = [1, 16], strides = [1, 1]} : vector<16x16xf32> to vector<1x16xf32>
    %cst_70 = arith.constant dense<0.000000e+00> : vector<1x16xf32>
    %105 = tpu.matmul %104, %103, %cst_70 {dimension_numbers = #tpu.dot_dimension_numbers<[1], [0], [0], [1], [0, 0, 1, 1], [], []>} : vector<1x16xf32>, vector<16x16xf32>, vector<1x16xf32> -> vector<1x16xf32>
    %c6_71 = arith.constant 6 : index
    %c0_72 = arith.constant 0 : index
    %106 = vector.load %arg34[%c6_71, %c0_72] : memref<8x16xf32, #tpu.memory_space<vmem>>, vector<1x16xf32>
    tpu.vector_store %arg34[%c6_71, %c0_72], %105 {strides = array<i32>} : memref<8x16xf32, #tpu.memory_space<vmem>>, vector<1x16xf32>,
    %c7 = arith.constant 7 : index
    %c0_73 = arith.constant 0 : index
    %c0_74 = arith.constant 0 : index
    %107 = vector.load %arg2[%c7, %c0_73, %c0_74] : memref<8x16x16xf32, #tpu.memory_space<vmem>>, vector<1x16x16xf32>
    %108 = vector.shape_cast %107 : vector<1x16x16xf32> to vector<16x16xf32>
    %c7_75 = arith.constant 7 : index
    %c0_76 = arith.constant 0 : index
    %c0_77 = arith.constant 0 : index
    %109 = vector.load %arg1[%c7_75, %c0_76, %c0_77] : memref<8x16x1xf32, #tpu.memory_space<vmem>>, vector<1x16x1xf32>
    %110 = vector.shape_cast %109 : vector<1x16x1xf32> to vector<16x1xf32>
    %111 = vector.broadcast %110 : vector<16x1xf32> to vector<16x16xf32>
    %112 = vector.broadcast %0 : vector<1x16xf32> to vector<16x16xf32>
    %113 = arith.mulf %111, %112 : vector<16x16xf32>
    %cst_78 = arith.constant dense<0.000000e+00> : vector<16x16xf32>
    %114 = tpu.matmul %108, %113, %cst_78 {dimension_numbers = #tpu.dot_dimension_numbers<[1], [0], [0], [1], [0, 0, 1, 1], [], []>} : vector<16x16xf32>, vector<16x16xf32>, vector<16x16xf32> -> vector<16x16xf32>
    %115 = vector.broadcast %1 : vector<1x16xf32> to vector<16x16xf32>
    %116 = arith.addf %114, %115 : vector<16x16xf32>
    %cst_79 = arith.constant 0.000000e+00 : f32
    %117 = vector.broadcast %cst_79 : f32 to vector<16x16xf32>
    %118 = arith.maximumf %116, %117 : vector<16x16xf32>
    %119 = vector.extract_strided_slice %108 {offsets = [0, 0], sizes = [1, 16], strides = [1, 1]} : vector<16x16xf32> to vector<1x16xf32>
    %cst_80 = arith.constant dense<0.000000e+00> : vector<1x16xf32>
    %120 = tpu.matmul %119, %118, %cst_80 {dimension_numbers = #tpu.dot_dimension_numbers<[1], [0], [0], [1], [0, 0, 1, 1], [], []>} : vector<1x16xf32>, vector<16x16xf32>, vector<1x16xf32> -> vector<1x16xf32>
    %c7_81 = arith.constant 7 : index
    %c0_82 = arith.constant 0 : index
    %121 = vector.load %arg34[%c7_81, %c0_82] : memref<8x16xf32, #tpu.memory_space<vmem>>, vector<1x16xf32>
    tpu.vector_store %arg34[%c7_81, %c0_82], %120 {strides = array<i32>} : memref<8x16xf32, #tpu.memory_space<vmem>>, vector<1x16xf32>,
    %c0_83 = arith.constant 0 : index
    %c0_84 = arith.constant 0 : index
    %122 = vector.load %arg34[%c0_83, %c0_84] : memref<8x16xf32, #tpu.memory_space<vmem>>, vector<8x16xf32>
    %c0_85 = arith.constant 0 : index
    %c0_86 = arith.constant 0 : index
    %123 = vector.load %arg5[%c0_85, %c0_86] : memref<16x8xf32, #tpu.memory_space<vmem>>, vector<16x8xf32>
    %cst_87 = arith.constant dense<0.000000e+00> : vector<8x8xf32>
    %124 = tpu.matmul %122, %123, %cst_87 {dimension_numbers = #tpu.dot_dimension_numbers<[1], [0], [0], [1], [0, 0, 1, 1], [], []>} : vector<8x16xf32>, vector<16x8xf32>, vector<8x8xf32> -> vector<8x8xf32>
    %c0_88 = arith.constant 0 : index
    %c0_89 = arith.constant 0 : index
    %125 = vector.load %arg6[%c0_88, %c0_89] : memref<1x8xf32, #tpu.memory_space<vmem>>, vector<1x8xf32>
    %126 = vector.broadcast %125 : vector<1x8xf32> to vector<8x8xf32>
    %127 = arith.addf %124, %126 : vector<8x8xf32>
    %c0_90 = arith.constant 0 : index
    %c0_91 = arith.constant 0 : index
    %128 = vector.load %arg7[%c0_90, %c0_91] : memref<16x8xf32, #tpu.memory_space<vmem>>, vector<16x8xf32>
    %cst_92 = arith.constant dense<0.000000e+00> : vector<16x8xf32>
    %129 = tpu.matmul %128, %127, %cst_92 {dimension_numbers = #tpu.dot_dimension_numbers<[1], [0], [0], [1], [0, 0, 1, 1], [], []>} : vector<16x8xf32>, vector<8x8xf32>, vector<16x8xf32> -> vector<16x8xf32>
    %c0_93 = arith.constant 0 : index
    %c0_94 = arith.constant 0 : index
    %130 = vector.load %arg8[%c0_93, %c0_94] : memref<16x4xf32, #tpu.memory_space<vmem>>, vector<16x4xf32>
    %c0_95 = arith.constant 0 : index
    %c0_96 = arith.constant 0 : index
    %131 = vector.load %arg10[%c0_95, %c0_96] : memref<4x128xf32, #tpu.memory_space<vmem>>, vector<4x128xf32>
    %cst_97 = arith.constant dense<0.000000e+00> : vector<16x128xf32>
    %132 = tpu.matmul %130, %131, %cst_97 {dimension_numbers = #tpu.dot_dimension_numbers<[1], [0], [0], [1], [0, 0, 1, 1], [], []>} : vector<16x4xf32>, vector<4x128xf32>, vector<16x128xf32> -> vector<16x128xf32>
    %c0_98 = arith.constant 0 : index
    %c0_99 = arith.constant 0 : index
    %133 = vector.load %arg9[%c0_98, %c0_99] : memref<8x128xf32, #tpu.memory_space<vmem>>, vector<8x128xf32>
    %cst_100 = arith.constant dense<0.000000e+00> : vector<16x128xf32>
    %134 = tpu.matmul %129, %133, %cst_100 {dimension_numbers = #tpu.dot_dimension_numbers<[1], [0], [0], [1], [0, 0, 1, 1], [], []>} : vector<16x8xf32>, vector<8x128xf32>, vector<16x128xf32> -> vector<16x128xf32>
    %135 = arith.addf %132, %134 : vector<16x128xf32>
    %c0_101 = arith.constant 0 : index
    %c0_102 = arith.constant 0 : index
    %136 = vector.load %arg11[%c0_101, %c0_102] : memref<1x128xf32, #tpu.memory_space<vmem>>, vector<1x128xf32>
    %137 = vector.broadcast %136 : vector<1x128xf32> to vector<16x128xf32>
    %138 = arith.addf %135, %137 : vector<16x128xf32>
    %c0_103 = arith.constant 0 : index
    %c0_104 = arith.constant 0 : index
    %139 = vector.load %arg14[%c0_103, %c0_104] : memref<1x128xf32, #tpu.memory_space<vmem>>, vector<1x128xf32>
    %c0_105 = arith.constant 0 : index
    %c0_106 = arith.constant 0 : index
    %140 = vector.load %arg15[%c0_105, %c0_106] : memref<1x128xf32, #tpu.memory_space<vmem>>, vector<1x128xf32>
    %cst_107 = arith.constant dense<0.000000e+00> : vector<16xf32>
    %141 = vector.multi_reduction <add>, %138, %cst_107 [1] : vector<16x128xf32> to vector<16xf32>
    %142 = vector.shape_cast %141 : vector<16xf32> to vector<16x1xf32>
    %cst_108 = arith.constant 1.280000e+02 : f32
    %143 = vector.broadcast %cst_108 : f32 to vector<16x1xf32>
    %144 = arith.divf %142, %143 : vector<16x1xf32>
    %145 = vector.broadcast %144 : vector<16x1xf32> to vector<16x128xf32>
    %146 = arith.subf %138, %145 : vector<16x128xf32>
    %147 = arith.mulf %146, %146 : vector<16x128xf32>
    %cst_109 = arith.constant dense<0.000000e+00> : vector<16xf32>
    %148 = vector.multi_reduction <add>, %147, %cst_109 [1] : vector<16x128xf32> to vector<16xf32>
    %149 = vector.shape_cast %148 : vector<16xf32> to vector<16x1xf32>
    %cst_110 = arith.constant 1.280000e+02 : f32
    %150 = vector.broadcast %cst_110 : f32 to vector<16x1xf32>
    %151 = arith.divf %149, %150 : vector<16x1xf32>
    %cst_111 = arith.constant 9.99999974E-6 : f32
    %152 = vector.broadcast %cst_111 : f32 to vector<16x1xf32>
    %153 = arith.addf %151, %152 : vector<16x1xf32>
    %154 = math.rsqrt %153 : vector<16x1xf32>
    %155 = vector.broadcast %154 : vector<16x1xf32> to vector<16x128xf32>
    %156 = arith.mulf %146, %155 : vector<16x128xf32>
    %157 = vector.broadcast %139 : vector<1x128xf32> to vector<16x128xf32>
    %158 = arith.mulf %156, %157 : vector<16x128xf32>
    %159 = vector.broadcast %140 : vector<1x128xf32> to vector<16x128xf32>
    %160 = arith.addf %158, %159 : vector<16x128xf32>
    %c0_112 = arith.constant 0 : index
    %c0_113 = arith.constant 0 : index
    %161 = vector.load %arg12[%c0_112, %c0_113] : memref<32x128xf32, #tpu.memory_space<vmem>>, vector<32x128xf32>
    %c0_114 = arith.constant 0 : index
    %c0_115 = arith.constant 0 : index
    %162 = vector.load %arg13[%c0_114, %c0_115] : memref<1x128xf32, #tpu.memory_space<vmem>>, vector<1x128xf32>
    %c0_116 = arith.constant 0 : index
    %c0_117 = arith.constant 0 : index
    %163 = vector.load %arg16[%c0_116, %c0_117] : memref<1x128xf32, #tpu.memory_space<vmem>>, vector<1x128xf32>
    %c0_118 = arith.constant 0 : index
    %c0_119 = arith.constant 0 : index
    %164 = vector.load %arg17[%c0_118, %c0_119] : memref<1x128xf32, #tpu.memory_space<vmem>>, vector<1x128xf32>
    %c0_120 = arith.constant 0 : index
    %c0_121 = arith.constant 0 : index
    %165 = vector.load %arg18[%c0_120, %c0_121] : memref<1x32xf32, #tpu.memory_space<vmem>>, vector<1x32xf32>
    %c0_122 = arith.constant 0 : index
    %c0_123 = arith.constant 0 : index
    %166 = vector.load %arg19[%c0_122, %c0_123] : memref<1x32xf32, #tpu.memory_space<vmem>>, vector<1x32xf32>
    %cst_124 = arith.constant 0.000000e+00 : f32
    %167 = vector.broadcast %cst_124 : f32 to vector<2x32xf32>
    %cst_125 = arith.constant 0.000000e+00 : f32
    %168 = vector.broadcast %cst_125 : f32 to vector<2x32xf32>
    %169 = vector.extract_strided_slice %160 {offsets = [0, 0], sizes = [2, 128], strides = [1, 1]} : vector<16x128xf32> to vector<2x128xf32>
    %cst_126 = arith.constant dense<0.000000e+00> : vector<2x128xf32>
    %170 = tpu.matmul %167, %161, %cst_126 {dimension_numbers = #tpu.dot_dimension_numbers<[1], [0], [0], [1], [0, 0, 1, 1], [], []>} : vector<2x32xf32>, vector<32x128xf32>, vector<2x128xf32> -> vector<2x128xf32>
    %171 = vector.broadcast %162 : vector<1x128xf32> to vector<2x128xf32>
    %172 = arith.addf %170, %171 : vector<2x128xf32>
    %cst_127 = arith.constant dense<0.000000e+00> : vector<2xf32>
    %173 = vector.multi_reduction <add>, %172, %cst_127 [1] : vector<2x128xf32> to vector<2xf32>
    %174 = vector.shape_cast %173 : vector<2xf32> to vector<2x1xf32>
    %cst_128 = arith.constant 1.280000e+02 : f32
    %175 = vector.broadcast %cst_128 : f32 to vector<2x1xf32>
    %176 = arith.divf %174, %175 : vector<2x1xf32>
    %177 = vector.broadcast %176 : vector<2x1xf32> to vector<2x128xf32>
    %178 = arith.subf %172, %177 : vector<2x128xf32>
    %179 = arith.mulf %178, %178 : vector<2x128xf32>
    %cst_129 = arith.constant dense<0.000000e+00> : vector<2xf32>
    %180 = vector.multi_reduction <add>, %179, %cst_129 [1] : vector<2x128xf32> to vector<2xf32>
    %181 = vector.shape_cast %180 : vector<2xf32> to vector<2x1xf32>
    %cst_130 = arith.constant 1.280000e+02 : f32
    %182 = vector.broadcast %cst_130 : f32 to vector<2x1xf32>
    %183 = arith.divf %181, %182 : vector<2x1xf32>
    %cst_131 = arith.constant 9.99999974E-6 : f32
    %184 = vector.broadcast %cst_131 : f32 to vector<2x1xf32>
    %185 = arith.addf %183, %184 : vector<2x1xf32>
    %186 = math.rsqrt %185 : vector<2x1xf32>
    %187 = vector.broadcast %186 : vector<2x1xf32> to vector<2x128xf32>
    %188 = arith.mulf %178, %187 : vector<2x128xf32>
    %189 = vector.broadcast %163 : vector<1x128xf32> to vector<2x128xf32>
    %190 = arith.mulf %188, %189 : vector<2x128xf32>
    %191 = vector.broadcast %164 : vector<1x128xf32> to vector<2x128xf32>
    %192 = arith.addf %190, %191 : vector<2x128xf32>
    %193 = arith.addf %169, %192 : vector<2x128xf32>
    %194 = vector.extract_strided_slice %193 {offsets = [0, 0], sizes = [2, 96], strides = [1, 1]} : vector<2x128xf32> to vector<2x96xf32>
    %195 = arith.negf %194 : vector<2x96xf32>
    %196 = math.exp %195 : vector<2x96xf32>
    %cst_132 = arith.constant 1.000000e+00 : f32
    %197 = vector.broadcast %cst_132 : f32 to vector<2x96xf32>
    %198 = arith.addf %197, %196 : vector<2x96xf32>
    %199 = arith.divf %197, %198 : vector<2x96xf32>
    %200 = vector.extract_strided_slice %199 {offsets = [0, 0], sizes = [2, 32], strides = [1, 1]} : vector<2x96xf32> to vector<2x32xf32>
    %201 = vector.extract_strided_slice %199 {offsets = [0, 32], sizes = [2, 32], strides = [1, 1]} : vector<2x96xf32> to vector<2x32xf32>
    %202 = vector.extract_strided_slice %199 {offsets = [0, 64], sizes = [2, 32], strides = [1, 1]} : vector<2x96xf32> to vector<2x32xf32>
    %203 = vector.extract_strided_slice %193 {offsets = [0, 96], sizes = [2, 32], strides = [1, 1]} : vector<2x128xf32> to vector<2x32xf32>
    %204 = math.tanh %203 : vector<2x32xf32>
    %205 = arith.mulf %201, %168 : vector<2x32xf32>
    %206 = arith.mulf %200, %204 : vector<2x32xf32>
    %207 = arith.addf %205, %206 : vector<2x32xf32>
    %cst_133 = arith.constant dense<0.000000e+00> : vector<2xf32>
    %208 = vector.multi_reduction <add>, %207, %cst_133 [1] : vector<2x32xf32> to vector<2xf32>
    %209 = vector.shape_cast %208 : vector<2xf32> to vector<2x1xf32>
    %cst_134 = arith.constant 3.200000e+01 : f32
    %210 = vector.broadcast %cst_134 : f32 to vector<2x1xf32>
    %211 = arith.divf %209, %210 : vector<2x1xf32>
    %212 = vector.broadcast %211 : vector<2x1xf32> to vector<2x32xf32>
    %213 = arith.subf %207, %212 : vector<2x32xf32>
    %214 = arith.mulf %213, %213 : vector<2x32xf32>
    %cst_135 = arith.constant dense<0.000000e+00> : vector<2xf32>
    %215 = vector.multi_reduction <add>, %214, %cst_135 [1] : vector<2x32xf32> to vector<2xf32>
    %216 = vector.shape_cast %215 : vector<2xf32> to vector<2x1xf32>
    %cst_136 = arith.constant 3.200000e+01 : f32
    %217 = vector.broadcast %cst_136 : f32 to vector<2x1xf32>
    %218 = arith.divf %216, %217 : vector<2x1xf32>
    %cst_137 = arith.constant 9.99999974E-6 : f32
    %219 = vector.broadcast %cst_137 : f32 to vector<2x1xf32>
    %220 = arith.addf %218, %219 : vector<2x1xf32>
    %221 = math.rsqrt %220 : vector<2x1xf32>
    %222 = vector.broadcast %221 : vector<2x1xf32> to vector<2x32xf32>
    %223 = arith.mulf %213, %222 : vector<2x32xf32>
    %224 = vector.broadcast %165 : vector<1x32xf32> to vector<2x32xf32>
    %225 = arith.mulf %223, %224 : vector<2x32xf32>
    %226 = vector.broadcast %166 : vector<1x32xf32> to vector<2x32xf32>
    %227 = arith.addf %225, %226 : vector<2x32xf32>
    %228 = math.tanh %227 : vector<2x32xf32>
    %229 = arith.mulf %202, %228 : vector<2x32xf32>
    %c0_138 = arith.constant 0 : index
    %c0_139 = arith.constant 0 : index
    %230 = vector.load %arg35[%c0_138, %c0_139] : memref<16x32xf32, #tpu.memory_space<vmem>>, vector<2x32xf32>
    tpu.vector_store %arg35[%c0_138, %c0_139], %229 {strides = array<i32>} : memref<16x32xf32, #tpu.memory_space<vmem>>, vector<2x32xf32>,
    %231 = vector.extract_strided_slice %160 {offsets = [2, 0], sizes = [2, 128], strides = [1, 1]} : vector<16x128xf32> to vector<2x128xf32>
    %cst_140 = arith.constant dense<0.000000e+00> : vector<2x128xf32>
    %232 = tpu.matmul %229, %161, %cst_140 {dimension_numbers = #tpu.dot_dimension_numbers<[1], [0], [0], [1], [0, 0, 1, 1], [], []>} : vector<2x32xf32>, vector<32x128xf32>, vector<2x128xf32> -> vector<2x128xf32>
    %233 = vector.broadcast %162 : vector<1x128xf32> to vector<2x128xf32>
    %234 = arith.addf %232, %233 : vector<2x128xf32>
    %cst_141 = arith.constant dense<0.000000e+00> : vector<2xf32>
    %235 = vector.multi_reduction <add>, %234, %cst_141 [1] : vector<2x128xf32> to vector<2xf32>
    %236 = vector.shape_cast %235 : vector<2xf32> to vector<2x1xf32>
    %cst_142 = arith.constant 1.280000e+02 : f32
    %237 = vector.broadcast %cst_142 : f32 to vector<2x1xf32>
    %238 = arith.divf %236, %237 : vector<2x1xf32>
    %239 = vector.broadcast %238 : vector<2x1xf32> to vector<2x128xf32>
    %240 = arith.subf %234, %239 : vector<2x128xf32>
    %241 = arith.mulf %240, %240 : vector<2x128xf32>
    %cst_143 = arith.constant dense<0.000000e+00> : vector<2xf32>
    %242 = vector.multi_reduction <add>, %241, %cst_143 [1] : vector<2x128xf32> to vector<2xf32>
    %243 = vector.shape_cast %242 : vector<2xf32> to vector<2x1xf32>
    %cst_144 = arith.constant 1.280000e+02 : f32
    %244 = vector.broadcast %cst_144 : f32 to vector<2x1xf32>
    %245 = arith.divf %243, %244 : vector<2x1xf32>
    %cst_145 = arith.constant 9.99999974E-6 : f32
    %246 = vector.broadcast %cst_145 : f32 to vector<2x1xf32>
    %247 = arith.addf %245, %246 : vector<2x1xf32>
    %248 = math.rsqrt %247 : vector<2x1xf32>
    %249 = vector.broadcast %248 : vector<2x1xf32> to vector<2x128xf32>
    %250 = arith.mulf %240, %249 : vector<2x128xf32>
    %251 = vector.broadcast %163 : vector<1x128xf32> to vector<2x128xf32>
    %252 = arith.mulf %250, %251 : vector<2x128xf32>
    %253 = vector.broadcast %164 : vector<1x128xf32> to vector<2x128xf32>
    %254 = arith.addf %252, %253 : vector<2x128xf32>
    %255 = arith.addf %231, %254 : vector<2x128xf32>
    %256 = vector.extract_strided_slice %255 {offsets = [0, 0], sizes = [2, 96], strides = [1, 1]} : vector<2x128xf32> to vector<2x96xf32>
    %257 = arith.negf %256 : vector<2x96xf32>
    %258 = math.exp %257 : vector<2x96xf32>
    %cst_146 = arith.constant 1.000000e+00 : f32
    %259 = vector.broadcast %cst_146 : f32 to vector<2x96xf32>
    %260 = arith.addf %259, %258 : vector<2x96xf32>
    %261 = arith.divf %259, %260 : vector<2x96xf32>
    %262 = vector.extract_strided_slice %261 {offsets = [0, 0], sizes = [2, 32], strides = [1, 1]} : vector<2x96xf32> to vector<2x32xf32>
    %263 = vector.extract_strided_slice %261 {offsets = [0, 32], sizes = [2, 32], strides = [1, 1]} : vector<2x96xf32> to vector<2x32xf32>
    %264 = vector.extract_strided_slice %261 {offsets = [0, 64], sizes = [2, 32], strides = [1, 1]} : vector<2x96xf32> to vector<2x32xf32>
    %265 = vector.extract_strided_slice %255 {offsets = [0, 96], sizes = [2, 32], strides = [1, 1]} : vector<2x128xf32> to vector<2x32xf32>
    %266 = math.tanh %265 : vector<2x32xf32>
    %267 = arith.mulf %263, %207 : vector<2x32xf32>
    %268 = arith.mulf %262, %266 : vector<2x32xf32>
    %269 = arith.addf %267, %268 : vector<2x32xf32>
    %cst_147 = arith.constant dense<0.000000e+00> : vector<2xf32>
    %270 = vector.multi_reduction <add>, %269, %cst_147 [1] : vector<2x32xf32> to vector<2xf32>
    %271 = vector.shape_cast %270 : vector<2xf32> to vector<2x1xf32>
    %cst_148 = arith.constant 3.200000e+01 : f32
    %272 = vector.broadcast %cst_148 : f32 to vector<2x1xf32>
    %273 = arith.divf %271, %272 : vector<2x1xf32>
    %274 = vector.broadcast %273 : vector<2x1xf32> to vector<2x32xf32>
    %275 = arith.subf %269, %274 : vector<2x32xf32>
    %276 = arith.mulf %275, %275 : vector<2x32xf32>
    %cst_149 = arith.constant dense<0.000000e+00> : vector<2xf32>
    %277 = vector.multi_reduction <add>, %276, %cst_149 [1] : vector<2x32xf32> to vector<2xf32>
    %278 = vector.shape_cast %277 : vector<2xf32> to vector<2x1xf32>
    %cst_150 = arith.constant 3.200000e+01 : f32
    %279 = vector.broadcast %cst_150 : f32 to vector<2x1xf32>
    %280 = arith.divf %278, %279 : vector<2x1xf32>
    %cst_151 = arith.constant 9.99999974E-6 : f32
    %281 = vector.broadcast %cst_151 : f32 to vector<2x1xf32>
    %282 = arith.addf %280, %281 : vector<2x1xf32>
    %283 = math.rsqrt %282 : vector<2x1xf32>
    %284 = vector.broadcast %283 : vector<2x1xf32> to vector<2x32xf32>
    %285 = arith.mulf %275, %284 : vector<2x32xf32>
    %286 = vector.broadcast %165 : vector<1x32xf32> to vector<2x32xf32>
    %287 = arith.mulf %285, %286 : vector<2x32xf32>
    %288 = vector.broadcast %166 : vector<1x32xf32> to vector<2x32xf32>
    %289 = arith.addf %287, %288 : vector<2x32xf32>
    %290 = math.tanh %289 : vector<2x32xf32>
    %291 = arith.mulf %264, %290 : vector<2x32xf32>
    %c2_152 = arith.constant 2 : index
    %c0_153 = arith.constant 0 : index
    %292 = vector.load %arg35[%c2_152, %c0_153] : memref<16x32xf32, #tpu.memory_space<vmem>>, vector<2x32xf32>
    tpu.vector_store %arg35[%c2_152, %c0_153], %291 {strides = array<i32>} : memref<16x32xf32, #tpu.memory_space<vmem>>, vector<2x32xf32>,
    %293 = vector.extract_strided_slice %160 {offsets = [4, 0], sizes = [2, 128], strides = [1, 1]} : vector<16x128xf32> to vector<2x128xf32>
    %cst_154 = arith.constant dense<0.000000e+00> : vector<2x128xf32>
    %294 = tpu.matmul %291, %161, %cst_154 {dimension_numbers = #tpu.dot_dimension_numbers<[1], [0], [0], [1], [0, 0, 1, 1], [], []>} : vector<2x32xf32>, vector<32x128xf32>, vector<2x128xf32> -> vector<2x128xf32>
    %295 = vector.broadcast %162 : vector<1x128xf32> to vector<2x128xf32>
    %296 = arith.addf %294, %295 : vector<2x128xf32>
    %cst_155 = arith.constant dense<0.000000e+00> : vector<2xf32>
    %297 = vector.multi_reduction <add>, %296, %cst_155 [1] : vector<2x128xf32> to vector<2xf32>
    %298 = vector.shape_cast %297 : vector<2xf32> to vector<2x1xf32>
    %cst_156 = arith.constant 1.280000e+02 : f32
    %299 = vector.broadcast %cst_156 : f32 to vector<2x1xf32>
    %300 = arith.divf %298, %299 : vector<2x1xf32>
    %301 = vector.broadcast %300 : vector<2x1xf32> to vector<2x128xf32>
    %302 = arith.subf %296, %301 : vector<2x128xf32>
    %303 = arith.mulf %302, %302 : vector<2x128xf32>
    %cst_157 = arith.constant dense<0.000000e+00> : vector<2xf32>
    %304 = vector.multi_reduction <add>, %303, %cst_157 [1] : vector<2x128xf32> to vector<2xf32>
    %305 = vector.shape_cast %304 : vector<2xf32> to vector<2x1xf32>
    %cst_158 = arith.constant 1.280000e+02 : f32
    %306 = vector.broadcast %cst_158 : f32 to vector<2x1xf32>
    %307 = arith.divf %305, %306 : vector<2x1xf32>
    %cst_159 = arith.constant 9.99999974E-6 : f32
    %308 = vector.broadcast %cst_159 : f32 to vector<2x1xf32>
    %309 = arith.addf %307, %308 : vector<2x1xf32>
    %310 = math.rsqrt %309 : vector<2x1xf32>
    %311 = vector.broadcast %310 : vector<2x1xf32> to vector<2x128xf32>
    %312 = arith.mulf %302, %311 : vector<2x128xf32>
    %313 = vector.broadcast %163 : vector<1x128xf32> to vector<2x128xf32>
    %314 = arith.mulf %312, %313 : vector<2x128xf32>
    %315 = vector.broadcast %164 : vector<1x128xf32> to vector<2x128xf32>
    %316 = arith.addf %314, %315 : vector<2x128xf32>
    %317 = arith.addf %293, %316 : vector<2x128xf32>
    %318 = vector.extract_strided_slice %317 {offsets = [0, 0], sizes = [2, 96], strides = [1, 1]} : vector<2x128xf32> to vector<2x96xf32>
    %319 = arith.negf %318 : vector<2x96xf32>
    %320 = math.exp %319 : vector<2x96xf32>
    %cst_160 = arith.constant 1.000000e+00 : f32
    %321 = vector.broadcast %cst_160 : f32 to vector<2x96xf32>
    %322 = arith.addf %321, %320 : vector<2x96xf32>
    %323 = arith.divf %321, %322 : vector<2x96xf32>
    %324 = vector.extract_strided_slice %323 {offsets = [0, 0], sizes = [2, 32], strides = [1, 1]} : vector<2x96xf32> to vector<2x32xf32>
    %325 = vector.extract_strided_slice %323 {offsets = [0, 32], sizes = [2, 32], strides = [1, 1]} : vector<2x96xf32> to vector<2x32xf32>
    %326 = vector.extract_strided_slice %323 {offsets = [0, 64], sizes = [2, 32], strides = [1, 1]} : vector<2x96xf32> to vector<2x32xf32>
    %327 = vector.extract_strided_slice %317 {offsets = [0, 96], sizes = [2, 32], strides = [1, 1]} : vector<2x128xf32> to vector<2x32xf32>
    %328 = math.tanh %327 : vector<2x32xf32>
    %329 = arith.mulf %325, %269 : vector<2x32xf32>
    %330 = arith.mulf %324, %328 : vector<2x32xf32>
    %331 = arith.addf %329, %330 : vector<2x32xf32>
    %cst_161 = arith.constant dense<0.000000e+00> : vector<2xf32>
    %332 = vector.multi_reduction <add>, %331, %cst_161 [1] : vector<2x32xf32> to vector<2xf32>
    %333 = vector.shape_cast %332 : vector<2xf32> to vector<2x1xf32>
    %cst_162 = arith.constant 3.200000e+01 : f32
    %334 = vector.broadcast %cst_162 : f32 to vector<2x1xf32>
    %335 = arith.divf %333, %334 : vector<2x1xf32>
    %336 = vector.broadcast %335 : vector<2x1xf32> to vector<2x32xf32>
    %337 = arith.subf %331, %336 : vector<2x32xf32>
    %338 = arith.mulf %337, %337 : vector<2x32xf32>
    %cst_163 = arith.constant dense<0.000000e+00> : vector<2xf32>
    %339 = vector.multi_reduction <add>, %338, %cst_163 [1] : vector<2x32xf32> to vector<2xf32>
    %340 = vector.shape_cast %339 : vector<2xf32> to vector<2x1xf32>
    %cst_164 = arith.constant 3.200000e+01 : f32
    %341 = vector.broadcast %cst_164 : f32 to vector<2x1xf32>
    %342 = arith.divf %340, %341 : vector<2x1xf32>
    %cst_165 = arith.constant 9.99999974E-6 : f32
    %343 = vector.broadcast %cst_165 : f32 to vector<2x1xf32>
    %344 = arith.addf %342, %343 : vector<2x1xf32>
    %345 = math.rsqrt %344 : vector<2x1xf32>
    %346 = vector.broadcast %345 : vector<2x1xf32> to vector<2x32xf32>
    %347 = arith.mulf %337, %346 : vector<2x32xf32>
    %348 = vector.broadcast %165 : vector<1x32xf32> to vector<2x32xf32>
    %349 = arith.mulf %347, %348 : vector<2x32xf32>
    %350 = vector.broadcast %166 : vector<1x32xf32> to vector<2x32xf32>
    %351 = arith.addf %349, %350 : vector<2x32xf32>
    %352 = math.tanh %351 : vector<2x32xf32>
    %353 = arith.mulf %326, %352 : vector<2x32xf32>
    %c4_166 = arith.constant 4 : index
    %c0_167 = arith.constant 0 : index
    %354 = vector.load %arg35[%c4_166, %c0_167] : memref<16x32xf32, #tpu.memory_space<vmem>>, vector<2x32xf32>
    tpu.vector_store %arg35[%c4_166, %c0_167], %353 {strides = array<i32>} : memref<16x32xf32, #tpu.memory_space<vmem>>, vector<2x32xf32>,
    %355 = vector.extract_strided_slice %160 {offsets = [6, 0], sizes = [2, 128], strides = [1, 1]} : vector<16x128xf32> to vector<2x128xf32>
    %cst_168 = arith.constant dense<0.000000e+00> : vector<2x128xf32>
    %356 = tpu.matmul %353, %161, %cst_168 {dimension_numbers = #tpu.dot_dimension_numbers<[1], [0], [0], [1], [0, 0, 1, 1], [], []>} : vector<2x32xf32>, vector<32x128xf32>, vector<2x128xf32> -> vector<2x128xf32>
    %357 = vector.broadcast %162 : vector<1x128xf32> to vector<2x128xf32>
    %358 = arith.addf %356, %357 : vector<2x128xf32>
    %cst_169 = arith.constant dense<0.000000e+00> : vector<2xf32>
    %359 = vector.multi_reduction <add>, %358, %cst_169 [1] : vector<2x128xf32> to vector<2xf32>
    %360 = vector.shape_cast %359 : vector<2xf32> to vector<2x1xf32>
    %cst_170 = arith.constant 1.280000e+02 : f32
    %361 = vector.broadcast %cst_170 : f32 to vector<2x1xf32>
    %362 = arith.divf %360, %361 : vector<2x1xf32>
    %363 = vector.broadcast %362 : vector<2x1xf32> to vector<2x128xf32>
    %364 = arith.subf %358, %363 : vector<2x128xf32>
    %365 = arith.mulf %364, %364 : vector<2x128xf32>
    %cst_171 = arith.constant dense<0.000000e+00> : vector<2xf32>
    %366 = vector.multi_reduction <add>, %365, %cst_171 [1] : vector<2x128xf32> to vector<2xf32>
    %367 = vector.shape_cast %366 : vector<2xf32> to vector<2x1xf32>
    %cst_172 = arith.constant 1.280000e+02 : f32
    %368 = vector.broadcast %cst_172 : f32 to vector<2x1xf32>
    %369 = arith.divf %367, %368 : vector<2x1xf32>
    %cst_173 = arith.constant 9.99999974E-6 : f32
    %370 = vector.broadcast %cst_173 : f32 to vector<2x1xf32>
    %371 = arith.addf %369, %370 : vector<2x1xf32>
    %372 = math.rsqrt %371 : vector<2x1xf32>
    %373 = vector.broadcast %372 : vector<2x1xf32> to vector<2x128xf32>
    %374 = arith.mulf %364, %373 : vector<2x128xf32>
    %375 = vector.broadcast %163 : vector<1x128xf32> to vector<2x128xf32>
    %376 = arith.mulf %374, %375 : vector<2x128xf32>
    %377 = vector.broadcast %164 : vector<1x128xf32> to vector<2x128xf32>
    %378 = arith.addf %376, %377 : vector<2x128xf32>
    %379 = arith.addf %355, %378 : vector<2x128xf32>
    %380 = vector.extract_strided_slice %379 {offsets = [0, 0], sizes = [2, 96], strides = [1, 1]} : vector<2x128xf32> to vector<2x96xf32>
    %381 = arith.negf %380 : vector<2x96xf32>
    %382 = math.exp %381 : vector<2x96xf32>
    %cst_174 = arith.constant 1.000000e+00 : f32
    %383 = vector.broadcast %cst_174 : f32 to vector<2x96xf32>
    %384 = arith.addf %383, %382 : vector<2x96xf32>
    %385 = arith.divf %383, %384 : vector<2x96xf32>
    %386 = vector.extract_strided_slice %385 {offsets = [0, 0], sizes = [2, 32], strides = [1, 1]} : vector<2x96xf32> to vector<2x32xf32>
    %387 = vector.extract_strided_slice %385 {offsets = [0, 32], sizes = [2, 32], strides = [1, 1]} : vector<2x96xf32> to vector<2x32xf32>
    %388 = vector.extract_strided_slice %385 {offsets = [0, 64], sizes = [2, 32], strides = [1, 1]} : vector<2x96xf32> to vector<2x32xf32>
    %389 = vector.extract_strided_slice %379 {offsets = [0, 96], sizes = [2, 32], strides = [1, 1]} : vector<2x128xf32> to vector<2x32xf32>
    %390 = math.tanh %389 : vector<2x32xf32>
    %391 = arith.mulf %387, %331 : vector<2x32xf32>
    %392 = arith.mulf %386, %390 : vector<2x32xf32>
    %393 = arith.addf %391, %392 : vector<2x32xf32>
    %cst_175 = arith.constant dense<0.000000e+00> : vector<2xf32>
    %394 = vector.multi_reduction <add>, %393, %cst_175 [1] : vector<2x32xf32> to vector<2xf32>
    %395 = vector.shape_cast %394 : vector<2xf32> to vector<2x1xf32>
    %cst_176 = arith.constant 3.200000e+01 : f32
    %396 = vector.broadcast %cst_176 : f32 to vector<2x1xf32>
    %397 = arith.divf %395, %396 : vector<2x1xf32>
    %398 = vector.broadcast %397 : vector<2x1xf32> to vector<2x32xf32>
    %399 = arith.subf %393, %398 : vector<2x32xf32>
    %400 = arith.mulf %399, %399 : vector<2x32xf32>
    %cst_177 = arith.constant dense<0.000000e+00> : vector<2xf32>
    %401 = vector.multi_reduction <add>, %400, %cst_177 [1] : vector<2x32xf32> to vector<2xf32>
    %402 = vector.shape_cast %401 : vector<2xf32> to vector<2x1xf32>
    %cst_178 = arith.constant 3.200000e+01 : f32
    %403 = vector.broadcast %cst_178 : f32 to vector<2x1xf32>
    %404 = arith.divf %402, %403 : vector<2x1xf32>
    %cst_179 = arith.constant 9.99999974E-6 : f32
    %405 = vector.broadcast %cst_179 : f32 to vector<2x1xf32>
    %406 = arith.addf %404, %405 : vector<2x1xf32>
    %407 = math.rsqrt %406 : vector<2x1xf32>
    %408 = vector.broadcast %407 : vector<2x1xf32> to vector<2x32xf32>
    %409 = arith.mulf %399, %408 : vector<2x32xf32>
    %410 = vector.broadcast %165 : vector<1x32xf32> to vector<2x32xf32>
    %411 = arith.mulf %409, %410 : vector<2x32xf32>
    %412 = vector.broadcast %166 : vector<1x32xf32> to vector<2x32xf32>
    %413 = arith.addf %411, %412 : vector<2x32xf32>
    %414 = math.tanh %413 : vector<2x32xf32>
    %415 = arith.mulf %388, %414 : vector<2x32xf32>
    %c6_180 = arith.constant 6 : index
    %c0_181 = arith.constant 0 : index
    %416 = vector.load %arg35[%c6_180, %c0_181] : memref<16x32xf32, #tpu.memory_space<vmem>>, vector<2x32xf32>
    tpu.vector_store %arg35[%c6_180, %c0_181], %415 {strides = array<i32>} : memref<16x32xf32, #tpu.memory_space<vmem>>, vector<2x32xf32>,
    %417 = vector.extract_strided_slice %160 {offsets = [8, 0], sizes = [2, 128], strides = [1, 1]} : vector<16x128xf32> to vector<2x128xf32>
    %cst_182 = arith.constant dense<0.000000e+00> : vector<2x128xf32>
    %418 = tpu.matmul %415, %161, %cst_182 {dimension_numbers = #tpu.dot_dimension_numbers<[1], [0], [0], [1], [0, 0, 1, 1], [], []>} : vector<2x32xf32>, vector<32x128xf32>, vector<2x128xf32> -> vector<2x128xf32>
    %419 = vector.broadcast %162 : vector<1x128xf32> to vector<2x128xf32>
    %420 = arith.addf %418, %419 : vector<2x128xf32>
    %cst_183 = arith.constant dense<0.000000e+00> : vector<2xf32>
    %421 = vector.multi_reduction <add>, %420, %cst_183 [1] : vector<2x128xf32> to vector<2xf32>
    %422 = vector.shape_cast %421 : vector<2xf32> to vector<2x1xf32>
    %cst_184 = arith.constant 1.280000e+02 : f32
    %423 = vector.broadcast %cst_184 : f32 to vector<2x1xf32>
    %424 = arith.divf %422, %423 : vector<2x1xf32>
    %425 = vector.broadcast %424 : vector<2x1xf32> to vector<2x128xf32>
    %426 = arith.subf %420, %425 : vector<2x128xf32>
    %427 = arith.mulf %426, %426 : vector<2x128xf32>
    %cst_185 = arith.constant dense<0.000000e+00> : vector<2xf32>
    %428 = vector.multi_reduction <add>, %427, %cst_185 [1] : vector<2x128xf32> to vector<2xf32>
    %429 = vector.shape_cast %428 : vector<2xf32> to vector<2x1xf32>
    %cst_186 = arith.constant 1.280000e+02 : f32
    %430 = vector.broadcast %cst_186 : f32 to vector<2x1xf32>
    %431 = arith.divf %429, %430 : vector<2x1xf32>
    %cst_187 = arith.constant 9.99999974E-6 : f32
    %432 = vector.broadcast %cst_187 : f32 to vector<2x1xf32>
    %433 = arith.addf %431, %432 : vector<2x1xf32>
    %434 = math.rsqrt %433 : vector<2x1xf32>
    %435 = vector.broadcast %434 : vector<2x1xf32> to vector<2x128xf32>
    %436 = arith.mulf %426, %435 : vector<2x128xf32>
    %437 = vector.broadcast %163 : vector<1x128xf32> to vector<2x128xf32>
    %438 = arith.mulf %436, %437 : vector<2x128xf32>
    %439 = vector.broadcast %164 : vector<1x128xf32> to vector<2x128xf32>
    %440 = arith.addf %438, %439 : vector<2x128xf32>
    %441 = arith.addf %417, %440 : vector<2x128xf32>
    %442 = vector.extract_strided_slice %441 {offsets = [0, 0], sizes = [2, 96], strides = [1, 1]} : vector<2x128xf32> to vector<2x96xf32>
    %443 = arith.negf %442 : vector<2x96xf32>
    %444 = math.exp %443 : vector<2x96xf32>
    %cst_188 = arith.constant 1.000000e+00 : f32
    %445 = vector.broadcast %cst_188 : f32 to vector<2x96xf32>
    %446 = arith.addf %445, %444 : vector<2x96xf32>
    %447 = arith.divf %445, %446 : vector<2x96xf32>
    %448 = vector.extract_strided_slice %447 {offsets = [0, 0], sizes = [2, 32], strides = [1, 1]} : vector<2x96xf32> to vector<2x32xf32>
    %449 = vector.extract_strided_slice %447 {offsets = [0, 32], sizes = [2, 32], strides = [1, 1]} : vector<2x96xf32> to vector<2x32xf32>
    %450 = vector.extract_strided_slice %447 {offsets = [0, 64], sizes = [2, 32], strides = [1, 1]} : vector<2x96xf32> to vector<2x32xf32>
    %451 = vector.extract_strided_slice %441 {offsets = [0, 96], sizes = [2, 32], strides = [1, 1]} : vector<2x128xf32> to vector<2x32xf32>
    %452 = math.tanh %451 : vector<2x32xf32>
    %453 = arith.mulf %449, %393 : vector<2x32xf32>
    %454 = arith.mulf %448, %452 : vector<2x32xf32>
    %455 = arith.addf %453, %454 : vector<2x32xf32>
    %cst_189 = arith.constant dense<0.000000e+00> : vector<2xf32>
    %456 = vector.multi_reduction <add>, %455, %cst_189 [1] : vector<2x32xf32> to vector<2xf32>
    %457 = vector.shape_cast %456 : vector<2xf32> to vector<2x1xf32>
    %cst_190 = arith.constant 3.200000e+01 : f32
    %458 = vector.broadcast %cst_190 : f32 to vector<2x1xf32>
    %459 = arith.divf %457, %458 : vector<2x1xf32>
    %460 = vector.broadcast %459 : vector<2x1xf32> to vector<2x32xf32>
    %461 = arith.subf %455, %460 : vector<2x32xf32>
    %462 = arith.mulf %461, %461 : vector<2x32xf32>
    %cst_191 = arith.constant dense<0.000000e+00> : vector<2xf32>
    %463 = vector.multi_reduction <add>, %462, %cst_191 [1] : vector<2x32xf32> to vector<2xf32>
    %464 = vector.shape_cast %463 : vector<2xf32> to vector<2x1xf32>
    %cst_192 = arith.constant 3.200000e+01 : f32
    %465 = vector.broadcast %cst_192 : f32 to vector<2x1xf32>
    %466 = arith.divf %464, %465 : vector<2x1xf32>
    %cst_193 = arith.constant 9.99999974E-6 : f32
    %467 = vector.broadcast %cst_193 : f32 to vector<2x1xf32>
    %468 = arith.addf %466, %467 : vector<2x1xf32>
    %469 = math.rsqrt %468 : vector<2x1xf32>
    %470 = vector.broadcast %469 : vector<2x1xf32> to vector<2x32xf32>
    %471 = arith.mulf %461, %470 : vector<2x32xf32>
    %472 = vector.broadcast %165 : vector<1x32xf32> to vector<2x32xf32>
    %473 = arith.mulf %471, %472 : vector<2x32xf32>
    %474 = vector.broadcast %166 : vector<1x32xf32> to vector<2x32xf32>
    %475 = arith.addf %473, %474 : vector<2x32xf32>
    %476 = math.tanh %475 : vector<2x32xf32>
    %477 = arith.mulf %450, %476 : vector<2x32xf32>
    %c8 = arith.constant 8 : index
    %c0_194 = arith.constant 0 : index
    %478 = vector.load %arg35[%c8, %c0_194] : memref<16x32xf32, #tpu.memory_space<vmem>>, vector<2x32xf32>
    tpu.vector_store %arg35[%c8, %c0_194], %477 {strides = array<i32>} : memref<16x32xf32, #tpu.memory_space<vmem>>, vector<2x32xf32>,
    %479 = vector.extract_strided_slice %160 {offsets = [10, 0], sizes = [2, 128], strides = [1, 1]} : vector<16x128xf32> to vector<2x128xf32>
    %cst_195 = arith.constant dense<0.000000e+00> : vector<2x128xf32>
    %480 = tpu.matmul %477, %161, %cst_195 {dimension_numbers = #tpu.dot_dimension_numbers<[1], [0], [0], [1], [0, 0, 1, 1], [], []>} : vector<2x32xf32>, vector<32x128xf32>, vector<2x128xf32> -> vector<2x128xf32>
    %481 = vector.broadcast %162 : vector<1x128xf32> to vector<2x128xf32>
    %482 = arith.addf %480, %481 : vector<2x128xf32>
    %cst_196 = arith.constant dense<0.000000e+00> : vector<2xf32>
    %483 = vector.multi_reduction <add>, %482, %cst_196 [1] : vector<2x128xf32> to vector<2xf32>
    %484 = vector.shape_cast %483 : vector<2xf32> to vector<2x1xf32>
    %cst_197 = arith.constant 1.280000e+02 : f32
    %485 = vector.broadcast %cst_197 : f32 to vector<2x1xf32>
    %486 = arith.divf %484, %485 : vector<2x1xf32>
    %487 = vector.broadcast %486 : vector<2x1xf32> to vector<2x128xf32>
    %488 = arith.subf %482, %487 : vector<2x128xf32>
    %489 = arith.mulf %488, %488 : vector<2x128xf32>
    %cst_198 = arith.constant dense<0.000000e+00> : vector<2xf32>
    %490 = vector.multi_reduction <add>, %489, %cst_198 [1] : vector<2x128xf32> to vector<2xf32>
    %491 = vector.shape_cast %490 : vector<2xf32> to vector<2x1xf32>
    %cst_199 = arith.constant 1.280000e+02 : f32
    %492 = vector.broadcast %cst_199 : f32 to vector<2x1xf32>
    %493 = arith.divf %491, %492 : vector<2x1xf32>
    %cst_200 = arith.constant 9.99999974E-6 : f32
    %494 = vector.broadcast %cst_200 : f32 to vector<2x1xf32>
    %495 = arith.addf %493, %494 : vector<2x1xf32>
    %496 = math.rsqrt %495 : vector<2x1xf32>
    %497 = vector.broadcast %496 : vector<2x1xf32> to vector<2x128xf32>
    %498 = arith.mulf %488, %497 : vector<2x128xf32>
    %499 = vector.broadcast %163 : vector<1x128xf32> to vector<2x128xf32>
    %500 = arith.mulf %498, %499 : vector<2x128xf32>
    %501 = vector.broadcast %164 : vector<1x128xf32> to vector<2x128xf32>
    %502 = arith.addf %500, %501 : vector<2x128xf32>
    %503 = arith.addf %479, %502 : vector<2x128xf32>
    %504 = vector.extract_strided_slice %503 {offsets = [0, 0], sizes = [2, 96], strides = [1, 1]} : vector<2x128xf32> to vector<2x96xf32>
    %505 = arith.negf %504 : vector<2x96xf32>
    %506 = math.exp %505 : vector<2x96xf32>
    %cst_201 = arith.constant 1.000000e+00 : f32
    %507 = vector.broadcast %cst_201 : f32 to vector<2x96xf32>
    %508 = arith.addf %507, %506 : vector<2x96xf32>
    %509 = arith.divf %507, %508 : vector<2x96xf32>
    %510 = vector.extract_strided_slice %509 {offsets = [0, 0], sizes = [2, 32], strides = [1, 1]} : vector<2x96xf32> to vector<2x32xf32>
    %511 = vector.extract_strided_slice %509 {offsets = [0, 32], sizes = [2, 32], strides = [1, 1]} : vector<2x96xf32> to vector<2x32xf32>
    %512 = vector.extract_strided_slice %509 {offsets = [0, 64], sizes = [2, 32], strides = [1, 1]} : vector<2x96xf32> to vector<2x32xf32>
    %513 = vector.extract_strided_slice %503 {offsets = [0, 96], sizes = [2, 32], strides = [1, 1]} : vector<2x128xf32> to vector<2x32xf32>
    %514 = math.tanh %513 : vector<2x32xf32>
    %515 = arith.mulf %511, %455 : vector<2x32xf32>
    %516 = arith.mulf %510, %514 : vector<2x32xf32>
    %517 = arith.addf %515, %516 : vector<2x32xf32>
    %cst_202 = arith.constant dense<0.000000e+00> : vector<2xf32>
    %518 = vector.multi_reduction <add>, %517, %cst_202 [1] : vector<2x32xf32> to vector<2xf32>
    %519 = vector.shape_cast %518 : vector<2xf32> to vector<2x1xf32>
    %cst_203 = arith.constant 3.200000e+01 : f32
    %520 = vector.broadcast %cst_203 : f32 to vector<2x1xf32>
    %521 = arith.divf %519, %520 : vector<2x1xf32>
    %522 = vector.broadcast %521 : vector<2x1xf32> to vector<2x32xf32>
    %523 = arith.subf %517, %522 : vector<2x32xf32>
    %524 = arith.mulf %523, %523 : vector<2x32xf32>
    %cst_204 = arith.constant dense<0.000000e+00> : vector<2xf32>
    %525 = vector.multi_reduction <add>, %524, %cst_204 [1] : vector<2x32xf32> to vector<2xf32>
    %526 = vector.shape_cast %525 : vector<2xf32> to vector<2x1xf32>
    %cst_205 = arith.constant 3.200000e+01 : f32
    %527 = vector.broadcast %cst_205 : f32 to vector<2x1xf32>
    %528 = arith.divf %526, %527 : vector<2x1xf32>
    %cst_206 = arith.constant 9.99999974E-6 : f32
    %529 = vector.broadcast %cst_206 : f32 to vector<2x1xf32>
    %530 = arith.addf %528, %529 : vector<2x1xf32>
    %531 = math.rsqrt %530 : vector<2x1xf32>
    %532 = vector.broadcast %531 : vector<2x1xf32> to vector<2x32xf32>
    %533 = arith.mulf %523, %532 : vector<2x32xf32>
    %534 = vector.broadcast %165 : vector<1x32xf32> to vector<2x32xf32>
    %535 = arith.mulf %533, %534 : vector<2x32xf32>
    %536 = vector.broadcast %166 : vector<1x32xf32> to vector<2x32xf32>
    %537 = arith.addf %535, %536 : vector<2x32xf32>
    %538 = math.tanh %537 : vector<2x32xf32>
    %539 = arith.mulf %512, %538 : vector<2x32xf32>
    %c10 = arith.constant 10 : index
    %c0_207 = arith.constant 0 : index
    %540 = vector.load %arg35[%c10, %c0_207] : memref<16x32xf32, #tpu.memory_space<vmem>>, vector<2x32xf32>
    tpu.vector_store %arg35[%c10, %c0_207], %539 {strides = array<i32>} : memref<16x32xf32, #tpu.memory_space<vmem>>, vector<2x32xf32>,
    %541 = vector.extract_strided_slice %160 {offsets = [12, 0], sizes = [2, 128], strides = [1, 1]} : vector<16x128xf32> to vector<2x128xf32>
    %cst_208 = arith.constant dense<0.000000e+00> : vector<2x128xf32>
    %542 = tpu.matmul %539, %161, %cst_208 {dimension_numbers = #tpu.dot_dimension_numbers<[1], [0], [0], [1], [0, 0, 1, 1], [], []>} : vector<2x32xf32>, vector<32x128xf32>, vector<2x128xf32> -> vector<2x128xf32>
    %543 = vector.broadcast %162 : vector<1x128xf32> to vector<2x128xf32>
    %544 = arith.addf %542, %543 : vector<2x128xf32>
    %cst_209 = arith.constant dense<0.000000e+00> : vector<2xf32>
    %545 = vector.multi_reduction <add>, %544, %cst_209 [1] : vector<2x128xf32> to vector<2xf32>
    %546 = vector.shape_cast %545 : vector<2xf32> to vector<2x1xf32>
    %cst_210 = arith.constant 1.280000e+02 : f32
    %547 = vector.broadcast %cst_210 : f32 to vector<2x1xf32>
    %548 = arith.divf %546, %547 : vector<2x1xf32>
    %549 = vector.broadcast %548 : vector<2x1xf32> to vector<2x128xf32>
    %550 = arith.subf %544, %549 : vector<2x128xf32>
    %551 = arith.mulf %550, %550 : vector<2x128xf32>
    %cst_211 = arith.constant dense<0.000000e+00> : vector<2xf32>
    %552 = vector.multi_reduction <add>, %551, %cst_211 [1] : vector<2x128xf32> to vector<2xf32>
    %553 = vector.shape_cast %552 : vector<2xf32> to vector<2x1xf32>
    %cst_212 = arith.constant 1.280000e+02 : f32
    %554 = vector.broadcast %cst_212 : f32 to vector<2x1xf32>
    %555 = arith.divf %553, %554 : vector<2x1xf32>
    %cst_213 = arith.constant 9.99999974E-6 : f32
    %556 = vector.broadcast %cst_213 : f32 to vector<2x1xf32>
    %557 = arith.addf %555, %556 : vector<2x1xf32>
    %558 = math.rsqrt %557 : vector<2x1xf32>
    %559 = vector.broadcast %558 : vector<2x1xf32> to vector<2x128xf32>
    %560 = arith.mulf %550, %559 : vector<2x128xf32>
    %561 = vector.broadcast %163 : vector<1x128xf32> to vector<2x128xf32>
    %562 = arith.mulf %560, %561 : vector<2x128xf32>
    %563 = vector.broadcast %164 : vector<1x128xf32> to vector<2x128xf32>
    %564 = arith.addf %562, %563 : vector<2x128xf32>
    %565 = arith.addf %541, %564 : vector<2x128xf32>
    %566 = vector.extract_strided_slice %565 {offsets = [0, 0], sizes = [2, 96], strides = [1, 1]} : vector<2x128xf32> to vector<2x96xf32>
    %567 = arith.negf %566 : vector<2x96xf32>
    %568 = math.exp %567 : vector<2x96xf32>
    %cst_214 = arith.constant 1.000000e+00 : f32
    %569 = vector.broadcast %cst_214 : f32 to vector<2x96xf32>
    %570 = arith.addf %569, %568 : vector<2x96xf32>
    %571 = arith.divf %569, %570 : vector<2x96xf32>
    %572 = vector.extract_strided_slice %571 {offsets = [0, 0], sizes = [2, 32], strides = [1, 1]} : vector<2x96xf32> to vector<2x32xf32>
    %573 = vector.extract_strided_slice %571 {offsets = [0, 32], sizes = [2, 32], strides = [1, 1]} : vector<2x96xf32> to vector<2x32xf32>
    %574 = vector.extract_strided_slice %571 {offsets = [0, 64], sizes = [2, 32], strides = [1, 1]} : vector<2x96xf32> to vector<2x32xf32>
    %575 = vector.extract_strided_slice %565 {offsets = [0, 96], sizes = [2, 32], strides = [1, 1]} : vector<2x128xf32> to vector<2x32xf32>
    %576 = math.tanh %575 : vector<2x32xf32>
    %577 = arith.mulf %573, %517 : vector<2x32xf32>
    %578 = arith.mulf %572, %576 : vector<2x32xf32>
    %579 = arith.addf %577, %578 : vector<2x32xf32>
    %cst_215 = arith.constant dense<0.000000e+00> : vector<2xf32>
    %580 = vector.multi_reduction <add>, %579, %cst_215 [1] : vector<2x32xf32> to vector<2xf32>
    %581 = vector.shape_cast %580 : vector<2xf32> to vector<2x1xf32>
    %cst_216 = arith.constant 3.200000e+01 : f32
    %582 = vector.broadcast %cst_216 : f32 to vector<2x1xf32>
    %583 = arith.divf %581, %582 : vector<2x1xf32>
    %584 = vector.broadcast %583 : vector<2x1xf32> to vector<2x32xf32>
    %585 = arith.subf %579, %584 : vector<2x32xf32>
    %586 = arith.mulf %585, %585 : vector<2x32xf32>
    %cst_217 = arith.constant dense<0.000000e+00> : vector<2xf32>
    %587 = vector.multi_reduction <add>, %586, %cst_217 [1] : vector<2x32xf32> to vector<2xf32>
    %588 = vector.shape_cast %587 : vector<2xf32> to vector<2x1xf32>
    %cst_218 = arith.constant 3.200000e+01 : f32
    %589 = vector.broadcast %cst_218 : f32 to vector<2x1xf32>
    %590 = arith.divf %588, %589 : vector<2x1xf32>
    %cst_219 = arith.constant 9.99999974E-6 : f32
    %591 = vector.broadcast %cst_219 : f32 to vector<2x1xf32>
    %592 = arith.addf %590, %591 : vector<2x1xf32>
    %593 = math.rsqrt %592 : vector<2x1xf32>
    %594 = vector.broadcast %593 : vector<2x1xf32> to vector<2x32xf32>
    %595 = arith.mulf %585, %594 : vector<2x32xf32>
    %596 = vector.broadcast %165 : vector<1x32xf32> to vector<2x32xf32>
    %597 = arith.mulf %595, %596 : vector<2x32xf32>
    %598 = vector.broadcast %166 : vector<1x32xf32> to vector<2x32xf32>
    %599 = arith.addf %597, %598 : vector<2x32xf32>
    %600 = math.tanh %599 : vector<2x32xf32>
    %601 = arith.mulf %574, %600 : vector<2x32xf32>
    %c12 = arith.constant 12 : index
    %c0_220 = arith.constant 0 : index
    %602 = vector.load %arg35[%c12, %c0_220] : memref<16x32xf32, #tpu.memory_space<vmem>>, vector<2x32xf32>
    tpu.vector_store %arg35[%c12, %c0_220], %601 {strides = array<i32>} : memref<16x32xf32, #tpu.memory_space<vmem>>, vector<2x32xf32>,
    %603 = vector.extract_strided_slice %160 {offsets = [14, 0], sizes = [2, 128], strides = [1, 1]} : vector<16x128xf32> to vector<2x128xf32>
    %cst_221 = arith.constant dense<0.000000e+00> : vector<2x128xf32>
    %604 = tpu.matmul %601, %161, %cst_221 {dimension_numbers = #tpu.dot_dimension_numbers<[1], [0], [0], [1], [0, 0, 1, 1], [], []>} : vector<2x32xf32>, vector<32x128xf32>, vector<2x128xf32> -> vector<2x128xf32>
    %605 = vector.broadcast %162 : vector<1x128xf32> to vector<2x128xf32>
    %606 = arith.addf %604, %605 : vector<2x128xf32>
    %cst_222 = arith.constant dense<0.000000e+00> : vector<2xf32>
    %607 = vector.multi_reduction <add>, %606, %cst_222 [1] : vector<2x128xf32> to vector<2xf32>
    %608 = vector.shape_cast %607 : vector<2xf32> to vector<2x1xf32>
    %cst_223 = arith.constant 1.280000e+02 : f32
    %609 = vector.broadcast %cst_223 : f32 to vector<2x1xf32>
    %610 = arith.divf %608, %609 : vector<2x1xf32>
    %611 = vector.broadcast %610 : vector<2x1xf32> to vector<2x128xf32>
    %612 = arith.subf %606, %611 : vector<2x128xf32>
    %613 = arith.mulf %612, %612 : vector<2x128xf32>
    %cst_224 = arith.constant dense<0.000000e+00> : vector<2xf32>
    %614 = vector.multi_reduction <add>, %613, %cst_224 [1] : vector<2x128xf32> to vector<2xf32>
    %615 = vector.shape_cast %614 : vector<2xf32> to vector<2x1xf32>
    %cst_225 = arith.constant 1.280000e+02 : f32
    %616 = vector.broadcast %cst_225 : f32 to vector<2x1xf32>
    %617 = arith.divf %615, %616 : vector<2x1xf32>
    %cst_226 = arith.constant 9.99999974E-6 : f32
    %618 = vector.broadcast %cst_226 : f32 to vector<2x1xf32>
    %619 = arith.addf %617, %618 : vector<2x1xf32>
    %620 = math.rsqrt %619 : vector<2x1xf32>
    %621 = vector.broadcast %620 : vector<2x1xf32> to vector<2x128xf32>
    %622 = arith.mulf %612, %621 : vector<2x128xf32>
    %623 = vector.broadcast %163 : vector<1x128xf32> to vector<2x128xf32>
    %624 = arith.mulf %622, %623 : vector<2x128xf32>
    %625 = vector.broadcast %164 : vector<1x128xf32> to vector<2x128xf32>
    %626 = arith.addf %624, %625 : vector<2x128xf32>
    %627 = arith.addf %603, %626 : vector<2x128xf32>
    %628 = vector.extract_strided_slice %627 {offsets = [0, 0], sizes = [2, 96], strides = [1, 1]} : vector<2x128xf32> to vector<2x96xf32>
    %629 = arith.negf %628 : vector<2x96xf32>
    %630 = math.exp %629 : vector<2x96xf32>
    %cst_227 = arith.constant 1.000000e+00 : f32
    %631 = vector.broadcast %cst_227 : f32 to vector<2x96xf32>
    %632 = arith.addf %631, %630 : vector<2x96xf32>
    %633 = arith.divf %631, %632 : vector<2x96xf32>
    %634 = vector.extract_strided_slice %633 {offsets = [0, 0], sizes = [2, 32], strides = [1, 1]} : vector<2x96xf32> to vector<2x32xf32>
    %635 = vector.extract_strided_slice %633 {offsets = [0, 32], sizes = [2, 32], strides = [1, 1]} : vector<2x96xf32> to vector<2x32xf32>
    %636 = vector.extract_strided_slice %633 {offsets = [0, 64], sizes = [2, 32], strides = [1, 1]} : vector<2x96xf32> to vector<2x32xf32>
    %637 = vector.extract_strided_slice %627 {offsets = [0, 96], sizes = [2, 32], strides = [1, 1]} : vector<2x128xf32> to vector<2x32xf32>
    %638 = math.tanh %637 : vector<2x32xf32>
    %639 = arith.mulf %635, %579 : vector<2x32xf32>
    %640 = arith.mulf %634, %638 : vector<2x32xf32>
    %641 = arith.addf %639, %640 : vector<2x32xf32>
    %cst_228 = arith.constant dense<0.000000e+00> : vector<2xf32>
    %642 = vector.multi_reduction <add>, %641, %cst_228 [1] : vector<2x32xf32> to vector<2xf32>
    %643 = vector.shape_cast %642 : vector<2xf32> to vector<2x1xf32>
    %cst_229 = arith.constant 3.200000e+01 : f32
    %644 = vector.broadcast %cst_229 : f32 to vector<2x1xf32>
    %645 = arith.divf %643, %644 : vector<2x1xf32>
    %646 = vector.broadcast %645 : vector<2x1xf32> to vector<2x32xf32>
    %647 = arith.subf %641, %646 : vector<2x32xf32>
    %648 = arith.mulf %647, %647 : vector<2x32xf32>
    %cst_230 = arith.constant dense<0.000000e+00> : vector<2xf32>
    %649 = vector.multi_reduction <add>, %648, %cst_230 [1] : vector<2x32xf32> to vector<2xf32>
    %650 = vector.shape_cast %649 : vector<2xf32> to vector<2x1xf32>
    %cst_231 = arith.constant 3.200000e+01 : f32
    %651 = vector.broadcast %cst_231 : f32 to vector<2x1xf32>
    %652 = arith.divf %650, %651 : vector<2x1xf32>
    %cst_232 = arith.constant 9.99999974E-6 : f32
    %653 = vector.broadcast %cst_232 : f32 to vector<2x1xf32>
    %654 = arith.addf %652, %653 : vector<2x1xf32>
    %655 = math.rsqrt %654 : vector<2x1xf32>
    %656 = vector.broadcast %655 : vector<2x1xf32> to vector<2x32xf32>
    %657 = arith.mulf %647, %656 : vector<2x32xf32>
    %658 = vector.broadcast %165 : vector<1x32xf32> to vector<2x32xf32>
    %659 = arith.mulf %657, %658 : vector<2x32xf32>
    %660 = vector.broadcast %166 : vector<1x32xf32> to vector<2x32xf32>
    %661 = arith.addf %659, %660 : vector<2x32xf32>
    %662 = math.tanh %661 : vector<2x32xf32>
    %663 = arith.mulf %636, %662 : vector<2x32xf32>
    %c14 = arith.constant 14 : index
    %c0_233 = arith.constant 0 : index
    %664 = vector.load %arg35[%c14, %c0_233] : memref<16x32xf32, #tpu.memory_space<vmem>>, vector<2x32xf32>
    tpu.vector_store %arg35[%c14, %c0_233], %663 {strides = array<i32>} : memref<16x32xf32, #tpu.memory_space<vmem>>, vector<2x32xf32>,
    %c0_234 = arith.constant 0 : index
    %c0_235 = arith.constant 0 : index
    %665 = vector.load %arg35[%c0_234, %c0_235] : memref<16x32xf32, #tpu.memory_space<vmem>>, vector<16x32xf32>
    %c0_236 = arith.constant 0 : index
    %c0_237 = arith.constant 0 : index
    %666 = vector.load %arg20[%c0_236, %c0_237] : memref<32x128xf32, #tpu.memory_space<vmem>>, vector<32x128xf32>
    %cst_238 = arith.constant dense<0.000000e+00> : vector<16x128xf32>
    %667 = tpu.matmul %665, %666, %cst_238 {dimension_numbers = #tpu.dot_dimension_numbers<[1], [0], [0], [1], [0, 0, 1, 1], [], []>} : vector<16x32xf32>, vector<32x128xf32>, vector<16x128xf32> -> vector<16x128xf32>
    %c0_239 = arith.constant 0 : index
    %c0_240 = arith.constant 0 : index
    %668 = vector.load %arg21[%c0_239, %c0_240] : memref<1x128xf32, #tpu.memory_space<vmem>>, vector<1x128xf32>
    %669 = vector.broadcast %668 : vector<1x128xf32> to vector<16x128xf32>
    %670 = arith.addf %667, %669 : vector<16x128xf32>
    %c0_241 = arith.constant 0 : index
    %c0_242 = arith.constant 0 : index
    %671 = vector.load %arg24[%c0_241, %c0_242] : memref<1x128xf32, #tpu.memory_space<vmem>>, vector<1x128xf32>
    %c0_243 = arith.constant 0 : index
    %c0_244 = arith.constant 0 : index
    %672 = vector.load %arg25[%c0_243, %c0_244] : memref<1x128xf32, #tpu.memory_space<vmem>>, vector<1x128xf32>
    %cst_245 = arith.constant dense<0.000000e+00> : vector<16xf32>
    %673 = vector.multi_reduction <add>, %670, %cst_245 [1] : vector<16x128xf32> to vector<16xf32>
    %674 = vector.shape_cast %673 : vector<16xf32> to vector<16x1xf32>
    %cst_246 = arith.constant 1.280000e+02 : f32
    %675 = vector.broadcast %cst_246 : f32 to vector<16x1xf32>
    %676 = arith.divf %674, %675 : vector<16x1xf32>
    %677 = vector.broadcast %676 : vector<16x1xf32> to vector<16x128xf32>
    %678 = arith.subf %670, %677 : vector<16x128xf32>
    %679 = arith.mulf %678, %678 : vector<16x128xf32>
    %cst_247 = arith.constant dense<0.000000e+00> : vector<16xf32>
    %680 = vector.multi_reduction <add>, %679, %cst_247 [1] : vector<16x128xf32> to vector<16xf32>
    %681 = vector.shape_cast %680 : vector<16xf32> to vector<16x1xf32>
    %cst_248 = arith.constant 1.280000e+02 : f32
    %682 = vector.broadcast %cst_248 : f32 to vector<16x1xf32>
    %683 = arith.divf %681, %682 : vector<16x1xf32>
    %cst_249 = arith.constant 9.99999974E-6 : f32
    %684 = vector.broadcast %cst_249 : f32 to vector<16x1xf32>
    %685 = arith.addf %683, %684 : vector<16x1xf32>
    %686 = math.rsqrt %685 : vector<16x1xf32>
    %687 = vector.broadcast %686 : vector<16x1xf32> to vector<16x128xf32>
    %688 = arith.mulf %678, %687 : vector<16x128xf32>
    %689 = vector.broadcast %671 : vector<1x128xf32> to vector<16x128xf32>
    %690 = arith.mulf %688, %689 : vector<16x128xf32>
    %691 = vector.broadcast %672 : vector<1x128xf32> to vector<16x128xf32>
    %692 = arith.addf %690, %691 : vector<16x128xf32>
    %c0_250 = arith.constant 0 : index
    %c0_251 = arith.constant 0 : index
    %693 = vector.load %arg22[%c0_250, %c0_251] : memref<32x128xf32, #tpu.memory_space<vmem>>, vector<32x128xf32>
    %c0_252 = arith.constant 0 : index
    %c0_253 = arith.constant 0 : index
    %694 = vector.load %arg23[%c0_252, %c0_253] : memref<1x128xf32, #tpu.memory_space<vmem>>, vector<1x128xf32>
    %c0_254 = arith.constant 0 : index
    %c0_255 = arith.constant 0 : index
    %695 = vector.load %arg26[%c0_254, %c0_255] : memref<1x128xf32, #tpu.memory_space<vmem>>, vector<1x128xf32>
    %c0_256 = arith.constant 0 : index
    %c0_257 = arith.constant 0 : index
    %696 = vector.load %arg27[%c0_256, %c0_257] : memref<1x128xf32, #tpu.memory_space<vmem>>, vector<1x128xf32>
    %c0_258 = arith.constant 0 : index
    %c0_259 = arith.constant 0 : index
    %697 = vector.load %arg28[%c0_258, %c0_259] : memref<1x32xf32, #tpu.memory_space<vmem>>, vector<1x32xf32>
    %c0_260 = arith.constant 0 : index
    %c0_261 = arith.constant 0 : index
    %698 = vector.load %arg29[%c0_260, %c0_261] : memref<1x32xf32, #tpu.memory_space<vmem>>, vector<1x32xf32>
    %cst_262 = arith.constant 0.000000e+00 : f32
    %699 = vector.broadcast %cst_262 : f32 to vector<2x32xf32>
    %cst_263 = arith.constant 0.000000e+00 : f32
    %700 = vector.broadcast %cst_263 : f32 to vector<2x32xf32>
    %701 = vector.extract_strided_slice %692 {offsets = [0, 0], sizes = [2, 128], strides = [1, 1]} : vector<16x128xf32> to vector<2x128xf32>
    %cst_264 = arith.constant dense<0.000000e+00> : vector<2x128xf32>
    %702 = tpu.matmul %699, %693, %cst_264 {dimension_numbers = #tpu.dot_dimension_numbers<[1], [0], [0], [1], [0, 0, 1, 1], [], []>} : vector<2x32xf32>, vector<32x128xf32>, vector<2x128xf32> -> vector<2x128xf32>
    %703 = vector.broadcast %694 : vector<1x128xf32> to vector<2x128xf32>
    %704 = arith.addf %702, %703 : vector<2x128xf32>
    %cst_265 = arith.constant dense<0.000000e+00> : vector<2xf32>
    %705 = vector.multi_reduction <add>, %704, %cst_265 [1] : vector<2x128xf32> to vector<2xf32>
    %706 = vector.shape_cast %705 : vector<2xf32> to vector<2x1xf32>
    %cst_266 = arith.constant 1.280000e+02 : f32
    %707 = vector.broadcast %cst_266 : f32 to vector<2x1xf32>
    %708 = arith.divf %706, %707 : vector<2x1xf32>
    %709 = vector.broadcast %708 : vector<2x1xf32> to vector<2x128xf32>
    %710 = arith.subf %704, %709 : vector<2x128xf32>
    %711 = arith.mulf %710, %710 : vector<2x128xf32>
    %cst_267 = arith.constant dense<0.000000e+00> : vector<2xf32>
    %712 = vector.multi_reduction <add>, %711, %cst_267 [1] : vector<2x128xf32> to vector<2xf32>
    %713 = vector.shape_cast %712 : vector<2xf32> to vector<2x1xf32>
    %cst_268 = arith.constant 1.280000e+02 : f32
    %714 = vector.broadcast %cst_268 : f32 to vector<2x1xf32>
    %715 = arith.divf %713, %714 : vector<2x1xf32>
    %cst_269 = arith.constant 9.99999974E-6 : f32
    %716 = vector.broadcast %cst_269 : f32 to vector<2x1xf32>
    %717 = arith.addf %715, %716 : vector<2x1xf32>
    %718 = math.rsqrt %717 : vector<2x1xf32>
    %719 = vector.broadcast %718 : vector<2x1xf32> to vector<2x128xf32>
    %720 = arith.mulf %710, %719 : vector<2x128xf32>
    %721 = vector.broadcast %695 : vector<1x128xf32> to vector<2x128xf32>
    %722 = arith.mulf %720, %721 : vector<2x128xf32>
    %723 = vector.broadcast %696 : vector<1x128xf32> to vector<2x128xf32>
    %724 = arith.addf %722, %723 : vector<2x128xf32>
    %725 = arith.addf %701, %724 : vector<2x128xf32>
    %726 = vector.extract_strided_slice %725 {offsets = [0, 0], sizes = [2, 96], strides = [1, 1]} : vector<2x128xf32> to vector<2x96xf32>
    %727 = arith.negf %726 : vector<2x96xf32>
    %728 = math.exp %727 : vector<2x96xf32>
    %cst_270 = arith.constant 1.000000e+00 : f32
    %729 = vector.broadcast %cst_270 : f32 to vector<2x96xf32>
    %730 = arith.addf %729, %728 : vector<2x96xf32>
    %731 = arith.divf %729, %730 : vector<2x96xf32>
    %732 = vector.extract_strided_slice %731 {offsets = [0, 0], sizes = [2, 32], strides = [1, 1]} : vector<2x96xf32> to vector<2x32xf32>
    %733 = vector.extract_strided_slice %731 {offsets = [0, 32], sizes = [2, 32], strides = [1, 1]} : vector<2x96xf32> to vector<2x32xf32>
    %734 = vector.extract_strided_slice %731 {offsets = [0, 64], sizes = [2, 32], strides = [1, 1]} : vector<2x96xf32> to vector<2x32xf32>
    %735 = vector.extract_strided_slice %725 {offsets = [0, 96], sizes = [2, 32], strides = [1, 1]} : vector<2x128xf32> to vector<2x32xf32>
    %736 = math.tanh %735 : vector<2x32xf32>
    %737 = arith.mulf %733, %700 : vector<2x32xf32>
    %738 = arith.mulf %732, %736 : vector<2x32xf32>
    %739 = arith.addf %737, %738 : vector<2x32xf32>
    %cst_271 = arith.constant dense<0.000000e+00> : vector<2xf32>
    %740 = vector.multi_reduction <add>, %739, %cst_271 [1] : vector<2x32xf32> to vector<2xf32>
    %741 = vector.shape_cast %740 : vector<2xf32> to vector<2x1xf32>
    %cst_272 = arith.constant 3.200000e+01 : f32
    %742 = vector.broadcast %cst_272 : f32 to vector<2x1xf32>
    %743 = arith.divf %741, %742 : vector<2x1xf32>
    %744 = vector.broadcast %743 : vector<2x1xf32> to vector<2x32xf32>
    %745 = arith.subf %739, %744 : vector<2x32xf32>
    %746 = arith.mulf %745, %745 : vector<2x32xf32>
    %cst_273 = arith.constant dense<0.000000e+00> : vector<2xf32>
    %747 = vector.multi_reduction <add>, %746, %cst_273 [1] : vector<2x32xf32> to vector<2xf32>
    %748 = vector.shape_cast %747 : vector<2xf32> to vector<2x1xf32>
    %cst_274 = arith.constant 3.200000e+01 : f32
    %749 = vector.broadcast %cst_274 : f32 to vector<2x1xf32>
    %750 = arith.divf %748, %749 : vector<2x1xf32>
    %cst_275 = arith.constant 9.99999974E-6 : f32
    %751 = vector.broadcast %cst_275 : f32 to vector<2x1xf32>
    %752 = arith.addf %750, %751 : vector<2x1xf32>
    %753 = math.rsqrt %752 : vector<2x1xf32>
    %754 = vector.broadcast %753 : vector<2x1xf32> to vector<2x32xf32>
    %755 = arith.mulf %745, %754 : vector<2x32xf32>
    %756 = vector.broadcast %697 : vector<1x32xf32> to vector<2x32xf32>
    %757 = arith.mulf %755, %756 : vector<2x32xf32>
    %758 = vector.broadcast %698 : vector<1x32xf32> to vector<2x32xf32>
    %759 = arith.addf %757, %758 : vector<2x32xf32>
    %760 = math.tanh %759 : vector<2x32xf32>
    %761 = arith.mulf %734, %760 : vector<2x32xf32>
    %c0_276 = arith.constant 0 : index
    %c0_277 = arith.constant 0 : index
    %762 = vector.load %arg35[%c0_276, %c0_277] : memref<16x32xf32, #tpu.memory_space<vmem>>, vector<2x32xf32>
    tpu.vector_store %arg35[%c0_276, %c0_277], %761 {strides = array<i32>} : memref<16x32xf32, #tpu.memory_space<vmem>>, vector<2x32xf32>,
    %763 = vector.extract_strided_slice %692 {offsets = [2, 0], sizes = [2, 128], strides = [1, 1]} : vector<16x128xf32> to vector<2x128xf32>
    %cst_278 = arith.constant dense<0.000000e+00> : vector<2x128xf32>
    %764 = tpu.matmul %761, %693, %cst_278 {dimension_numbers = #tpu.dot_dimension_numbers<[1], [0], [0], [1], [0, 0, 1, 1], [], []>} : vector<2x32xf32>, vector<32x128xf32>, vector<2x128xf32> -> vector<2x128xf32>
    %765 = vector.broadcast %694 : vector<1x128xf32> to vector<2x128xf32>
    %766 = arith.addf %764, %765 : vector<2x128xf32>
    %cst_279 = arith.constant dense<0.000000e+00> : vector<2xf32>
    %767 = vector.multi_reduction <add>, %766, %cst_279 [1] : vector<2x128xf32> to vector<2xf32>
    %768 = vector.shape_cast %767 : vector<2xf32> to vector<2x1xf32>
    %cst_280 = arith.constant 1.280000e+02 : f32
    %769 = vector.broadcast %cst_280 : f32 to vector<2x1xf32>
    %770 = arith.divf %768, %769 : vector<2x1xf32>
    %771 = vector.broadcast %770 : vector<2x1xf32> to vector<2x128xf32>
    %772 = arith.subf %766, %771 : vector<2x128xf32>
    %773 = arith.mulf %772, %772 : vector<2x128xf32>
    %cst_281 = arith.constant dense<0.000000e+00> : vector<2xf32>
    %774 = vector.multi_reduction <add>, %773, %cst_281 [1] : vector<2x128xf32> to vector<2xf32>
    %775 = vector.shape_cast %774 : vector<2xf32> to vector<2x1xf32>
    %cst_282 = arith.constant 1.280000e+02 : f32
    %776 = vector.broadcast %cst_282 : f32 to vector<2x1xf32>
    %777 = arith.divf %775, %776 : vector<2x1xf32>
    %cst_283 = arith.constant 9.99999974E-6 : f32
    %778 = vector.broadcast %cst_283 : f32 to vector<2x1xf32>
    %779 = arith.addf %777, %778 : vector<2x1xf32>
    %780 = math.rsqrt %779 : vector<2x1xf32>
    %781 = vector.broadcast %780 : vector<2x1xf32> to vector<2x128xf32>
    %782 = arith.mulf %772, %781 : vector<2x128xf32>
    %783 = vector.broadcast %695 : vector<1x128xf32> to vector<2x128xf32>
    %784 = arith.mulf %782, %783 : vector<2x128xf32>
    %785 = vector.broadcast %696 : vector<1x128xf32> to vector<2x128xf32>
    %786 = arith.addf %784, %785 : vector<2x128xf32>
    %787 = arith.addf %763, %786 : vector<2x128xf32>
    %788 = vector.extract_strided_slice %787 {offsets = [0, 0], sizes = [2, 96], strides = [1, 1]} : vector<2x128xf32> to vector<2x96xf32>
    %789 = arith.negf %788 : vector<2x96xf32>
    %790 = math.exp %789 : vector<2x96xf32>
    %cst_284 = arith.constant 1.000000e+00 : f32
    %791 = vector.broadcast %cst_284 : f32 to vector<2x96xf32>
    %792 = arith.addf %791, %790 : vector<2x96xf32>
    %793 = arith.divf %791, %792 : vector<2x96xf32>
    %794 = vector.extract_strided_slice %793 {offsets = [0, 0], sizes = [2, 32], strides = [1, 1]} : vector<2x96xf32> to vector<2x32xf32>
    %795 = vector.extract_strided_slice %793 {offsets = [0, 32], sizes = [2, 32], strides = [1, 1]} : vector<2x96xf32> to vector<2x32xf32>
    %796 = vector.extract_strided_slice %793 {offsets = [0, 64], sizes = [2, 32], strides = [1, 1]} : vector<2x96xf32> to vector<2x32xf32>
    %797 = vector.extract_strided_slice %787 {offsets = [0, 96], sizes = [2, 32], strides = [1, 1]} : vector<2x128xf32> to vector<2x32xf32>
    %798 = math.tanh %797 : vector<2x32xf32>
    %799 = arith.mulf %795, %739 : vector<2x32xf32>
    %800 = arith.mulf %794, %798 : vector<2x32xf32>
    %801 = arith.addf %799, %800 : vector<2x32xf32>
    %cst_285 = arith.constant dense<0.000000e+00> : vector<2xf32>
    %802 = vector.multi_reduction <add>, %801, %cst_285 [1] : vector<2x32xf32> to vector<2xf32>
    %803 = vector.shape_cast %802 : vector<2xf32> to vector<2x1xf32>
    %cst_286 = arith.constant 3.200000e+01 : f32
    %804 = vector.broadcast %cst_286 : f32 to vector<2x1xf32>
    %805 = arith.divf %803, %804 : vector<2x1xf32>
    %806 = vector.broadcast %805 : vector<2x1xf32> to vector<2x32xf32>
    %807 = arith.subf %801, %806 : vector<2x32xf32>
    %808 = arith.mulf %807, %807 : vector<2x32xf32>
    %cst_287 = arith.constant dense<0.000000e+00> : vector<2xf32>
    %809 = vector.multi_reduction <add>, %808, %cst_287 [1] : vector<2x32xf32> to vector<2xf32>
    %810 = vector.shape_cast %809 : vector<2xf32> to vector<2x1xf32>
    %cst_288 = arith.constant 3.200000e+01 : f32
    %811 = vector.broadcast %cst_288 : f32 to vector<2x1xf32>
    %812 = arith.divf %810, %811 : vector<2x1xf32>
    %cst_289 = arith.constant 9.99999974E-6 : f32
    %813 = vector.broadcast %cst_289 : f32 to vector<2x1xf32>
    %814 = arith.addf %812, %813 : vector<2x1xf32>
    %815 = math.rsqrt %814 : vector<2x1xf32>
    %816 = vector.broadcast %815 : vector<2x1xf32> to vector<2x32xf32>
    %817 = arith.mulf %807, %816 : vector<2x32xf32>
    %818 = vector.broadcast %697 : vector<1x32xf32> to vector<2x32xf32>
    %819 = arith.mulf %817, %818 : vector<2x32xf32>
    %820 = vector.broadcast %698 : vector<1x32xf32> to vector<2x32xf32>
    %821 = arith.addf %819, %820 : vector<2x32xf32>
    %822 = math.tanh %821 : vector<2x32xf32>
    %823 = arith.mulf %796, %822 : vector<2x32xf32>
    %c2_290 = arith.constant 2 : index
    %c0_291 = arith.constant 0 : index
    %824 = vector.load %arg35[%c2_290, %c0_291] : memref<16x32xf32, #tpu.memory_space<vmem>>, vector<2x32xf32>
    tpu.vector_store %arg35[%c2_290, %c0_291], %823 {strides = array<i32>} : memref<16x32xf32, #tpu.memory_space<vmem>>, vector<2x32xf32>,
    %825 = vector.extract_strided_slice %692 {offsets = [4, 0], sizes = [2, 128], strides = [1, 1]} : vector<16x128xf32> to vector<2x128xf32>
    %cst_292 = arith.constant dense<0.000000e+00> : vector<2x128xf32>
    %826 = tpu.matmul %823, %693, %cst_292 {dimension_numbers = #tpu.dot_dimension_numbers<[1], [0], [0], [1], [0, 0, 1, 1], [], []>} : vector<2x32xf32>, vector<32x128xf32>, vector<2x128xf32> -> vector<2x128xf32>
    %827 = vector.broadcast %694 : vector<1x128xf32> to vector<2x128xf32>
    %828 = arith.addf %826, %827 : vector<2x128xf32>
    %cst_293 = arith.constant dense<0.000000e+00> : vector<2xf32>
    %829 = vector.multi_reduction <add>, %828, %cst_293 [1] : vector<2x128xf32> to vector<2xf32>
    %830 = vector.shape_cast %829 : vector<2xf32> to vector<2x1xf32>
    %cst_294 = arith.constant 1.280000e+02 : f32
    %831 = vector.broadcast %cst_294 : f32 to vector<2x1xf32>
    %832 = arith.divf %830, %831 : vector<2x1xf32>
    %833 = vector.broadcast %832 : vector<2x1xf32> to vector<2x128xf32>
    %834 = arith.subf %828, %833 : vector<2x128xf32>
    %835 = arith.mulf %834, %834 : vector<2x128xf32>
    %cst_295 = arith.constant dense<0.000000e+00> : vector<2xf32>
    %836 = vector.multi_reduction <add>, %835, %cst_295 [1] : vector<2x128xf32> to vector<2xf32>
    %837 = vector.shape_cast %836 : vector<2xf32> to vector<2x1xf32>
    %cst_296 = arith.constant 1.280000e+02 : f32
    %838 = vector.broadcast %cst_296 : f32 to vector<2x1xf32>
    %839 = arith.divf %837, %838 : vector<2x1xf32>
    %cst_297 = arith.constant 9.99999974E-6 : f32
    %840 = vector.broadcast %cst_297 : f32 to vector<2x1xf32>
    %841 = arith.addf %839, %840 : vector<2x1xf32>
    %842 = math.rsqrt %841 : vector<2x1xf32>
    %843 = vector.broadcast %842 : vector<2x1xf32> to vector<2x128xf32>
    %844 = arith.mulf %834, %843 : vector<2x128xf32>
    %845 = vector.broadcast %695 : vector<1x128xf32> to vector<2x128xf32>
    %846 = arith.mulf %844, %845 : vector<2x128xf32>
    %847 = vector.broadcast %696 : vector<1x128xf32> to vector<2x128xf32>
    %848 = arith.addf %846, %847 : vector<2x128xf32>
    %849 = arith.addf %825, %848 : vector<2x128xf32>
    %850 = vector.extract_strided_slice %849 {offsets = [0, 0], sizes = [2, 96], strides = [1, 1]} : vector<2x128xf32> to vector<2x96xf32>
    %851 = arith.negf %850 : vector<2x96xf32>
    %852 = math.exp %851 : vector<2x96xf32>
    %cst_298 = arith.constant 1.000000e+00 : f32
    %853 = vector.broadcast %cst_298 : f32 to vector<2x96xf32>
    %854 = arith.addf %853, %852 : vector<2x96xf32>
    %855 = arith.divf %853, %854 : vector<2x96xf32>
    %856 = vector.extract_strided_slice %855 {offsets = [0, 0], sizes = [2, 32], strides = [1, 1]} : vector<2x96xf32> to vector<2x32xf32>
    %857 = vector.extract_strided_slice %855 {offsets = [0, 32], sizes = [2, 32], strides = [1, 1]} : vector<2x96xf32> to vector<2x32xf32>
    %858 = vector.extract_strided_slice %855 {offsets = [0, 64], sizes = [2, 32], strides = [1, 1]} : vector<2x96xf32> to vector<2x32xf32>
    %859 = vector.extract_strided_slice %849 {offsets = [0, 96], sizes = [2, 32], strides = [1, 1]} : vector<2x128xf32> to vector<2x32xf32>
    %860 = math.tanh %859 : vector<2x32xf32>
    %861 = arith.mulf %857, %801 : vector<2x32xf32>
    %862 = arith.mulf %856, %860 : vector<2x32xf32>
    %863 = arith.addf %861, %862 : vector<2x32xf32>
    %cst_299 = arith.constant dense<0.000000e+00> : vector<2xf32>
    %864 = vector.multi_reduction <add>, %863, %cst_299 [1] : vector<2x32xf32> to vector<2xf32>
    %865 = vector.shape_cast %864 : vector<2xf32> to vector<2x1xf32>
    %cst_300 = arith.constant 3.200000e+01 : f32
    %866 = vector.broadcast %cst_300 : f32 to vector<2x1xf32>
    %867 = arith.divf %865, %866 : vector<2x1xf32>
    %868 = vector.broadcast %867 : vector<2x1xf32> to vector<2x32xf32>
    %869 = arith.subf %863, %868 : vector<2x32xf32>
    %870 = arith.mulf %869, %869 : vector<2x32xf32>
    %cst_301 = arith.constant dense<0.000000e+00> : vector<2xf32>
    %871 = vector.multi_reduction <add>, %870, %cst_301 [1] : vector<2x32xf32> to vector<2xf32>
    %872 = vector.shape_cast %871 : vector<2xf32> to vector<2x1xf32>
    %cst_302 = arith.constant 3.200000e+01 : f32
    %873 = vector.broadcast %cst_302 : f32 to vector<2x1xf32>
    %874 = arith.divf %872, %873 : vector<2x1xf32>
    %cst_303 = arith.constant 9.99999974E-6 : f32
    %875 = vector.broadcast %cst_303 : f32 to vector<2x1xf32>
    %876 = arith.addf %874, %875 : vector<2x1xf32>
    %877 = math.rsqrt %876 : vector<2x1xf32>
    %878 = vector.broadcast %877 : vector<2x1xf32> to vector<2x32xf32>
    %879 = arith.mulf %869, %878 : vector<2x32xf32>
    %880 = vector.broadcast %697 : vector<1x32xf32> to vector<2x32xf32>
    %881 = arith.mulf %879, %880 : vector<2x32xf32>
    %882 = vector.broadcast %698 : vector<1x32xf32> to vector<2x32xf32>
    %883 = arith.addf %881, %882 : vector<2x32xf32>
    %884 = math.tanh %883 : vector<2x32xf32>
    %885 = arith.mulf %858, %884 : vector<2x32xf32>
    %c4_304 = arith.constant 4 : index
    %c0_305 = arith.constant 0 : index
    %886 = vector.load %arg35[%c4_304, %c0_305] : memref<16x32xf32, #tpu.memory_space<vmem>>, vector<2x32xf32>
    tpu.vector_store %arg35[%c4_304, %c0_305], %885 {strides = array<i32>} : memref<16x32xf32, #tpu.memory_space<vmem>>, vector<2x32xf32>,
    %887 = vector.extract_strided_slice %692 {offsets = [6, 0], sizes = [2, 128], strides = [1, 1]} : vector<16x128xf32> to vector<2x128xf32>
    %cst_306 = arith.constant dense<0.000000e+00> : vector<2x128xf32>
    %888 = tpu.matmul %885, %693, %cst_306 {dimension_numbers = #tpu.dot_dimension_numbers<[1], [0], [0], [1], [0, 0, 1, 1], [], []>} : vector<2x32xf32>, vector<32x128xf32>, vector<2x128xf32> -> vector<2x128xf32>
    %889 = vector.broadcast %694 : vector<1x128xf32> to vector<2x128xf32>
    %890 = arith.addf %888, %889 : vector<2x128xf32>
    %cst_307 = arith.constant dense<0.000000e+00> : vector<2xf32>
    %891 = vector.multi_reduction <add>, %890, %cst_307 [1] : vector<2x128xf32> to vector<2xf32>
    %892 = vector.shape_cast %891 : vector<2xf32> to vector<2x1xf32>
    %cst_308 = arith.constant 1.280000e+02 : f32
    %893 = vector.broadcast %cst_308 : f32 to vector<2x1xf32>
    %894 = arith.divf %892, %893 : vector<2x1xf32>
    %895 = vector.broadcast %894 : vector<2x1xf32> to vector<2x128xf32>
    %896 = arith.subf %890, %895 : vector<2x128xf32>
    %897 = arith.mulf %896, %896 : vector<2x128xf32>
    %cst_309 = arith.constant dense<0.000000e+00> : vector<2xf32>
    %898 = vector.multi_reduction <add>, %897, %cst_309 [1] : vector<2x128xf32> to vector<2xf32>
    %899 = vector.shape_cast %898 : vector<2xf32> to vector<2x1xf32>
    %cst_310 = arith.constant 1.280000e+02 : f32
    %900 = vector.broadcast %cst_310 : f32 to vector<2x1xf32>
    %901 = arith.divf %899, %900 : vector<2x1xf32>
    %cst_311 = arith.constant 9.99999974E-6 : f32
    %902 = vector.broadcast %cst_311 : f32 to vector<2x1xf32>
    %903 = arith.addf %901, %902 : vector<2x1xf32>
    %904 = math.rsqrt %903 : vector<2x1xf32>
    %905 = vector.broadcast %904 : vector<2x1xf32> to vector<2x128xf32>
    %906 = arith.mulf %896, %905 : vector<2x128xf32>
    %907 = vector.broadcast %695 : vector<1x128xf32> to vector<2x128xf32>
    %908 = arith.mulf %906, %907 : vector<2x128xf32>
    %909 = vector.broadcast %696 : vector<1x128xf32> to vector<2x128xf32>
    %910 = arith.addf %908, %909 : vector<2x128xf32>
    %911 = arith.addf %887, %910 : vector<2x128xf32>
    %912 = vector.extract_strided_slice %911 {offsets = [0, 0], sizes = [2, 96], strides = [1, 1]} : vector<2x128xf32> to vector<2x96xf32>
    %913 = arith.negf %912 : vector<2x96xf32>
    %914 = math.exp %913 : vector<2x96xf32>
    %cst_312 = arith.constant 1.000000e+00 : f32
    %915 = vector.broadcast %cst_312 : f32 to vector<2x96xf32>
    %916 = arith.addf %915, %914 : vector<2x96xf32>
    %917 = arith.divf %915, %916 : vector<2x96xf32>
    %918 = vector.extract_strided_slice %917 {offsets = [0, 0], sizes = [2, 32], strides = [1, 1]} : vector<2x96xf32> to vector<2x32xf32>
    %919 = vector.extract_strided_slice %917 {offsets = [0, 32], sizes = [2, 32], strides = [1, 1]} : vector<2x96xf32> to vector<2x32xf32>
    %920 = vector.extract_strided_slice %917 {offsets = [0, 64], sizes = [2, 32], strides = [1, 1]} : vector<2x96xf32> to vector<2x32xf32>
    %921 = vector.extract_strided_slice %911 {offsets = [0, 96], sizes = [2, 32], strides = [1, 1]} : vector<2x128xf32> to vector<2x32xf32>
    %922 = math.tanh %921 : vector<2x32xf32>
    %923 = arith.mulf %919, %863 : vector<2x32xf32>
    %924 = arith.mulf %918, %922 : vector<2x32xf32>
    %925 = arith.addf %923, %924 : vector<2x32xf32>
    %cst_313 = arith.constant dense<0.000000e+00> : vector<2xf32>
    %926 = vector.multi_reduction <add>, %925, %cst_313 [1] : vector<2x32xf32> to vector<2xf32>
    %927 = vector.shape_cast %926 : vector<2xf32> to vector<2x1xf32>
    %cst_314 = arith.constant 3.200000e+01 : f32
    %928 = vector.broadcast %cst_314 : f32 to vector<2x1xf32>
    %929 = arith.divf %927, %928 : vector<2x1xf32>
    %930 = vector.broadcast %929 : vector<2x1xf32> to vector<2x32xf32>
    %931 = arith.subf %925, %930 : vector<2x32xf32>
    %932 = arith.mulf %931, %931 : vector<2x32xf32>
    %cst_315 = arith.constant dense<0.000000e+00> : vector<2xf32>
    %933 = vector.multi_reduction <add>, %932, %cst_315 [1] : vector<2x32xf32> to vector<2xf32>
    %934 = vector.shape_cast %933 : vector<2xf32> to vector<2x1xf32>
    %cst_316 = arith.constant 3.200000e+01 : f32
    %935 = vector.broadcast %cst_316 : f32 to vector<2x1xf32>
    %936 = arith.divf %934, %935 : vector<2x1xf32>
    %cst_317 = arith.constant 9.99999974E-6 : f32
    %937 = vector.broadcast %cst_317 : f32 to vector<2x1xf32>
    %938 = arith.addf %936, %937 : vector<2x1xf32>
    %939 = math.rsqrt %938 : vector<2x1xf32>
    %940 = vector.broadcast %939 : vector<2x1xf32> to vector<2x32xf32>
    %941 = arith.mulf %931, %940 : vector<2x32xf32>
    %942 = vector.broadcast %697 : vector<1x32xf32> to vector<2x32xf32>
    %943 = arith.mulf %941, %942 : vector<2x32xf32>
    %944 = vector.broadcast %698 : vector<1x32xf32> to vector<2x32xf32>
    %945 = arith.addf %943, %944 : vector<2x32xf32>
    %946 = math.tanh %945 : vector<2x32xf32>
    %947 = arith.mulf %920, %946 : vector<2x32xf32>
    %c6_318 = arith.constant 6 : index
    %c0_319 = arith.constant 0 : index
    %948 = vector.load %arg35[%c6_318, %c0_319] : memref<16x32xf32, #tpu.memory_space<vmem>>, vector<2x32xf32>
    tpu.vector_store %arg35[%c6_318, %c0_319], %947 {strides = array<i32>} : memref<16x32xf32, #tpu.memory_space<vmem>>, vector<2x32xf32>,
    %949 = vector.extract_strided_slice %692 {offsets = [8, 0], sizes = [2, 128], strides = [1, 1]} : vector<16x128xf32> to vector<2x128xf32>
    %cst_320 = arith.constant dense<0.000000e+00> : vector<2x128xf32>
    %950 = tpu.matmul %947, %693, %cst_320 {dimension_numbers = #tpu.dot_dimension_numbers<[1], [0], [0], [1], [0, 0, 1, 1], [], []>} : vector<2x32xf32>, vector<32x128xf32>, vector<2x128xf32> -> vector<2x128xf32>
    %951 = vector.broadcast %694 : vector<1x128xf32> to vector<2x128xf32>
    %952 = arith.addf %950, %951 : vector<2x128xf32>
    %cst_321 = arith.constant dense<0.000000e+00> : vector<2xf32>
    %953 = vector.multi_reduction <add>, %952, %cst_321 [1] : vector<2x128xf32> to vector<2xf32>
    %954 = vector.shape_cast %953 : vector<2xf32> to vector<2x1xf32>
    %cst_322 = arith.constant 1.280000e+02 : f32
    %955 = vector.broadcast %cst_322 : f32 to vector<2x1xf32>
    %956 = arith.divf %954, %955 : vector<2x1xf32>
    %957 = vector.broadcast %956 : vector<2x1xf32> to vector<2x128xf32>
    %958 = arith.subf %952, %957 : vector<2x128xf32>
    %959 = arith.mulf %958, %958 : vector<2x128xf32>
    %cst_323 = arith.constant dense<0.000000e+00> : vector<2xf32>
    %960 = vector.multi_reduction <add>, %959, %cst_323 [1] : vector<2x128xf32> to vector<2xf32>
    %961 = vector.shape_cast %960 : vector<2xf32> to vector<2x1xf32>
    %cst_324 = arith.constant 1.280000e+02 : f32
    %962 = vector.broadcast %cst_324 : f32 to vector<2x1xf32>
    %963 = arith.divf %961, %962 : vector<2x1xf32>
    %cst_325 = arith.constant 9.99999974E-6 : f32
    %964 = vector.broadcast %cst_325 : f32 to vector<2x1xf32>
    %965 = arith.addf %963, %964 : vector<2x1xf32>
    %966 = math.rsqrt %965 : vector<2x1xf32>
    %967 = vector.broadcast %966 : vector<2x1xf32> to vector<2x128xf32>
    %968 = arith.mulf %958, %967 : vector<2x128xf32>
    %969 = vector.broadcast %695 : vector<1x128xf32> to vector<2x128xf32>
    %970 = arith.mulf %968, %969 : vector<2x128xf32>
    %971 = vector.broadcast %696 : vector<1x128xf32> to vector<2x128xf32>
    %972 = arith.addf %970, %971 : vector<2x128xf32>
    %973 = arith.addf %949, %972 : vector<2x128xf32>
    %974 = vector.extract_strided_slice %973 {offsets = [0, 0], sizes = [2, 96], strides = [1, 1]} : vector<2x128xf32> to vector<2x96xf32>
    %975 = arith.negf %974 : vector<2x96xf32>
    %976 = math.exp %975 : vector<2x96xf32>
    %cst_326 = arith.constant 1.000000e+00 : f32
    %977 = vector.broadcast %cst_326 : f32 to vector<2x96xf32>
    %978 = arith.addf %977, %976 : vector<2x96xf32>
    %979 = arith.divf %977, %978 : vector<2x96xf32>
    %980 = vector.extract_strided_slice %979 {offsets = [0, 0], sizes = [2, 32], strides = [1, 1]} : vector<2x96xf32> to vector<2x32xf32>
    %981 = vector.extract_strided_slice %979 {offsets = [0, 32], sizes = [2, 32], strides = [1, 1]} : vector<2x96xf32> to vector<2x32xf32>
    %982 = vector.extract_strided_slice %979 {offsets = [0, 64], sizes = [2, 32], strides = [1, 1]} : vector<2x96xf32> to vector<2x32xf32>
    %983 = vector.extract_strided_slice %973 {offsets = [0, 96], sizes = [2, 32], strides = [1, 1]} : vector<2x128xf32> to vector<2x32xf32>
    %984 = math.tanh %983 : vector<2x32xf32>
    %985 = arith.mulf %981, %925 : vector<2x32xf32>
    %986 = arith.mulf %980, %984 : vector<2x32xf32>
    %987 = arith.addf %985, %986 : vector<2x32xf32>
    %cst_327 = arith.constant dense<0.000000e+00> : vector<2xf32>
    %988 = vector.multi_reduction <add>, %987, %cst_327 [1] : vector<2x32xf32> to vector<2xf32>
    %989 = vector.shape_cast %988 : vector<2xf32> to vector<2x1xf32>
    %cst_328 = arith.constant 3.200000e+01 : f32
    %990 = vector.broadcast %cst_328 : f32 to vector<2x1xf32>
    %991 = arith.divf %989, %990 : vector<2x1xf32>
    %992 = vector.broadcast %991 : vector<2x1xf32> to vector<2x32xf32>
    %993 = arith.subf %987, %992 : vector<2x32xf32>
    %994 = arith.mulf %993, %993 : vector<2x32xf32>
    %cst_329 = arith.constant dense<0.000000e+00> : vector<2xf32>
    %995 = vector.multi_reduction <add>, %994, %cst_329 [1] : vector<2x32xf32> to vector<2xf32>
    %996 = vector.shape_cast %995 : vector<2xf32> to vector<2x1xf32>
    %cst_330 = arith.constant 3.200000e+01 : f32
    %997 = vector.broadcast %cst_330 : f32 to vector<2x1xf32>
    %998 = arith.divf %996, %997 : vector<2x1xf32>
    %cst_331 = arith.constant 9.99999974E-6 : f32
    %999 = vector.broadcast %cst_331 : f32 to vector<2x1xf32>
    %1000 = arith.addf %998, %999 : vector<2x1xf32>
    %1001 = math.rsqrt %1000 : vector<2x1xf32>
    %1002 = vector.broadcast %1001 : vector<2x1xf32> to vector<2x32xf32>
    %1003 = arith.mulf %993, %1002 : vector<2x32xf32>
    %1004 = vector.broadcast %697 : vector<1x32xf32> to vector<2x32xf32>
    %1005 = arith.mulf %1003, %1004 : vector<2x32xf32>
    %1006 = vector.broadcast %698 : vector<1x32xf32> to vector<2x32xf32>
    %1007 = arith.addf %1005, %1006 : vector<2x32xf32>
    %1008 = math.tanh %1007 : vector<2x32xf32>
    %1009 = arith.mulf %982, %1008 : vector<2x32xf32>
    %c8_332 = arith.constant 8 : index
    %c0_333 = arith.constant 0 : index
    %1010 = vector.load %arg35[%c8_332, %c0_333] : memref<16x32xf32, #tpu.memory_space<vmem>>, vector<2x32xf32>
    tpu.vector_store %arg35[%c8_332, %c0_333], %1009 {strides = array<i32>} : memref<16x32xf32, #tpu.memory_space<vmem>>, vector<2x32xf32>,
    %1011 = vector.extract_strided_slice %692 {offsets = [10, 0], sizes = [2, 128], strides = [1, 1]} : vector<16x128xf32> to vector<2x128xf32>
    %cst_334 = arith.constant dense<0.000000e+00> : vector<2x128xf32>
    %1012 = tpu.matmul %1009, %693, %cst_334 {dimension_numbers = #tpu.dot_dimension_numbers<[1], [0], [0], [1], [0, 0, 1, 1], [], []>} : vector<2x32xf32>, vector<32x128xf32>, vector<2x128xf32> -> vector<2x128xf32>
    %1013 = vector.broadcast %694 : vector<1x128xf32> to vector<2x128xf32>
    %1014 = arith.addf %1012, %1013 : vector<2x128xf32>
    %cst_335 = arith.constant dense<0.000000e+00> : vector<2xf32>
    %1015 = vector.multi_reduction <add>, %1014, %cst_335 [1] : vector<2x128xf32> to vector<2xf32>
    %1016 = vector.shape_cast %1015 : vector<2xf32> to vector<2x1xf32>
    %cst_336 = arith.constant 1.280000e+02 : f32
    %1017 = vector.broadcast %cst_336 : f32 to vector<2x1xf32>
    %1018 = arith.divf %1016, %1017 : vector<2x1xf32>
    %1019 = vector.broadcast %1018 : vector<2x1xf32> to vector<2x128xf32>
    %1020 = arith.subf %1014, %1019 : vector<2x128xf32>
    %1021 = arith.mulf %1020, %1020 : vector<2x128xf32>
    %cst_337 = arith.constant dense<0.000000e+00> : vector<2xf32>
    %1022 = vector.multi_reduction <add>, %1021, %cst_337 [1] : vector<2x128xf32> to vector<2xf32>
    %1023 = vector.shape_cast %1022 : vector<2xf32> to vector<2x1xf32>
    %cst_338 = arith.constant 1.280000e+02 : f32
    %1024 = vector.broadcast %cst_338 : f32 to vector<2x1xf32>
    %1025 = arith.divf %1023, %1024 : vector<2x1xf32>
    %cst_339 = arith.constant 9.99999974E-6 : f32
    %1026 = vector.broadcast %cst_339 : f32 to vector<2x1xf32>
    %1027 = arith.addf %1025, %1026 : vector<2x1xf32>
    %1028 = math.rsqrt %1027 : vector<2x1xf32>
    %1029 = vector.broadcast %1028 : vector<2x1xf32> to vector<2x128xf32>
    %1030 = arith.mulf %1020, %1029 : vector<2x128xf32>
    %1031 = vector.broadcast %695 : vector<1x128xf32> to vector<2x128xf32>
    %1032 = arith.mulf %1030, %1031 : vector<2x128xf32>
    %1033 = vector.broadcast %696 : vector<1x128xf32> to vector<2x128xf32>
    %1034 = arith.addf %1032, %1033 : vector<2x128xf32>
    %1035 = arith.addf %1011, %1034 : vector<2x128xf32>
    %1036 = vector.extract_strided_slice %1035 {offsets = [0, 0], sizes = [2, 96], strides = [1, 1]} : vector<2x128xf32> to vector<2x96xf32>
    %1037 = arith.negf %1036 : vector<2x96xf32>
    %1038 = math.exp %1037 : vector<2x96xf32>
    %cst_340 = arith.constant 1.000000e+00 : f32
    %1039 = vector.broadcast %cst_340 : f32 to vector<2x96xf32>
    %1040 = arith.addf %1039, %1038 : vector<2x96xf32>
    %1041 = arith.divf %1039, %1040 : vector<2x96xf32>
    %1042 = vector.extract_strided_slice %1041 {offsets = [0, 0], sizes = [2, 32], strides = [1, 1]} : vector<2x96xf32> to vector<2x32xf32>
    %1043 = vector.extract_strided_slice %1041 {offsets = [0, 32], sizes = [2, 32], strides = [1, 1]} : vector<2x96xf32> to vector<2x32xf32>
    %1044 = vector.extract_strided_slice %1041 {offsets = [0, 64], sizes = [2, 32], strides = [1, 1]} : vector<2x96xf32> to vector<2x32xf32>
    %1045 = vector.extract_strided_slice %1035 {offsets = [0, 96], sizes = [2, 32], strides = [1, 1]} : vector<2x128xf32> to vector<2x32xf32>
    %1046 = math.tanh %1045 : vector<2x32xf32>
    %1047 = arith.mulf %1043, %987 : vector<2x32xf32>
    %1048 = arith.mulf %1042, %1046 : vector<2x32xf32>
    %1049 = arith.addf %1047, %1048 : vector<2x32xf32>
    %cst_341 = arith.constant dense<0.000000e+00> : vector<2xf32>
    %1050 = vector.multi_reduction <add>, %1049, %cst_341 [1] : vector<2x32xf32> to vector<2xf32>
    %1051 = vector.shape_cast %1050 : vector<2xf32> to vector<2x1xf32>
    %cst_342 = arith.constant 3.200000e+01 : f32
    %1052 = vector.broadcast %cst_342 : f32 to vector<2x1xf32>
    %1053 = arith.divf %1051, %1052 : vector<2x1xf32>
    %1054 = vector.broadcast %1053 : vector<2x1xf32> to vector<2x32xf32>
    %1055 = arith.subf %1049, %1054 : vector<2x32xf32>
    %1056 = arith.mulf %1055, %1055 : vector<2x32xf32>
    %cst_343 = arith.constant dense<0.000000e+00> : vector<2xf32>
    %1057 = vector.multi_reduction <add>, %1056, %cst_343 [1] : vector<2x32xf32> to vector<2xf32>
    %1058 = vector.shape_cast %1057 : vector<2xf32> to vector<2x1xf32>
    %cst_344 = arith.constant 3.200000e+01 : f32
    %1059 = vector.broadcast %cst_344 : f32 to vector<2x1xf32>
    %1060 = arith.divf %1058, %1059 : vector<2x1xf32>
    %cst_345 = arith.constant 9.99999974E-6 : f32
    %1061 = vector.broadcast %cst_345 : f32 to vector<2x1xf32>
    %1062 = arith.addf %1060, %1061 : vector<2x1xf32>
    %1063 = math.rsqrt %1062 : vector<2x1xf32>
    %1064 = vector.broadcast %1063 : vector<2x1xf32> to vector<2x32xf32>
    %1065 = arith.mulf %1055, %1064 : vector<2x32xf32>
    %1066 = vector.broadcast %697 : vector<1x32xf32> to vector<2x32xf32>
    %1067 = arith.mulf %1065, %1066 : vector<2x32xf32>
    %1068 = vector.broadcast %698 : vector<1x32xf32> to vector<2x32xf32>
    %1069 = arith.addf %1067, %1068 : vector<2x32xf32>
    %1070 = math.tanh %1069 : vector<2x32xf32>
    %1071 = arith.mulf %1044, %1070 : vector<2x32xf32>
    %c10_346 = arith.constant 10 : index
    %c0_347 = arith.constant 0 : index
    %1072 = vector.load %arg35[%c10_346, %c0_347] : memref<16x32xf32, #tpu.memory_space<vmem>>, vector<2x32xf32>
    tpu.vector_store %arg35[%c10_346, %c0_347], %1071 {strides = array<i32>} : memref<16x32xf32, #tpu.memory_space<vmem>>, vector<2x32xf32>,
    %1073 = vector.extract_strided_slice %692 {offsets = [12, 0], sizes = [2, 128], strides = [1, 1]} : vector<16x128xf32> to vector<2x128xf32>
    %cst_348 = arith.constant dense<0.000000e+00> : vector<2x128xf32>
    %1074 = tpu.matmul %1071, %693, %cst_348 {dimension_numbers = #tpu.dot_dimension_numbers<[1], [0], [0], [1], [0, 0, 1, 1], [], []>} : vector<2x32xf32>, vector<32x128xf32>, vector<2x128xf32> -> vector<2x128xf32>
    %1075 = vector.broadcast %694 : vector<1x128xf32> to vector<2x128xf32>
    %1076 = arith.addf %1074, %1075 : vector<2x128xf32>
    %cst_349 = arith.constant dense<0.000000e+00> : vector<2xf32>
    %1077 = vector.multi_reduction <add>, %1076, %cst_349 [1] : vector<2x128xf32> to vector<2xf32>
    %1078 = vector.shape_cast %1077 : vector<2xf32> to vector<2x1xf32>
    %cst_350 = arith.constant 1.280000e+02 : f32
    %1079 = vector.broadcast %cst_350 : f32 to vector<2x1xf32>
    %1080 = arith.divf %1078, %1079 : vector<2x1xf32>
    %1081 = vector.broadcast %1080 : vector<2x1xf32> to vector<2x128xf32>
    %1082 = arith.subf %1076, %1081 : vector<2x128xf32>
    %1083 = arith.mulf %1082, %1082 : vector<2x128xf32>
    %cst_351 = arith.constant dense<0.000000e+00> : vector<2xf32>
    %1084 = vector.multi_reduction <add>, %1083, %cst_351 [1] : vector<2x128xf32> to vector<2xf32>
    %1085 = vector.shape_cast %1084 : vector<2xf32> to vector<2x1xf32>
    %cst_352 = arith.constant 1.280000e+02 : f32
    %1086 = vector.broadcast %cst_352 : f32 to vector<2x1xf32>
    %1087 = arith.divf %1085, %1086 : vector<2x1xf32>
    %cst_353 = arith.constant 9.99999974E-6 : f32
    %1088 = vector.broadcast %cst_353 : f32 to vector<2x1xf32>
    %1089 = arith.addf %1087, %1088 : vector<2x1xf32>
    %1090 = math.rsqrt %1089 : vector<2x1xf32>
    %1091 = vector.broadcast %1090 : vector<2x1xf32> to vector<2x128xf32>
    %1092 = arith.mulf %1082, %1091 : vector<2x128xf32>
    %1093 = vector.broadcast %695 : vector<1x128xf32> to vector<2x128xf32>
    %1094 = arith.mulf %1092, %1093 : vector<2x128xf32>
    %1095 = vector.broadcast %696 : vector<1x128xf32> to vector<2x128xf32>
    %1096 = arith.addf %1094, %1095 : vector<2x128xf32>
    %1097 = arith.addf %1073, %1096 : vector<2x128xf32>
    %1098 = vector.extract_strided_slice %1097 {offsets = [0, 0], sizes = [2, 96], strides = [1, 1]} : vector<2x128xf32> to vector<2x96xf32>
    %1099 = arith.negf %1098 : vector<2x96xf32>
    %1100 = math.exp %1099 : vector<2x96xf32>
    %cst_354 = arith.constant 1.000000e+00 : f32
    %1101 = vector.broadcast %cst_354 : f32 to vector<2x96xf32>
    %1102 = arith.addf %1101, %1100 : vector<2x96xf32>
    %1103 = arith.divf %1101, %1102 : vector<2x96xf32>
    %1104 = vector.extract_strided_slice %1103 {offsets = [0, 0], sizes = [2, 32], strides = [1, 1]} : vector<2x96xf32> to vector<2x32xf32>
    %1105 = vector.extract_strided_slice %1103 {offsets = [0, 32], sizes = [2, 32], strides = [1, 1]} : vector<2x96xf32> to vector<2x32xf32>
    %1106 = vector.extract_strided_slice %1103 {offsets = [0, 64], sizes = [2, 32], strides = [1, 1]} : vector<2x96xf32> to vector<2x32xf32>
    %1107 = vector.extract_strided_slice %1097 {offsets = [0, 96], sizes = [2, 32], strides = [1, 1]} : vector<2x128xf32> to vector<2x32xf32>
    %1108 = math.tanh %1107 : vector<2x32xf32>
    %1109 = arith.mulf %1105, %1049 : vector<2x32xf32>
    %1110 = arith.mulf %1104, %1108 : vector<2x32xf32>
    %1111 = arith.addf %1109, %1110 : vector<2x32xf32>
    %cst_355 = arith.constant dense<0.000000e+00> : vector<2xf32>
    %1112 = vector.multi_reduction <add>, %1111, %cst_355 [1] : vector<2x32xf32> to vector<2xf32>
    %1113 = vector.shape_cast %1112 : vector<2xf32> to vector<2x1xf32>
    %cst_356 = arith.constant 3.200000e+01 : f32
    %1114 = vector.broadcast %cst_356 : f32 to vector<2x1xf32>
    %1115 = arith.divf %1113, %1114 : vector<2x1xf32>
    %1116 = vector.broadcast %1115 : vector<2x1xf32> to vector<2x32xf32>
    %1117 = arith.subf %1111, %1116 : vector<2x32xf32>
    %1118 = arith.mulf %1117, %1117 : vector<2x32xf32>
    %cst_357 = arith.constant dense<0.000000e+00> : vector<2xf32>
    %1119 = vector.multi_reduction <add>, %1118, %cst_357 [1] : vector<2x32xf32> to vector<2xf32>
    %1120 = vector.shape_cast %1119 : vector<2xf32> to vector<2x1xf32>
    %cst_358 = arith.constant 3.200000e+01 : f32
    %1121 = vector.broadcast %cst_358 : f32 to vector<2x1xf32>
    %1122 = arith.divf %1120, %1121 : vector<2x1xf32>
    %cst_359 = arith.constant 9.99999974E-6 : f32
    %1123 = vector.broadcast %cst_359 : f32 to vector<2x1xf32>
    %1124 = arith.addf %1122, %1123 : vector<2x1xf32>
    %1125 = math.rsqrt %1124 : vector<2x1xf32>
    %1126 = vector.broadcast %1125 : vector<2x1xf32> to vector<2x32xf32>
    %1127 = arith.mulf %1117, %1126 : vector<2x32xf32>
    %1128 = vector.broadcast %697 : vector<1x32xf32> to vector<2x32xf32>
    %1129 = arith.mulf %1127, %1128 : vector<2x32xf32>
    %1130 = vector.broadcast %698 : vector<1x32xf32> to vector<2x32xf32>
    %1131 = arith.addf %1129, %1130 : vector<2x32xf32>
    %1132 = math.tanh %1131 : vector<2x32xf32>
    %1133 = arith.mulf %1106, %1132 : vector<2x32xf32>
    %c12_360 = arith.constant 12 : index
    %c0_361 = arith.constant 0 : index
    %1134 = vector.load %arg35[%c12_360, %c0_361] : memref<16x32xf32, #tpu.memory_space<vmem>>, vector<2x32xf32>
    tpu.vector_store %arg35[%c12_360, %c0_361], %1133 {strides = array<i32>} : memref<16x32xf32, #tpu.memory_space<vmem>>, vector<2x32xf32>,
    %1135 = vector.extract_strided_slice %692 {offsets = [14, 0], sizes = [2, 128], strides = [1, 1]} : vector<16x128xf32> to vector<2x128xf32>
    %cst_362 = arith.constant dense<0.000000e+00> : vector<2x128xf32>
    %1136 = tpu.matmul %1133, %693, %cst_362 {dimension_numbers = #tpu.dot_dimension_numbers<[1], [0], [0], [1], [0, 0, 1, 1], [], []>} : vector<2x32xf32>, vector<32x128xf32>, vector<2x128xf32> -> vector<2x128xf32>
    %1137 = vector.broadcast %694 : vector<1x128xf32> to vector<2x128xf32>
    %1138 = arith.addf %1136, %1137 : vector<2x128xf32>
    %cst_363 = arith.constant dense<0.000000e+00> : vector<2xf32>
    %1139 = vector.multi_reduction <add>, %1138, %cst_363 [1] : vector<2x128xf32> to vector<2xf32>
    %1140 = vector.shape_cast %1139 : vector<2xf32> to vector<2x1xf32>
    %cst_364 = arith.constant 1.280000e+02 : f32
    %1141 = vector.broadcast %cst_364 : f32 to vector<2x1xf32>
    %1142 = arith.divf %1140, %1141 : vector<2x1xf32>
    %1143 = vector.broadcast %1142 : vector<2x1xf32> to vector<2x128xf32>
    %1144 = arith.subf %1138, %1143 : vector<2x128xf32>
    %1145 = arith.mulf %1144, %1144 : vector<2x128xf32>
    %cst_365 = arith.constant dense<0.000000e+00> : vector<2xf32>
    %1146 = vector.multi_reduction <add>, %1145, %cst_365 [1] : vector<2x128xf32> to vector<2xf32>
    %1147 = vector.shape_cast %1146 : vector<2xf32> to vector<2x1xf32>
    %cst_366 = arith.constant 1.280000e+02 : f32
    %1148 = vector.broadcast %cst_366 : f32 to vector<2x1xf32>
    %1149 = arith.divf %1147, %1148 : vector<2x1xf32>
    %cst_367 = arith.constant 9.99999974E-6 : f32
    %1150 = vector.broadcast %cst_367 : f32 to vector<2x1xf32>
    %1151 = arith.addf %1149, %1150 : vector<2x1xf32>
    %1152 = math.rsqrt %1151 : vector<2x1xf32>
    %1153 = vector.broadcast %1152 : vector<2x1xf32> to vector<2x128xf32>
    %1154 = arith.mulf %1144, %1153 : vector<2x128xf32>
    %1155 = vector.broadcast %695 : vector<1x128xf32> to vector<2x128xf32>
    %1156 = arith.mulf %1154, %1155 : vector<2x128xf32>
    %1157 = vector.broadcast %696 : vector<1x128xf32> to vector<2x128xf32>
    %1158 = arith.addf %1156, %1157 : vector<2x128xf32>
    %1159 = arith.addf %1135, %1158 : vector<2x128xf32>
    %1160 = vector.extract_strided_slice %1159 {offsets = [0, 0], sizes = [2, 96], strides = [1, 1]} : vector<2x128xf32> to vector<2x96xf32>
    %1161 = arith.negf %1160 : vector<2x96xf32>
    %1162 = math.exp %1161 : vector<2x96xf32>
    %cst_368 = arith.constant 1.000000e+00 : f32
    %1163 = vector.broadcast %cst_368 : f32 to vector<2x96xf32>
    %1164 = arith.addf %1163, %1162 : vector<2x96xf32>
    %1165 = arith.divf %1163, %1164 : vector<2x96xf32>
    %1166 = vector.extract_strided_slice %1165 {offsets = [0, 0], sizes = [2, 32], strides = [1, 1]} : vector<2x96xf32> to vector<2x32xf32>
    %1167 = vector.extract_strided_slice %1165 {offsets = [0, 32], sizes = [2, 32], strides = [1, 1]} : vector<2x96xf32> to vector<2x32xf32>
    %1168 = vector.extract_strided_slice %1165 {offsets = [0, 64], sizes = [2, 32], strides = [1, 1]} : vector<2x96xf32> to vector<2x32xf32>
    %1169 = vector.extract_strided_slice %1159 {offsets = [0, 96], sizes = [2, 32], strides = [1, 1]} : vector<2x128xf32> to vector<2x32xf32>
    %1170 = math.tanh %1169 : vector<2x32xf32>
    %1171 = arith.mulf %1167, %1111 : vector<2x32xf32>
    %1172 = arith.mulf %1166, %1170 : vector<2x32xf32>
    %1173 = arith.addf %1171, %1172 : vector<2x32xf32>
    %cst_369 = arith.constant dense<0.000000e+00> : vector<2xf32>
    %1174 = vector.multi_reduction <add>, %1173, %cst_369 [1] : vector<2x32xf32> to vector<2xf32>
    %1175 = vector.shape_cast %1174 : vector<2xf32> to vector<2x1xf32>
    %cst_370 = arith.constant 3.200000e+01 : f32
    %1176 = vector.broadcast %cst_370 : f32 to vector<2x1xf32>
    %1177 = arith.divf %1175, %1176 : vector<2x1xf32>
    %1178 = vector.broadcast %1177 : vector<2x1xf32> to vector<2x32xf32>
    %1179 = arith.subf %1173, %1178 : vector<2x32xf32>
    %1180 = arith.mulf %1179, %1179 : vector<2x32xf32>
    %cst_371 = arith.constant dense<0.000000e+00> : vector<2xf32>
    %1181 = vector.multi_reduction <add>, %1180, %cst_371 [1] : vector<2x32xf32> to vector<2xf32>
    %1182 = vector.shape_cast %1181 : vector<2xf32> to vector<2x1xf32>
    %cst_372 = arith.constant 3.200000e+01 : f32
    %1183 = vector.broadcast %cst_372 : f32 to vector<2x1xf32>
    %1184 = arith.divf %1182, %1183 : vector<2x1xf32>
    %cst_373 = arith.constant 9.99999974E-6 : f32
    %1185 = vector.broadcast %cst_373 : f32 to vector<2x1xf32>
    %1186 = arith.addf %1184, %1185 : vector<2x1xf32>
    %1187 = math.rsqrt %1186 : vector<2x1xf32>
    %1188 = vector.broadcast %1187 : vector<2x1xf32> to vector<2x32xf32>
    %1189 = arith.mulf %1179, %1188 : vector<2x32xf32>
    %1190 = vector.broadcast %697 : vector<1x32xf32> to vector<2x32xf32>
    %1191 = arith.mulf %1189, %1190 : vector<2x32xf32>
    %1192 = vector.broadcast %698 : vector<1x32xf32> to vector<2x32xf32>
    %1193 = arith.addf %1191, %1192 : vector<2x32xf32>
    %1194 = math.tanh %1193 : vector<2x32xf32>
    %1195 = arith.mulf %1168, %1194 : vector<2x32xf32>
    %c14_374 = arith.constant 14 : index
    %c0_375 = arith.constant 0 : index
    %1196 = vector.load %arg35[%c14_374, %c0_375] : memref<16x32xf32, #tpu.memory_space<vmem>>, vector<2x32xf32>
    tpu.vector_store %arg35[%c14_374, %c0_375], %1195 {strides = array<i32>} : memref<16x32xf32, #tpu.memory_space<vmem>>, vector<2x32xf32>,
    %c0_376 = arith.constant 0 : index
    %c0_377 = arith.constant 0 : index
    %1197 = vector.load %arg35[%c0_376, %c0_377] : memref<16x32xf32, #tpu.memory_space<vmem>>, vector<16x32xf32>
    %c0_378 = arith.constant 0 : index
    %c0_379 = arith.constant 0 : index
    %1198 = vector.load %arg30[%c0_378, %c0_379] : memref<32x4xf32, #tpu.memory_space<vmem>>, vector<32x4xf32>
    %cst_380 = arith.constant dense<0.000000e+00> : vector<16x4xf32>
    %1199 = tpu.matmul %1197, %1198, %cst_380 {dimension_numbers = #tpu.dot_dimension_numbers<[1], [0], [0], [1], [0, 0, 1, 1], [], []>} : vector<16x32xf32>, vector<32x4xf32>, vector<16x4xf32> -> vector<16x4xf32>
    %c0_381 = arith.constant 0 : index
    %c0_382 = arith.constant 0 : index
    %1200 = vector.load %arg31[%c0_381, %c0_382] : memref<1x4xf32, #tpu.memory_space<vmem>>, vector<1x4xf32>
    %1201 = vector.broadcast %1200 : vector<1x4xf32> to vector<16x4xf32>
    %1202 = arith.addf %1199, %1201 : vector<16x4xf32>
    %c0_383 = arith.constant 0 : index
    %c0_384 = arith.constant 0 : index
    %1203 = vector.load %arg32[%c0_383, %c0_384] : memref<16x16xf32, #tpu.memory_space<vmem>>, vector<16x16xf32>
    %cst_385 = arith.constant dense<0.000000e+00> : vector<16x4xf32>
    %1204 = tpu.matmul %1203, %1202, %cst_385 {dimension_numbers = #tpu.dot_dimension_numbers<[1], [0], [0], [1], [0, 0, 1, 1], [], []>} : vector<16x16xf32>, vector<16x4xf32>, vector<16x4xf32> -> vector<16x4xf32>
    %c0_386 = arith.constant 0 : index
    %c0_387 = arith.constant 0 : index
    %1205 = vector.load %arg33[%c0_386, %c0_387] : memref<16x4xf32, #tpu.memory_space<vmem>>, vector<16x4xf32>
    tpu.vector_store %arg33[%c0_386, %c0_387], %1204 {strides = array<i32>} : memref<16x4xf32, #tpu.memory_space<vmem>>, vector<16x4xf32>,
    return
  }
  func.func @transform_0(%arg0: i32) -> (i32, i32, i32) {
    %c0_i32 = arith.constant 0 : i32
    %c0_i32_0 = arith.constant 0 : i32
    %c0_i32_1 = arith.constant 0 : i32
    %c0_i32_2 = arith.constant 0 : i32
    return %c0_i32, %c0_i32_0, %c0_i32_1 : i32, i32, i32
  }
  func.func @transform_1(%arg0: i32) -> (i32, i32, i32) {
    %c0_i32 = arith.constant 0 : i32
    %c0_i32_0 = arith.constant 0 : i32
    %c0_i32_1 = arith.constant 0 : i32
    %c0_i32_2 = arith.constant 0 : i32
    return %c0_i32, %c0_i32_0, %c0_i32_1 : i32, i32, i32
  }
  func.func @transform_2(%arg0: i32) -> (i32, i32) {
    %c0_i32 = arith.constant 0 : i32
    %c0_i32_0 = arith.constant 0 : i32
    %c0_i32_1 = arith.constant 0 : i32
    return %c0_i32, %c0_i32_0 : i32, i32
  }
  func.func @transform_3(%arg0: i32) -> (i32, i32) {
    %c0_i32 = arith.constant 0 : i32
    %c0_i32_0 = arith.constant 0 : i32
    %c0_i32_1 = arith.constant 0 : i32
    return %c0_i32, %c0_i32_0 : i32, i32
  }
  func.func @transform_4(%arg0: i32) -> (i32, i32) {
    %c0_i32 = arith.constant 0 : i32
    %c0_i32_0 = arith.constant 0 : i32
    %c0_i32_1 = arith.constant 0 : i32
    return %c0_i32, %c0_i32_0 : i32, i32
  }
  func.func @transform_5(%arg0: i32) -> (i32, i32) {
    %c0_i32 = arith.constant 0 : i32
    %c0_i32_0 = arith.constant 0 : i32
    %c0_i32_1 = arith.constant 0 : i32
    return %c0_i32, %c0_i32_0 : i32, i32
  }
  func.func @transform_6(%arg0: i32) -> (i32, i32) {
    %c0_i32 = arith.constant 0 : i32
    %c0_i32_0 = arith.constant 0 : i32
    %c0_i32_1 = arith.constant 0 : i32
    return %c0_i32, %c0_i32_0 : i32, i32
  }
  func.func @transform_7(%arg0: i32) -> (i32, i32) {
    %c0_i32 = arith.constant 0 : i32
    %c0_i32_0 = arith.constant 0 : i32
    %c0_i32_1 = arith.constant 0 : i32
    return %c0_i32, %c0_i32_0 : i32, i32
  }
  func.func @transform_8(%arg0: i32) -> (i32, i32) {
    %c0_i32 = arith.constant 0 : i32
    %c0_i32_0 = arith.constant 0 : i32
    %c0_i32_1 = arith.constant 0 : i32
    return %c0_i32, %c0_i32_0 : i32, i32
  }
  func.func @transform_9(%arg0: i32) -> (i32, i32) {
    %c0_i32 = arith.constant 0 : i32
    %c0_i32_0 = arith.constant 0 : i32
    %c0_i32_1 = arith.constant 0 : i32
    return %c0_i32, %c0_i32_0 : i32, i32
  }
  func.func @transform_10(%arg0: i32) -> (i32, i32) {
    %c0_i32 = arith.constant 0 : i32
    %c0_i32_0 = arith.constant 0 : i32
    %c0_i32_1 = arith.constant 0 : i32
    return %c0_i32, %c0_i32_0 : i32, i32
  }
  func.func @transform_11(%arg0: i32) -> (i32, i32) {
    %c0_i32 = arith.constant 0 : i32
    %c0_i32_0 = arith.constant 0 : i32
    %c0_i32_1 = arith.constant 0 : i32
    return %c0_i32, %c0_i32_0 : i32, i32
  }
  func.func @transform_12(%arg0: i32) -> (i32, i32) {
    %c0_i32 = arith.constant 0 : i32
    %c0_i32_0 = arith.constant 0 : i32
    %c0_i32_1 = arith.constant 0 : i32
    return %c0_i32, %c0_i32_0 : i32, i32
  }
  func.func @transform_13(%arg0: i32) -> (i32, i32) {
    %c0_i32 = arith.constant 0 : i32
    %c0_i32_0 = arith.constant 0 : i32
    %c0_i32_1 = arith.constant 0 : i32
    return %c0_i32, %c0_i32_0 : i32, i32
  }
  func.func @transform_14(%arg0: i32) -> (i32, i32) {
    %c0_i32 = arith.constant 0 : i32
    %c0_i32_0 = arith.constant 0 : i32
    %c0_i32_1 = arith.constant 0 : i32
    return %c0_i32, %c0_i32_0 : i32, i32
  }
  func.func @transform_15(%arg0: i32) -> (i32, i32) {
    %c0_i32 = arith.constant 0 : i32
    %c0_i32_0 = arith.constant 0 : i32
    %c0_i32_1 = arith.constant 0 : i32
    return %c0_i32, %c0_i32_0 : i32, i32
  }
  func.func @transform_16(%arg0: i32) -> (i32, i32) {
    %c0_i32 = arith.constant 0 : i32
    %c0_i32_0 = arith.constant 0 : i32
    %c0_i32_1 = arith.constant 0 : i32
    return %c0_i32, %c0_i32_0 : i32, i32
  }
  func.func @transform_17(%arg0: i32) -> (i32, i32) {
    %c0_i32 = arith.constant 0 : i32
    %c0_i32_0 = arith.constant 0 : i32
    %c0_i32_1 = arith.constant 0 : i32
    return %c0_i32, %c0_i32_0 : i32, i32
  }
  func.func @transform_18(%arg0: i32) -> (i32, i32) {
    %c0_i32 = arith.constant 0 : i32
    %c0_i32_0 = arith.constant 0 : i32
    %c0_i32_1 = arith.constant 0 : i32
    return %c0_i32, %c0_i32_0 : i32, i32
  }
  func.func @transform_19(%arg0: i32) -> (i32, i32) {
    %c0_i32 = arith.constant 0 : i32
    %c0_i32_0 = arith.constant 0 : i32
    %c0_i32_1 = arith.constant 0 : i32
    return %c0_i32, %c0_i32_0 : i32, i32
  }
  func.func @transform_20(%arg0: i32) -> (i32, i32) {
    %c0_i32 = arith.constant 0 : i32
    %c0_i32_0 = arith.constant 0 : i32
    %c0_i32_1 = arith.constant 0 : i32
    return %c0_i32, %c0_i32_0 : i32, i32
  }
  func.func @transform_21(%arg0: i32) -> (i32, i32) {
    %c0_i32 = arith.constant 0 : i32
    %c0_i32_0 = arith.constant 0 : i32
    %c0_i32_1 = arith.constant 0 : i32
    return %c0_i32, %c0_i32_0 : i32, i32
  }
  func.func @transform_22(%arg0: i32) -> (i32, i32) {
    %c0_i32 = arith.constant 0 : i32
    %c0_i32_0 = arith.constant 0 : i32
    %c0_i32_1 = arith.constant 0 : i32
    return %c0_i32, %c0_i32_0 : i32, i32
  }
  func.func @transform_23(%arg0: i32) -> (i32, i32) {
    %c0_i32 = arith.constant 0 : i32
    %c0_i32_0 = arith.constant 0 : i32
    %c0_i32_1 = arith.constant 0 : i32
    return %c0_i32, %c0_i32_0 : i32, i32
  }
  func.func @transform_24(%arg0: i32) -> (i32, i32) {
    %c0_i32 = arith.constant 0 : i32
    %c0_i32_0 = arith.constant 0 : i32
    %c0_i32_1 = arith.constant 0 : i32
    return %c0_i32, %c0_i32_0 : i32, i32
  }
  func.func @transform_25(%arg0: i32) -> (i32, i32) {
    %c0_i32 = arith.constant 0 : i32
    %c0_i32_0 = arith.constant 0 : i32
    %c0_i32_1 = arith.constant 0 : i32
    return %c0_i32, %c0_i32_0 : i32, i32
  }
  func.func @transform_26(%arg0: i32) -> (i32, i32) {
    %c0_i32 = arith.constant 0 : i32
    %c0_i32_0 = arith.constant 0 : i32
    %c0_i32_1 = arith.constant 0 : i32
    return %c0_i32, %c0_i32_0 : i32, i32
  }
  func.func @transform_27(%arg0: i32) -> (i32, i32) {
    %c0_i32 = arith.constant 0 : i32
    %c0_i32_0 = arith.constant 0 : i32
    %c0_i32_1 = arith.constant 0 : i32
    return %c0_i32, %c0_i32_0 : i32, i32
  }
  func.func @transform_28(%arg0: i32) -> (i32, i32) {
    %c0_i32 = arith.constant 0 : i32
    %c0_i32_0 = arith.constant 0 : i32
    %c0_i32_1 = arith.constant 0 : i32
    return %c0_i32, %c0_i32_0 : i32, i32
  }
  func.func @transform_29(%arg0: i32) -> (i32, i32) {
    %c0_i32 = arith.constant 0 : i32
    %c0_i32_0 = arith.constant 0 : i32
    %c0_i32_1 = arith.constant 0 : i32
    return %c0_i32, %c0_i32_0 : i32, i32
  }
  func.func @transform_30(%arg0: i32) -> (i32, i32) {
    %c0_i32 = arith.constant 0 : i32
    %c0_i32_0 = arith.constant 0 : i32
    %c0_i32_1 = arith.constant 0 : i32
    return %c0_i32, %c0_i32_0 : i32, i32
  }
  func.func @transform_31(%arg0: i32) -> (i32, i32) {
    %c0_i32 = arith.constant 0 : i32
    %c0_i32_0 = arith.constant 0 : i32
    %c0_i32_1 = arith.constant 0 : i32
    return %c0_i32, %c0_i32_0 : i32, i32
  }
  func.func @transform_32(%arg0: i32) -> (i32, i32) {
    %c0_i32 = arith.constant 0 : i32
    %c0_i32_0 = arith.constant 0 : i32
    %c0_i32_1 = arith.constant 0 : i32
    return %c0_i32, %c0_i32_0 : i32, i32
  }
}

</mosaic_0001>

<llo_original>
// kernel: gcn_lstm_forward.1
$region0: #{gcn_lstm_forward.1}
  #allocation0 [shape = 'u32[]', space=smem, size = 0x4, offset = 0x4, fixed_abs, tag = 'smem constant byte address 0x4 - core index']
  #allocation1 [shape = 'u32[144,128]{1,0:T(1,128)}', space=vmem, size = 0x12000, scoped, tag = 'internal scratch']
  #allocation2 [shape = 'f32[8,16]{1,0:T(8,128)}', space=vmem, size = 0x1000, scoped, tag = 'scratch operand']
  #allocation3 [shape = 'f32[16,32]{1,0:T(8,128)}', space=vmem, size = 0x2000, scoped, tag = 'scratch operand']
  %s0 = inlined_call_operand.smem [shape: u32[33], index: -1, kind: input, shape index: {}]
  %s1 = sld [smem:[%s0]]
  %s2 = scalar_lea.smem %s0, 1
  %s3 = sld [smem:[%s2]]
  %s4 = scalar_lea.smem %s0, 2
  %s5 = sld [smem:[%s4]]
  %s6 = scalar_lea.smem %s0, 3
  %s7 = sld [smem:[%s6]]
  %s8 = scalar_lea.smem %s0, 4
  %s9 = sld [smem:[%s8]]
  %s10 = scalar_lea.smem %s0, 5
  %s11 = sld [smem:[%s10]]
  %s12 = scalar_lea.smem %s0, 6
  %s13 = sld [smem:[%s12]]
  %s14 = scalar_lea.smem %s0, 7
  %s15 = sld [smem:[%s14]]
  %s16 = scalar_lea.smem %s0, 8
  %s17 = sld [smem:[%s16]]
  %s18 = scalar_lea.smem %s0, 9
  %s19 = sld [smem:[%s18]]
  %s20 = scalar_lea.smem %s0, 10
  %s21 = sld [smem:[%s20]]
  %s22 = scalar_lea.smem %s0, 11
  %s23 = sld [smem:[%s22]]
  %s24 = scalar_lea.smem %s0, 12
  %s25 = sld [smem:[%s24]]
  %s26 = scalar_lea.smem %s0, 13
  %s27 = sld [smem:[%s26]]
  %s28 = scalar_lea.smem %s0, 14
  %s29 = sld [smem:[%s28]]
  %s30 = scalar_lea.smem %s0, 15
  %s31 = sld [smem:[%s30]]
  %s32 = scalar_lea.smem %s0, 16
  %s33 = sld [smem:[%s32]]
  %s34 = scalar_lea.smem %s0, 17
  %s35 = sld [smem:[%s34]]
  %s36 = scalar_lea.smem %s0, 18
  %s37 = sld [smem:[%s36]]
  %s38 = scalar_lea.smem %s0, 19
  %s39 = sld [smem:[%s38]]
  %s40 = scalar_lea.smem %s0, 20
  %s41 = sld [smem:[%s40]]
  %s42 = scalar_lea.smem %s0, 21
  %s43 = sld [smem:[%s42]]
  %s44 = scalar_lea.smem %s0, 22
  %s45 = sld [smem:[%s44]]
  %s46 = scalar_lea.smem %s0, 23
  %s47 = sld [smem:[%s46]]
  %s48 = scalar_lea.smem %s0, 24
  %s49 = sld [smem:[%s48]]
  %s50 = scalar_lea.smem %s0, 25
  %s51 = sld [smem:[%s50]]
  %s52 = scalar_lea.smem %s0, 26
  %s53 = sld [smem:[%s52]]
  %s54 = scalar_lea.smem %s0, 27
  %s55 = sld [smem:[%s54]]
  %s56 = scalar_lea.smem %s0, 28
  %s57 = sld [smem:[%s56]]
  %s58 = scalar_lea.smem %s0, 29
  %s59 = sld [smem:[%s58]]
  %s60 = scalar_lea.smem %s0, 30
  %s61 = sld [smem:[%s60]]
  %s62 = scalar_lea.smem %s0, 31
  %s63 = sld [smem:[%s62]]
  %s64 = scalar_lea.smem %s0, 32
  %s65 = sld [smem:[%s64]]
  %s66 = sld [smem:[#allocation0]]
  $region146: #{gcn_lstm_forward.1} parent=0
    _
  %s68 = ssub.s32 1, %s66
  %s69 = scalar_select 0, %s68, %s66
  $region1: #{gcn_lstm_forward.1} parent=0
    #allocation4 [shape = 'u8[512]{0}', space=vmem, size = 0x400, scoped, tag = 'input window, operand 5, single buffered']
    #allocation5 [shape = 's32[1]{0}', space=sflag, size = 0x4, scoped, tag = 'scoped memory for gcn_lstm_forward.1']
    #allocation6 [shape = 'u8[512]{0}', space=vmem, size = 0x400, scoped, tag = 'input window, operand 30, single buffered']
    #allocation7 [shape = 's32[1]{0}', space=sflag, size = 0x4, scoped, tag = 'scoped memory for gcn_lstm_forward.1']
    %70 = vsyncpa [#allocation5], 0
    %71 = vsyncpa [#allocation7], 0
    // Predicated region
    $region2: #{gcn_lstm_forward.1} parent=1 // pred_check
      _
    $region3: #{gcn_lstm_forward.1} parent=1 // pred_check_branch
      %73 = sbr.rel (0) target = $region5
    $region4: #{gcn_lstm_forward.1} parent=1 // pred_region
      _
    $region5: #{gcn_lstm_forward.1} parent=1 // pred_fallthru
      _
    // Predicated region
    $region6: #{gcn_lstm_forward.1} parent=1 // pred_check
      _
    $region7: #{gcn_lstm_forward.1} parent=1 // pred_check_branch
      %75 = sbr.rel (0) target = $region9
    $region8: #{gcn_lstm_forward.1} parent=1 // pred_region
      _
    $region9: #{gcn_lstm_forward.1} parent=1 // pred_fallthru
      _
    // Predicated region
    $region10: #{gcn_lstm_forward.1} parent=1 // pred_check
      _
    $region11: #{gcn_lstm_forward.1} parent=1 // pred_check_branch
      %77 = sbr.rel (0) target = $region13
    $region12: #{gcn_lstm_forward.1} parent=1 // pred_region
      _
    $region13: #{gcn_lstm_forward.1} parent=1 // pred_fallthru
      _
    // Predicated region
    $region14: #{gcn_lstm_forward.1} parent=1 // pred_check
      _
    $region15: #{gcn_lstm_forward.1} parent=1 // pred_check_branch
      %79 = sbr.rel (0) target = $region17
    $region16: #{gcn_lstm_forward.1} parent=1 // pred_region
      _
    $region17: #{gcn_lstm_forward.1} parent=1 // pred_fallthru
      _
    // Predicated region
    $region18: #{gcn_lstm_forward.1} parent=1 // pred_check
      _
    $region19: #{gcn_lstm_forward.1} parent=1 // pred_check_branch
      %81 = sbr.rel (0) target = $region21
    $region20: #{gcn_lstm_forward.1} parent=1 // pred_region
      _
    $region21: #{gcn_lstm_forward.1} parent=1 // pred_fallthru
      _
    // Predicated region
    $region22: #{gcn_lstm_forward.1} parent=1 // pred_check
      _
    $region23: #{gcn_lstm_forward.1} parent=1 // pred_check_branch
      %83 = sbr.rel (0) target = $region25
    $region24: #{gcn_lstm_forward.1} parent=1 // pred_region
      %s85 = ssub.s32 16, 16
      %86 = vsyncadd [#allocation5], %s85
      %s88 = sshll.u32 [#allocation4], 4
      %s89 = int_to_ptr.vmem [resolvable:$true] %s88
      %91 = dma.hbm_to_vmem [thread:$0]  %s11, 16, %s89, [#allocation5]
    $region25: #{gcn_lstm_forward.1} parent=1 // pred_fallthru
      _
    // Predicated region
    $region26: #{gcn_lstm_forward.1} parent=1 // pred_check
      _
    $region27: #{gcn_lstm_forward.1} parent=1 // pred_check_branch
      %93 = sbr.rel (0) target = $region29
    $region28: #{gcn_lstm_forward.1} parent=1 // pred_region
      _
    $region29: #{gcn_lstm_forward.1} parent=1 // pred_fallthru
      _
    // Predicated region
    $region30: #{gcn_lstm_forward.1} parent=1 // pred_check
      _
    $region31: #{gcn_lstm_forward.1} parent=1 // pred_check_branch
      %95 = sbr.rel (0) target = $region33
    $region32: #{gcn_lstm_forward.1} parent=1 // pred_region
      _
    $region33: #{gcn_lstm_forward.1} parent=1 // pred_fallthru
      _
    // Predicated region
    $region34: #{gcn_lstm_forward.1} parent=1 // pred_check
      _
    $region35: #{gcn_lstm_forward.1} parent=1 // pred_check_branch
      %97 = sbr.rel (0) target = $region37
    $region36: #{gcn_lstm_forward.1} parent=1 // pred_region
      _
    $region37: #{gcn_lstm_forward.1} parent=1 // pred_fallthru
      _
    // Predicated region
    $region38: #{gcn_lstm_forward.1} parent=1 // pred_check
      _
    $region39: #{gcn_lstm_forward.1} parent=1 // pred_check_branch
      %99 = sbr.rel (0) target = $region41
    $region40: #{gcn_lstm_forward.1} parent=1 // pred_region
      _
    $region41: #{gcn_lstm_forward.1} parent=1 // pred_fallthru
      _
    // Predicated region
    $region42: #{gcn_lstm_forward.1} parent=1 // pred_check
      _
    $region43: #{gcn_lstm_forward.1} parent=1 // pred_check_branch
      %101 = sbr.rel (0) target = $region45
    $region44: #{gcn_lstm_forward.1} parent=1 // pred_region
      _
    $region45: #{gcn_lstm_forward.1} parent=1 // pred_fallthru
      _
    // Predicated region
    $region46: #{gcn_lstm_forward.1} parent=1 // pred_check
      _
    $region47: #{gcn_lstm_forward.1} parent=1 // pred_check_branch
      %103 = sbr.rel (0) target = $region49
    $region48: #{gcn_lstm_forward.1} parent=1 // pred_region
      _
    $region49: #{gcn_lstm_forward.1} parent=1 // pred_fallthru
      _
    // Predicated region
    $region50: #{gcn_lstm_forward.1} parent=1 // pred_check
      _
    $region51: #{gcn_lstm_forward.1} parent=1 // pred_check_branch
      %105 = sbr.rel (0) target = $region53
    $region52: #{gcn_lstm_forward.1} parent=1 // pred_region
      _
    $region53: #{gcn_lstm_forward.1} parent=1 // pred_fallthru
      _
    // Predicated region
    $region54: #{gcn_lstm_forward.1} parent=1 // pred_check
      _
    $region55: #{gcn_lstm_forward.1} parent=1 // pred_check_branch
      %107 = sbr.rel (0) target = $region57
    $region56: #{gcn_lstm_forward.1} parent=1 // pred_region
      _
    $region57: #{gcn_lstm_forward.1} parent=1 // pred_fallthru
      _
    // Predicated region
    $region58: #{gcn_lstm_forward.1} parent=1 // pred_check
      _
    $region59: #{gcn_lstm_forward.1} parent=1 // pred_check_branch
      %109 = sbr.rel (0) target = $region61
    $region60: #{gcn_lstm_forward.1} parent=1 // pred_region
      _
    $region61: #{gcn_lstm_forward.1} parent=1 // pred_fallthru
      _
    // Predicated region
    $region62: #{gcn_lstm_forward.1} parent=1 // pred_check
      _
    $region63: #{gcn_lstm_forward.1} parent=1 // pred_check_branch
      %111 = sbr.rel (0) target = $region65
    $region64: #{gcn_lstm_forward.1} parent=1 // pred_region
      _
    $region65: #{gcn_lstm_forward.1} parent=1 // pred_fallthru
      _
    // Predicated region
    $region66: #{gcn_lstm_forward.1} parent=1 // pred_check
      _
    $region67: #{gcn_lstm_forward.1} parent=1 // pred_check_branch
      %113 = sbr.rel (0) target = $region69
    $region68: #{gcn_lstm_forward.1} parent=1 // pred_region
      _
    $region69: #{gcn_lstm_forward.1} parent=1 // pred_fallthru
      _
    // Predicated region
    $region70: #{gcn_lstm_forward.1} parent=1 // pred_check
      _
    $region71: #{gcn_lstm_forward.1} parent=1 // pred_check_branch
      %115 = sbr.rel (0) target = $region73
    $region72: #{gcn_lstm_forward.1} parent=1 // pred_region
      _
    $region73: #{gcn_lstm_forward.1} parent=1 // pred_fallthru
      _
    // Predicated region
    $region74: #{gcn_lstm_forward.1} parent=1 // pred_check
      _
    $region75: #{gcn_lstm_forward.1} parent=1 // pred_check_branch
      %117 = sbr.rel (0) target = $region77
    $region76: #{gcn_lstm_forward.1} parent=1 // pred_region
      _
    $region77: #{gcn_lstm_forward.1} parent=1 // pred_fallthru
      _
    // Predicated region
    $region78: #{gcn_lstm_forward.1} parent=1 // pred_check
      _
    $region79: #{gcn_lstm_forward.1} parent=1 // pred_check_branch
      %119 = sbr.rel (0) target = $region81
    $region80: #{gcn_lstm_forward.1} parent=1 // pred_region
      _
    $region81: #{gcn_lstm_forward.1} parent=1 // pred_fallthru
      _
    // Predicated region
    $region82: #{gcn_lstm_forward.1} parent=1 // pred_check
      _
    $region83: #{gcn_lstm_forward.1} parent=1 // pred_check_branch
      %121 = sbr.rel (0) target = $region85
    $region84: #{gcn_lstm_forward.1} parent=1 // pred_region
      _
    $region85: #{gcn_lstm_forward.1} parent=1 // pred_fallthru
      _
    // Predicated region
    $region86: #{gcn_lstm_forward.1} parent=1 // pred_check
      _
    $region87: #{gcn_lstm_forward.1} parent=1 // pred_check_branch
      %123 = sbr.rel (0) target = $region89
    $region88: #{gcn_lstm_forward.1} parent=1 // pred_region
      _
    $region89: #{gcn_lstm_forward.1} parent=1 // pred_fallthru
      _
    // Predicated region
    $region90: #{gcn_lstm_forward.1} parent=1 // pred_check
      _
    $region91: #{gcn_lstm_forward.1} parent=1 // pred_check_branch
      %125 = sbr.rel (0) target = $region93
    $region92: #{gcn_lstm_forward.1} parent=1 // pred_region
      _
    $region93: #{gcn_lstm_forward.1} parent=1 // pred_fallthru
      _
    // Predicated region
    $region94: #{gcn_lstm_forward.1} parent=1 // pred_check
      _
    $region95: #{gcn_lstm_forward.1} parent=1 // pred_check_branch
      %127 = sbr.rel (0) target = $region97
    $region96: #{gcn_lstm_forward.1} parent=1 // pred_region
      _
    $region97: #{gcn_lstm_forward.1} parent=1 // pred_fallthru
      _
    // Predicated region
    $region98: #{gcn_lstm_forward.1} parent=1 // pred_check
      _
    $region99: #{gcn_lstm_forward.1} parent=1 // pred_check_branch
      %129 = sbr.rel (0) target = $region101
    $region100: #{gcn_lstm_forward.1} parent=1 // pred_region
      _
    $region101: #{gcn_lstm_forward.1} parent=1 // pred_fallthru
      _
    // Predicated region
    $region102: #{gcn_lstm_forward.1} parent=1 // pred_check
      _
    $region103: #{gcn_lstm_forward.1} parent=1 // pred_check_branch
      %131 = sbr.rel (0) target = $region105
    $region104: #{gcn_lstm_forward.1} parent=1 // pred_region
      _
    $region105: #{gcn_lstm_forward.1} parent=1 // pred_fallthru
      _
    // Predicated region
    $region106: #{gcn_lstm_forward.1} parent=1 // pred_check
      _
    $region107: #{gcn_lstm_forward.1} parent=1 // pred_check_branch
      %133 = sbr.rel (0) target = $region109
    $region108: #{gcn_lstm_forward.1} parent=1 // pred_region
      _
    $region109: #{gcn_lstm_forward.1} parent=1 // pred_fallthru
      _
    // Predicated region
    $region110: #{gcn_lstm_forward.1} parent=1 // pred_check
      _
    $region111: #{gcn_lstm_forward.1} parent=1 // pred_check_branch
      %135 = sbr.rel (0) target = $region113
    $region112: #{gcn_lstm_forward.1} parent=1 // pred_region
      _
    $region113: #{gcn_lstm_forward.1} parent=1 // pred_fallthru
      _
    // Predicated region
    $region114: #{gcn_lstm_forward.1} parent=1 // pred_check
      _
    $region115: #{gcn_lstm_forward.1} parent=1 // pred_check_branch
      %137 = sbr.rel (0) target = $region117
    $region116: #{gcn_lstm_forward.1} parent=1 // pred_region
      _
    $region117: #{gcn_lstm_forward.1} parent=1 // pred_fallthru
      _
    // Predicated region
    $region118: #{gcn_lstm_forward.1} parent=1 // pred_check
      _
    $region119: #{gcn_lstm_forward.1} parent=1 // pred_check_branch
      %139 = sbr.rel (0) target = $region121
    $region120: #{gcn_lstm_forward.1} parent=1 // pred_region
      _
    $region121: #{gcn_lstm_forward.1} parent=1 // pred_fallthru
      _
    // Predicated region
    $region122: #{gcn_lstm_forward.1} parent=1 // pred_check
      _
    $region123: #{gcn_lstm_forward.1} parent=1 // pred_check_branch
      %141 = sbr.rel (0) target = $region125
    $region124: #{gcn_lstm_forward.1} parent=1 // pred_region
      %s143 = ssub.s32 16, 16
      %144 = vsyncadd [#allocation7], %s143
      %s146 = sshll.u32 [#allocation6], 4
      %s147 = int_to_ptr.vmem [resolvable:$true] %s146
      %149 = dma.hbm_to_vmem [thread:$0]  %s61, 16, %s147, [#allocation7]
    $region125: #{gcn_lstm_forward.1} parent=1 // pred_fallthru
      _
    // Predicated region
    $region126: #{gcn_lstm_forward.1} parent=1 // pred_check
      _
    $region127: #{gcn_lstm_forward.1} parent=1 // pred_check_branch
      %151 = sbr.rel (0) target = $region129
    $region128: #{gcn_lstm_forward.1} parent=1 // pred_region
      _
    $region129: #{gcn_lstm_forward.1} parent=1 // pred_fallthru
      _
    // Predicated region
    $region130: #{gcn_lstm_forward.1} parent=1 // pred_check
      _
    $region131: #{gcn_lstm_forward.1} parent=1 // pred_check_branch
      %153 = sbr.rel (0) target = $region133
    $region132: #{gcn_lstm_forward.1} parent=1 // pred_region
      %154 = dma.done [#allocation5], 16
    $region133: #{gcn_lstm_forward.1} parent=1 // pred_fallthru
      _
    // Predicated region
    $region134: #{gcn_lstm_forward.1} parent=1 // pred_check
      _
    $region135: #{gcn_lstm_forward.1} parent=1 // pred_check_branch
      %156 = sbr.rel (0) target = $region137
    $region136: #{gcn_lstm_forward.1} parent=1 // pred_region
      %157 = dma.done [#allocation7], 16
    $region137: #{gcn_lstm_forward.1} parent=1 // pred_fallthru
      _
    %v158 = vld [vmem:[%s5] sm:$0x1]
    %v159 = vld [vmem:[%s7] sm:$0x1]
    %v160 = vld [vmem:[%s3] sm:$0xff]
    %v161 = vld [vmem:[%s3 + $0x8] sm:$0xff]
    %v162 = vld [vmem:[%s1] sm:$0xff]
    %v163 = vld [vmem:[%s1 + $0x8] sm:$0xff]
    %165 = vset.pattern.permute.xlu0 0
    %166 = vperm.xlu0 %165, %v162
    %v167 = vpop.permute.xlu0 %166
    %170 = vset.pattern.permute.xlu0 0
    %171 = vperm.xlu0 %170, %v163
    %v172 = vpop.permute.xlu0 %171
    %v175 = vlaneseq
    %v176 = vshrl.u32 %v175, 7
    %v177 = vsub.s32 0, %v176
    %v178 = vrot.slane %v158, %v177
    %v180 = vmul.f32 %v167, %v178
    %v181 = vmul.f32 %v172, %v178
    %v183 = vlaneseq
    %v184 = vshrl.u32 %v183, 7
    %v185 = vsub.s32 0, %v184
    %v186 = vrot.slane %v159, %v185
    %vm188 = vcmask 130048
    %v190 = vsel %vm188, %v160, 0
    %v193 = vsel %vm188, %v161, 0
    %195 = vmatprep.subr.mxu0 0.0
    %196 = vmatpush1.msra.mxu0 %v180
    %197 = vmatprep.subr.mxu0 0.0
    %198 = vmatpush1.msra.mxu0 %v181
    %199 = vmatprep.subr.mxu0 0.0
    %200 = vmatpush1.msra.mxu0 0.0
    %201 = vmatprep.subr.mxu0 0.0
    %202 = vmatpush1.msra.mxu0 0.0
    %203 = vmatprep.subr.mxu0 0.0
    %204 = vmatpush1.msra.mxu0 0.0
    %205 = vmatprep.subr.mxu0 0.0
    %206 = vmatpush1.msra.mxu0 0.0
    %207 = vmatprep.subr.mxu0 0.0
    %208 = vmatpush1.msra.mxu0 0.0
    %209 = vmatprep.subr.mxu0 0.0
    %210 = vmatpush1.msra.mxu0 0.0
    %211 = vmatprep.subr.mxu0 0.0
    %212 = vmatpush1.msra.mxu0 0.0
    %213 = vmatprep.subr.mxu0 0.0
    %214 = vmatpush1.msra.mxu0 0.0
    %215 = vmatprep.subr.mxu0 0.0
    %216 = vmatpush1.msra.mxu0 0.0
    %217 = vmatprep.subr.mxu0 0.0
    %218 = vmatpush1.msra.mxu0 0.0
    %219 = vmatprep.subr.mxu0 0.0
    %220 = vmatpush1.msra.mxu0 0.0
    %221 = vmatprep.subr.mxu0 0.0
    %222 = vmatpush1.msra.mxu0 0.0
    %223 = vmatprep.subr.mxu0 0.0
    %224 = vmatpush1.msra.mxu0 0.0
    %225 = vmatprep.subr.mxu0 0.0
    %226 = vmatpush1.msra.mxu0 0.0
    %227 = vmatprep.subr.mxu0 0.0
    %228 = vmatpush1.msra.mxu0 0.0
    %229 = vmatprep.subr.mxu0 0.0
    %230 = vmatpush1.msra.mxu0 0.0
    %231 = vmatprep.subr.mxu0 0.0
    %232 = vmatpush1.msra.mxu0 0.0
    %233 = vmatprep.subr.mxu0 0.0
    %234 = vmatpush1.msra.mxu0 0.0
    %235 = vmatprep.subr.mxu0 0.0
    %236 = vmatpush1.msra.mxu0 0.0
    %237 = vmatprep.subr.mxu0 0.0
    %238 = vmatpush1.msra.mxu0 0.0
    %239 = vmatprep.subr.mxu0 0.0
    %240 = vmatpush1.msra.mxu0 0.0
    %241 = vmatprep.subr.mxu0 0.0
    %242 = vmatpush1.msra.mxu0 0.0
    %243 = vmatprep.subr.mxu0 0.0
    %244 = vmatpush1.msra.mxu0 0.0
    %245 = vmatprep.subr.mxu0 0.0
    %246 = vmatpush1.msra.mxu0 0.0
    %247 = vmatprep.subr.mxu0 0.0
    %248 = vmatpush1.msra.mxu0 0.0
    %249 = vmatprep.subr.mxu0 0.0
    %250 = vmatpush1.msra.mxu0 0.0
    %251 = vmatprep.subr.mxu0 0.0
    %252 = vmatpush1.msra.mxu0 0.0
    %253 = vmatprep.subr.mxu0 0.0
    %254 = vmatpush1.msra.mxu0 0.0
    %255 = vmatprep.subr.mxu0 0.0
    %256 = vmatpush1.msra.mxu0 0.0
    %257 = vmatprep.subr.mxu0 0.0
    %258 = vmatpush1.msra.mxu0 0.0
    %259 = vmatprep.mubr.f32.mxu0 0.0
    %260 = vmatmul.mubr.f32.gmra.mrb[0].mxu0 %v190
    %v261 = vpop.f32.mrb[0].mxu0
    %v262 = vadd.f32 %v186, %v261
    %v263 = vpop.f32.mrb[0].mxu0
    %264 = vmatprep.mubr.f32.mxu0 0.0
    %265 = vmatmul.mubr.f32.gmra.mrb[0].mxu0 %v193
    %v266 = vpop.f32.mrb[0].mxu0
    %v267 = vadd.f32 %v186, %v266
    %v268 = vpop.f32.mrb[0].mxu0
    %269 = vdwg.mxu0
    %v270 = vmax.f32 %v262, 0.0
    %v271 = vmax.f32 %v267, 0.0
    %272 = vmatprep.subr.mxu0 0.0
    %273 = vmatpush1.msra.mxu0 %v270
    %274 = vmatprep.subr.mxu0 0.0
    %275 = vmatpush1.msra.mxu0 %v271
    %276 = vmatprep.subr.mxu0 0.0
    %277 = vmatpush1.msra.mxu0 0.0
    %278 = vmatprep.subr.mxu0 0.0
    %279 = vmatpush1.msra.mxu0 0.0
    %280 = vmatprep.subr.mxu0 0.0
    %281 = vmatpush1.msra.mxu0 0.0
    %282 = vmatprep.subr.mxu0 0.0
    %283 = vmatpush1.msra.mxu0 0.0
    %284 = vmatprep.subr.mxu0 0.0
    %285 = vmatpush1.msra.mxu0 0.0
    %286 = vmatprep.subr.mxu0 0.0
    %287 = vmatpush1.msra.mxu0 0.0
    %288 = vmatprep.subr.mxu0 0.0
    %289 = vmatpush1.msra.mxu0 0.0
    %290 = vmatprep.subr.mxu0 0.0
    %291 = vmatpush1.msra.mxu0 0.0
    %292 = vmatprep.subr.mxu0 0.0
    %293 = vmatpush1.msra.mxu0 0.0
    %294 = vmatprep.subr.mxu0 0.0
    %295 = vmatpush1.msra.mxu0 0.0
    %296 = vmatprep.subr.mxu0 0.0
    %297 = vmatpush1.msra.mxu0 0.0
    %298 = vmatprep.subr.mxu0 0.0
    %299 = vmatpush1.msra.mxu0 0.0
    %300 = vmatprep.subr.mxu0 0.0
    %301 = vmatpush1.msra.mxu0 0.0
    %302 = vmatprep.subr.mxu0 0.0
    %303 = vmatpush1.msra.mxu0 0.0
    %304 = vmatprep.subr.mxu0 0.0
    %305 = vmatpush1.msra.mxu0 0.0
    %306 = vmatprep.subr.mxu0 0.0
    %307 = vmatpush1.msra.mxu0 0.0
    %308 = vmatprep.subr.mxu0 0.0
    %309 = vmatpush1.msra.mxu0 0.0
    %310 = vmatprep.subr.mxu0 0.0
    %311 = vmatpush1.msra.mxu0 0.0
    %312 = vmatprep.subr.mxu0 0.0
    %313 = vmatpush1.msra.mxu0 0.0
    %314 = vmatprep.subr.mxu0 0.0
    %315 = vmatpush1.msra.mxu0 0.0
    %316 = vmatprep.subr.mxu0 0.0
    %317 = vmatpush1.msra.mxu0 0.0
    %318 = vmatprep.subr.mxu0 0.0
    %319 = vmatpush1.msra.mxu0 0.0
    %320 = vmatprep.subr.mxu0 0.0
    %321 = vmatpush1.msra.mxu0 0.0
    %322 = vmatprep.subr.mxu0 0.0
    %323 = vmatpush1.msra.mxu0 0.0
    %324 = vmatprep.subr.mxu0 0.0
    %325 = vmatpush1.msra.mxu0 0.0
    %326 = vmatprep.subr.mxu0 0.0
    %327 = vmatpush1.msra.mxu0 0.0
    %328 = vmatprep.subr.mxu0 0.0
    %329 = vmatpush1.msra.mxu0 0.0
    %330 = vmatprep.subr.mxu0 0.0
    %331 = vmatpush1.msra.mxu0 0.0
    %332 = vmatprep.subr.mxu0 0.0
    %333 = vmatpush1.msra.mxu0 0.0
    %334 = vmatprep.subr.mxu0 0.0
    %335 = vmatpush1.msra.mxu0 0.0
    %336 = vmatprep.mubr.f32.mxu0 0.0
    %337 = vmatmul.mubr.f32.gmra.mrb[0].mxu0 %v190
    %v338 = vpop.f32.mrb[0].mxu0
    %v339 = vadd.f32 0.0, %v338
    %v340 = vpop.f32.mrb[0].mxu0
    %341 = vdwg.mxu0
    %vm342 = vcmask 122880
    %343 = vst.msk [vmem:[#allocation2] sm:$0x1] %vm342, %v339
    %s344 = scalar_lea.vmem %s3, 16
    %v345 = vld [vmem:[%s344] sm:$0xff]
    %v346 = vld [vmem:[%s344 + $0x8] sm:$0xff]
    %s347 = scalar_lea.vmem %s1, 16
    %v348 = vld [vmem:[%s347] sm:$0xff]
    %v349 = vld [vmem:[%s347 + $0x8] sm:$0xff]
    %351 = vset.pattern.permute.xlu0 0
    %352 = vperm.xlu0 %351, %v348
    %v353 = vpop.permute.xlu0 %352
    %356 = vset.pattern.permute.xlu0 0
    %357 = vperm.xlu0 %356, %v349
    %v358 = vpop.permute.xlu0 %357
    %v360 = vmul.f32 %v353, %v178
    %v361 = vmul.f32 %v358, %v178
    %v363 = vsel %vm188, %v345, 0
    %v366 = vsel %vm188, %v346, 0
    %368 = vmatprep.subr.mxu0 0.0
    %369 = vmatpush1.msra.mxu0 %v360
    %370 = vmatprep.subr.mxu0 0.0
    %371 = vmatpush1.msra.mxu0 %v361
    %372 = vmatprep.subr.mxu0 0.0
    %373 = vmatpush1.msra.mxu0 0.0
    %374 = vmatprep.subr.mxu0 0.0
    %375 = vmatpush1.msra.mxu0 0.0
    %376 = vmatprep.subr.mxu0 0.0
    %377 = vmatpush1.msra.mxu0 0.0
    %378 = vmatprep.subr.mxu0 0.0
    %379 = vmatpush1.msra.mxu0 0.0
    %380 = vmatprep.subr.mxu0 0.0
    %381 = vmatpush1.msra.mxu0 0.0
    %382 = vmatprep.subr.mxu0 0.0
    %383 = vmatpush1.msra.mxu0 0.0
    %384 = vmatprep.subr.mxu0 0.0
    %385 = vmatpush1.msra.mxu0 0.0
    %386 = vmatprep.subr.mxu0 0.0
    %387 = vmatpush1.msra.mxu0 0.0
    %388 = vmatprep.subr.mxu0 0.0
    %389 = vmatpush1.msra.mxu0 0.0
    %390 = vmatprep.subr.mxu0 0.0
    %391 = vmatpush1.msra.mxu0 0.0
    %392 = vmatprep.subr.mxu0 0.0
    %393 = vmatpush1.msra.mxu0 0.0
    %394 = vmatprep.subr.mxu0 0.0
    %395 = vmatpush1.msra.mxu0 0.0
    %396 = vmatprep.subr.mxu0 0.0
    %397 = vmatpush1.msra.mxu0 0.0
    %398 = vmatprep.subr.mxu0 0.0
    %399 = vmatpush1.msra.mxu0 0.0
    %400 = vmatprep.subr.mxu0 0.0
    %401 = vmatpush1.msra.mxu0 0.0
    %402 = vmatprep.subr.mxu0 0.0
    %403 = vmatpush1.msra.mxu0 0.0
    %404 = vmatprep.subr.mxu0 0.0
    %405 = vmatpush1.msra.mxu0 0.0
    %406 = vmatprep.subr.mxu0 0.0
    %407 = vmatpush1.msra.mxu0 0.0
    %408 = vmatprep.subr.mxu0 0.0
    %409 = vmatpush1.msra.mxu0 0.0
    %410 = vmatprep.subr.mxu0 0.0
    %411 = vmatpush1.msra.mxu0 0.0
    %412 = vmatprep.subr.mxu0 0.0
    %413 = vmatpush1.msra.mxu0 0.0
    %414 = vmatprep.subr.mxu0 0.0
    %415 = vmatpush1.msra.mxu0 0.0
    %416 = vmatprep.subr.mxu0 0.0
    %417 = vmatpush1.msra.mxu0 0.0
    %418 = vmatprep.subr.mxu0 0.0
    %419 = vmatpush1.msra.mxu0 0.0
    %420 = vmatprep.subr.mxu0 0.0
    %421 = vmatpush1.msra.mxu0 0.0
    %422 = vmatprep.subr.mxu0 0.0
    %423 = vmatpush1.msra.mxu0 0.0
    %424 = vmatprep.subr.mxu0 0.0
    %425 = vmatpush1.msra.mxu0 0.0
    %426 = vmatprep.subr.mxu0 0.0
    %427 = vmatpush1.msra.mxu0 0.0
    %428 = vmatprep.subr.mxu0 0.0
    %429 = vmatpush1.msra.mxu0 0.0
    %430 = vmatprep.subr.mxu0 0.0
    %431 = vmatpush1.msra.mxu0 0.0
    %432 = vmatprep.mubr.f32.mxu0 0.0
    %433 = vmatmul.mubr.f32.gmra.mrb[0].mxu0 %v363
    %v434 = vpop.f32.mrb[0].mxu0
    %v435 = vadd.f32 %v186, %v434
    %v436 = vpop.f32.mrb[0].mxu0
    %437 = vmatprep.mubr.f32.mxu0 0.0
    %438 = vmatmul.mubr.f32.gmra.mrb[0].mxu0 %v366
    %v439 = vpop.f32.mrb[0].mxu0
    %v440 = vadd.f32 %v186, %v439
    %v441 = vpop.f32.mrb[0].mxu0
    %442 = vdwg.mxu0
    %v443 = vmax.f32 %v435, 0.0
    %v444 = vmax.f32 %v440, 0.0
    %445 = vmatprep.subr.mxu0 0.0
    %446 = vmatpush1.msra.mxu0 %v443
    %447 = vmatprep.subr.mxu0 0.0
    %448 = vmatpush1.msra.mxu0 %v444
    %449 = vmatprep.subr.mxu0 0.0
    %450 = vmatpush1.msra.mxu0 0.0
    %451 = vmatprep.subr.mxu0 0.0
    %452 = vmatpush1.msra.mxu0 0.0
    %453 = vmatprep.subr.mxu0 0.0
    %454 = vmatpush1.msra.mxu0 0.0
    %455 = vmatprep.subr.mxu0 0.0
    %456 = vmatpush1.msra.mxu0 0.0
    %457 = vmatprep.subr.mxu0 0.0
    %458 = vmatpush1.msra.mxu0 0.0
    %459 = vmatprep.subr.mxu0 0.0
    %460 = vmatpush1.msra.mxu0 0.0
    %461 = vmatprep.subr.mxu0 0.0
    %462 = vmatpush1.msra.mxu0 0.0
    %463 = vmatprep.subr.mxu0 0.0
    %464 = vmatpush1.msra.mxu0 0.0
    %465 = vmatprep.subr.mxu0 0.0
    %466 = vmatpush1.msra.mxu0 0.0
    %467 = vmatprep.subr.mxu0 0.0
    %468 = vmatpush1.msra.mxu0 0.0
    %469 = vmatprep.subr.mxu0 0.0
    %470 = vmatpush1.msra.mxu0 0.0
    %471 = vmatprep.subr.mxu0 0.0
    %472 = vmatpush1.msra.mxu0 0.0
    %473 = vmatprep.subr.mxu0 0.0
    %474 = vmatpush1.msra.mxu0 0.0
    %475 = vmatprep.subr.mxu0 0.0
    %476 = vmatpush1.msra.mxu0 0.0
    %477 = vmatprep.subr.mxu0 0.0
    %478 = vmatpush1.msra.mxu0 0.0
    %479 = vmatprep.subr.mxu0 0.0
    %480 = vmatpush1.msra.mxu0 0.0
    %481 = vmatprep.subr.mxu0 0.0
    %482 = vmatpush1.msra.mxu0 0.0
    %483 = vmatprep.subr.mxu0 0.0
    %484 = vmatpush1.msra.mxu0 0.0
    %485 = vmatprep.subr.mxu0 0.0
    %486 = vmatpush1.msra.mxu0 0.0
    %487 = vmatprep.subr.mxu0 0.0
    %488 = vmatpush1.msra.mxu0 0.0
    %489 = vmatprep.subr.mxu0 0.0
    %490 = vmatpush1.msra.mxu0 0.0
    %491 = vmatprep.subr.mxu0 0.0
    %492 = vmatpush1.msra.mxu0 0.0
    %493 = vmatprep.subr.mxu0 0.0
    %494 = vmatpush1.msra.mxu0 0.0
    %495 = vmatprep.subr.mxu0 0.0
    %496 = vmatpush1.msra.mxu0 0.0
    %497 = vmatprep.subr.mxu0 0.0
    %498 = vmatpush1.msra.mxu0 0.0
    %499 = vmatprep.subr.mxu0 0.0
    %500 = vmatpush1.msra.mxu0 0.0
    %501 = vmatprep.subr.mxu0 0.0
    %502 = vmatpush1.msra.mxu0 0.0
    %503 = vmatprep.subr.mxu0 0.0
    %504 = vmatpush1.msra.mxu0 0.0
    %505 = vmatprep.subr.mxu0 0.0
    %506 = vmatpush1.msra.mxu0 0.0
    %507 = vmatprep.subr.mxu0 0.0
    %508 = vmatpush1.msra.mxu0 0.0
    %509 = vmatprep.mubr.f32.mxu0 0.0
    %510 = vmatmul.mubr.f32.gmra.mrb[0].mxu0 %v363
    %v511 = vpop.f32.mrb[0].mxu0
    %v512 = vadd.f32 0.0, %v511
    %v513 = vpop.f32.mrb[0].mxu0
    %514 = vdwg.mxu0
    %515 = vst.msk [vmem:[#allocation2 + $0x1] sm:$0x1] %vm342, %v512
    %s516 = scalar_lea.vmem %s3, 32
    %v517 = vld [vmem:[%s516] sm:$0xff]
    %v518 = vld [vmem:[%s516 + $0x8] sm:$0xff]
    %s519 = scalar_lea.vmem %s1, 32
    %v520 = vld [vmem:[%s519] sm:$0xff]
    %v521 = vld [vmem:[%s519 + $0x8] sm:$0xff]
    %523 = vset.pattern.permute.xlu0 0
    %524 = vperm.xlu0 %523, %v520
    %v525 = vpop.permute.xlu0 %524
    %528 = vset.pattern.permute.xlu0 0
    %529 = vperm.xlu0 %528, %v521
    %v530 = vpop.permute.xlu0 %529
    %v532 = vmul.f32 %v525, %v178
    %v533 = vmul.f32 %v530, %v178
    %v535 = vsel %vm188, %v517, 0
    %v538 = vsel %vm188, %v518, 0
    %540 = vmatprep.subr.mxu0 0.0
    %541 = vmatpush1.msra.mxu0 %v532
    %542 = vmatprep.subr.mxu0 0.0
    %543 = vmatpush1.msra.mxu0 %v533
    %544 = vmatprep.subr.mxu0 0.0
    %545 = vmatpush1.msra.mxu0 0.0
    %546 = vmatprep.subr.mxu0 0.0
    %547 = vmatpush1.msra.mxu0 0.0
    %548 = vmatprep.subr.mxu0 0.0
    %549 = vmatpush1.msra.mxu0 0.0
    %550 = vmatprep.subr.mxu0 0.0
    %551 = vmatpush1.msra.mxu0 0.0
    %552 = vmatprep.subr.mxu0 0.0
    %553 = vmatpush1.msra.mxu0 0.0
    %554 = vmatprep.subr.mxu0 0.0
    %555 = vmatpush1.msra.mxu0 0.0
    %556 = vmatprep.subr.mxu0 0.0
    %557 = vmatpush1.msra.mxu0 0.0
    %558 = vmatprep.subr.mxu0 0.0
    %559 = vmatpush1.msra.mxu0 0.0
    %560 = vmatprep.subr.mxu0 0.0
    %561 = vmatpush1.msra.mxu0 0.0
    %562 = vmatprep.subr.mxu0 0.0
    %563 = vmatpush1.msra.mxu0 0.0
    %564 = vmatprep.subr.mxu0 0.0
    %565 = vmatpush1.msra.mxu0 0.0
    %566 = vmatprep.subr.mxu0 0.0
    %567 = vmatpush1.msra.mxu0 0.0
    %568 = vmatprep.subr.mxu0 0.0
    %569 = vmatpush1.msra.mxu0 0.0
    %570 = vmatprep.subr.mxu0 0.0
    %571 = vmatpush1.msra.mxu0 0.0
    %572 = vmatprep.subr.mxu0 0.0
    %573 = vmatpush1.msra.mxu0 0.0
    %574 = vmatprep.subr.mxu0 0.0
    %575 = vmatpush1.msra.mxu0 0.0
    %576 = vmatprep.subr.mxu0 0.0
    %577 = vmatpush1.msra.mxu0 0.0
    %578 = vmatprep.subr.mxu0 0.0
    %579 = vmatpush1.msra.mxu0 0.0
    %580 = vmatprep.subr.mxu0 0.0
    %581 = vmatpush1.msra.mxu0 0.0
    %582 = vmatprep.subr.mxu0 0.0
    %583 = vmatpush1.msra.mxu0 0.0
    %584 = vmatprep.subr.mxu0 0.0
    %585 = vmatpush1.msra.mxu0 0.0
    %586 = vmatprep.subr.mxu0 0.0
    %587 = vmatpush1.msra.mxu0 0.0
    %588 = vmatprep.subr.mxu0 0.0
    %589 = vmatpush1.msra.mxu0 0.0
    %590 = vmatprep.subr.mxu0 0.0
    %591 = vmatpush1.msra.mxu0 0.0
    %592 = vmatprep.subr.mxu0 0.0
    %593 = vmatpush1.msra.mxu0 0.0
    %594 = vmatprep.subr.mxu0 0.0
    %595 = vmatpush1.msra.mxu0 0.0
    %596 = vmatprep.subr.mxu0 0.0
    %597 = vmatpush1.msra.mxu0 0.0
    %598 = vmatprep.subr.mxu0 0.0
    %599 = vmatpush1.msra.mxu0 0.0
    %600 = vmatprep.subr.mxu0 0.0
    %601 = vmatpush1.msra.mxu0 0.0
    %602 = vmatprep.subr.mxu0 0.0
    %603 = vmatpush1.msra.mxu0 0.0
    %604 = vmatprep.mubr.f32.mxu0 0.0
    %605 = vmatmul.mubr.f32.gmra.mrb[0].mxu0 %v535
    %v606 = vpop.f32.mrb[0].mxu0
    %v607 = vadd.f32 %v186, %v606
    %v608 = vpop.f32.mrb[0].mxu0
    %609 = vmatprep.mubr.f32.mxu0 0.0
    %610 = vmatmul.mubr.f32.gmra.mrb[0].mxu0 %v538
    %v611 = vpop.f32.mrb[0].mxu0
    %v612 = vadd.f32 %v186, %v611
    %v613 = vpop.f32.mrb[0].mxu0
    %614 = vdwg.mxu0
    %v615 = vmax.f32 %v607, 0.0
    %v616 = vmax.f32 %v612, 0.0
    %617 = vmatprep.subr.mxu0 0.0
    %618 = vmatpush1.msra.mxu0 %v615
    %619 = vmatprep.subr.mxu0 0.0
    %620 = vmatpush1.msra.mxu0 %v616
    %621 = vmatprep.subr.mxu0 0.0
    %622 = vmatpush1.msra.mxu0 0.0
    %623 = vmatprep.subr.mxu0 0.0
    %624 = vmatpush1.msra.mxu0 0.0
    %625 = vmatprep.subr.mxu0 0.0
    %626 = vmatpush1.msra.mxu0 0.0
    %627 = vmatprep.subr.mxu0 0.0
    %628 = vmatpush1.msra.mxu0 0.0
    %629 = vmatprep.subr.mxu0 0.0
    %630 = vmatpush1.msra.mxu0 0.0
    %631 = vmatprep.subr.mxu0 0.0
    %632 = vmatpush1.msra.mxu0 0.0
    %633 = vmatprep.subr.mxu0 0.0
    %634 = vmatpush1.msra.mxu0 0.0
    %635 = vmatprep.subr.mxu0 0.0
    %636 = vmatpush1.msra.mxu0 0.0
    %637 = vmatprep.subr.mxu0 0.0
    %638 = vmatpush1.msra.mxu0 0.0
    %639 = vmatprep.subr.mxu0 0.0
    %640 = vmatpush1.msra.mxu0 0.0
    %641 = vmatprep.subr.mxu0 0.0
    %642 = vmatpush1.msra.mxu0 0.0
    %643 = vmatprep.subr.mxu0 0.0
    %644 = vmatpush1.msra.mxu0 0.0
    %645 = vmatprep.subr.mxu0 0.0
    %646 = vmatpush1.msra.mxu0 0.0
    %647 = vmatprep.subr.mxu0 0.0
    %648 = vmatpush1.msra.mxu0 0.0
    %649 = vmatprep.subr.mxu0 0.0
    %650 = vmatpush1.msra.mxu0 0.0
    %651 = vmatprep.subr.mxu0 0.0
    %652 = vmatpush1.msra.mxu0 0.0
    %653 = vmatprep.subr.mxu0 0.0
    %654 = vmatpush1.msra.mxu0 0.0
    %655 = vmatprep.subr.mxu0 0.0
    %656 = vmatpush1.msra.mxu0 0.0
    %657 = vmatprep.subr.mxu0 0.0
    %658 = vmatpush1.msra.mxu0 0.0
    %659 = vmatprep.subr.mxu0 0.0
    %660 = vmatpush1.msra.mxu0 0.0
    %661 = vmatprep.subr.mxu0 0.0
    %662 = vmatpush1.msra.mxu0 0.0
    %663 = vmatprep.subr.mxu0 0.0
    %664 = vmatpush1.msra.mxu0 0.0
    %665 = vmatprep.subr.mxu0 0.0
    %666 = vmatpush1.msra.mxu0 0.0
    %667 = vmatprep.subr.mxu0 0.0
    %668 = vmatpush1.msra.mxu0 0.0
    %669 = vmatprep.subr.mxu0 0.0
    %670 = vmatpush1.msra.mxu0 0.0
    %671 = vmatprep.subr.mxu0 0.0
    %672 = vmatpush1.msra.mxu0 0.0
    %673 = vmatprep.subr.mxu0 0.0
    %674 = vmatpush1.msra.mxu0 0.0
    %675 = vmatprep.subr.mxu0 0.0
    %676 = vmatpush1.msra.mxu0 0.0
    %677 = vmatprep.subr.mxu0 0.0
    %678 = vmatpush1.msra.mxu0 0.0
    %679 = vmatprep.subr.mxu0 0.0
    %680 = vmatpush1.msra.mxu0 0.0
    %681 = vmatprep.mubr.f32.mxu0 0.0
    %682 = vmatmul.mubr.f32.gmra.mrb[0].mxu0 %v535
    %v683 = vpop.f32.mrb[0].mxu0
    %v684 = vadd.f32 0.0, %v683
    %v685 = vpop.f32.mrb[0].mxu0
    %686 = vdwg.mxu0
    %687 = vst.msk [vmem:[#allocation2 + $0x2] sm:$0x1] %vm342, %v684
    %s688 = scalar_lea.vmem %s3, 48
    %v689 = vld [vmem:[%s688] sm:$0xff]
    %v690 = vld [vmem:[%s688 + $0x8] sm:$0xff]
    %s691 = scalar_lea.vmem %s1, 48
    %v692 = vld [vmem:[%s691] sm:$0xff]
    %v693 = vld [vmem:[%s691 + $0x8] sm:$0xff]
    %695 = vset.pattern.permute.xlu0 0
    %696 = vperm.xlu0 %695, %v692
    %v697 = vpop.permute.xlu0 %696
    %700 = vset.pattern.permute.xlu0 0
    %701 = vperm.xlu0 %700, %v693
    %v702 = vpop.permute.xlu0 %701
    %v704 = vmul.f32 %v697, %v178
    %v705 = vmul.f32 %v702, %v178
    %v707 = vsel %vm188, %v689, 0
    %v710 = vsel %vm188, %v690, 0
    %712 = vmatprep.subr.mxu0 0.0
    %713 = vmatpush1.msra.mxu0 %v704
    %714 = vmatprep.subr.mxu0 0.0
    %715 = vmatpush1.msra.mxu0 %v705
    %716 = vmatprep.subr.mxu0 0.0
    %717 = vmatpush1.msra.mxu0 0.0
    %718 = vmatprep.subr.mxu0 0.0
    %719 = vmatpush1.msra.mxu0 0.0
    %720 = vmatprep.subr.mxu0 0.0
    %721 = vmatpush1.msra.mxu0 0.0
    %722 = vmatprep.subr.mxu0 0.0
    %723 = vmatpush1.msra.mxu0 0.0
    %724 = vmatprep.subr.mxu0 0.0
    %725 = vmatpush1.msra.mxu0 0.0
    %726 = vmatprep.subr.mxu0 0.0
    %727 = vmatpush1.msra.mxu0 0.0
    %728 = vmatprep.subr.mxu0 0.0
    %729 = vmatpush1.msra.mxu0 0.0
    %730 = vmatprep.subr.mxu0 0.0
    %731 = vmatpush1.msra.mxu0 0.0
    %732 = vmatprep.subr.mxu0 0.0
    %733 = vmatpush1.msra.mxu0 0.0
    %734 = vmatprep.subr.mxu0 0.0
    %735 = vmatpush1.msra.mxu0 0.0
    %736 = vmatprep.subr.mxu0 0.0
    %737 = vmatpush1.msra.mxu0 0.0
    %738 = vmatprep.subr.mxu0 0.0
    %739 = vmatpush1.msra.mxu0 0.0
    %740 = vmatprep.subr.mxu0 0.0
    %741 = vmatpush1.msra.mxu0 0.0
    %742 = vmatprep.subr.mxu0 0.0
    %743 = vmatpush1.msra.mxu0 0.0
    %744 = vmatprep.subr.mxu0 0.0
    %745 = vmatpush1.msra.mxu0 0.0
    %746 = vmatprep.subr.mxu0 0.0
    %747 = vmatpush1.msra.mxu0 0.0
    %748 = vmatprep.subr.mxu0 0.0
    %749 = vmatpush1.msra.mxu0 0.0
    %750 = vmatprep.subr.mxu0 0.0
    %751 = vmatpush1.msra.mxu0 0.0
    %752 = vmatprep.subr.mxu0 0.0
    %753 = vmatpush1.msra.mxu0 0.0
    %754 = vmatprep.subr.mxu0 0.0
    %755 = vmatpush1.msra.mxu0 0.0
    %756 = vmatprep.subr.mxu0 0.0
    %757 = vmatpush1.msra.mxu0 0.0
    %758 = vmatprep.subr.mxu0 0.0
    %759 = vmatpush1.msra.mxu0 0.0
    %760 = vmatprep.subr.mxu0 0.0
    %761 = vmatpush1.msra.mxu0 0.0
    %762 = vmatprep.subr.mxu0 0.0
    %763 = vmatpush1.msra.mxu0 0.0
    %764 = vmatprep.subr.mxu0 0.0
    %765 = vmatpush1.msra.mxu0 0.0
    %766 = vmatprep.subr.mxu0 0.0
    %767 = vmatpush1.msra.mxu0 0.0
    %768 = vmatprep.subr.mxu0 0.0
    %769 = vmatpush1.msra.mxu0 0.0
    %770 = vmatprep.subr.mxu0 0.0
    %771 = vmatpush1.msra.mxu0 0.0
    %772 = vmatprep.subr.mxu0 0.0
    %773 = vmatpush1.msra.mxu0 0.0
    %774 = vmatprep.subr.mxu0 0.0
    %775 = vmatpush1.msra.mxu0 0.0
    %776 = vmatprep.mubr.f32.mxu0 0.0
    %777 = vmatmul.mubr.f32.gmra.mrb[0].mxu0 %v707
    %v778 = vpop.f32.mrb[0].mxu0
    %v779 = vadd.f32 %v186, %v778
    %v780 = vpop.f32.mrb[0].mxu0
    %781 = vmatprep.mubr.f32.mxu0 0.0
    %782 = vmatmul.mubr.f32.gmra.mrb[0].mxu0 %v710
    %v783 = vpop.f32.mrb[0].mxu0
    %v784 = vadd.f32 %v186, %v783
    %v785 = vpop.f32.mrb[0].mxu0
    %786 = vdwg.mxu0
    %v787 = vmax.f32 %v779, 0.0
    %v788 = vmax.f32 %v784, 0.0
    %789 = vmatprep.subr.mxu0 0.0
    %790 = vmatpush1.msra.mxu0 %v787
    %791 = vmatprep.subr.mxu0 0.0
    %792 = vmatpush1.msra.mxu0 %v788
    %793 = vmatprep.subr.mxu0 0.0
    %794 = vmatpush1.msra.mxu0 0.0
    %795 = vmatprep.subr.mxu0 0.0
    %796 = vmatpush1.msra.mxu0 0.0
    %797 = vmatprep.subr.mxu0 0.0
    %798 = vmatpush1.msra.mxu0 0.0
    %799 = vmatprep.subr.mxu0 0.0
    %800 = vmatpush1.msra.mxu0 0.0
    %801 = vmatprep.subr.mxu0 0.0
    %802 = vmatpush1.msra.mxu0 0.0
    %803 = vmatprep.subr.mxu0 0.0
    %804 = vmatpush1.msra.mxu0 0.0
    %805 = vmatprep.subr.mxu0 0.0
    %806 = vmatpush1.msra.mxu0 0.0
    %807 = vmatprep.subr.mxu0 0.0
    %808 = vmatpush1.msra.mxu0 0.0
    %809 = vmatprep.subr.mxu0 0.0
    %810 = vmatpush1.msra.mxu0 0.0
    %811 = vmatprep.subr.mxu0 0.0
    %812 = vmatpush1.msra.mxu0 0.0
    %813 = vmatprep.subr.mxu0 0.0
    %814 = vmatpush1.msra.mxu0 0.0
    %815 = vmatprep.subr.mxu0 0.0
    %816 = vmatpush1.msra.mxu0 0.0
    %817 = vmatprep.subr.mxu0 0.0
    %818 = vmatpush1.msra.mxu0 0.0
    %819 = vmatprep.subr.mxu0 0.0
    %820 = vmatpush1.msra.mxu0 0.0
    %821 = vmatprep.subr.mxu0 0.0
    %822 = vmatpush1.msra.mxu0 0.0
    %823 = vmatprep.subr.mxu0 0.0
    %824 = vmatpush1.msra.mxu0 0.0
    %825 = vmatprep.subr.mxu0 0.0
    %826 = vmatpush1.msra.mxu0 0.0
    %827 = vmatprep.subr.mxu0 0.0
    %828 = vmatpush1.msra.mxu0 0.0
    %829 = vmatprep.subr.mxu0 0.0
    %830 = vmatpush1.msra.mxu0 0.0
    %831 = vmatprep.subr.mxu0 0.0
    %832 = vmatpush1.msra.mxu0 0.0
    %833 = vmatprep.subr.mxu0 0.0
    %834 = vmatpush1.msra.mxu0 0.0
    %835 = vmatprep.subr.mxu0 0.0
    %836 = vmatpush1.msra.mxu0 0.0
    %837 = vmatprep.subr.mxu0 0.0
    %838 = vmatpush1.msra.mxu0 0.0
    %839 = vmatprep.subr.mxu0 0.0
    %840 = vmatpush1.msra.mxu0 0.0
    %841 = vmatprep.subr.mxu0 0.0
    %842 = vmatpush1.msra.mxu0 0.0
    %843 = vmatprep.subr.mxu0 0.0
    %844 = vmatpush1.msra.mxu0 0.0
    %845 = vmatprep.subr.mxu0 0.0
    %846 = vmatpush1.msra.mxu0 0.0
    %847 = vmatprep.subr.mxu0 0.0
    %848 = vmatpush1.msra.mxu0 0.0
    %849 = vmatprep.subr.mxu0 0.0
    %850 = vmatpush1.msra.mxu0 0.0
    %851 = vmatprep.subr.mxu0 0.0
    %852 = vmatpush1.msra.mxu0 0.0
    %853 = vmatprep.mubr.f32.mxu0 0.0
    %854 = vmatmul.mubr.f32.gmra.mrb[0].mxu0 %v707
    %v855 = vpop.f32.mrb[0].mxu0
    %v856 = vadd.f32 0.0, %v855
    %v857 = vpop.f32.mrb[0].mxu0
    %858 = vdwg.mxu0
    %859 = vst.msk [vmem:[#allocation2 + $0x3] sm:$0x1] %vm342, %v856
    %s860 = scalar_lea.vmem %s3, 64
    %v861 = vld [vmem:[%s860] sm:$0xff]
    %v862 = vld [vmem:[%s860 + $0x8] sm:$0xff]
    %s863 = scalar_lea.vmem %s1, 64
    %v864 = vld [vmem:[%s863] sm:$0xff]
    %v865 = vld [vmem:[%s863 + $0x8] sm:$0xff]
    %867 = vset.pattern.permute.xlu0 0
    %868 = vperm.xlu0 %867, %v864
    %v869 = vpop.permute.xlu0 %868
    %872 = vset.pattern.permute.xlu0 0
    %873 = vperm.xlu0 %872, %v865
    %v874 = vpop.permute.xlu0 %873
    %v876 = vmul.f32 %v869, %v178
    %v877 = vmul.f32 %v874, %v178
    %v879 = vsel %vm188, %v861, 0
    %v882 = vsel %vm188, %v862, 0
    %884 = vmatprep.subr.mxu0 0.0
    %885 = vmatpush1.msra.mxu0 %v876
    %886 = vmatprep.subr.mxu0 0.0
    %887 = vmatpush1.msra.mxu0 %v877
    %888 = vmatprep.subr.mxu0 0.0
    %889 = vmatpush1.msra.mxu0 0.0
    %890 = vmatprep.subr.mxu0 0.0
    %891 = vmatpush1.msra.mxu0 0.0
    %892 = vmatprep.subr.mxu0 0.0
    %893 = vmatpush1.msra.mxu0 0.0
    %894 = vmatprep.subr.mxu0 0.0
    %895 = vmatpush1.msra.mxu0 0.0
    %896 = vmatprep.subr.mxu0 0.0
    %897 = vmatpush1.msra.mxu0 0.0
    %898 = vmatprep.subr.mxu0 0.0
    %899 = vmatpush1.msra.mxu0 0.0
    %900 = vmatprep.subr.mxu0 0.0
    %901 = vmatpush1.msra.mxu0 0.0
    %902 = vmatprep.subr.mxu0 0.0
    %903 = vmatpush1.msra.mxu0 0.0
    %904 = vmatprep.subr.mxu0 0.0
    %905 = vmatpush1.msra.mxu0 0.0
    %906 = vmatprep.subr.mxu0 0.0
    %907 = vmatpush1.msra.mxu0 0.0
    %908 = vmatprep.subr.mxu0 0.0
    %909 = vmatpush1.msra.mxu0 0.0
    %910 = vmatprep.subr.mxu0 0.0
    %911 = vmatpush1.msra.mxu0 0.0
    %912 = vmatprep.subr.mxu0 0.0
    %913 = vmatpush1.msra.mxu0 0.0
    %914 = vmatprep.subr.mxu0 0.0
    %915 = vmatpush1.msra.mxu0 0.0
    %916 = vmatprep.subr.mxu0 0.0
    %917 = vmatpush1.msra.mxu0 0.0
    %918 = vmatprep.subr.mxu0 0.0
    %919 = vmatpush1.msra.mxu0 0.0
    %920 = vmatprep.subr.mxu0 0.0
    %921 = vmatpush1.msra.mxu0 0.0
    %922 = vmatprep.subr.mxu0 0.0
    %923 = vmatpush1.msra.mxu0 0.0
    %924 = vmatprep.subr.mxu0 0.0
    %925 = vmatpush1.msra.mxu0 0.0
    %926 = vmatprep.subr.mxu0 0.0
    %927 = vmatpush1.msra.mxu0 0.0
    %928 = vmatprep.subr.mxu0 0.0
    %929 = vmatpush1.msra.mxu0 0.0
    %930 = vmatprep.subr.mxu0 0.0
    %931 = vmatpush1.msra.mxu0 0.0
    %932 = vmatprep.subr.mxu0 0.0
    %933 = vmatpush1.msra.mxu0 0.0
    %934 = vmatprep.subr.mxu0 0.0
    %935 = vmatpush1.msra.mxu0 0.0
    %936 = vmatprep.subr.mxu0 0.0
    %937 = vmatpush1.msra.mxu0 0.0
    %938 = vmatprep.subr.mxu0 0.0
    %939 = vmatpush1.msra.mxu0 0.0
    %940 = vmatprep.subr.mxu0 0.0
    %941 = vmatpush1.msra.mxu0 0.0
    %942 = vmatprep.subr.mxu0 0.0
    %943 = vmatpush1.msra.mxu0 0.0
    %944 = vmatprep.subr.mxu0 0.0
    %945 = vmatpush1.msra.mxu0 0.0
    %946 = vmatprep.subr.mxu0 0.0
    %947 = vmatpush1.msra.mxu0 0.0
    %948 = vmatprep.mubr.f32.mxu0 0.0
    %949 = vmatmul.mubr.f32.gmra.mrb[0].mxu0 %v879
    %v950 = vpop.f32.mrb[0].mxu0
    %v951 = vadd.f32 %v186, %v950
    %v952 = vpop.f32.mrb[0].mxu0
    %953 = vmatprep.mubr.f32.mxu0 0.0
    %954 = vmatmul.mubr.f32.gmra.mrb[0].mxu0 %v882
    %v955 = vpop.f32.mrb[0].mxu0
    %v956 = vadd.f32 %v186, %v955
    %v957 = vpop.f32.mrb[0].mxu0
    %958 = vdwg.mxu0
    %v959 = vmax.f32 %v951, 0.0
    %v960 = vmax.f32 %v956, 0.0
    %961 = vmatprep.subr.mxu0 0.0
    %962 = vmatpush1.msra.mxu0 %v959
    %963 = vmatprep.subr.mxu0 0.0
    %964 = vmatpush1.msra.mxu0 %v960
    %965 = vmatprep.subr.mxu0 0.0
    %966 = vmatpush1.msra.mxu0 0.0
    %967 = vmatprep.subr.mxu0 0.0
    %968 = vmatpush1.msra.mxu0 0.0
    %969 = vmatprep.subr.mxu0 0.0
    %970 = vmatpush1.msra.mxu0 0.0
    %971 = vmatprep.subr.mxu0 0.0
    %972 = vmatpush1.msra.mxu0 0.0
    %973 = vmatprep.subr.mxu0 0.0
    %974 = vmatpush1.msra.mxu0 0.0
    %975 = vmatprep.subr.mxu0 0.0
    %976 = vmatpush1.msra.mxu0 0.0
    %977 = vmatprep.subr.mxu0 0.0
    %978 = vmatpush1.msra.mxu0 0.0
    %979 = vmatprep.subr.mxu0 0.0
    %980 = vmatpush1.msra.mxu0 0.0
    %981 = vmatprep.subr.mxu0 0.0
    %982 = vmatpush1.msra.mxu0 0.0
    %983 = vmatprep.subr.mxu0 0.0
    %984 = vmatpush1.msra.mxu0 0.0
    %985 = vmatprep.subr.mxu0 0.0
    %986 = vmatpush1.msra.mxu0 0.0
    %987 = vmatprep.subr.mxu0 0.0
    %988 = vmatpush1.msra.mxu0 0.0
    %989 = vmatprep.subr.mxu0 0.0
    %990 = vmatpush1.msra.mxu0 0.0
    %991 = vmatprep.subr.mxu0 0.0
    %992 = vmatpush1.msra.mxu0 0.0
    %993 = vmatprep.subr.mxu0 0.0
    %994 = vmatpush1.msra.mxu0 0.0
    %995 = vmatprep.subr.mxu0 0.0
    %996 = vmatpush1.msra.mxu0 0.0
    %997 = vmatprep.subr.mxu0 0.0
    %998 = vmatpush1.msra.mxu0 0.0
    %999 = vmatprep.subr.mxu0 0.0
    %1000 = vmatpush1.msra.mxu0 0.0
    %1001 = vmatprep.subr.mxu0 0.0
    %1002 = vmatpush1.msra.mxu0 0.0
    %1003 = vmatprep.subr.mxu0 0.0
    %1004 = vmatpush1.msra.mxu0 0.0
    %1005 = vmatprep.subr.mxu0 0.0
    %1006 = vmatpush1.msra.mxu0 0.0
    %1007 = vmatprep.subr.mxu0 0.0
    %1008 = vmatpush1.msra.mxu0 0.0
    %1009 = vmatprep.subr.mxu0 0.0
    %1010 = vmatpush1.msra.mxu0 0.0
    %1011 = vmatprep.subr.mxu0 0.0
    %1012 = vmatpush1.msra.mxu0 0.0
    %1013 = vmatprep.subr.mxu0 0.0
    %1014 = vmatpush1.msra.mxu0 0.0
    %1015 = vmatprep.subr.mxu0 0.0
    %1016 = vmatpush1.msra.mxu0 0.0
    %1017 = vmatprep.subr.mxu0 0.0
    %1018 = vmatpush1.msra.mxu0 0.0
    %1019 = vmatprep.subr.mxu0 0.0
    %1020 = vmatpush1.msra.mxu0 0.0
    %1021 = vmatprep.subr.mxu0 0.0
    %1022 = vmatpush1.msra.mxu0 0.0
    %1023 = vmatprep.subr.mxu0 0.0
    %1024 = vmatpush1.msra.mxu0 0.0
    %1025 = vmatprep.mubr.f32.mxu0 0.0
    %1026 = vmatmul.mubr.f32.gmra.mrb[0].mxu0 %v879
    %v1027 = vpop.f32.mrb[0].mxu0
    %v1028 = vadd.f32 0.0, %v1027
    %v1029 = vpop.f32.mrb[0].mxu0
    %1030 = vdwg.mxu0
    %1031 = vst.msk [vmem:[#allocation2 + $0x4] sm:$0x1] %vm342, %v1028
    %s1032 = scalar_lea.vmem %s3, 80
    %v1033 = vld [vmem:[%s1032] sm:$0xff]
    %v1034 = vld [vmem:[%s1032 + $0x8] sm:$0xff]
    %s1035 = scalar_lea.vmem %s1, 80
    %v1036 = vld [vmem:[%s1035] sm:$0xff]
    %v1037 = vld [vmem:[%s1035 + $0x8] sm:$0xff]
    %1039 = vset.pattern.permute.xlu0 0
    %1040 = vperm.xlu0 %1039, %v1036
    %v1041 = vpop.permute.xlu0 %1040
    %1044 = vset.pattern.permute.xlu0 0
    %1045 = vperm.xlu0 %1044, %v1037
    %v1046 = vpop.permute.xlu0 %1045
    %v1048 = vmul.f32 %v1041, %v178
    %v1049 = vmul.f32 %v1046, %v178
    %v1051 = vsel %vm188, %v1033, 0
    %v1054 = vsel %vm188, %v1034, 0
    %1056 = vmatprep.subr.mxu0 0.0
    %1057 = vmatpush1.msra.mxu0 %v1048
    %1058 = vmatprep.subr.mxu0 0.0
    %1059 = vmatpush1.msra.mxu0 %v1049
    %1060 = vmatprep.subr.mxu0 0.0
    %1061 = vmatpush1.msra.mxu0 0.0
    %1062 = vmatprep.subr.mxu0 0.0
    %1063 = vmatpush1.msra.mxu0 0.0
    %1064 = vmatprep.subr.mxu0 0.0
    %1065 = vmatpush1.msra.mxu0 0.0
    %1066 = vmatprep.subr.mxu0 0.0
    %1067 = vmatpush1.msra.mxu0 0.0
    %1068 = vmatprep.subr.mxu0 0.0
    %1069 = vmatpush1.msra.mxu0 0.0
    %1070 = vmatprep.subr.mxu0 0.0
    %1071 = vmatpush1.msra.mxu0 0.0
    %1072 = vmatprep.subr.mxu0 0.0
    %1073 = vmatpush1.msra.mxu0 0.0
    %1074 = vmatprep.subr.mxu0 0.0
    %1075 = vmatpush1.msra.mxu0 0.0
    %1076 = vmatprep.subr.mxu0 0.0
    %1077 = vmatpush1.msra.mxu0 0.0
    %1078 = vmatprep.subr.mxu0 0.0
    %1079 = vmatpush1.msra.mxu0 0.0
    %1080 = vmatprep.subr.mxu0 0.0
    %1081 = vmatpush1.msra.mxu0 0.0
    %1082 = vmatprep.subr.mxu0 0.0
    %1083 = vmatpush1.msra.mxu0 0.0
    %1084 = vmatprep.subr.mxu0 0.0
    %1085 = vmatpush1.msra.mxu0 0.0
    %1086 = vmatprep.subr.mxu0 0.0
    %1087 = vmatpush1.msra.mxu0 0.0
    %1088 = vmatprep.subr.mxu0 0.0
    %1089 = vmatpush1.msra.mxu0 0.0
    %1090 = vmatprep.subr.mxu0 0.0
    %1091 = vmatpush1.msra.mxu0 0.0
    %1092 = vmatprep.subr.mxu0 0.0
    %1093 = vmatpush1.msra.mxu0 0.0
    %1094 = vmatprep.subr.mxu0 0.0
    %1095 = vmatpush1.msra.mxu0 0.0
    %1096 = vmatprep.subr.mxu0 0.0
    %1097 = vmatpush1.msra.mxu0 0.0
    %1098 = vmatprep.subr.mxu0 0.0
    %1099 = vmatpush1.msra.mxu0 0.0
    %1100 = vmatprep.subr.mxu0 0.0
    %1101 = vmatpush1.msra.mxu0 0.0
    %1102 = vmatprep.subr.mxu0 0.0
    %1103 = vmatpush1.msra.mxu0 0.0
    %1104 = vmatprep.subr.mxu0 0.0
    %1105 = vmatpush1.msra.mxu0 0.0
    %1106 = vmatprep.subr.mxu0 0.0
    %1107 = vmatpush1.msra.mxu0 0.0
    %1108 = vmatprep.subr.mxu0 0.0
    %1109 = vmatpush1.msra.mxu0 0.0
    %1110 = vmatprep.subr.mxu0 0.0
    %1111 = vmatpush1.msra.mxu0 0.0
    %1112 = vmatprep.subr.mxu0 0.0
    %1113 = vmatpush1.msra.mxu0 0.0
    %1114 = vmatprep.subr.mxu0 0.0
    %1115 = vmatpush1.msra.mxu0 0.0
    %1116 = vmatprep.subr.mxu0 0.0
    %1117 = vmatpush1.msra.mxu0 0.0
    %1118 = vmatprep.subr.mxu0 0.0
    %1119 = vmatpush1.msra.mxu0 0.0
    %1120 = vmatprep.mubr.f32.mxu0 0.0
    %1121 = vmatmul.mubr.f32.gmra.mrb[0].mxu0 %v1051
    %v1122 = vpop.f32.mrb[0].mxu0
    %v1123 = vadd.f32 %v186, %v1122
    %v1124 = vpop.f32.mrb[0].mxu0
    %1125 = vmatprep.mubr.f32.mxu0 0.0
    %1126 = vmatmul.mubr.f32.gmra.mrb[0].mxu0 %v1054
    %v1127 = vpop.f32.mrb[0].mxu0
    %v1128 = vadd.f32 %v186, %v1127
    %v1129 = vpop.f32.mrb[0].mxu0
    %1130 = vdwg.mxu0
    %v1131 = vmax.f32 %v1123, 0.0
    %v1132 = vmax.f32 %v1128, 0.0
    %1133 = vmatprep.subr.mxu0 0.0
    %1134 = vmatpush1.msra.mxu0 %v1131
    %1135 = vmatprep.subr.mxu0 0.0
    %1136 = vmatpush1.msra.mxu0 %v1132
    %1137 = vmatprep.subr.mxu0 0.0
    %1138 = vmatpush1.msra.mxu0 0.0
    %1139 = vmatprep.subr.mxu0 0.0
    %1140 = vmatpush1.msra.mxu0 0.0
    %1141 = vmatprep.subr.mxu0 0.0
    %1142 = vmatpush1.msra.mxu0 0.0
    %1143 = vmatprep.subr.mxu0 0.0
    %1144 = vmatpush1.msra.mxu0 0.0
    %1145 = vmatprep.subr.mxu0 0.0
    %1146 = vmatpush1.msra.mxu0 0.0
    %1147 = vmatprep.subr.mxu0 0.0
    %1148 = vmatpush1.msra.mxu0 0.0
    %1149 = vmatprep.subr.mxu0 0.0
    %1150 = vmatpush1.msra.mxu0 0.0
    %1151 = vmatprep.subr.mxu0 0.0
    %1152 = vmatpush1.msra.mxu0 0.0
    %1153 = vmatprep.subr.mxu0 0.0
    %1154 = vmatpush1.msra.mxu0 0.0
    %1155 = vmatprep.subr.mxu0 0.0
    %1156 = vmatpush1.msra.mxu0 0.0
    %1157 = vmatprep.subr.mxu0 0.0
    %1158 = vmatpush1.msra.mxu0 0.0
    %1159 = vmatprep.subr.mxu0 0.0
    %1160 = vmatpush1.msra.mxu0 0.0
    %1161 = vmatprep.subr.mxu0 0.0
    %1162 = vmatpush1.msra.mxu0 0.0
    %1163 = vmatprep.subr.mxu0 0.0
    %1164 = vmatpush1.msra.mxu0 0.0
    %1165 = vmatprep.subr.mxu0 0.0
    %1166 = vmatpush1.msra.mxu0 0.0
    %1167 = vmatprep.subr.mxu0 0.0
    %1168 = vmatpush1.msra.mxu0 0.0
    %1169 = vmatprep.subr.mxu0 0.0
    %1170 = vmatpush1.msra.mxu0 0.0
    %1171 = vmatprep.subr.mxu0 0.0
    %1172 = vmatpush1.msra.mxu0 0.0
    %1173 = vmatprep.subr.mxu0 0.0
    %1174 = vmatpush1.msra.mxu0 0.0
    %1175 = vmatprep.subr.mxu0 0.0
    %1176 = vmatpush1.msra.mxu0 0.0
    %1177 = vmatprep.subr.mxu0 0.0
    %1178 = vmatpush1.msra.mxu0 0.0
    %1179 = vmatprep.subr.mxu0 0.0
    %1180 = vmatpush1.msra.mxu0 0.0
    %1181 = vmatprep.subr.mxu0 0.0
    %1182 = vmatpush1.msra.mxu0 0.0
    %1183 = vmatprep.subr.mxu0 0.0
    %1184 = vmatpush1.msra.mxu0 0.0
    %1185 = vmatprep.subr.mxu0 0.0
    %1186 = vmatpush1.msra.mxu0 0.0
    %1187 = vmatprep.subr.mxu0 0.0
    %1188 = vmatpush1.msra.mxu0 0.0
    %1189 = vmatprep.subr.mxu0 0.0
    %1190 = vmatpush1.msra.mxu0 0.0
    %1191 = vmatprep.subr.mxu0 0.0
    %1192 = vmatpush1.msra.mxu0 0.0
    %1193 = vmatprep.subr.mxu0 0.0
    %1194 = vmatpush1.msra.mxu0 0.0
    %1195 = vmatprep.subr.mxu0 0.0
    %1196 = vmatpush1.msra.mxu0 0.0
    %1197 = vmatprep.mubr.f32.mxu0 0.0
    %1198 = vmatmul.mubr.f32.gmra.mrb[0].mxu0 %v1051
    %v1199 = vpop.f32.mrb[0].mxu0
    %v1200 = vadd.f32 0.0, %v1199
    %v1201 = vpop.f32.mrb[0].mxu0
    %1202 = vdwg.mxu0
    %1203 = vst.msk [vmem:[#allocation2 + $0x5] sm:$0x1] %vm342, %v1200
    %s1204 = scalar_lea.vmem %s3, 96
    %v1205 = vld [vmem:[%s1204] sm:$0xff]
    %v1206 = vld [vmem:[%s1204 + $0x8] sm:$0xff]
    %s1207 = scalar_lea.vmem %s1, 96
    %v1208 = vld [vmem:[%s1207] sm:$0xff]
    %v1209 = vld [vmem:[%s1207 + $0x8] sm:$0xff]
    %1211 = vset.pattern.permute.xlu0 0
    %1212 = vperm.xlu0 %1211, %v1208
    %v1213 = vpop.permute.xlu0 %1212
    %1216 = vset.pattern.permute.xlu0 0
    %1217 = vperm.xlu0 %1216, %v1209
    %v1218 = vpop.permute.xlu0 %1217
    %v1220 = vmul.f32 %v1213, %v178
    %v1221 = vmul.f32 %v1218, %v178
    %v1223 = vsel %vm188, %v1205, 0
    %v1226 = vsel %vm188, %v1206, 0
    %1228 = vmatprep.subr.mxu0 0.0
    %1229 = vmatpush1.msra.mxu0 %v1220
    %1230 = vmatprep.subr.mxu0 0.0
    %1231 = vmatpush1.msra.mxu0 %v1221
    %1232 = vmatprep.subr.mxu0 0.0
    %1233 = vmatpush1.msra.mxu0 0.0
    %1234 = vmatprep.subr.mxu0 0.0
    %1235 = vmatpush1.msra.mxu0 0.0
    %1236 = vmatprep.subr.mxu0 0.0
    %1237 = vmatpush1.msra.mxu0 0.0
    %1238 = vmatprep.subr.mxu0 0.0
    %1239 = vmatpush1.msra.mxu0 0.0
    %1240 = vmatprep.subr.mxu0 0.0
    %1241 = vmatpush1.msra.mxu0 0.0
    %1242 = vmatprep.subr.mxu0 0.0
    %1243 = vmatpush1.msra.mxu0 0.0
    %1244 = vmatprep.subr.mxu0 0.0
    %1245 = vmatpush1.msra.mxu0 0.0
    %1246 = vmatprep.subr.mxu0 0.0
    %1247 = vmatpush1.msra.mxu0 0.0
    %1248 = vmatprep.subr.mxu0 0.0
    %1249 = vmatpush1.msra.mxu0 0.0
    %1250 = vmatprep.subr.mxu0 0.0
    %1251 = vmatpush1.msra.mxu0 0.0
    %1252 = vmatprep.subr.mxu0 0.0
    %1253 = vmatpush1.msra.mxu0 0.0
    %1254 = vmatprep.subr.mxu0 0.0
    %1255 = vmatpush1.msra.mxu0 0.0
    %1256 = vmatprep.subr.mxu0 0.0
    %1257 = vmatpush1.msra.mxu0 0.0
    %1258 = vmatprep.subr.mxu0 0.0
    %1259 = vmatpush1.msra.mxu0 0.0
    %1260 = vmatprep.subr.mxu0 0.0
    %1261 = vmatpush1.msra.mxu0 0.0
    %1262 = vmatprep.subr.mxu0 0.0
    %1263 = vmatpush1.msra.mxu0 0.0
    %1264 = vmatprep.subr.mxu0 0.0
    %1265 = vmatpush1.msra.mxu0 0.0
    %1266 = vmatprep.subr.mxu0 0.0
    %1267 = vmatpush1.msra.mxu0 0.0
    %1268 = vmatprep.subr.mxu0 0.0
    %1269 = vmatpush1.msra.mxu0 0.0
    %1270 = vmatprep.subr.mxu0 0.0
    %1271 = vmatpush1.msra.mxu0 0.0
    %1272 = vmatprep.subr.mxu0 0.0
    %1273 = vmatpush1.msra.mxu0 0.0
    %1274 = vmatprep.subr.mxu0 0.0
    %1275 = vmatpush1.msra.mxu0 0.0
    %1276 = vmatprep.subr.mxu0 0.0
    %1277 = vmatpush1.msra.mxu0 0.0
    %1278 = vmatprep.subr.mxu0 0.0
    %1279 = vmatpush1.msra.mxu0 0.0
    %1280 = vmatprep.subr.mxu0 0.0
    %1281 = vmatpush1.msra.mxu0 0.0
    %1282 = vmatprep.subr.mxu0 0.0
    %1283 = vmatpush1.msra.mxu0 0.0
    %1284 = vmatprep.subr.mxu0 0.0
    %1285 = vmatpush1.msra.mxu0 0.0
    %1286 = vmatprep.subr.mxu0 0.0
    %1287 = vmatpush1.msra.mxu0 0.0
    %1288 = vmatprep.subr.mxu0 0.0
    %1289 = vmatpush1.msra.mxu0 0.0
    %1290 = vmatprep.subr.mxu0 0.0
    %1291 = vmatpush1.msra.mxu0 0.0
    %1292 = vmatprep.mubr.f32.mxu0 0.0
    %1293 = vmatmul.mubr.f32.gmra.mrb[0].mxu0 %v1223
    %v1294 = vpop.f32.mrb[0].mxu0
    %v1295 = vadd.f32 %v186, %v1294
    %v1296 = vpop.f32.mrb[0].mxu0
    %1297 = vmatprep.mubr.f32.mxu0 0.0
    %1298 = vmatmul.mubr.f32.gmra.mrb[0].mxu0 %v1226
    %v1299 = vpop.f32.mrb[0].mxu0
    %v1300 = vadd.f32 %v186, %v1299
    %v1301 = vpop.f32.mrb[0].mxu0
    %1302 = vdwg.mxu0
    %v1303 = vmax.f32 %v1295, 0.0
    %v1304 = vmax.f32 %v1300, 0.0
    %1305 = vmatprep.subr.mxu0 0.0
    %1306 = vmatpush1.msra.mxu0 %v1303
    %1307 = vmatprep.subr.mxu0 0.0
    %1308 = vmatpush1.msra.mxu0 %v1304
    %1309 = vmatprep.subr.mxu0 0.0
    %1310 = vmatpush1.msra.mxu0 0.0
    %1311 = vmatprep.subr.mxu0 0.0
    %1312 = vmatpush1.msra.mxu0 0.0
    %1313 = vmatprep.subr.mxu0 0.0
    %1314 = vmatpush1.msra.mxu0 0.0
    %1315 = vmatprep.subr.mxu0 0.0
    %1316 = vmatpush1.msra.mxu0 0.0
    %1317 = vmatprep.subr.mxu0 0.0
    %1318 = vmatpush1.msra.mxu0 0.0
    %1319 = vmatprep.subr.mxu0 0.0
    %1320 = vmatpush1.msra.mxu0 0.0
    %1321 = vmatprep.subr.mxu0 0.0
    %1322 = vmatpush1.msra.mxu0 0.0
    %1323 = vmatprep.subr.mxu0 0.0
    %1324 = vmatpush1.msra.mxu0 0.0
    %1325 = vmatprep.subr.mxu0 0.0
    %1326 = vmatpush1.msra.mxu0 0.0
    %1327 = vmatprep.subr.mxu0 0.0
    %1328 = vmatpush1.msra.mxu0 0.0
    %1329 = vmatprep.subr.mxu0 0.0
    %1330 = vmatpush1.msra.mxu0 0.0
    %1331 = vmatprep.subr.mxu0 0.0
    %1332 = vmatpush1.msra.mxu0 0.0
    %1333 = vmatprep.subr.mxu0 0.0
    %1334 = vmatpush1.msra.mxu0 0.0
    %1335 = vmatprep.subr.mxu0 0.0
    %1336 = vmatpush1.msra.mxu0 0.0
    %1337 = vmatprep.subr.mxu0 0.0
    %1338 = vmatpush1.msra.mxu0 0.0
    %1339 = vmatprep.subr.mxu0 0.0
    %1340 = vmatpush1.msra.mxu0 0.0
    %1341 = vmatprep.subr.mxu0 0.0
    %1342 = vmatpush1.msra.mxu0 0.0
    %1343 = vmatprep.subr.mxu0 0.0
    %1344 = vmatpush1.msra.mxu0 0.0
    %1345 = vmatprep.subr.mxu0 0.0
    %1346 = vmatpush1.msra.mxu0 0.0
    %1347 = vmatprep.subr.mxu0 0.0
    %1348 = vmatpush1.msra.mxu0 0.0
    %1349 = vmatprep.subr.mxu0 0.0
    %1350 = vmatpush1.msra.mxu0 0.0
    %1351 = vmatprep.subr.mxu0 0.0
    %1352 = vmatpush1.msra.mxu0 0.0
    %1353 = vmatprep.subr.mxu0 0.0
    %1354 = vmatpush1.msra.mxu0 0.0
    %1355 = vmatprep.subr.mxu0 0.0
    %1356 = vmatpush1.msra.mxu0 0.0
    %1357 = vmatprep.subr.mxu0 0.0
    %1358 = vmatpush1.msra.mxu0 0.0
    %1359 = vmatprep.subr.mxu0 0.0
    %1360 = vmatpush1.msra.mxu0 0.0
    %1361 = vmatprep.subr.mxu0 0.0
    %1362 = vmatpush1.msra.mxu0 0.0
    %1363 = vmatprep.subr.mxu0 0.0
    %1364 = vmatpush1.msra.mxu0 0.0
    %1365 = vmatprep.subr.mxu0 0.0
    %1366 = vmatpush1.msra.mxu0 0.0
    %1367 = vmatprep.subr.mxu0 0.0
    %1368 = vmatpush1.msra.mxu0 0.0
    %1369 = vmatprep.mubr.f32.mxu0 0.0
    %1370 = vmatmul.mubr.f32.gmra.mrb[0].mxu0 %v1223
    %v1371 = vpop.f32.mrb[0].mxu0
    %v1372 = vadd.f32 0.0, %v1371
    %v1373 = vpop.f32.mrb[0].mxu0
    %1374 = vdwg.mxu0
    %1375 = vst.msk [vmem:[#allocation2 + $0x6] sm:$0x1] %vm342, %v1372
    %s1376 = scalar_lea.vmem %s3, 112
    %v1377 = vld [vmem:[%s1376] sm:$0xff]
    %v1378 = vld [vmem:[%s1376 + $0x8] sm:$0xff]
    %s1379 = scalar_lea.vmem %s1, 112
    %v1380 = vld [vmem:[%s1379] sm:$0xff]
    %v1381 = vld [vmem:[%s1379 + $0x8] sm:$0xff]
    %1383 = vset.pattern.permute.xlu0 0
    %1384 = vperm.xlu0 %1383, %v1380
    %v1385 = vpop.permute.xlu0 %1384
    %1388 = vset.pattern.permute.xlu0 0
    %1389 = vperm.xlu0 %1388, %v1381
    %v1390 = vpop.permute.xlu0 %1389
    %v1392 = vmul.f32 %v1385, %v178
    %v1393 = vmul.f32 %v1390, %v178
    %v1395 = vsel %vm188, %v1377, 0
    %v1398 = vsel %vm188, %v1378, 0
    %1400 = vmatprep.subr.mxu0 0.0
    %1401 = vmatpush1.msra.mxu0 %v1392
    %1402 = vmatprep.subr.mxu0 0.0
    %1403 = vmatpush1.msra.mxu0 %v1393
    %1404 = vmatprep.subr.mxu0 0.0
    %1405 = vmatpush1.msra.mxu0 0.0
    %1406 = vmatprep.subr.mxu0 0.0
    %1407 = vmatpush1.msra.mxu0 0.0
    %1408 = vmatprep.subr.mxu0 0.0
    %1409 = vmatpush1.msra.mxu0 0.0
    %1410 = vmatprep.subr.mxu0 0.0
    %1411 = vmatpush1.msra.mxu0 0.0
    %1412 = vmatprep.subr.mxu0 0.0
    %1413 = vmatpush1.msra.mxu0 0.0
    %1414 = vmatprep.subr.mxu0 0.0
    %1415 = vmatpush1.msra.mxu0 0.0
    %1416 = vmatprep.subr.mxu0 0.0
    %1417 = vmatpush1.msra.mxu0 0.0
    %1418 = vmatprep.subr.mxu0 0.0
    %1419 = vmatpush1.msra.mxu0 0.0
    %1420 = vmatprep.subr.mxu0 0.0
    %1421 = vmatpush1.msra.mxu0 0.0
    %1422 = vmatprep.subr.mxu0 0.0
    %1423 = vmatpush1.msra.mxu0 0.0
    %1424 = vmatprep.subr.mxu0 0.0
    %1425 = vmatpush1.msra.mxu0 0.0
    %1426 = vmatprep.subr.mxu0 0.0
    %1427 = vmatpush1.msra.mxu0 0.0
    %1428 = vmatprep.subr.mxu0 0.0
    %1429 = vmatpush1.msra.mxu0 0.0
    %1430 = vmatprep.subr.mxu0 0.0
    %1431 = vmatpush1.msra.mxu0 0.0
    %1432 = vmatprep.subr.mxu0 0.0
    %1433 = vmatpush1.msra.mxu0 0.0
    %1434 = vmatprep.subr.mxu0 0.0
    %1435 = vmatpush1.msra.mxu0 0.0
    %1436 = vmatprep.subr.mxu0 0.0
    %1437 = vmatpush1.msra.mxu0 0.0
    %1438 = vmatprep.subr.mxu0 0.0
    %1439 = vmatpush1.msra.mxu0 0.0
    %1440 = vmatprep.subr.mxu0 0.0
    %1441 = vmatpush1.msra.mxu0 0.0
    %1442 = vmatprep.subr.mxu0 0.0
    %1443 = vmatpush1.msra.mxu0 0.0
    %1444 = vmatprep.subr.mxu0 0.0
    %1445 = vmatpush1.msra.mxu0 0.0
    %1446 = vmatprep.subr.mxu0 0.0
    %1447 = vmatpush1.msra.mxu0 0.0
    %1448 = vmatprep.subr.mxu0 0.0
    %1449 = vmatpush1.msra.mxu0 0.0
    %1450 = vmatprep.subr.mxu0 0.0
    %1451 = vmatpush1.msra.mxu0 0.0
    %1452 = vmatprep.subr.mxu0 0.0
    %1453 = vmatpush1.msra.mxu0 0.0
    %1454 = vmatprep.subr.mxu0 0.0
    %1455 = vmatpush1.msra.mxu0 0.0
    %1456 = vmatprep.subr.mxu0 0.0
    %1457 = vmatpush1.msra.mxu0 0.0
    %1458 = vmatprep.subr.mxu0 0.0
    %1459 = vmatpush1.msra.mxu0 0.0
    %1460 = vmatprep.subr.mxu0 0.0
    %1461 = vmatpush1.msra.mxu0 0.0
    %1462 = vmatprep.subr.mxu0 0.0
    %1463 = vmatpush1.msra.mxu0 0.0
    %1464 = vmatprep.mubr.f32.mxu0 0.0
    %1465 = vmatmul.mubr.f32.gmra.mrb[0].mxu0 %v1395
    %v1466 = vpop.f32.mrb[0].mxu0
    %v1467 = vadd.f32 %v186, %v1466
    %v1468 = vpop.f32.mrb[0].mxu0
    %1469 = vmatprep.mubr.f32.mxu0 0.0
    %1470 = vmatmul.mubr.f32.gmra.mrb[0].mxu0 %v1398
    %v1471 = vpop.f32.mrb[0].mxu0
    %v1472 = vadd.f32 %v186, %v1471
    %v1473 = vpop.f32.mrb[0].mxu0
    %1474 = vdwg.mxu0
    %v1475 = vmax.f32 %v1467, 0.0
    %v1476 = vmax.f32 %v1472, 0.0
    %1477 = vmatprep.subr.mxu0 0.0
    %1478 = vmatpush1.msra.mxu0 %v1475
    %1479 = vmatprep.subr.mxu0 0.0
    %1480 = vmatpush1.msra.mxu0 %v1476
    %1481 = vmatprep.subr.mxu0 0.0
    %1482 = vmatpush1.msra.mxu0 0.0
    %1483 = vmatprep.subr.mxu0 0.0
    %1484 = vmatpush1.msra.mxu0 0.0
    %1485 = vmatprep.subr.mxu0 0.0
    %1486 = vmatpush1.msra.mxu0 0.0
    %1487 = vmatprep.subr.mxu0 0.0
    %1488 = vmatpush1.msra.mxu0 0.0
    %1489 = vmatprep.subr.mxu0 0.0
    %1490 = vmatpush1.msra.mxu0 0.0
    %1491 = vmatprep.subr.mxu0 0.0
    %1492 = vmatpush1.msra.mxu0 0.0
    %1493 = vmatprep.subr.mxu0 0.0
    %1494 = vmatpush1.msra.mxu0 0.0
    %1495 = vmatprep.subr.mxu0 0.0
    %1496 = vmatpush1.msra.mxu0 0.0
    %1497 = vmatprep.subr.mxu0 0.0
    %1498 = vmatpush1.msra.mxu0 0.0
    %1499 = vmatprep.subr.mxu0 0.0
    %1500 = vmatpush1.msra.mxu0 0.0
    %1501 = vmatprep.subr.mxu0 0.0
    %1502 = vmatpush1.msra.mxu0 0.0
    %1503 = vmatprep.subr.mxu0 0.0
    %1504 = vmatpush1.msra.mxu0 0.0
    %1505 = vmatprep.subr.mxu0 0.0
    %1506 = vmatpush1.msra.mxu0 0.0
    %1507 = vmatprep.subr.mxu0 0.0
    %1508 = vmatpush1.msra.mxu0 0.0
    %1509 = vmatprep.subr.mxu0 0.0
    %1510 = vmatpush1.msra.mxu0 0.0
    %1511 = vmatprep.subr.mxu0 0.0
    %1512 = vmatpush1.msra.mxu0 0.0
    %1513 = vmatprep.subr.mxu0 0.0
    %1514 = vmatpush1.msra.mxu0 0.0
    %1515 = vmatprep.subr.mxu0 0.0
    %1516 = vmatpush1.msra.mxu0 0.0
    %1517 = vmatprep.subr.mxu0 0.0
    %1518 = vmatpush1.msra.mxu0 0.0
    %1519 = vmatprep.subr.mxu0 0.0
    %1520 = vmatpush1.msra.mxu0 0.0
    %1521 = vmatprep.subr.mxu0 0.0
    %1522 = vmatpush1.msra.mxu0 0.0
    %1523 = vmatprep.subr.mxu0 0.0
    %1524 = vmatpush1.msra.mxu0 0.0
    %1525 = vmatprep.subr.mxu0 0.0
    %1526 = vmatpush1.msra.mxu0 0.0
    %1527 = vmatprep.subr.mxu0 0.0
    %1528 = vmatpush1.msra.mxu0 0.0
    %1529 = vmatprep.subr.mxu0 0.0
    %1530 = vmatpush1.msra.mxu0 0.0
    %1531 = vmatprep.subr.mxu0 0.0
    %1532 = vmatpush1.msra.mxu0 0.0
    %1533 = vmatprep.subr.mxu0 0.0
    %1534 = vmatpush1.msra.mxu0 0.0
    %1535 = vmatprep.subr.mxu0 0.0
    %1536 = vmatpush1.msra.mxu0 0.0
    %1537 = vmatprep.subr.mxu0 0.0
    %1538 = vmatpush1.msra.mxu0 0.0
    %1539 = vmatprep.subr.mxu0 0.0
    %1540 = vmatpush1.msra.mxu0 0.0
    %1541 = vmatprep.mubr.f32.mxu0 0.0
    %1542 = vmatmul.mubr.f32.gmra.mrb[0].mxu0 %v1395
    %v1543 = vpop.f32.mrb[0].mxu0
    %v1544 = vadd.f32 0.0, %v1543
    %v1545 = vpop.f32.mrb[0].mxu0
    %1546 = vdwg.mxu0
    %1547 = vst.msk [vmem:[#allocation2 + $0x7] sm:$0x1] %vm342, %v1544
    %v1548 = vld [vmem:[#allocation2] sm:$0xff]
    %v1549 = vld [vmem:[%s9] sm:$0xff]
    %v1550 = vld [vmem:[%s9 + $0x8] sm:$0xff]
    %v1551 = vld [vmem:[#allocation4] sm:$0x1]
    %v1553 = vlaneseq
    %v1554 = vshrl.u32 %v1553, 7
    %v1555 = vsub.s32 0, %v1554
    %v1556 = vrot.slane %v1551, %v1555
    %v1559 = vsel %vm188, %v1548, 0
    %1561 = vmatprep.subr.mxu0 0.0
    %1562 = vmatpush1.msra.mxu0 %v1549
    %1563 = vmatprep.subr.mxu0 0.0
    %1564 = vmatpush1.msra.mxu0 %v1550
    %1565 = vmatprep.subr.mxu0 0.0
    %1566 = vmatpush1.msra.mxu0 0.0
    %1567 = vmatprep.subr.mxu0 0.0
    %1568 = vmatpush1.msra.mxu0 0.0
    %1569 = vmatprep.subr.mxu0 0.0
    %1570 = vmatpush1.msra.mxu0 0.0
    %1571 = vmatprep.subr.mxu0 0.0
    %1572 = vmatpush1.msra.mxu0 0.0
    %1573 = vmatprep.subr.mxu0 0.0
    %1574 = vmatpush1.msra.mxu0 0.0
    %1575 = vmatprep.subr.mxu0 0.0
    %1576 = vmatpush1.msra.mxu0 0.0
    %1577 = vmatprep.subr.mxu0 0.0
    %1578 = vmatpush1.msra.mxu0 0.0
    %1579 = vmatprep.subr.mxu0 0.0
    %1580 = vmatpush1.msra.mxu0 0.0
    %1581 = vmatprep.subr.mxu0 0.0
    %1582 = vmatpush1.msra.mxu0 0.0
    %1583 = vmatprep.subr.mxu0 0.0
    %1584 = vmatpush1.msra.mxu0 0.0
    %1585 = vmatprep.subr.mxu0 0.0
    %1586 = vmatpush1.msra.mxu0 0.0
    %1587 = vmatprep.subr.mxu0 0.0
    %1588 = vmatpush1.msra.mxu0 0.0
    %1589 = vmatprep.subr.mxu0 0.0
    %1590 = vmatpush1.msra.mxu0 0.0
    %1591 = vmatprep.subr.mxu0 0.0
    %1592 = vmatpush1.msra.mxu0 0.0
    %1593 = vmatprep.subr.mxu0 0.0
    %1594 = vmatpush1.msra.mxu0 0.0
    %1595 = vmatprep.subr.mxu0 0.0
    %1596 = vmatpush1.msra.mxu0 0.0
    %1597 = vmatprep.subr.mxu0 0.0
    %1598 = vmatpush1.msra.mxu0 0.0
    %1599 = vmatprep.subr.mxu0 0.0
    %1600 = vmatpush1.msra.mxu0 0.0
    %1601 = vmatprep.subr.mxu0 0.0
    %1602 = vmatpush1.msra.mxu0 0.0
    %1603 = vmatprep.subr.mxu0 0.0
    %1604 = vmatpush1.msra.mxu0 0.0
    %1605 = vmatprep.subr.mxu0 0.0
    %1606 = vmatpush1.msra.mxu0 0.0
    %1607 = vmatprep.subr.mxu0 0.0
    %1608 = vmatpush1.msra.mxu0 0.0
    %1609 = vmatprep.subr.mxu0 0.0
    %1610 = vmatpush1.msra.mxu0 0.0
    %1611 = vmatprep.subr.mxu0 0.0
    %1612 = vmatpush1.msra.mxu0 0.0
    %1613 = vmatprep.subr.mxu0 0.0
    %1614 = vmatpush1.msra.mxu0 0.0
    %1615 = vmatprep.subr.mxu0 0.0
    %1616 = vmatpush1.msra.mxu0 0.0
    %1617 = vmatprep.subr.mxu0 0.0
    %1618 = vmatpush1.msra.mxu0 0.0
    %1619 = vmatprep.subr.mxu0 0.0
    %1620 = vmatpush1.msra.mxu0 0.0
    %1621 = vmatprep.subr.mxu0 0.0
    %1622 = vmatpush1.msra.mxu0 0.0
    %1623 = vmatprep.subr.mxu0 0.0
    %1624 = vmatpush1.msra.mxu0 0.0
    %1625 = vmatprep.mubr.f32.mxu0 0.0
    %1626 = vmatmul.mubr.f32.gmra.mrb[0].mxu0 %v1559
    %v1627 = vpop.f32.mrb[0].mxu0
    %v1628 = vadd.f32 %v1556, %v1627
    %v1629 = vpop.f32.mrb[0].mxu0
    %1630 = vdwg.mxu0
    %v1631 = vld [vmem:[%s13] sm:$0xff]
    %v1632 = vld [vmem:[%s13 + $0x8] sm:$0xff]
    %vm1633 = vcmask 64512
    %v1635 = vsel %vm1633, %v1631, 0
    %v1638 = vsel %vm1633, %v1632, 0
    %1640 = vmatprep.subr.mxu0 0.0
    %1641 = vmatpush1.msra.mxu0 %v1628
    %1642 = vmatprep.subr.mxu0 0.0
    %1643 = vmatpush1.msra.mxu0 0.0
    %1644 = vmatprep.subr.mxu0 0.0
    %1645 = vmatpush1.msra.mxu0 0.0
    %1646 = vmatprep.subr.mxu0 0.0
    %1647 = vmatpush1.msra.mxu0 0.0
    %1648 = vmatprep.subr.mxu0 0.0
    %1649 = vmatpush1.msra.mxu0 0.0
    %1650 = vmatprep.subr.mxu0 0.0
    %1651 = vmatpush1.msra.mxu0 0.0
    %1652 = vmatprep.subr.mxu0 0.0
    %1653 = vmatpush1.msra.mxu0 0.0
    %1654 = vmatprep.subr.mxu0 0.0
    %1655 = vmatpush1.msra.mxu0 0.0
    %1656 = vmatprep.subr.mxu0 0.0
    %1657 = vmatpush1.msra.mxu0 0.0
    %1658 = vmatprep.subr.mxu0 0.0
    %1659 = vmatpush1.msra.mxu0 0.0
    %1660 = vmatprep.subr.mxu0 0.0
    %1661 = vmatpush1.msra.mxu0 0.0
    %1662 = vmatprep.subr.mxu0 0.0
    %1663 = vmatpush1.msra.mxu0 0.0
    %1664 = vmatprep.subr.mxu0 0.0
    %1665 = vmatpush1.msra.mxu0 0.0
    %1666 = vmatprep.subr.mxu0 0.0
    %1667 = vmatpush1.msra.mxu0 0.0
    %1668 = vmatprep.subr.mxu0 0.0
    %1669 = vmatpush1.msra.mxu0 0.0
    %1670 = vmatprep.subr.mxu0 0.0
    %1671 = vmatpush1.msra.mxu0 0.0
    %1672 = vmatprep.subr.mxu0 0.0
    %1673 = vmatpush1.msra.mxu0 0.0
    %1674 = vmatprep.subr.mxu0 0.0
    %1675 = vmatpush1.msra.mxu0 0.0
    %1676 = vmatprep.subr.mxu0 0.0
    %1677 = vmatpush1.msra.mxu0 0.0
    %1678 = vmatprep.subr.mxu0 0.0
    %1679 = vmatpush1.msra.mxu0 0.0
    %1680 = vmatprep.subr.mxu0 0.0
    %1681 = vmatpush1.msra.mxu0 0.0
    %1682 = vmatprep.subr.mxu0 0.0
    %1683 = vmatpush1.msra.mxu0 0.0
    %1684 = vmatprep.subr.mxu0 0.0
    %1685 = vmatpush1.msra.mxu0 0.0
    %1686 = vmatprep.subr.mxu0 0.0
    %1687 = vmatpush1.msra.mxu0 0.0
    %1688 = vmatprep.subr.mxu0 0.0
    %1689 = vmatpush1.msra.mxu0 0.0
    %1690 = vmatprep.subr.mxu0 0.0
    %1691 = vmatpush1.msra.mxu0 0.0
    %1692 = vmatprep.subr.mxu0 0.0
    %1693 = vmatpush1.msra.mxu0 0.0
    %1694 = vmatprep.subr.mxu0 0.0
    %1695 = vmatpush1.msra.mxu0 0.0
    %1696 = vmatprep.subr.mxu0 0.0
    %1697 = vmatpush1.msra.mxu0 0.0
    %1698 = vmatprep.subr.mxu0 0.0
    %1699 = vmatpush1.msra.mxu0 0.0
    %1700 = vmatprep.subr.mxu0 0.0
    %1701 = vmatpush1.msra.mxu0 0.0
    %1702 = vmatprep.subr.mxu0 0.0
    %1703 = vmatpush1.msra.mxu0 0.0
    %1704 = vmatprep.mubr.f32.mxu0 0.0
    %1705 = vmatmul.mubr.f32.gmra.mrb[0].mxu0 %v1635
    %v1706 = vpop.f32.mrb[0].mxu0
    %v1707 = vadd.f32 0.0, %v1706
    %v1708 = vpop.f32.mrb[0].mxu0
    %1709 = vmatprep.mubr.f32.mxu0 0.0
    %1710 = vmatmul.mubr.f32.gmra.mrb[0].mxu0 %v1638
    %v1711 = vpop.f32.mrb[0].mxu0
    %v1712 = vadd.f32 0.0, %v1711
    %v1713 = vpop.f32.mrb[0].mxu0
    %1714 = vdwg.mxu0
    %v1715 = vld [vmem:[%s15] sm:$0xff]
    %v1716 = vld [vmem:[%s15 + $0x8] sm:$0xff]
    %v1717 = vld [vmem:[%s19] sm:$0xf]
    %v1718 = vld [vmem:[%s17] sm:$0xff]
    %v1720 = vsel %vm1633, %v1707, 0
    %v1723 = vsel %vm1633, %v1712, 0
    %1725 = vmatprep.subr.mxu0 0.0
    %1726 = vmatpush1.msra.mxu0 %v1718
    %1727 = vmatprep.subr.mxu0 0.0
    %1728 = vmatpush1.msra.mxu0 0.0
    %1729 = vmatprep.subr.mxu0 0.0
    %1730 = vmatpush1.msra.mxu0 0.0
    %1731 = vmatprep.subr.mxu0 0.0
    %1732 = vmatpush1.msra.mxu0 0.0
    %1733 = vmatprep.subr.mxu0 0.0
    %1734 = vmatpush1.msra.mxu0 0.0
    %1735 = vmatprep.subr.mxu0 0.0
    %1736 = vmatpush1.msra.mxu0 0.0
    %1737 = vmatprep.subr.mxu0 0.0
    %1738 = vmatpush1.msra.mxu0 0.0
    %1739 = vmatprep.subr.mxu0 0.0
    %1740 = vmatpush1.msra.mxu0 0.0
    %1741 = vmatprep.subr.mxu0 0.0
    %1742 = vmatpush1.msra.mxu0 0.0
    %1743 = vmatprep.subr.mxu0 0.0
    %1744 = vmatpush1.msra.mxu0 0.0
    %1745 = vmatprep.subr.mxu0 0.0
    %1746 = vmatpush1.msra.mxu0 0.0
    %1747 = vmatprep.subr.mxu0 0.0
    %1748 = vmatpush1.msra.mxu0 0.0
    %1749 = vmatprep.subr.mxu0 0.0
    %1750 = vmatpush1.msra.mxu0 0.0
    %1751 = vmatprep.subr.mxu0 0.0
    %1752 = vmatpush1.msra.mxu0 0.0
    %1753 = vmatprep.subr.mxu0 0.0
    %1754 = vmatpush1.msra.mxu0 0.0
    %1755 = vmatprep.subr.mxu0 0.0
    %1756 = vmatpush1.msra.mxu0 0.0
    %1757 = vmatprep.subr.mxu0 0.0
    %1758 = vmatpush1.msra.mxu0 0.0
    %1759 = vmatprep.subr.mxu0 0.0
    %1760 = vmatpush1.msra.mxu0 0.0
    %1761 = vmatprep.subr.mxu0 0.0
    %1762 = vmatpush1.msra.mxu0 0.0
    %1763 = vmatprep.subr.mxu0 0.0
    %1764 = vmatpush1.msra.mxu0 0.0
    %1765 = vmatprep.subr.mxu0 0.0
    %1766 = vmatpush1.msra.mxu0 0.0
    %1767 = vmatprep.subr.mxu0 0.0
    %1768 = vmatpush1.msra.mxu0 0.0
    %1769 = vmatprep.subr.mxu0 0.0
    %1770 = vmatpush1.msra.mxu0 0.0
    %1771 = vmatprep.subr.mxu0 0.0
    %1772 = vmatpush1.msra.mxu0 0.0
    %1773 = vmatprep.subr.mxu0 0.0
    %1774 = vmatpush1.msra.mxu0 0.0
    %1775 = vmatprep.subr.mxu0 0.0
    %1776 = vmatpush1.msra.mxu0 0.0
    %1777 = vmatprep.subr.mxu0 0.0
    %1778 = vmatpush1.msra.mxu0 0.0
    %1779 = vmatprep.subr.mxu0 0.0
    %1780 = vmatpush1.msra.mxu0 0.0
    %1781 = vmatprep.subr.mxu0 0.0
    %1782 = vmatpush1.msra.mxu0 0.0
    %1783 = vmatprep.subr.mxu0 0.0
    %1784 = vmatpush1.msra.mxu0 0.0
    %1785 = vmatprep.subr.mxu0 0.0
    %1786 = vmatpush1.msra.mxu0 0.0
    %1787 = vmatprep.subr.mxu0 0.0
    %1788 = vmatpush1.msra.mxu0 0.0
    %1789 = vmatprep.mubr.f32.mxu0 0.0
    %1790 = vmatmul.mubr.f32.gmra.mrb[0].mxu0 %v1720
    %v1791 = vpop.f32.mrb[0].mxu0
    %v1792 = vadd.f32 0.0, %v1791
    %v1793 = vpop.f32.mrb[0].mxu0
    %1794 = vmatprep.mubr.f32.mxu0 0.0
    %1795 = vmatmul.mubr.f32.gmra.mrb[0].mxu0 %v1723
    %v1796 = vpop.f32.mrb[0].mxu0
    %v1797 = vadd.f32 0.0, %v1796
    %v1798 = vpop.f32.mrb[0].mxu0
    %1799 = vdwg.mxu0
    %vm1800 = vcmask 31744
    %v1802 = vsel %vm1800, %v1715, 0
    %v1805 = vsel %vm1800, %v1716, 0
    %vm1807 = vcmask 1043456
    %v1809 = vsel %vm1807, %v1717, 0
    %1811 = vmatprep.subr.mxu0 0.0
    %1812 = vmatpush1.msra.mxu0 %v1809
    %1813 = vmatprep.subr.mxu0 0.0
    %1814 = vmatpush1.msra.mxu0 0.0
    %1815 = vmatprep.subr.mxu0 0.0
    %1816 = vmatpush1.msra.mxu0 0.0
    %1817 = vmatprep.subr.mxu0 0.0
    %1818 = vmatpush1.msra.mxu0 0.0
    %1819 = vmatprep.subr.mxu0 0.0
    %1820 = vmatpush1.msra.mxu0 0.0
    %1821 = vmatprep.subr.mxu0 0.0
    %1822 = vmatpush1.msra.mxu0 0.0
    %1823 = vmatprep.subr.mxu0 0.0
    %1824 = vmatpush1.msra.mxu0 0.0
    %1825 = vmatprep.subr.mxu0 0.0
    %1826 = vmatpush1.msra.mxu0 0.0
    %1827 = vmatprep.subr.mxu0 0.0
    %1828 = vmatpush1.msra.mxu0 0.0
    %1829 = vmatprep.subr.mxu0 0.0
    %1830 = vmatpush1.msra.mxu0 0.0
    %1831 = vmatprep.subr.mxu0 0.0
    %1832 = vmatpush1.msra.mxu0 0.0
    %1833 = vmatprep.subr.mxu0 0.0
    %1834 = vmatpush1.msra.mxu0 0.0
    %1835 = vmatprep.subr.mxu0 0.0
    %1836 = vmatpush1.msra.mxu0 0.0
    %1837 = vmatprep.subr.mxu0 0.0
    %1838 = vmatpush1.msra.mxu0 0.0
    %1839 = vmatprep.subr.mxu0 0.0
    %1840 = vmatpush1.msra.mxu0 0.0
    %1841 = vmatprep.subr.mxu0 0.0
    %1842 = vmatpush1.msra.mxu0 0.0
    %1843 = vmatprep.subr.mxu0 0.0
    %1844 = vmatpush1.msra.mxu0 0.0
    %1845 = vmatprep.subr.mxu0 0.0
    %1846 = vmatpush1.msra.mxu0 0.0
    %1847 = vmatprep.subr.mxu0 0.0
    %1848 = vmatpush1.msra.mxu0 0.0
    %1849 = vmatprep.subr.mxu0 0.0
    %1850 = vmatpush1.msra.mxu0 0.0
    %1851 = vmatprep.subr.mxu0 0.0
    %1852 = vmatpush1.msra.mxu0 0.0
    %1853 = vmatprep.subr.mxu0 0.0
    %1854 = vmatpush1.msra.mxu0 0.0
    %1855 = vmatprep.subr.mxu0 0.0
    %1856 = vmatpush1.msra.mxu0 0.0
    %1857 = vmatprep.subr.mxu0 0.0
    %1858 = vmatpush1.msra.mxu0 0.0
    %1859 = vmatprep.subr.mxu0 0.0
    %1860 = vmatpush1.msra.mxu0 0.0
    %1861 = vmatprep.subr.mxu0 0.0
    %1862 = vmatpush1.msra.mxu0 0.0
    %1863 = vmatprep.subr.mxu0 0.0
    %1864 = vmatpush1.msra.mxu0 0.0
    %1865 = vmatprep.subr.mxu0 0.0
    %1866 = vmatpush1.msra.mxu0 0.0
    %1867 = vmatprep.subr.mxu0 0.0
    %1868 = vmatpush1.msra.mxu0 0.0
    %1869 = vmatprep.subr.mxu0 0.0
    %1870 = vmatpush1.msra.mxu0 0.0
    %1871 = vmatprep.subr.mxu0 0.0
    %1872 = vmatpush1.msra.mxu0 0.0
    %1873 = vmatprep.subr.mxu0 0.0
    %1874 = vmatpush1.msra.mxu0 0.0
    %1875 = vmatprep.mubr.f32.mxu0 0.0
    %1876 = vmatmul.mubr.f32.gmra.mrb[0].mxu0 %v1802
    %v1877 = vpop.f32.mrb[0].mxu0
    %v1878 = vadd.f32 %v1792, %v1877
    %v1879 = vpop.f32.mrb[0].mxu0
    %1880 = vmatprep.mubr.f32.mxu0 0.0
    %1881 = vmatmul.mubr.f32.gmra.mrb[0].mxu0 %v1805
    %v1882 = vpop.f32.mrb[0].mxu0
    %v1883 = vadd.f32 %v1797, %v1882
    %v1884 = vpop.f32.mrb[0].mxu0
    %1885 = vdwg.mxu0
    %v1886 = vld [vmem:[%s21] sm:$0x1]
    %v1888 = vlaneseq
    %v1889 = vshrl.u32 %v1888, 7
    %v1890 = vsub.s32 0, %v1889
    %v1891 = vrot.slane %v1886, %v1890
    %v1893 = vadd.f32 %v1878, %v1891
    %v1894 = vadd.f32 %v1883, %v1891
    %v1895 = vld [vmem:[%s27] sm:$0x1]
    %v1896 = vld [vmem:[%s29] sm:$0x1]
    %1897 = vadd.xlane.f32.xlu0 %v1893
    %v1898 = vpop.xlane.xlu0 %1897
    %1899 = vadd.xlane.f32.xlu0 %v1894
    %v1900 = vpop.xlane.xlu0 %1899
    %v1901 = vrcp.pop 128.0
    %v1902 = vmul.f32 %v1898, %v1901
    %v1903 = vmul.f32 %v1900, %v1901
    %v1904 = vsub.f32 %v1893, %v1902
    %v1905 = vsub.f32 %v1894, %v1903
    %v1906 = vmul.f32 %v1904, %v1904
    %v1907 = vmul.f32 %v1905, %v1905
    %1908 = vadd.xlane.f32.xlu0 %v1906
    %v1909 = vpop.xlane.xlu0 %1908
    %1910 = vadd.xlane.f32.xlu0 %v1907
    %v1911 = vpop.xlane.xlu0 %1910
    %v1912 = vmul.f32 %v1909, %v1901
    %v1913 = vmul.f32 %v1911, %v1901
    %v1914 = vadd.f32 %v1912, 1e-05
    %v1915 = vadd.f32 %v1913, 1e-05
    %v1916 = vrsqrt.pop %v1914
    %v1917 = vrsqrt.pop %v1915
    %v1918 = vmul.f32 %v1904, %v1916
    %v1919 = vmul.f32 %v1905, %v1917
    %v1921 = vlaneseq
    %v1922 = vshrl.u32 %v1921, 7
    %v1923 = vsub.s32 0, %v1922
    %v1924 = vrot.slane %v1895, %v1923
    %v1926 = vmul.f32 %v1918, %v1924
    %v1927 = vmul.f32 %v1919, %v1924
    %v1929 = vlaneseq
    %v1930 = vshrl.u32 %v1929, 7
    %v1931 = vsub.s32 0, %v1930
    %v1932 = vrot.slane %v1896, %v1931
    %v1934 = vadd.f32 %v1926, %v1932
    %v1935 = vadd.f32 %v1927, %v1932
    %v1936 = vld [vmem:[%s23] sm:$0xff]
    %v1937 = vld [vmem:[%s23 + $0x8] sm:$0xff]
    %v1938 = vld [vmem:[%s23 + $0x10] sm:$0xff]
    %v1939 = vld [vmem:[%s23 + $0x18] sm:$0xff]
    %v1940 = vld [vmem:[%s25] sm:$0x1]
    %v1941 = vld [vmem:[%s31] sm:$0x1]
    %v1942 = vld [vmem:[%s33] sm:$0x1]
    %v1943 = vld [vmem:[%s35] sm:$0x1]
    %v1944 = vld [vmem:[%s37] sm:$0x1]
    %v1946 = vlaneseq
    %v1947 = vshrl.u32 %v1946, 7
    %v1948 = vsub.s32 0, %v1947
    %v1949 = vrot.slane %v1940, %v1948
    %vm1951 = vcmask 261120
    %v1953 = vsel %vm1951, 0.0, 0
    %1955 = vmatprep.subr.mxu0 0.0
    %1956 = vmatpush1.msra.mxu0 %v1936
    %1957 = vmatprep.subr.mxu0 0.0
    %1958 = vmatpush1.msra.mxu0 %v1937
    %1959 = vmatprep.subr.mxu0 0.0
    %1960 = vmatpush1.msra.mxu0 %v1938
    %1961 = vmatprep.subr.mxu0 0.0
    %1962 = vmatpush1.msra.mxu0 %v1939
    %1963 = vmatprep.subr.mxu0 0.0
    %1964 = vmatpush1.msra.mxu0 0.0
    %1965 = vmatprep.subr.mxu0 0.0
    %1966 = vmatpush1.msra.mxu0 0.0
    %1967 = vmatprep.subr.mxu0 0.0
    %1968 = vmatpush1.msra.mxu0 0.0
    %1969 = vmatprep.subr.mxu0 0.0
    %1970 = vmatpush1.msra.mxu0 0.0
    %1971 = vmatprep.subr.mxu0 0.0
    %1972 = vmatpush1.msra.mxu0 0.0
    %1973 = vmatprep.subr.mxu0 0.0
    %1974 = vmatpush1.msra.mxu0 0.0
    %1975 = vmatprep.subr.mxu0 0.0
    %1976 = vmatpush1.msra.mxu0 0.0
    %1977 = vmatprep.subr.mxu0 0.0
    %1978 = vmatpush1.msra.mxu0 0.0
    %1979 = vmatprep.subr.mxu0 0.0
    %1980 = vmatpush1.msra.mxu0 0.0
    %1981 = vmatprep.subr.mxu0 0.0
    %1982 = vmatpush1.msra.mxu0 0.0
    %1983 = vmatprep.subr.mxu0 0.0
    %1984 = vmatpush1.msra.mxu0 0.0
    %1985 = vmatprep.subr.mxu0 0.0
    %1986 = vmatpush1.msra.mxu0 0.0
    %1987 = vmatprep.subr.mxu0 0.0
    %1988 = vmatpush1.msra.mxu0 0.0
    %1989 = vmatprep.subr.mxu0 0.0
    %1990 = vmatpush1.msra.mxu0 0.0
    %1991 = vmatprep.subr.mxu0 0.0
    %1992 = vmatpush1.msra.mxu0 0.0
    %1993 = vmatprep.subr.mxu0 0.0
    %1994 = vmatpush1.msra.mxu0 0.0
    %1995 = vmatprep.subr.mxu0 0.0
    %1996 = vmatpush1.msra.mxu0 0.0
    %1997 = vmatprep.subr.mxu0 0.0
    %1998 = vmatpush1.msra.mxu0 0.0
    %1999 = vmatprep.subr.mxu0 0.0
    %2000 = vmatpush1.msra.mxu0 0.0
    %2001 = vmatprep.subr.mxu0 0.0
    %2002 = vmatpush1.msra.mxu0 0.0
    %2003 = vmatprep.subr.mxu0 0.0
    %2004 = vmatpush1.msra.mxu0 0.0
    %2005 = vmatprep.subr.mxu0 0.0
    %2006 = vmatpush1.msra.mxu0 0.0
    %2007 = vmatprep.subr.mxu0 0.0
    %2008 = vmatpush1.msra.mxu0 0.0
    %2009 = vmatprep.subr.mxu0 0.0
    %2010 = vmatpush1.msra.mxu0 0.0
    %2011 = vmatprep.subr.mxu0 0.0
    %2012 = vmatpush1.msra.mxu0 0.0
    %2013 = vmatprep.subr.mxu0 0.0
    %2014 = vmatpush1.msra.mxu0 0.0
    %2015 = vmatprep.subr.mxu0 0.0
    %2016 = vmatpush1.msra.mxu0 0.0
    %2017 = vmatprep.subr.mxu0 0.0
    %2018 = vmatpush1.msra.mxu0 0.0
    %2019 = vmatprep.mubr.f32.mxu0 0.0
    %2020 = vmatmul.mubr.f32.gmra.mrb[0].mxu0 %v1953
    %v2021 = vpop.f32.mrb[0].mxu0
    %v2022 = vadd.f32 %v1949, %v2021
    %v2023 = vpop.f32.mrb[0].mxu0
    %2024 = vdwg.mxu0
    %vm2025 = vcmask 1041408
    %v2026 = vsel %vm2025, %v2022, 0.0
    %2027 = vadd.xlane.f32.xlu0 %v2026
    %v2028 = vpop.xlane.xlu0 %2027
    %v2029 = vmul.f32 %v2028, %v1901
    %v2030 = vsub.f32 %v2022, %v2029
    %v2031 = vmul.f32 %v2030, %v2030
    %v2032 = vsel %vm2025, %v2031, 0.0
    %2033 = vadd.xlane.f32.xlu0 %v2032
    %v2034 = vpop.xlane.xlu0 %2033
    %v2035 = vmul.f32 %v2034, %v1901
    %v2036 = vadd.f32 %v2035, 1e-05
    %v2037 = vrsqrt.pop %v2036
    %v2038 = vmul.f32 %v2030, %v2037
    %v2040 = vlaneseq
    %v2041 = vshrl.u32 %v2040, 7
    %v2042 = vsub.s32 0, %v2041
    %v2043 = vrot.slane %v1941, %v2042
    %v2045 = vmul.f32 %v2038, %v2043
    %v2047 = vlaneseq
    %v2048 = vshrl.u32 %v2047, 7
    %v2049 = vsub.s32 0, %v2048
    %v2050 = vrot.slane %v1942, %v2049
    %v2052 = vadd.f32 %v2045, %v2050
    %v2053 = vadd.f32 %v1934, %v2052
    %v2054 = vxor.u32 %v2053, 2147483648
    %v2055 = vmul.f32 %v2054, 1.442695
    %v2056 = vpow.pop %v2055
    %v2057 = vadd.f32 %v2056, 1.0
    %v2058 = vrcp.pop %v2057
    %v2059 = vmul.f32 1.0, %v2058
    %v2060 = vtanh.pop %v2053
    %v2061 = vmul.f32 %v2059, 0.0
    %2063 = vrot.lane.b32.xlu0 %v2060, 32
    %v2064 = vpop.permute.xlu0 %2063
    %v2066 = vmul.f32 %v2059, %v2064
    %2068 = vrot.lane.b32.xlu0 %v2066, 32
    %v2069 = vpop.permute.xlu0 %2068
    %v2071 = vadd.f32 %v2061, %v2069
    %2073 = vrot.lane.b32.xlu0 %v2071, 96
    %v2074 = vpop.permute.xlu0 %2073
    %vm2076 = vcmask 254976
    %v2077 = vsel %vm2076, %v2074, 0.0
    %2078 = vadd.xlane.f32.xlu0 %v2077
    %v2079 = vpop.xlane.xlu0 %2078
    %v2080 = vrcp.pop 32.0
    %v2081 = vmul.f32 %v2079, %v2080
    %v2082 = vsub.f32 %v2071, %v2081
    %v2083 = vmul.f32 %v2082, %v2082
    %2085 = vrot.lane.b32.xlu0 %v2083, 96
    %v2086 = vpop.permute.xlu0 %2085
    %v2088 = vsel %vm2076, %v2086, 0.0
    %2089 = vadd.xlane.f32.xlu0 %v2088
    %v2090 = vpop.xlane.xlu0 %2089
    %v2091 = vmul.f32 %v2090, %v2080
    %v2092 = vadd.f32 %v2091, 1e-05
    %v2093 = vrsqrt.pop %v2092
    %v2094 = vmul.f32 %v2082, %v2093
    %v2096 = vlaneseq
    %v2097 = vshrl.u32 %v2096, 7
    %v2098 = vsub.s32 0, %v2097
    %v2099 = vrot.slane %v1943, %v2098
    %2100 = vrot.lane.b32.xlu0 %v2099, 32
    %v2101 = vpop.permute.xlu0 %2100
    %v2103 = vmul.f32 %v2094, %v2101
    %v2105 = vlaneseq
    %v2106 = vshrl.u32 %v2105, 7
    %v2107 = vsub.s32 0, %v2106
    %v2108 = vrot.slane %v1944, %v2107
    %2109 = vrot.lane.b32.xlu0 %v2108, 32
    %v2110 = vpop.permute.xlu0 %2109
    %v2112 = vadd.f32 %v2103, %v2110
    %v2113 = vtanh.pop %v2112
    %2115 = vrot.lane.b32.xlu0 %v2113, 32
    %v2116 = vpop.permute.xlu0 %2115
    %v2118 = vmul.f32 %v2059, %v2116
    %2120 = vrot.lane.b32.xlu0 %v2118, 64
    %v2121 = vpop.permute.xlu0 %2120
    %2123 = vst.msk [vmem:[#allocation3] sm:$0x3] %vm2076, %v2121
    %v2124 = vsel %vm1951, %v2121, 0
    %2126 = vmatprep.subr.mxu0 0.0
    %2127 = vmatpush1.msra.mxu0 %v1936
    %2128 = vmatprep.subr.mxu0 0.0
    %2129 = vmatpush1.msra.mxu0 %v1937
    %2130 = vmatprep.subr.mxu0 0.0
    %2131 = vmatpush1.msra.mxu0 %v1938
    %2132 = vmatprep.subr.mxu0 0.0
    %2133 = vmatpush1.msra.mxu0 %v1939
    %2134 = vmatprep.subr.mxu0 0.0
    %2135 = vmatpush1.msra.mxu0 0.0
    %2136 = vmatprep.subr.mxu0 0.0
    %2137 = vmatpush1.msra.mxu0 0.0
    %2138 = vmatprep.subr.mxu0 0.0
    %2139 = vmatpush1.msra.mxu0 0.0
    %2140 = vmatprep.subr.mxu0 0.0
    %2141 = vmatpush1.msra.mxu0 0.0
    %2142 = vmatprep.subr.mxu0 0.0
    %2143 = vmatpush1.msra.mxu0 0.0
    %2144 = vmatprep.subr.mxu0 0.0
    %2145 = vmatpush1.msra.mxu0 0.0
    %2146 = vmatprep.subr.mxu0 0.0
    %2147 = vmatpush1.msra.mxu0 0.0
    %2148 = vmatprep.subr.mxu0 0.0
    %2149 = vmatpush1.msra.mxu0 0.0
    %2150 = vmatprep.subr.mxu0 0.0
    %2151 = vmatpush1.msra.mxu0 0.0
    %2152 = vmatprep.subr.mxu0 0.0
    %2153 = vmatpush1.msra.mxu0 0.0
    %2154 = vmatprep.subr.mxu0 0.0
    %2155 = vmatpush1.msra.mxu0 0.0
    %2156 = vmatprep.subr.mxu0 0.0
    %2157 = vmatpush1.msra.mxu0 0.0
    %2158 = vmatprep.subr.mxu0 0.0
    %2159 = vmatpush1.msra.mxu0 0.0
    %2160 = vmatprep.subr.mxu0 0.0
    %2161 = vmatpush1.msra.mxu0 0.0
    %2162 = vmatprep.subr.mxu0 0.0
    %2163 = vmatpush1.msra.mxu0 0.0
    %2164 = vmatprep.subr.mxu0 0.0
    %2165 = vmatpush1.msra.mxu0 0.0
    %2166 = vmatprep.subr.mxu0 0.0
    %2167 = vmatpush1.msra.mxu0 0.0
    %2168 = vmatprep.subr.mxu0 0.0
    %2169 = vmatpush1.msra.mxu0 0.0
    %2170 = vmatprep.subr.mxu0 0.0
    %2171 = vmatpush1.msra.mxu0 0.0
    %2172 = vmatprep.subr.mxu0 0.0
    %2173 = vmatpush1.msra.mxu0 0.0
    %2174 = vmatprep.subr.mxu0 0.0
    %2175 = vmatpush1.msra.mxu0 0.0
    %2176 = vmatprep.subr.mxu0 0.0
    %2177 = vmatpush1.msra.mxu0 0.0
    %2178 = vmatprep.subr.mxu0 0.0
    %2179 = vmatpush1.msra.mxu0 0.0
    %2180 = vmatprep.subr.mxu0 0.0
    %2181 = vmatpush1.msra.mxu0 0.0
    %2182 = vmatprep.subr.mxu0 0.0
    %2183 = vmatpush1.msra.mxu0 0.0
    %2184 = vmatprep.subr.mxu0 0.0
    %2185 = vmatpush1.msra.mxu0 0.0
    %2186 = vmatprep.subr.mxu0 0.0
    %2187 = vmatpush1.msra.mxu0 0.0
    %2188 = vmatprep.subr.mxu0 0.0
    %2189 = vmatpush1.msra.mxu0 0.0
    %2190 = vmatprep.mubr.f32.mxu0 0.0
    %2191 = vmatmul.mubr.f32.gmra.mrb[0].mxu0 %v2124
    %v2192 = vpop.f32.mrb[0].mxu0
    %v2193 = vadd.f32 %v1949, %v2192
    %v2194 = vpop.f32.mrb[0].mxu0
    %2195 = vdwg.mxu0
    %v2196 = vsel %vm2025, %v2193, 0.0
    %2197 = vadd.xlane.f32.xlu0 %v2196
    %v2198 = vpop.xlane.xlu0 %2197
    %v2199 = vmul.f32 %v2198, %v1901
    %v2200 = vsub.f32 %v2193, %v2199
    %v2201 = vmul.f32 %v2200, %v2200
    %v2202 = vsel %vm2025, %v2201, 0.0
    %2203 = vadd.xlane.f32.xlu0 %v2202
    %v2204 = vpop.xlane.xlu0 %2203
    %v2205 = vmul.f32 %v2204, %v1901
    %v2206 = vadd.f32 %v2205, 1e-05
    %v2207 = vrsqrt.pop %v2206
    %v2208 = vmul.f32 %v2200, %v2207
    %v2209 = vmul.f32 %v2208, %v2043
    %v2210 = vadd.f32 %v2209, %v2050
    %v2212 = vrot.slane %v2210, 6
    %v2214 = vadd.f32 %v1934, %v2212
    %v2215 = vxor.u32 %v2214, 2147483648
    %v2216 = vmul.f32 %v2215, 1.442695
    %v2217 = vpow.pop %v2216
    %v2218 = vadd.f32 %v2217, 1.0
    %v2219 = vrcp.pop %v2218
    %v2220 = vmul.f32 1.0, %v2219
    %v2221 = vtanh.pop %v2214
    %v2222 = vrot.slane %v2071, 6
    %v2224 = vmul.f32 %v2220, %v2222
    %2226 = vrot.lane.b32.xlu0 %v2221, 32
    %v2227 = vpop.permute.xlu0 %2226
    %v2229 = vmul.f32 %v2220, %v2227
    %2231 = vrot.lane.b32.xlu0 %v2229, 32
    %v2232 = vpop.permute.xlu0 %2231
    %v2234 = vadd.f32 %v2224, %v2232
    %2236 = vrot.lane.b32.xlu0 %v2234, 96
    %v2237 = vpop.permute.xlu0 %2236
    %vm2239 = vcmask 257026
    %v2240 = vsel %vm2239, %v2237, 0.0
    %2241 = vadd.xlane.f32.xlu0 %v2240
    %v2242 = vpop.xlane.xlu0 %2241
    %v2243 = vmul.f32 %v2242, %v2080
    %v2244 = vsub.f32 %v2234, %v2243
    %v2245 = vmul.f32 %v2244, %v2244
    %2247 = vrot.lane.b32.xlu0 %v2245, 96
    %v2248 = vpop.permute.xlu0 %2247
    %v2250 = vsel %vm2239, %v2248, 0.0
    %2251 = vadd.xlane.f32.xlu0 %v2250
    %v2252 = vpop.xlane.xlu0 %2251
    %v2253 = vmul.f32 %v2252, %v2080
    %v2254 = vadd.f32 %v2253, 1e-05
    %v2255 = vrsqrt.pop %v2254
    %v2256 = vmul.f32 %v2244, %v2255
    %v2257 = vmul.f32 %v2256, %v2101
    %v2258 = vadd.f32 %v2257, %v2110
    %v2259 = vtanh.pop %v2258
    %2261 = vrot.lane.b32.xlu0 %v2259, 32
    %v2262 = vpop.permute.xlu0 %2261
    %v2264 = vmul.f32 %v2220, %v2262
    %2266 = vrot.lane.b32.xlu0 %v2264, 64
    %v2267 = vpop.permute.xlu0 %2266
    %2269 = vst.msk [vmem:[#allocation3] sm:$0xc] %vm2239, %v2267
    %v2270 = vrot.slane %v2264, 2
    %2271 = vrot.lane.b32.xlu0 %v2270, 64
    %v2272 = vpop.permute.xlu0 %2271
    %v2273 = vsel %vm1951, %v2272, 0
    %2275 = vmatprep.subr.mxu0 0.0
    %2276 = vmatpush1.msra.mxu0 %v1936
    %2277 = vmatprep.subr.mxu0 0.0
    %2278 = vmatpush1.msra.mxu0 %v1937
    %2279 = vmatprep.subr.mxu0 0.0
    %2280 = vmatpush1.msra.mxu0 %v1938
    %2281 = vmatprep.subr.mxu0 0.0
    %2282 = vmatpush1.msra.mxu0 %v1939
    %2283 = vmatprep.subr.mxu0 0.0
    %2284 = vmatpush1.msra.mxu0 0.0
    %2285 = vmatprep.subr.mxu0 0.0
    %2286 = vmatpush1.msra.mxu0 0.0
    %2287 = vmatprep.subr.mxu0 0.0
    %2288 = vmatpush1.msra.mxu0 0.0
    %2289 = vmatprep.subr.mxu0 0.0
    %2290 = vmatpush1.msra.mxu0 0.0
    %2291 = vmatprep.subr.mxu0 0.0
    %2292 = vmatpush1.msra.mxu0 0.0
    %2293 = vmatprep.subr.mxu0 0.0
    %2294 = vmatpush1.msra.mxu0 0.0
    %2295 = vmatprep.subr.mxu0 0.0
    %2296 = vmatpush1.msra.mxu0 0.0
    %2297 = vmatprep.subr.mxu0 0.0
    %2298 = vmatpush1.msra.mxu0 0.0
    %2299 = vmatprep.subr.mxu0 0.0
    %2300 = vmatpush1.msra.mxu0 0.0
    %2301 = vmatprep.subr.mxu0 0.0
    %2302 = vmatpush1.msra.mxu0 0.0
    %2303 = vmatprep.subr.mxu0 0.0
    %2304 = vmatpush1.msra.mxu0 0.0
    %2305 = vmatprep.subr.mxu0 0.0
    %2306 = vmatpush1.msra.mxu0 0.0
    %2307 = vmatprep.subr.mxu0 0.0
    %2308 = vmatpush1.msra.mxu0 0.0
    %2309 = vmatprep.subr.mxu0 0.0
    %2310 = vmatpush1.msra.mxu0 0.0
    %2311 = vmatprep.subr.mxu0 0.0
    %2312 = vmatpush1.msra.mxu0 0.0
    %2313 = vmatprep.subr.mxu0 0.0
    %2314 = vmatpush1.msra.mxu0 0.0
    %2315 = vmatprep.subr.mxu0 0.0
    %2316 = vmatpush1.msra.mxu0 0.0
    %2317 = vmatprep.subr.mxu0 0.0
    %2318 = vmatpush1.msra.mxu0 0.0
    %2319 = vmatprep.subr.mxu0 0.0
    %2320 = vmatpush1.msra.mxu0 0.0
    %2321 = vmatprep.subr.mxu0 0.0
    %2322 = vmatpush1.msra.mxu0 0.0
    %2323 = vmatprep.subr.mxu0 0.0
    %2324 = vmatpush1.msra.mxu0 0.0
    %2325 = vmatprep.subr.mxu0 0.0
    %2326 = vmatpush1.msra.mxu0 0.0
    %2327 = vmatprep.subr.mxu0 0.0
    %2328 = vmatpush1.msra.mxu0 0.0
    %2329 = vmatprep.subr.mxu0 0.0
    %2330 = vmatpush1.msra.mxu0 0.0
    %2331 = vmatprep.subr.mxu0 0.0
    %2332 = vmatpush1.msra.mxu0 0.0
    %2333 = vmatprep.subr.mxu0 0.0
    %2334 = vmatpush1.msra.mxu0 0.0
    %2335 = vmatprep.subr.mxu0 0.0
    %2336 = vmatpush1.msra.mxu0 0.0
    %2337 = vmatprep.subr.mxu0 0.0
    %2338 = vmatpush1.msra.mxu0 0.0
    %2339 = vmatprep.mubr.f32.mxu0 0.0
    %2340 = vmatmul.mubr.f32.gmra.mrb[0].mxu0 %v2273
    %v2341 = vpop.f32.mrb[0].mxu0
    %v2342 = vadd.f32 %v1949, %v2341
    %v2343 = vpop.f32.mrb[0].mxu0
    %2344 = vdwg.mxu0
    %v2345 = vsel %vm2025, %v2342, 0.0
    %2346 = vadd.xlane.f32.xlu0 %v2345
    %v2347 = vpop.xlane.xlu0 %2346
    %v2348 = vmul.f32 %v2347, %v1901
    %v2349 = vsub.f32 %v2342, %v2348
    %v2350 = vmul.f32 %v2349, %v2349
    %v2351 = vsel %vm2025, %v2350, 0.0
    %2352 = vadd.xlane.f32.xlu0 %v2351
    %v2353 = vpop.xlane.xlu0 %2352
    %v2354 = vmul.f32 %v2353, %v1901
    %v2355 = vadd.f32 %v2354, 1e-05
    %v2356 = vrsqrt.pop %v2355
    %v2357 = vmul.f32 %v2349, %v2356
    %v2358 = vmul.f32 %v2357, %v2043
    %v2359 = vadd.f32 %v2358, %v2050
    %v2361 = vrot.slane %v2359, 4
    %v2363 = vadd.f32 %v1934, %v2361
    %v2364 = vxor.u32 %v2363, 2147483648
    %v2365 = vmul.f32 %v2364, 1.442695
    %v2366 = vpow.pop %v2365
    %v2367 = vadd.f32 %v2366, 1.0
    %v2368 = vrcp.pop %v2367
    %v2369 = vmul.f32 1.0, %v2368
    %v2370 = vtanh.pop %v2363
    %v2371 = vrot.slane %v2234, 6
    %v2373 = vmul.f32 %v2369, %v2371
    %2375 = vrot.lane.b32.xlu0 %v2370, 32
    %v2376 = vpop.permute.xlu0 %2375
    %v2378 = vmul.f32 %v2369, %v2376
    %2380 = vrot.lane.b32.xlu0 %v2378, 32
    %v2381 = vpop.permute.xlu0 %2380
    %v2383 = vadd.f32 %v2373, %v2381
    %2385 = vrot.lane.b32.xlu0 %v2383, 96
    %v2386 = vpop.permute.xlu0 %2385
    %vm2388 = vcmask 259076
    %v2389 = vsel %vm2388, %v2386, 0.0
    %2390 = vadd.xlane.f32.xlu0 %v2389
    %v2391 = vpop.xlane.xlu0 %2390
    %v2392 = vmul.f32 %v2391, %v2080
    %v2393 = vsub.f32 %v2383, %v2392
    %v2394 = vmul.f32 %v2393, %v2393
    %2396 = vrot.lane.b32.xlu0 %v2394, 96
    %v2397 = vpop.permute.xlu0 %2396
    %v2399 = vsel %vm2388, %v2397, 0.0
    %2400 = vadd.xlane.f32.xlu0 %v2399
    %v2401 = vpop.xlane.xlu0 %2400
    %v2402 = vmul.f32 %v2401, %v2080
    %v2403 = vadd.f32 %v2402, 1e-05
    %v2404 = vrsqrt.pop %v2403
    %v2405 = vmul.f32 %v2393, %v2404
    %v2406 = vmul.f32 %v2405, %v2101
    %v2407 = vadd.f32 %v2406, %v2110
    %v2408 = vtanh.pop %v2407
    %2410 = vrot.lane.b32.xlu0 %v2408, 32
    %v2411 = vpop.permute.xlu0 %2410
    %v2413 = vmul.f32 %v2369, %v2411
    %2415 = vrot.lane.b32.xlu0 %v2413, 64
    %v2416 = vpop.permute.xlu0 %2415
    %2418 = vst.msk [vmem:[#allocation3] sm:$0x30] %vm2388, %v2416
    %v2419 = vrot.slane %v2413, 4
    %2420 = vrot.lane.b32.xlu0 %v2419, 64
    %v2421 = vpop.permute.xlu0 %2420
    %v2422 = vsel %vm1951, %v2421, 0
    %2424 = vmatprep.subr.mxu0 0.0
    %2425 = vmatpush1.msra.mxu0 %v1936
    %2426 = vmatprep.subr.mxu0 0.0
    %2427 = vmatpush1.msra.mxu0 %v1937
    %2428 = vmatprep.subr.mxu0 0.0
    %2429 = vmatpush1.msra.mxu0 %v1938
    %2430 = vmatprep.subr.mxu0 0.0
    %2431 = vmatpush1.msra.mxu0 %v1939
    %2432 = vmatprep.subr.mxu0 0.0
    %2433 = vmatpush1.msra.mxu0 0.0
    %2434 = vmatprep.subr.mxu0 0.0
    %2435 = vmatpush1.msra.mxu0 0.0
    %2436 = vmatprep.subr.mxu0 0.0
    %2437 = vmatpush1.msra.mxu0 0.0
    %2438 = vmatprep.subr.mxu0 0.0
    %2439 = vmatpush1.msra.mxu0 0.0
    %2440 = vmatprep.subr.mxu0 0.0
    %2441 = vmatpush1.msra.mxu0 0.0
    %2442 = vmatprep.subr.mxu0 0.0
    %2443 = vmatpush1.msra.mxu0 0.0
    %2444 = vmatprep.subr.mxu0 0.0
    %2445 = vmatpush1.msra.mxu0 0.0
    %2446 = vmatprep.subr.mxu0 0.0
    %2447 = vmatpush1.msra.mxu0 0.0
    %2448 = vmatprep.subr.mxu0 0.0
    %2449 = vmatpush1.msra.mxu0 0.0
    %2450 = vmatprep.subr.mxu0 0.0
    %2451 = vmatpush1.msra.mxu0 0.0
    %2452 = vmatprep.subr.mxu0 0.0
    %2453 = vmatpush1.msra.mxu0 0.0
    %2454 = vmatprep.subr.mxu0 0.0
    %2455 = vmatpush1.msra.mxu0 0.0
    %2456 = vmatprep.subr.mxu0 0.0
    %2457 = vmatpush1.msra.mxu0 0.0
    %2458 = vmatprep.subr.mxu0 0.0
    %2459 = vmatpush1.msra.mxu0 0.0
    %2460 = vmatprep.subr.mxu0 0.0
    %2461 = vmatpush1.msra.mxu0 0.0
    %2462 = vmatprep.subr.mxu0 0.0
    %2463 = vmatpush1.msra.mxu0 0.0
    %2464 = vmatprep.subr.mxu0 0.0
    %2465 = vmatpush1.msra.mxu0 0.0
    %2466 = vmatprep.subr.mxu0 0.0
    %2467 = vmatpush1.msra.mxu0 0.0
    %2468 = vmatprep.subr.mxu0 0.0
    %2469 = vmatpush1.msra.mxu0 0.0
    %2470 = vmatprep.subr.mxu0 0.0
    %2471 = vmatpush1.msra.mxu0 0.0
    %2472 = vmatprep.subr.mxu0 0.0
    %2473 = vmatpush1.msra.mxu0 0.0
    %2474 = vmatprep.subr.mxu0 0.0
    %2475 = vmatpush1.msra.mxu0 0.0
    %2476 = vmatprep.subr.mxu0 0.0
    %2477 = vmatpush1.msra.mxu0 0.0
    %2478 = vmatprep.subr.mxu0 0.0
    %2479 = vmatpush1.msra.mxu0 0.0
    %2480 = vmatprep.subr.mxu0 0.0
    %2481 = vmatpush1.msra.mxu0 0.0
    %2482 = vmatprep.subr.mxu0 0.0
    %2483 = vmatpush1.msra.mxu0 0.0
    %2484 = vmatprep.subr.mxu0 0.0
    %2485 = vmatpush1.msra.mxu0 0.0
    %2486 = vmatprep.subr.mxu0 0.0
    %2487 = vmatpush1.msra.mxu0 0.0
    %2488 = vmatprep.mubr.f32.mxu0 0.0
    %2489 = vmatmul.mubr.f32.gmra.mrb[0].mxu0 %v2422
    %v2490 = vpop.f32.mrb[0].mxu0
    %v2491 = vadd.f32 %v1949, %v2490
    %v2492 = vpop.f32.mrb[0].mxu0
    %2493 = vdwg.mxu0
    %v2494 = vsel %vm2025, %v2491, 0.0
    %2495 = vadd.xlane.f32.xlu0 %v2494
    %v2496 = vpop.xlane.xlu0 %2495
    %v2497 = vmul.f32 %v2496, %v1901
    %v2498 = vsub.f32 %v2491, %v2497
    %v2499 = vmul.f32 %v2498, %v2498
    %v2500 = vsel %vm2025, %v2499, 0.0
    %2501 = vadd.xlane.f32.xlu0 %v2500
    %v2502 = vpop.xlane.xlu0 %2501
    %v2503 = vmul.f32 %v2502, %v1901
    %v2504 = vadd.f32 %v2503, 1e-05
    %v2505 = vrsqrt.pop %v2504
    %v2506 = vmul.f32 %v2498, %v2505
    %v2507 = vmul.f32 %v2506, %v2043
    %v2508 = vadd.f32 %v2507, %v2050
    %v2510 = vrot.slane %v2508, 2
    %v2512 = vadd.f32 %v1934, %v2510
    %v2513 = vxor.u32 %v2512, 2147483648
    %v2514 = vmul.f32 %v2513, 1.442695
    %v2515 = vpow.pop %v2514
    %v2516 = vadd.f32 %v2515, 1.0
    %v2517 = vrcp.pop %v2516
    %v2518 = vmul.f32 1.0, %v2517
    %v2519 = vtanh.pop %v2512
    %v2520 = vrot.slane %v2383, 6
    %v2522 = vmul.f32 %v2518, %v2520
    %2524 = vrot.lane.b32.xlu0 %v2519, 32
    %v2525 = vpop.permute.xlu0 %2524
    %v2527 = vmul.f32 %v2518, %v2525
    %2529 = vrot.lane.b32.xlu0 %v2527, 32
    %v2530 = vpop.permute.xlu0 %2529
    %v2532 = vadd.f32 %v2522, %v2530
    %2534 = vrot.lane.b32.xlu0 %v2532, 96
    %v2535 = vpop.permute.xlu0 %2534
    %vm2537 = vcmask 261126
    %v2538 = vsel %vm2537, %v2535, 0.0
    %2539 = vadd.xlane.f32.xlu0 %v2538
    %v2540 = vpop.xlane.xlu0 %2539
    %v2541 = vmul.f32 %v2540, %v2080
    %v2542 = vsub.f32 %v2532, %v2541
    %v2543 = vmul.f32 %v2542, %v2542
    %2545 = vrot.lane.b32.xlu0 %v2543, 96
    %v2546 = vpop.permute.xlu0 %2545
    %v2548 = vsel %vm2537, %v2546, 0.0
    %2549 = vadd.xlane.f32.xlu0 %v2548
    %v2550 = vpop.xlane.xlu0 %2549
    %v2551 = vmul.f32 %v2550, %v2080
    %v2552 = vadd.f32 %v2551, 1e-05
    %v2553 = vrsqrt.pop %v2552
    %v2554 = vmul.f32 %v2542, %v2553
    %v2555 = vmul.f32 %v2554, %v2101
    %v2556 = vadd.f32 %v2555, %v2110
    %v2557 = vtanh.pop %v2556
    %2559 = vrot.lane.b32.xlu0 %v2557, 32
    %v2560 = vpop.permute.xlu0 %2559
    %v2562 = vmul.f32 %v2518, %v2560
    %2564 = vrot.lane.b32.xlu0 %v2562, 64
    %v2565 = vpop.permute.xlu0 %2564
    %2567 = vst.msk [vmem:[#allocation3] sm:$0xc0] %vm2537, %v2565
    %v2568 = vrot.slane %v2562, 6
    %2569 = vrot.lane.b32.xlu0 %v2568, 64
    %v2570 = vpop.permute.xlu0 %2569
    %v2571 = vsel %vm1951, %v2570, 0
    %2573 = vmatprep.subr.mxu0 0.0
    %2574 = vmatpush1.msra.mxu0 %v1936
    %2575 = vmatprep.subr.mxu0 0.0
    %2576 = vmatpush1.msra.mxu0 %v1937
    %2577 = vmatprep.subr.mxu0 0.0
    %2578 = vmatpush1.msra.mxu0 %v1938
    %2579 = vmatprep.subr.mxu0 0.0
    %2580 = vmatpush1.msra.mxu0 %v1939
    %2581 = vmatprep.subr.mxu0 0.0
    %2582 = vmatpush1.msra.mxu0 0.0
    %2583 = vmatprep.subr.mxu0 0.0
    %2584 = vmatpush1.msra.mxu0 0.0
    %2585 = vmatprep.subr.mxu0 0.0
    %2586 = vmatpush1.msra.mxu0 0.0
    %2587 = vmatprep.subr.mxu0 0.0
    %2588 = vmatpush1.msra.mxu0 0.0
    %2589 = vmatprep.subr.mxu0 0.0
    %2590 = vmatpush1.msra.mxu0 0.0
    %2591 = vmatprep.subr.mxu0 0.0
    %2592 = vmatpush1.msra.mxu0 0.0
    %2593 = vmatprep.subr.mxu0 0.0
    %2594 = vmatpush1.msra.mxu0 0.0
    %2595 = vmatprep.subr.mxu0 0.0
    %2596 = vmatpush1.msra.mxu0 0.0
    %2597 = vmatprep.subr.mxu0 0.0
    %2598 = vmatpush1.msra.mxu0 0.0
    %2599 = vmatprep.subr.mxu0 0.0
    %2600 = vmatpush1.msra.mxu0 0.0
    %2601 = vmatprep.subr.mxu0 0.0
    %2602 = vmatpush1.msra.mxu0 0.0
    %2603 = vmatprep.subr.mxu0 0.0
    %2604 = vmatpush1.msra.mxu0 0.0
    %2605 = vmatprep.subr.mxu0 0.0
    %2606 = vmatpush1.msra.mxu0 0.0
    %2607 = vmatprep.subr.mxu0 0.0
    %2608 = vmatpush1.msra.mxu0 0.0
    %2609 = vmatprep.subr.mxu0 0.0
    %2610 = vmatpush1.msra.mxu0 0.0
    %2611 = vmatprep.subr.mxu0 0.0
    %2612 = vmatpush1.msra.mxu0 0.0
    %2613 = vmatprep.subr.mxu0 0.0
    %2614 = vmatpush1.msra.mxu0 0.0
    %2615 = vmatprep.subr.mxu0 0.0
    %2616 = vmatpush1.msra.mxu0 0.0
    %2617 = vmatprep.subr.mxu0 0.0
    %2618 = vmatpush1.msra.mxu0 0.0
    %2619 = vmatprep.subr.mxu0 0.0
    %2620 = vmatpush1.msra.mxu0 0.0
    %2621 = vmatprep.subr.mxu0 0.0
    %2622 = vmatpush1.msra.mxu0 0.0
    %2623 = vmatprep.subr.mxu0 0.0
    %2624 = vmatpush1.msra.mxu0 0.0
    %2625 = vmatprep.subr.mxu0 0.0
    %2626 = vmatpush1.msra.mxu0 0.0
    %2627 = vmatprep.subr.mxu0 0.0
    %2628 = vmatpush1.msra.mxu0 0.0
    %2629 = vmatprep.subr.mxu0 0.0
    %2630 = vmatpush1.msra.mxu0 0.0
    %2631 = vmatprep.subr.mxu0 0.0
    %2632 = vmatpush1.msra.mxu0 0.0
    %2633 = vmatprep.subr.mxu0 0.0
    %2634 = vmatpush1.msra.mxu0 0.0
    %2635 = vmatprep.subr.mxu0 0.0
    %2636 = vmatpush1.msra.mxu0 0.0
    %2637 = vmatprep.mubr.f32.mxu0 0.0
    %2638 = vmatmul.mubr.f32.gmra.mrb[0].mxu0 %v2571
    %v2639 = vpop.f32.mrb[0].mxu0
    %v2640 = vadd.f32 %v1949, %v2639
    %v2641 = vpop.f32.mrb[0].mxu0
    %2642 = vdwg.mxu0
    %v2643 = vsel %vm2025, %v2640, 0.0
    %2644 = vadd.xlane.f32.xlu0 %v2643
    %v2645 = vpop.xlane.xlu0 %2644
    %v2646 = vmul.f32 %v2645, %v1901
    %v2647 = vsub.f32 %v2640, %v2646
    %v2648 = vmul.f32 %v2647, %v2647
    %v2649 = vsel %vm2025, %v2648, 0.0
    %2650 = vadd.xlane.f32.xlu0 %v2649
    %v2651 = vpop.xlane.xlu0 %2650
    %v2652 = vmul.f32 %v2651, %v1901
    %v2653 = vadd.f32 %v2652, 1e-05
    %v2654 = vrsqrt.pop %v2653
    %v2655 = vmul.f32 %v2647, %v2654
    %v2656 = vmul.f32 %v2655, %v2043
    %v2657 = vadd.f32 %v2656, %v2050
    %v2658 = vadd.f32 %v1935, %v2657
    %v2659 = vxor.u32 %v2658, 2147483648
    %v2660 = vmul.f32 %v2659, 1.442695
    %v2661 = vpow.pop %v2660
    %v2662 = vadd.f32 %v2661, 1.0
    %v2663 = vrcp.pop %v2662
    %v2664 = vmul.f32 1.0, %v2663
    %v2665 = vtanh.pop %v2658
    %v2666 = vrot.slane %v2532, 6
    %v2668 = vmul.f32 %v2664, %v2666
    %2670 = vrot.lane.b32.xlu0 %v2665, 32
    %v2671 = vpop.permute.xlu0 %2670
    %v2673 = vmul.f32 %v2664, %v2671
    %2675 = vrot.lane.b32.xlu0 %v2673, 32
    %v2676 = vpop.permute.xlu0 %2675
    %v2678 = vadd.f32 %v2668, %v2676
    %2680 = vrot.lane.b32.xlu0 %v2678, 96
    %v2681 = vpop.permute.xlu0 %2680
    %v2683 = vsel %vm2076, %v2681, 0.0
    %2684 = vadd.xlane.f32.xlu0 %v2683
    %v2685 = vpop.xlane.xlu0 %2684
    %v2686 = vmul.f32 %v2685, %v2080
    %v2687 = vsub.f32 %v2678, %v2686
    %v2688 = vmul.f32 %v2687, %v2687
    %2690 = vrot.lane.b32.xlu0 %v2688, 96
    %v2691 = vpop.permute.xlu0 %2690
    %v2693 = vsel %vm2076, %v2691, 0.0
    %2694 = vadd.xlane.f32.xlu0 %v2693
    %v2695 = vpop.xlane.xlu0 %2694
    %v2696 = vmul.f32 %v2695, %v2080
    %v2697 = vadd.f32 %v2696, 1e-05
    %v2698 = vrsqrt.pop %v2697
    %v2699 = vmul.f32 %v2687, %v2698
    %v2700 = vmul.f32 %v2699, %v2101
    %v2701 = vadd.f32 %v2700, %v2110
    %v2702 = vtanh.pop %v2701
    %2704 = vrot.lane.b32.xlu0 %v2702, 32
    %v2705 = vpop.permute.xlu0 %2704
    %v2707 = vmul.f32 %v2664, %v2705
    %2709 = vrot.lane.b32.xlu0 %v2707, 64
    %v2710 = vpop.permute.xlu0 %2709
    %2712 = vst.msk [vmem:[#allocation3 + $0x8] sm:$0x3] %vm2076, %v2710
    %v2713 = vsel %vm1951, %v2710, 0
    %2715 = vmatprep.subr.mxu0 0.0
    %2716 = vmatpush1.msra.mxu0 %v1936
    %2717 = vmatprep.subr.mxu0 0.0
    %2718 = vmatpush1.msra.mxu0 %v1937
    %2719 = vmatprep.subr.mxu0 0.0
    %2720 = vmatpush1.msra.mxu0 %v1938
    %2721 = vmatprep.subr.mxu0 0.0
    %2722 = vmatpush1.msra.mxu0 %v1939
    %2723 = vmatprep.subr.mxu0 0.0
    %2724 = vmatpush1.msra.mxu0 0.0
    %2725 = vmatprep.subr.mxu0 0.0
    %2726 = vmatpush1.msra.mxu0 0.0
    %2727 = vmatprep.subr.mxu0 0.0
    %2728 = vmatpush1.msra.mxu0 0.0
    %2729 = vmatprep.subr.mxu0 0.0
    %2730 = vmatpush1.msra.mxu0 0.0
    %2731 = vmatprep.subr.mxu0 0.0
    %2732 = vmatpush1.msra.mxu0 0.0
    %2733 = vmatprep.subr.mxu0 0.0
    %2734 = vmatpush1.msra.mxu0 0.0
    %2735 = vmatprep.subr.mxu0 0.0
    %2736 = vmatpush1.msra.mxu0 0.0
    %2737 = vmatprep.subr.mxu0 0.0
    %2738 = vmatpush1.msra.mxu0 0.0
    %2739 = vmatprep.subr.mxu0 0.0
    %2740 = vmatpush1.msra.mxu0 0.0
    %2741 = vmatprep.subr.mxu0 0.0
    %2742 = vmatpush1.msra.mxu0 0.0
    %2743 = vmatprep.subr.mxu0 0.0
    %2744 = vmatpush1.msra.mxu0 0.0
    %2745 = vmatprep.subr.mxu0 0.0
    %2746 = vmatpush1.msra.mxu0 0.0
    %2747 = vmatprep.subr.mxu0 0.0
    %2748 = vmatpush1.msra.mxu0 0.0
    %2749 = vmatprep.subr.mxu0 0.0
    %2750 = vmatpush1.msra.mxu0 0.0
    %2751 = vmatprep.subr.mxu0 0.0
    %2752 = vmatpush1.msra.mxu0 0.0
    %2753 = vmatprep.subr.mxu0 0.0
    %2754 = vmatpush1.msra.mxu0 0.0
    %2755 = vmatprep.subr.mxu0 0.0
    %2756 = vmatpush1.msra.mxu0 0.0
    %2757 = vmatprep.subr.mxu0 0.0
    %2758 = vmatpush1.msra.mxu0 0.0
    %2759 = vmatprep.subr.mxu0 0.0
    %2760 = vmatpush1.msra.mxu0 0.0
    %2761 = vmatprep.subr.mxu0 0.0
    %2762 = vmatpush1.msra.mxu0 0.0
    %2763 = vmatprep.subr.mxu0 0.0
    %2764 = vmatpush1.msra.mxu0 0.0
    %2765 = vmatprep.subr.mxu0 0.0
    %2766 = vmatpush1.msra.mxu0 0.0
    %2767 = vmatprep.subr.mxu0 0.0
    %2768 = vmatpush1.msra.mxu0 0.0
    %2769 = vmatprep.subr.mxu0 0.0
    %2770 = vmatpush1.msra.mxu0 0.0
    %2771 = vmatprep.subr.mxu0 0.0
    %2772 = vmatpush1.msra.mxu0 0.0
    %2773 = vmatprep.subr.mxu0 0.0
    %2774 = vmatpush1.msra.mxu0 0.0
    %2775 = vmatprep.subr.mxu0 0.0
    %2776 = vmatpush1.msra.mxu0 0.0
    %2777 = vmatprep.subr.mxu0 0.0
    %2778 = vmatpush1.msra.mxu0 0.0
    %2779 = vmatprep.mubr.f32.mxu0 0.0
    %2780 = vmatmul.mubr.f32.gmra.mrb[0].mxu0 %v2713
    %v2781 = vpop.f32.mrb[0].mxu0
    %v2782 = vadd.f32 %v1949, %v2781
    %v2783 = vpop.f32.mrb[0].mxu0
    %2784 = vdwg.mxu0
    %v2785 = vsel %vm2025, %v2782, 0.0
    %2786 = vadd.xlane.f32.xlu0 %v2785
    %v2787 = vpop.xlane.xlu0 %2786
    %v2788 = vmul.f32 %v2787, %v1901
    %v2789 = vsub.f32 %v2782, %v2788
    %v2790 = vmul.f32 %v2789, %v2789
    %v2791 = vsel %vm2025, %v2790, 0.0
    %2792 = vadd.xlane.f32.xlu0 %v2791
    %v2793 = vpop.xlane.xlu0 %2792
    %v2794 = vmul.f32 %v2793, %v1901
    %v2795 = vadd.f32 %v2794, 1e-05
    %v2796 = vrsqrt.pop %v2795
    %v2797 = vmul.f32 %v2789, %v2796
    %v2798 = vmul.f32 %v2797, %v2043
    %v2799 = vadd.f32 %v2798, %v2050
    %v2801 = vrot.slane %v2799, 6
    %v2803 = vadd.f32 %v1935, %v2801
    %v2804 = vxor.u32 %v2803, 2147483648
    %v2805 = vmul.f32 %v2804, 1.442695
    %v2806 = vpow.pop %v2805
    %v2807 = vadd.f32 %v2806, 1.0
    %v2808 = vrcp.pop %v2807
    %v2809 = vmul.f32 1.0, %v2808
    %v2810 = vtanh.pop %v2803
    %v2811 = vrot.slane %v2678, 6
    %v2813 = vmul.f32 %v2809, %v2811
    %2815 = vrot.lane.b32.xlu0 %v2810, 32
    %v2816 = vpop.permute.xlu0 %2815
    %v2818 = vmul.f32 %v2809, %v2816
    %2820 = vrot.lane.b32.xlu0 %v2818, 32
    %v2821 = vpop.permute.xlu0 %2820
    %v2823 = vadd.f32 %v2813, %v2821
    %2825 = vrot.lane.b32.xlu0 %v2823, 96
    %v2826 = vpop.permute.xlu0 %2825
    %v2828 = vsel %vm2239, %v2826, 0.0
    %2829 = vadd.xlane.f32.xlu0 %v2828
    %v2830 = vpop.xlane.xlu0 %2829
    %v2831 = vmul.f32 %v2830, %v2080
    %v2832 = vsub.f32 %v2823, %v2831
    %v2833 = vmul.f32 %v2832, %v2832
    %2835 = vrot.lane.b32.xlu0 %v2833, 96
    %v2836 = vpop.permute.xlu0 %2835
    %v2838 = vsel %vm2239, %v2836, 0.0
    %2839 = vadd.xlane.f32.xlu0 %v2838
    %v2840 = vpop.xlane.xlu0 %2839
    %v2841 = vmul.f32 %v2840, %v2080
    %v2842 = vadd.f32 %v2841, 1e-05
    %v2843 = vrsqrt.pop %v2842
    %v2844 = vmul.f32 %v2832, %v2843
    %v2845 = vmul.f32 %v2844, %v2101
    %v2846 = vadd.f32 %v2845, %v2110
    %v2847 = vtanh.pop %v2846
    %2849 = vrot.lane.b32.xlu0 %v2847, 32
    %v2850 = vpop.permute.xlu0 %2849
    %v2852 = vmul.f32 %v2809, %v2850
    %2854 = vrot.lane.b32.xlu0 %v2852, 64
    %v2855 = vpop.permute.xlu0 %2854
    %2857 = vst.msk [vmem:[#allocation3 + $0x8] sm:$0xc] %vm2239, %v2855
    %v2858 = vrot.slane %v2852, 2
    %2859 = vrot.lane.b32.xlu0 %v2858, 64
    %v2860 = vpop.permute.xlu0 %2859
    %v2861 = vsel %vm1951, %v2860, 0
    %2863 = vmatprep.subr.mxu0 0.0
    %2864 = vmatpush1.msra.mxu0 %v1936
    %2865 = vmatprep.subr.mxu0 0.0
    %2866 = vmatpush1.msra.mxu0 %v1937
    %2867 = vmatprep.subr.mxu0 0.0
    %2868 = vmatpush1.msra.mxu0 %v1938
    %2869 = vmatprep.subr.mxu0 0.0
    %2870 = vmatpush1.msra.mxu0 %v1939
    %2871 = vmatprep.subr.mxu0 0.0
    %2872 = vmatpush1.msra.mxu0 0.0
    %2873 = vmatprep.subr.mxu0 0.0
    %2874 = vmatpush1.msra.mxu0 0.0
    %2875 = vmatprep.subr.mxu0 0.0
    %2876 = vmatpush1.msra.mxu0 0.0
    %2877 = vmatprep.subr.mxu0 0.0
    %2878 = vmatpush1.msra.mxu0 0.0
    %2879 = vmatprep.subr.mxu0 0.0
    %2880 = vmatpush1.msra.mxu0 0.0
    %2881 = vmatprep.subr.mxu0 0.0
    %2882 = vmatpush1.msra.mxu0 0.0
    %2883 = vmatprep.subr.mxu0 0.0
    %2884 = vmatpush1.msra.mxu0 0.0
    %2885 = vmatprep.subr.mxu0 0.0
    %2886 = vmatpush1.msra.mxu0 0.0
    %2887 = vmatprep.subr.mxu0 0.0
    %2888 = vmatpush1.msra.mxu0 0.0
    %2889 = vmatprep.subr.mxu0 0.0
    %2890 = vmatpush1.msra.mxu0 0.0
    %2891 = vmatprep.subr.mxu0 0.0
    %2892 = vmatpush1.msra.mxu0 0.0
    %2893 = vmatprep.subr.mxu0 0.0
    %2894 = vmatpush1.msra.mxu0 0.0
    %2895 = vmatprep.subr.mxu0 0.0
    %2896 = vmatpush1.msra.mxu0 0.0
    %2897 = vmatprep.subr.mxu0 0.0
    %2898 = vmatpush1.msra.mxu0 0.0
    %2899 = vmatprep.subr.mxu0 0.0
    %2900 = vmatpush1.msra.mxu0 0.0
    %2901 = vmatprep.subr.mxu0 0.0
    %2902 = vmatpush1.msra.mxu0 0.0
    %2903 = vmatprep.subr.mxu0 0.0
    %2904 = vmatpush1.msra.mxu0 0.0
    %2905 = vmatprep.subr.mxu0 0.0
    %2906 = vmatpush1.msra.mxu0 0.0
    %2907 = vmatprep.subr.mxu0 0.0
    %2908 = vmatpush1.msra.mxu0 0.0
    %2909 = vmatprep.subr.mxu0 0.0
    %2910 = vmatpush1.msra.mxu0 0.0
    %2911 = vmatprep.subr.mxu0 0.0
    %2912 = vmatpush1.msra.mxu0 0.0
    %2913 = vmatprep.subr.mxu0 0.0
    %2914 = vmatpush1.msra.mxu0 0.0
    %2915 = vmatprep.subr.mxu0 0.0
    %2916 = vmatpush1.msra.mxu0 0.0
    %2917 = vmatprep.subr.mxu0 0.0
    %2918 = vmatpush1.msra.mxu0 0.0
    %2919 = vmatprep.subr.mxu0 0.0
    %2920 = vmatpush1.msra.mxu0 0.0
    %2921 = vmatprep.subr.mxu0 0.0
    %2922 = vmatpush1.msra.mxu0 0.0
    %2923 = vmatprep.subr.mxu0 0.0
    %2924 = vmatpush1.msra.mxu0 0.0
    %2925 = vmatprep.subr.mxu0 0.0
    %2926 = vmatpush1.msra.mxu0 0.0
    %2927 = vmatprep.mubr.f32.mxu0 0.0
    %2928 = vmatmul.mubr.f32.gmra.mrb[0].mxu0 %v2861
    %v2929 = vpop.f32.mrb[0].mxu0
    %v2930 = vadd.f32 %v1949, %v2929
    %v2931 = vpop.f32.mrb[0].mxu0
    %2932 = vdwg.mxu0
    %v2933 = vsel %vm2025, %v2930, 0.0
    %2934 = vadd.xlane.f32.xlu0 %v2933
    %v2935 = vpop.xlane.xlu0 %2934
    %v2936 = vmul.f32 %v2935, %v1901
    %v2937 = vsub.f32 %v2930, %v2936
    %v2938 = vmul.f32 %v2937, %v2937
    %v2939 = vsel %vm2025, %v2938, 0.0
    %2940 = vadd.xlane.f32.xlu0 %v2939
    %v2941 = vpop.xlane.xlu0 %2940
    %v2942 = vmul.f32 %v2941, %v1901
    %v2943 = vadd.f32 %v2942, 1e-05
    %v2944 = vrsqrt.pop %v2943
    %v2945 = vmul.f32 %v2937, %v2944
    %v2946 = vmul.f32 %v2945, %v2043
    %v2947 = vadd.f32 %v2946, %v2050
    %v2949 = vrot.slane %v2947, 4
    %v2951 = vadd.f32 %v1935, %v2949
    %v2952 = vxor.u32 %v2951, 2147483648
    %v2953 = vmul.f32 %v2952, 1.442695
    %v2954 = vpow.pop %v2953
    %v2955 = vadd.f32 %v2954, 1.0
    %v2956 = vrcp.pop %v2955
    %v2957 = vmul.f32 1.0, %v2956
    %v2958 = vtanh.pop %v2951
    %v2959 = vrot.slane %v2823, 6
    %v2961 = vmul.f32 %v2957, %v2959
    %2963 = vrot.lane.b32.xlu0 %v2958, 32
    %v2964 = vpop.permute.xlu0 %2963
    %v2966 = vmul.f32 %v2957, %v2964
    %2968 = vrot.lane.b32.xlu0 %v2966, 32
    %v2969 = vpop.permute.xlu0 %2968
    %v2971 = vadd.f32 %v2961, %v2969
    %2973 = vrot.lane.b32.xlu0 %v2971, 96
    %v2974 = vpop.permute.xlu0 %2973
    %v2976 = vsel %vm2388, %v2974, 0.0
    %2977 = vadd.xlane.f32.xlu0 %v2976
    %v2978 = vpop.xlane.xlu0 %2977
    %v2979 = vmul.f32 %v2978, %v2080
    %v2980 = vsub.f32 %v2971, %v2979
    %v2981 = vmul.f32 %v2980, %v2980
    %2983 = vrot.lane.b32.xlu0 %v2981, 96
    %v2984 = vpop.permute.xlu0 %2983
    %v2986 = vsel %vm2388, %v2984, 0.0
    %2987 = vadd.xlane.f32.xlu0 %v2986
    %v2988 = vpop.xlane.xlu0 %2987
    %v2989 = vmul.f32 %v2988, %v2080
    %v2990 = vadd.f32 %v2989, 1e-05
    %v2991 = vrsqrt.pop %v2990
    %v2992 = vmul.f32 %v2980, %v2991
    %v2993 = vmul.f32 %v2992, %v2101
    %v2994 = vadd.f32 %v2993, %v2110
    %v2995 = vtanh.pop %v2994
    %2997 = vrot.lane.b32.xlu0 %v2995, 32
    %v2998 = vpop.permute.xlu0 %2997
    %v3000 = vmul.f32 %v2957, %v2998
    %3002 = vrot.lane.b32.xlu0 %v3000, 64
    %v3003 = vpop.permute.xlu0 %3002
    %3005 = vst.msk [vmem:[#allocation3 + $0x8] sm:$0x30] %vm2388, %v3003
    %v3006 = vrot.slane %v3000, 4
    %3007 = vrot.lane.b32.xlu0 %v3006, 64
    %v3008 = vpop.permute.xlu0 %3007
    %v3009 = vsel %vm1951, %v3008, 0
    %3011 = vmatprep.subr.mxu0 0.0
    %3012 = vmatpush1.msra.mxu0 %v1936
    %3013 = vmatprep.subr.mxu0 0.0
    %3014 = vmatpush1.msra.mxu0 %v1937
    %3015 = vmatprep.subr.mxu0 0.0
    %3016 = vmatpush1.msra.mxu0 %v1938
    %3017 = vmatprep.subr.mxu0 0.0
    %3018 = vmatpush1.msra.mxu0 %v1939
    %3019 = vmatprep.subr.mxu0 0.0
    %3020 = vmatpush1.msra.mxu0 0.0
    %3021 = vmatprep.subr.mxu0 0.0
    %3022 = vmatpush1.msra.mxu0 0.0
    %3023 = vmatprep.subr.mxu0 0.0
    %3024 = vmatpush1.msra.mxu0 0.0
    %3025 = vmatprep.subr.mxu0 0.0
    %3026 = vmatpush1.msra.mxu0 0.0
    %3027 = vmatprep.subr.mxu0 0.0
    %3028 = vmatpush1.msra.mxu0 0.0
    %3029 = vmatprep.subr.mxu0 0.0
    %3030 = vmatpush1.msra.mxu0 0.0
    %3031 = vmatprep.subr.mxu0 0.0
    %3032 = vmatpush1.msra.mxu0 0.0
    %3033 = vmatprep.subr.mxu0 0.0
    %3034 = vmatpush1.msra.mxu0 0.0
    %3035 = vmatprep.subr.mxu0 0.0
    %3036 = vmatpush1.msra.mxu0 0.0
    %3037 = vmatprep.subr.mxu0 0.0
    %3038 = vmatpush1.msra.mxu0 0.0
    %3039 = vmatprep.subr.mxu0 0.0
    %3040 = vmatpush1.msra.mxu0 0.0
    %3041 = vmatprep.subr.mxu0 0.0
    %3042 = vmatpush1.msra.mxu0 0.0
    %3043 = vmatprep.subr.mxu0 0.0
    %3044 = vmatpush1.msra.mxu0 0.0
    %3045 = vmatprep.subr.mxu0 0.0
    %3046 = vmatpush1.msra.mxu0 0.0
    %3047 = vmatprep.subr.mxu0 0.0
    %3048 = vmatpush1.msra.mxu0 0.0
    %3049 = vmatprep.subr.mxu0 0.0
    %3050 = vmatpush1.msra.mxu0 0.0
    %3051 = vmatprep.subr.mxu0 0.0
    %3052 = vmatpush1.msra.mxu0 0.0
    %3053 = vmatprep.subr.mxu0 0.0
    %3054 = vmatpush1.msra.mxu0 0.0
    %3055 = vmatprep.subr.mxu0 0.0
    %3056 = vmatpush1.msra.mxu0 0.0
    %3057 = vmatprep.subr.mxu0 0.0
    %3058 = vmatpush1.msra.mxu0 0.0
    %3059 = vmatprep.subr.mxu0 0.0
    %3060 = vmatpush1.msra.mxu0 0.0
    %3061 = vmatprep.subr.mxu0 0.0
    %3062 = vmatpush1.msra.mxu0 0.0
    %3063 = vmatprep.subr.mxu0 0.0
    %3064 = vmatpush1.msra.mxu0 0.0
    %3065 = vmatprep.subr.mxu0 0.0
    %3066 = vmatpush1.msra.mxu0 0.0
    %3067 = vmatprep.subr.mxu0 0.0
    %3068 = vmatpush1.msra.mxu0 0.0
    %3069 = vmatprep.subr.mxu0 0.0
    %3070 = vmatpush1.msra.mxu0 0.0
    %3071 = vmatprep.subr.mxu0 0.0
    %3072 = vmatpush1.msra.mxu0 0.0
    %3073 = vmatprep.subr.mxu0 0.0
    %3074 = vmatpush1.msra.mxu0 0.0
    %3075 = vmatprep.mubr.f32.mxu0 0.0
    %3076 = vmatmul.mubr.f32.gmra.mrb[0].mxu0 %v3009
    %v3077 = vpop.f32.mrb[0].mxu0
    %v3078 = vadd.f32 %v1949, %v3077
    %v3079 = vpop.f32.mrb[0].mxu0
    %3080 = vdwg.mxu0
    %v3081 = vsel %vm2025, %v3078, 0.0
    %3082 = vadd.xlane.f32.xlu0 %v3081
    %v3083 = vpop.xlane.xlu0 %3082
    %v3084 = vmul.f32 %v3083, %v1901
    %v3085 = vsub.f32 %v3078, %v3084
    %v3086 = vmul.f32 %v3085, %v3085
    %v3087 = vsel %vm2025, %v3086, 0.0
    %3088 = vadd.xlane.f32.xlu0 %v3087
    %v3089 = vpop.xlane.xlu0 %3088
    %v3090 = vmul.f32 %v3089, %v1901
    %v3091 = vadd.f32 %v3090, 1e-05
    %v3092 = vrsqrt.pop %v3091
    %v3093 = vmul.f32 %v3085, %v3092
    %v3094 = vmul.f32 %v3093, %v2043
    %v3095 = vadd.f32 %v3094, %v2050
    %v3097 = vrot.slane %v3095, 2
    %v3099 = vadd.f32 %v1935, %v3097
    %v3100 = vxor.u32 %v3099, 2147483648
    %v3101 = vmul.f32 %v3100, 1.442695
    %v3102 = vpow.pop %v3101
    %v3103 = vadd.f32 %v3102, 1.0
    %v3104 = vrcp.pop %v3103
    %v3105 = vmul.f32 1.0, %v3104
    %v3106 = vtanh.pop %v3099
    %v3107 = vrot.slane %v2971, 6
    %v3109 = vmul.f32 %v3105, %v3107
    %3111 = vrot.lane.b32.xlu0 %v3106, 32
    %v3112 = vpop.permute.xlu0 %3111
    %v3114 = vmul.f32 %v3105, %v3112
    %3116 = vrot.lane.b32.xlu0 %v3114, 32
    %v3117 = vpop.permute.xlu0 %3116
    %v3119 = vadd.f32 %v3109, %v3117
    %3121 = vrot.lane.b32.xlu0 %v3119, 96
    %v3122 = vpop.permute.xlu0 %3121
    %v3124 = vsel %vm2537, %v3122, 0.0
    %3125 = vadd.xlane.f32.xlu0 %v3124
    %v3126 = vpop.xlane.xlu0 %3125
    %v3127 = vmul.f32 %v3126, %v2080
    %v3128 = vsub.f32 %v3119, %v3127
    %v3129 = vmul.f32 %v3128, %v3128
    %3131 = vrot.lane.b32.xlu0 %v3129, 96
    %v3132 = vpop.permute.xlu0 %3131
    %v3134 = vsel %vm2537, %v3132, 0.0
    %3135 = vadd.xlane.f32.xlu0 %v3134
    %v3136 = vpop.xlane.xlu0 %3135
    %v3137 = vmul.f32 %v3136, %v2080
    %v3138 = vadd.f32 %v3137, 1e-05
    %v3139 = vrsqrt.pop %v3138
    %v3140 = vmul.f32 %v3128, %v3139
    %v3141 = vmul.f32 %v3140, %v2101
    %v3142 = vadd.f32 %v3141, %v2110
    %v3143 = vtanh.pop %v3142
    %3145 = vrot.lane.b32.xlu0 %v3143, 32
    %v3146 = vpop.permute.xlu0 %3145
    %v3148 = vmul.f32 %v3105, %v3146
    %3150 = vrot.lane.b32.xlu0 %v3148, 64
    %v3151 = vpop.permute.xlu0 %3150
    %3153 = vst.msk [vmem:[#allocation3 + $0x8] sm:$0xc0] %vm2537, %v3151
    %v3154 = vld [vmem:[#allocation3] sm:$0xff]
    %v3155 = vld [vmem:[#allocation3 + $0x8] sm:$0xff]
    %v3156 = vld [vmem:[%s39] sm:$0xff]
    %v3157 = vld [vmem:[%s39 + $0x8] sm:$0xff]
    %v3158 = vld [vmem:[%s39 + $0x10] sm:$0xff]
    %v3159 = vld [vmem:[%s39 + $0x18] sm:$0xff]
    %v3160 = vld [vmem:[%s41] sm:$0x1]
    %v3162 = vlaneseq
    %v3163 = vshrl.u32 %v3162, 7
    %v3164 = vsub.s32 0, %v3163
    %v3165 = vrot.slane %v3160, %v3164
    %v3168 = vsel %vm1951, %v3154, 0
    %v3171 = vsel %vm1951, %v3155, 0
    %3173 = vmatprep.subr.mxu0 0.0
    %3174 = vmatpush1.msra.mxu0 %v3156
    %3175 = vmatprep.subr.mxu0 0.0
    %3176 = vmatpush1.msra.mxu0 %v3157
    %3177 = vmatprep.subr.mxu0 0.0
    %3178 = vmatpush1.msra.mxu0 %v3158
    %3179 = vmatprep.subr.mxu0 0.0
    %3180 = vmatpush1.msra.mxu0 %v3159
    %3181 = vmatprep.subr.mxu0 0.0
    %3182 = vmatpush1.msra.mxu0 0.0
    %3183 = vmatprep.subr.mxu0 0.0
    %3184 = vmatpush1.msra.mxu0 0.0
    %3185 = vmatprep.subr.mxu0 0.0
    %3186 = vmatpush1.msra.mxu0 0.0
    %3187 = vmatprep.subr.mxu0 0.0
    %3188 = vmatpush1.msra.mxu0 0.0
    %3189 = vmatprep.subr.mxu0 0.0
    %3190 = vmatpush1.msra.mxu0 0.0
    %3191 = vmatprep.subr.mxu0 0.0
    %3192 = vmatpush1.msra.mxu0 0.0
    %3193 = vmatprep.subr.mxu0 0.0
    %3194 = vmatpush1.msra.mxu0 0.0
    %3195 = vmatprep.subr.mxu0 0.0
    %3196 = vmatpush1.msra.mxu0 0.0
    %3197 = vmatprep.subr.mxu0 0.0
    %3198 = vmatpush1.msra.mxu0 0.0
    %3199 = vmatprep.subr.mxu0 0.0
    %3200 = vmatpush1.msra.mxu0 0.0
    %3201 = vmatprep.subr.mxu0 0.0
    %3202 = vmatpush1.msra.mxu0 0.0
    %3203 = vmatprep.subr.mxu0 0.0
    %3204 = vmatpush1.msra.mxu0 0.0
    %3205 = vmatprep.subr.mxu0 0.0
    %3206 = vmatpush1.msra.mxu0 0.0
    %3207 = vmatprep.subr.mxu0 0.0
    %3208 = vmatpush1.msra.mxu0 0.0
    %3209 = vmatprep.subr.mxu0 0.0
    %3210 = vmatpush1.msra.mxu0 0.0
    %3211 = vmatprep.subr.mxu0 0.0
    %3212 = vmatpush1.msra.mxu0 0.0
    %3213 = vmatprep.subr.mxu0 0.0
    %3214 = vmatpush1.msra.mxu0 0.0
    %3215 = vmatprep.subr.mxu0 0.0
    %3216 = vmatpush1.msra.mxu0 0.0
    %3217 = vmatprep.subr.mxu0 0.0
    %3218 = vmatpush1.msra.mxu0 0.0
    %3219 = vmatprep.subr.mxu0 0.0
    %3220 = vmatpush1.msra.mxu0 0.0
    %3221 = vmatprep.subr.mxu0 0.0
    %3222 = vmatpush1.msra.mxu0 0.0
    %3223 = vmatprep.subr.mxu0 0.0
    %3224 = vmatpush1.msra.mxu0 0.0
    %3225 = vmatprep.subr.mxu0 0.0
    %3226 = vmatpush1.msra.mxu0 0.0
    %3227 = vmatprep.subr.mxu0 0.0
    %3228 = vmatpush1.msra.mxu0 0.0
    %3229 = vmatprep.subr.mxu0 0.0
    %3230 = vmatpush1.msra.mxu0 0.0
    %3231 = vmatprep.subr.mxu0 0.0
    %3232 = vmatpush1.msra.mxu0 0.0
    %3233 = vmatprep.subr.mxu0 0.0
    %3234 = vmatpush1.msra.mxu0 0.0
    %3235 = vmatprep.subr.mxu0 0.0
    %3236 = vmatpush1.msra.mxu0 0.0
    %3237 = vmatprep.mubr.f32.mxu0 0.0
    %3238 = vmatmul.mubr.f32.gmra.mrb[0].mxu0 %v3168
    %v3239 = vpop.f32.mrb[0].mxu0
    %v3240 = vadd.f32 %v3165, %v3239
    %v3241 = vpop.f32.mrb[0].mxu0
    %3242 = vmatprep.mubr.f32.mxu0 0.0
    %3243 = vmatmul.mubr.f32.gmra.mrb[0].mxu0 %v3171
    %v3244 = vpop.f32.mrb[0].mxu0
    %v3245 = vadd.f32 %v3165, %v3244
    %v3246 = vpop.f32.mrb[0].mxu0
    %3247 = vdwg.mxu0
    %v3248 = vld [vmem:[%s47] sm:$0x1]
    %v3249 = vld [vmem:[%s49] sm:$0x1]
    %3250 = vadd.xlane.f32.xlu0 %v3240
    %v3251 = vpop.xlane.xlu0 %3250
    %3252 = vadd.xlane.f32.xlu0 %v3245
    %v3253 = vpop.xlane.xlu0 %3252
    %v3254 = vmul.f32 %v3251, %v1901
    %v3255 = vmul.f32 %v3253, %v1901
    %v3256 = vsub.f32 %v3240, %v3254
    %v3257 = vsub.f32 %v3245, %v3255
    %v3258 = vmul.f32 %v3256, %v3256
    %v3259 = vmul.f32 %v3257, %v3257
    %3260 = vadd.xlane.f32.xlu0 %v3258
    %v3261 = vpop.xlane.xlu0 %3260
    %3262 = vadd.xlane.f32.xlu0 %v3259
    %v3263 = vpop.xlane.xlu0 %3262
    %v3264 = vmul.f32 %v3261, %v1901
    %v3265 = vmul.f32 %v3263, %v1901
    %v3266 = vadd.f32 %v3264, 1e-05
    %v3267 = vadd.f32 %v3265, 1e-05
    %v3268 = vrsqrt.pop %v3266
    %v3269 = vrsqrt.pop %v3267
    %v3270 = vmul.f32 %v3256, %v3268
    %v3271 = vmul.f32 %v3257, %v3269
    %v3273 = vlaneseq
    %v3274 = vshrl.u32 %v3273, 7
    %v3275 = vsub.s32 0, %v3274
    %v3276 = vrot.slane %v3248, %v3275
    %v3278 = vmul.f32 %v3270, %v3276
    %v3279 = vmul.f32 %v3271, %v3276
    %v3281 = vlaneseq
    %v3282 = vshrl.u32 %v3281, 7
    %v3283 = vsub.s32 0, %v3282
    %v3284 = vrot.slane %v3249, %v3283
    %v3286 = vadd.f32 %v3278, %v3284
    %v3287 = vadd.f32 %v3279, %v3284
    %v3288 = vld [vmem:[%s43] sm:$0xff]
    %v3289 = vld [vmem:[%s43 + $0x8] sm:$0xff]
    %v3290 = vld [vmem:[%s43 + $0x10] sm:$0xff]
    %v3291 = vld [vmem:[%s43 + $0x18] sm:$0xff]
    %v3292 = vld [vmem:[%s45] sm:$0x1]
    %v3293 = vld [vmem:[%s51] sm:$0x1]
    %v3294 = vld [vmem:[%s53] sm:$0x1]
    %v3295 = vld [vmem:[%s55] sm:$0x1]
    %v3296 = vld [vmem:[%s57] sm:$0x1]
    %v3298 = vlaneseq
    %v3299 = vshrl.u32 %v3298, 7
    %v3300 = vsub.s32 0, %v3299
    %v3301 = vrot.slane %v3292, %v3300
    %3303 = vmatprep.subr.mxu0 0.0
    %3304 = vmatpush1.msra.mxu0 %v3288
    %3305 = vmatprep.subr.mxu0 0.0
    %3306 = vmatpush1.msra.mxu0 %v3289
    %3307 = vmatprep.subr.mxu0 0.0
    %3308 = vmatpush1.msra.mxu0 %v3290
    %3309 = vmatprep.subr.mxu0 0.0
    %3310 = vmatpush1.msra.mxu0 %v3291
    %3311 = vmatprep.subr.mxu0 0.0
    %3312 = vmatpush1.msra.mxu0 0.0
    %3313 = vmatprep.subr.mxu0 0.0
    %3314 = vmatpush1.msra.mxu0 0.0
    %3315 = vmatprep.subr.mxu0 0.0
    %3316 = vmatpush1.msra.mxu0 0.0
    %3317 = vmatprep.subr.mxu0 0.0
    %3318 = vmatpush1.msra.mxu0 0.0
    %3319 = vmatprep.subr.mxu0 0.0
    %3320 = vmatpush1.msra.mxu0 0.0
    %3321 = vmatprep.subr.mxu0 0.0
    %3322 = vmatpush1.msra.mxu0 0.0
    %3323 = vmatprep.subr.mxu0 0.0
    %3324 = vmatpush1.msra.mxu0 0.0
    %3325 = vmatprep.subr.mxu0 0.0
    %3326 = vmatpush1.msra.mxu0 0.0
    %3327 = vmatprep.subr.mxu0 0.0
    %3328 = vmatpush1.msra.mxu0 0.0
    %3329 = vmatprep.subr.mxu0 0.0
    %3330 = vmatpush1.msra.mxu0 0.0
    %3331 = vmatprep.subr.mxu0 0.0
    %3332 = vmatpush1.msra.mxu0 0.0
    %3333 = vmatprep.subr.mxu0 0.0
    %3334 = vmatpush1.msra.mxu0 0.0
    %3335 = vmatprep.subr.mxu0 0.0
    %3336 = vmatpush1.msra.mxu0 0.0
    %3337 = vmatprep.subr.mxu0 0.0
    %3338 = vmatpush1.msra.mxu0 0.0
    %3339 = vmatprep.subr.mxu0 0.0
    %3340 = vmatpush1.msra.mxu0 0.0
    %3341 = vmatprep.subr.mxu0 0.0
    %3342 = vmatpush1.msra.mxu0 0.0
    %3343 = vmatprep.subr.mxu0 0.0
    %3344 = vmatpush1.msra.mxu0 0.0
    %3345 = vmatprep.subr.mxu0 0.0
    %3346 = vmatpush1.msra.mxu0 0.0
    %3347 = vmatprep.subr.mxu0 0.0
    %3348 = vmatpush1.msra.mxu0 0.0
    %3349 = vmatprep.subr.mxu0 0.0
    %3350 = vmatpush1.msra.mxu0 0.0
    %3351 = vmatprep.subr.mxu0 0.0
    %3352 = vmatpush1.msra.mxu0 0.0
    %3353 = vmatprep.subr.mxu0 0.0
    %3354 = vmatpush1.msra.mxu0 0.0
    %3355 = vmatprep.subr.mxu0 0.0
    %3356 = vmatpush1.msra.mxu0 0.0
    %3357 = vmatprep.subr.mxu0 0.0
    %3358 = vmatpush1.msra.mxu0 0.0
    %3359 = vmatprep.subr.mxu0 0.0
    %3360 = vmatpush1.msra.mxu0 0.0
    %3361 = vmatprep.subr.mxu0 0.0
    %3362 = vmatpush1.msra.mxu0 0.0
    %3363 = vmatprep.subr.mxu0 0.0
    %3364 = vmatpush1.msra.mxu0 0.0
    %3365 = vmatprep.subr.mxu0 0.0
    %3366 = vmatpush1.msra.mxu0 0.0
    %3367 = vmatprep.mubr.f32.mxu0 0.0
    %3368 = vmatmul.mubr.f32.gmra.mrb[0].mxu0 %v1953
    %v3369 = vpop.f32.mrb[0].mxu0
    %v3370 = vadd.f32 %v3301, %v3369
    %v3371 = vpop.f32.mrb[0].mxu0
    %3372 = vdwg.mxu0
    %v3373 = vsel %vm2025, %v3370, 0.0
    %3374 = vadd.xlane.f32.xlu0 %v3373
    %v3375 = vpop.xlane.xlu0 %3374
    %v3376 = vmul.f32 %v3375, %v1901
    %v3377 = vsub.f32 %v3370, %v3376
    %v3378 = vmul.f32 %v3377, %v3377
    %v3379 = vsel %vm2025, %v3378, 0.0
    %3380 = vadd.xlane.f32.xlu0 %v3379
    %v3381 = vpop.xlane.xlu0 %3380
    %v3382 = vmul.f32 %v3381, %v1901
    %v3383 = vadd.f32 %v3382, 1e-05
    %v3384 = vrsqrt.pop %v3383
    %v3385 = vmul.f32 %v3377, %v3384
    %v3387 = vlaneseq
    %v3388 = vshrl.u32 %v3387, 7
    %v3389 = vsub.s32 0, %v3388
    %v3390 = vrot.slane %v3293, %v3389
    %v3392 = vmul.f32 %v3385, %v3390
    %v3394 = vlaneseq
    %v3395 = vshrl.u32 %v3394, 7
    %v3396 = vsub.s32 0, %v3395
    %v3397 = vrot.slane %v3294, %v3396
    %v3399 = vadd.f32 %v3392, %v3397
    %v3400 = vadd.f32 %v3286, %v3399
    %v3401 = vxor.u32 %v3400, 2147483648
    %v3402 = vmul.f32 %v3401, 1.442695
    %v3403 = vpow.pop %v3402
    %v3404 = vadd.f32 %v3403, 1.0
    %v3405 = vrcp.pop %v3404
    %v3406 = vmul.f32 1.0, %v3405
    %v3407 = vtanh.pop %v3400
    %v3408 = vmul.f32 %v3406, 0.0
    %3410 = vrot.lane.b32.xlu0 %v3407, 32
    %v3411 = vpop.permute.xlu0 %3410
    %v3413 = vmul.f32 %v3406, %v3411
    %3415 = vrot.lane.b32.xlu0 %v3413, 32
    %v3416 = vpop.permute.xlu0 %3415
    %v3418 = vadd.f32 %v3408, %v3416
    %3420 = vrot.lane.b32.xlu0 %v3418, 96
    %v3421 = vpop.permute.xlu0 %3420
    %v3423 = vsel %vm2076, %v3421, 0.0
    %3424 = vadd.xlane.f32.xlu0 %v3423
    %v3425 = vpop.xlane.xlu0 %3424
    %v3426 = vmul.f32 %v3425, %v2080
    %v3427 = vsub.f32 %v3418, %v3426
    %v3428 = vmul.f32 %v3427, %v3427
    %3430 = vrot.lane.b32.xlu0 %v3428, 96
    %v3431 = vpop.permute.xlu0 %3430
    %v3433 = vsel %vm2076, %v3431, 0.0
    %3434 = vadd.xlane.f32.xlu0 %v3433
    %v3435 = vpop.xlane.xlu0 %3434
    %v3436 = vmul.f32 %v3435, %v2080
    %v3437 = vadd.f32 %v3436, 1e-05
    %v3438 = vrsqrt.pop %v3437
    %v3439 = vmul.f32 %v3427, %v3438
    %v3441 = vlaneseq
    %v3442 = vshrl.u32 %v3441, 7
    %v3443 = vsub.s32 0, %v3442
    %v3444 = vrot.slane %v3295, %v3443
    %3445 = vrot.lane.b32.xlu0 %v3444, 32
    %v3446 = vpop.permute.xlu0 %3445
    %v3448 = vmul.f32 %v3439, %v3446
    %v3450 = vlaneseq
    %v3451 = vshrl.u32 %v3450, 7
    %v3452 = vsub.s32 0, %v3451
    %v3453 = vrot.slane %v3296, %v3452
    %3454 = vrot.lane.b32.xlu0 %v3453, 32
    %v3455 = vpop.permute.xlu0 %3454
    %v3457 = vadd.f32 %v3448, %v3455
    %v3458 = vtanh.pop %v3457
    %3460 = vrot.lane.b32.xlu0 %v3458, 32
    %v3461 = vpop.permute.xlu0 %3460
    %v3463 = vmul.f32 %v3406, %v3461
    %3465 = vrot.lane.b32.xlu0 %v3463, 64
    %v3466 = vpop.permute.xlu0 %3465
    %3468 = vst.msk [vmem:[#allocation3] sm:$0x3] %vm2076, %v3466
    %v3469 = vsel %vm1951, %v3466, 0
    %3471 = vmatprep.subr.mxu0 0.0
    %3472 = vmatpush1.msra.mxu0 %v3288
    %3473 = vmatprep.subr.mxu0 0.0
    %3474 = vmatpush1.msra.mxu0 %v3289
    %3475 = vmatprep.subr.mxu0 0.0
    %3476 = vmatpush1.msra.mxu0 %v3290
    %3477 = vmatprep.subr.mxu0 0.0
    %3478 = vmatpush1.msra.mxu0 %v3291
    %3479 = vmatprep.subr.mxu0 0.0
    %3480 = vmatpush1.msra.mxu0 0.0
    %3481 = vmatprep.subr.mxu0 0.0
    %3482 = vmatpush1.msra.mxu0 0.0
    %3483 = vmatprep.subr.mxu0 0.0
    %3484 = vmatpush1.msra.mxu0 0.0
    %3485 = vmatprep.subr.mxu0 0.0
    %3486 = vmatpush1.msra.mxu0 0.0
    %3487 = vmatprep.subr.mxu0 0.0
    %3488 = vmatpush1.msra.mxu0 0.0
    %3489 = vmatprep.subr.mxu0 0.0
    %3490 = vmatpush1.msra.mxu0 0.0
    %3491 = vmatprep.subr.mxu0 0.0
    %3492 = vmatpush1.msra.mxu0 0.0
    %3493 = vmatprep.subr.mxu0 0.0
    %3494 = vmatpush1.msra.mxu0 0.0
    %3495 = vmatprep.subr.mxu0 0.0
    %3496 = vmatpush1.msra.mxu0 0.0
    %3497 = vmatprep.subr.mxu0 0.0
    %3498 = vmatpush1.msra.mxu0 0.0
    %3499 = vmatprep.subr.mxu0 0.0
    %3500 = vmatpush1.msra.mxu0 0.0
    %3501 = vmatprep.subr.mxu0 0.0
    %3502 = vmatpush1.msra.mxu0 0.0
    %3503 = vmatprep.subr.mxu0 0.0
    %3504 = vmatpush1.msra.mxu0 0.0
    %3505 = vmatprep.subr.mxu0 0.0
    %3506 = vmatpush1.msra.mxu0 0.0
    %3507 = vmatprep.subr.mxu0 0.0
    %3508 = vmatpush1.msra.mxu0 0.0
    %3509 = vmatprep.subr.mxu0 0.0
    %3510 = vmatpush1.msra.mxu0 0.0
    %3511 = vmatprep.subr.mxu0 0.0
    %3512 = vmatpush1.msra.mxu0 0.0
    %3513 = vmatprep.subr.mxu0 0.0
    %3514 = vmatpush1.msra.mxu0 0.0
    %3515 = vmatprep.subr.mxu0 0.0
    %3516 = vmatpush1.msra.mxu0 0.0
    %3517 = vmatprep.subr.mxu0 0.0
    %3518 = vmatpush1.msra.mxu0 0.0
    %3519 = vmatprep.subr.mxu0 0.0
    %3520 = vmatpush1.msra.mxu0 0.0
    %3521 = vmatprep.subr.mxu0 0.0
    %3522 = vmatpush1.msra.mxu0 0.0
    %3523 = vmatprep.subr.mxu0 0.0
    %3524 = vmatpush1.msra.mxu0 0.0
    %3525 = vmatprep.subr.mxu0 0.0
    %3526 = vmatpush1.msra.mxu0 0.0
    %3527 = vmatprep.subr.mxu0 0.0
    %3528 = vmatpush1.msra.mxu0 0.0
    %3529 = vmatprep.subr.mxu0 0.0
    %3530 = vmatpush1.msra.mxu0 0.0
    %3531 = vmatprep.subr.mxu0 0.0
    %3532 = vmatpush1.msra.mxu0 0.0
    %3533 = vmatprep.subr.mxu0 0.0
    %3534 = vmatpush1.msra.mxu0 0.0
    %3535 = vmatprep.mubr.f32.mxu0 0.0
    %3536 = vmatmul.mubr.f32.gmra.mrb[0].mxu0 %v3469
    %v3537 = vpop.f32.mrb[0].mxu0
    %v3538 = vadd.f32 %v3301, %v3537
    %v3539 = vpop.f32.mrb[0].mxu0
    %3540 = vdwg.mxu0
    %v3541 = vsel %vm2025, %v3538, 0.0
    %3542 = vadd.xlane.f32.xlu0 %v3541
    %v3543 = vpop.xlane.xlu0 %3542
    %v3544 = vmul.f32 %v3543, %v1901
    %v3545 = vsub.f32 %v3538, %v3544
    %v3546 = vmul.f32 %v3545, %v3545
    %v3547 = vsel %vm2025, %v3546, 0.0
    %3548 = vadd.xlane.f32.xlu0 %v3547
    %v3549 = vpop.xlane.xlu0 %3548
    %v3550 = vmul.f32 %v3549, %v1901
    %v3551 = vadd.f32 %v3550, 1e-05
    %v3552 = vrsqrt.pop %v3551
    %v3553 = vmul.f32 %v3545, %v3552
    %v3554 = vmul.f32 %v3553, %v3390
    %v3555 = vadd.f32 %v3554, %v3397
    %v3557 = vrot.slane %v3555, 6
    %v3559 = vadd.f32 %v3286, %v3557
    %v3560 = vxor.u32 %v3559, 2147483648
    %v3561 = vmul.f32 %v3560, 1.442695
    %v3562 = vpow.pop %v3561
    %v3563 = vadd.f32 %v3562, 1.0
    %v3564 = vrcp.pop %v3563
    %v3565 = vmul.f32 1.0, %v3564
    %v3566 = vtanh.pop %v3559
    %v3567 = vrot.slane %v3418, 6
    %v3569 = vmul.f32 %v3565, %v3567
    %3571 = vrot.lane.b32.xlu0 %v3566, 32
    %v3572 = vpop.permute.xlu0 %3571
    %v3574 = vmul.f32 %v3565, %v3572
    %3576 = vrot.lane.b32.xlu0 %v3574, 32
    %v3577 = vpop.permute.xlu0 %3576
    %v3579 = vadd.f32 %v3569, %v3577
    %3581 = vrot.lane.b32.xlu0 %v3579, 96
    %v3582 = vpop.permute.xlu0 %3581
    %v3584 = vsel %vm2239, %v3582, 0.0
    %3585 = vadd.xlane.f32.xlu0 %v3584
    %v3586 = vpop.xlane.xlu0 %3585
    %v3587 = vmul.f32 %v3586, %v2080
    %v3588 = vsub.f32 %v3579, %v3587
    %v3589 = vmul.f32 %v3588, %v3588
    %3591 = vrot.lane.b32.xlu0 %v3589, 96
    %v3592 = vpop.permute.xlu0 %3591
    %v3594 = vsel %vm2239, %v3592, 0.0
    %3595 = vadd.xlane.f32.xlu0 %v3594
    %v3596 = vpop.xlane.xlu0 %3595
    %v3597 = vmul.f32 %v3596, %v2080
    %v3598 = vadd.f32 %v3597, 1e-05
    %v3599 = vrsqrt.pop %v3598
    %v3600 = vmul.f32 %v3588, %v3599
    %v3601 = vmul.f32 %v3600, %v3446
    %v3602 = vadd.f32 %v3601, %v3455
    %v3603 = vtanh.pop %v3602
    %3605 = vrot.lane.b32.xlu0 %v3603, 32
    %v3606 = vpop.permute.xlu0 %3605
    %v3608 = vmul.f32 %v3565, %v3606
    %3610 = vrot.lane.b32.xlu0 %v3608, 64
    %v3611 = vpop.permute.xlu0 %3610
    %3613 = vst.msk [vmem:[#allocation3] sm:$0xc] %vm2239, %v3611
    %v3614 = vrot.slane %v3608, 2
    %3615 = vrot.lane.b32.xlu0 %v3614, 64
    %v3616 = vpop.permute.xlu0 %3615
    %v3617 = vsel %vm1951, %v3616, 0
    %3619 = vmatprep.subr.mxu0 0.0
    %3620 = vmatpush1.msra.mxu0 %v3288
    %3621 = vmatprep.subr.mxu0 0.0
    %3622 = vmatpush1.msra.mxu0 %v3289
    %3623 = vmatprep.subr.mxu0 0.0
    %3624 = vmatpush1.msra.mxu0 %v3290
    %3625 = vmatprep.subr.mxu0 0.0
    %3626 = vmatpush1.msra.mxu0 %v3291
    %3627 = vmatprep.subr.mxu0 0.0
    %3628 = vmatpush1.msra.mxu0 0.0
    %3629 = vmatprep.subr.mxu0 0.0
    %3630 = vmatpush1.msra.mxu0 0.0
    %3631 = vmatprep.subr.mxu0 0.0
    %3632 = vmatpush1.msra.mxu0 0.0
    %3633 = vmatprep.subr.mxu0 0.0
    %3634 = vmatpush1.msra.mxu0 0.0
    %3635 = vmatprep.subr.mxu0 0.0
    %3636 = vmatpush1.msra.mxu0 0.0
    %3637 = vmatprep.subr.mxu0 0.0
    %3638 = vmatpush1.msra.mxu0 0.0
    %3639 = vmatprep.subr.mxu0 0.0
    %3640 = vmatpush1.msra.mxu0 0.0
    %3641 = vmatprep.subr.mxu0 0.0
    %3642 = vmatpush1.msra.mxu0 0.0
    %3643 = vmatprep.subr.mxu0 0.0
    %3644 = vmatpush1.msra.mxu0 0.0
    %3645 = vmatprep.subr.mxu0 0.0
    %3646 = vmatpush1.msra.mxu0 0.0
    %3647 = vmatprep.subr.mxu0 0.0
    %3648 = vmatpush1.msra.mxu0 0.0
    %3649 = vmatprep.subr.mxu0 0.0
    %3650 = vmatpush1.msra.mxu0 0.0
    %3651 = vmatprep.subr.mxu0 0.0
    %3652 = vmatpush1.msra.mxu0 0.0
    %3653 = vmatprep.subr.mxu0 0.0
    %3654 = vmatpush1.msra.mxu0 0.0
    %3655 = vmatprep.subr.mxu0 0.0
    %3656 = vmatpush1.msra.mxu0 0.0
    %3657 = vmatprep.subr.mxu0 0.0
    %3658 = vmatpush1.msra.mxu0 0.0
    %3659 = vmatprep.subr.mxu0 0.0
    %3660 = vmatpush1.msra.mxu0 0.0
    %3661 = vmatprep.subr.mxu0 0.0
    %3662 = vmatpush1.msra.mxu0 0.0
    %3663 = vmatprep.subr.mxu0 0.0
    %3664 = vmatpush1.msra.mxu0 0.0
    %3665 = vmatprep.subr.mxu0 0.0
    %3666 = vmatpush1.msra.mxu0 0.0
    %3667 = vmatprep.subr.mxu0 0.0
    %3668 = vmatpush1.msra.mxu0 0.0
    %3669 = vmatprep.subr.mxu0 0.0
    %3670 = vmatpush1.msra.mxu0 0.0
    %3671 = vmatprep.subr.mxu0 0.0
    %3672 = vmatpush1.msra.mxu0 0.0
    %3673 = vmatprep.subr.mxu0 0.0
    %3674 = vmatpush1.msra.mxu0 0.0
    %3675 = vmatprep.subr.mxu0 0.0
    %3676 = vmatpush1.msra.mxu0 0.0
    %3677 = vmatprep.subr.mxu0 0.0
    %3678 = vmatpush1.msra.mxu0 0.0
    %3679 = vmatprep.subr.mxu0 0.0
    %3680 = vmatpush1.msra.mxu0 0.0
    %3681 = vmatprep.subr.mxu0 0.0
    %3682 = vmatpush1.msra.mxu0 0.0
    %3683 = vmatprep.mubr.f32.mxu0 0.0
    %3684 = vmatmul.mubr.f32.gmra.mrb[0].mxu0 %v3617
    %v3685 = vpop.f32.mrb[0].mxu0
    %v3686 = vadd.f32 %v3301, %v3685
    %v3687 = vpop.f32.mrb[0].mxu0
    %3688 = vdwg.mxu0
    %v3689 = vsel %vm2025, %v3686, 0.0
    %3690 = vadd.xlane.f32.xlu0 %v3689
    %v3691 = vpop.xlane.xlu0 %3690
    %v3692 = vmul.f32 %v3691, %v1901
    %v3693 = vsub.f32 %v3686, %v3692
    %v3694 = vmul.f32 %v3693, %v3693
    %v3695 = vsel %vm2025, %v3694, 0.0
    %3696 = vadd.xlane.f32.xlu0 %v3695
    %v3697 = vpop.xlane.xlu0 %3696
    %v3698 = vmul.f32 %v3697, %v1901
    %v3699 = vadd.f32 %v3698, 1e-05
    %v3700 = vrsqrt.pop %v3699
    %v3701 = vmul.f32 %v3693, %v3700
    %v3702 = vmul.f32 %v3701, %v3390
    %v3703 = vadd.f32 %v3702, %v3397
    %v3705 = vrot.slane %v3703, 4
    %v3707 = vadd.f32 %v3286, %v3705
    %v3708 = vxor.u32 %v3707, 2147483648
    %v3709 = vmul.f32 %v3708, 1.442695
    %v3710 = vpow.pop %v3709
    %v3711 = vadd.f32 %v3710, 1.0
    %v3712 = vrcp.pop %v3711
    %v3713 = vmul.f32 1.0, %v3712
    %v3714 = vtanh.pop %v3707
    %v3715 = vrot.slane %v3579, 6
    %v3717 = vmul.f32 %v3713, %v3715
    %3719 = vrot.lane.b32.xlu0 %v3714, 32
    %v3720 = vpop.permute.xlu0 %3719
    %v3722 = vmul.f32 %v3713, %v3720
    %3724 = vrot.lane.b32.xlu0 %v3722, 32
    %v3725 = vpop.permute.xlu0 %3724
    %v3727 = vadd.f32 %v3717, %v3725
    %3729 = vrot.lane.b32.xlu0 %v3727, 96
    %v3730 = vpop.permute.xlu0 %3729
    %v3732 = vsel %vm2388, %v3730, 0.0
    %3733 = vadd.xlane.f32.xlu0 %v3732
    %v3734 = vpop.xlane.xlu0 %3733
    %v3735 = vmul.f32 %v3734, %v2080
    %v3736 = vsub.f32 %v3727, %v3735
    %v3737 = vmul.f32 %v3736, %v3736
    %3739 = vrot.lane.b32.xlu0 %v3737, 96
    %v3740 = vpop.permute.xlu0 %3739
    %v3742 = vsel %vm2388, %v3740, 0.0
    %3743 = vadd.xlane.f32.xlu0 %v3742
    %v3744 = vpop.xlane.xlu0 %3743
    %v3745 = vmul.f32 %v3744, %v2080
    %v3746 = vadd.f32 %v3745, 1e-05
    %v3747 = vrsqrt.pop %v3746
    %v3748 = vmul.f32 %v3736, %v3747
    %v3749 = vmul.f32 %v3748, %v3446
    %v3750 = vadd.f32 %v3749, %v3455
    %v3751 = vtanh.pop %v3750
    %3753 = vrot.lane.b32.xlu0 %v3751, 32
    %v3754 = vpop.permute.xlu0 %3753
    %v3756 = vmul.f32 %v3713, %v3754
    %3758 = vrot.lane.b32.xlu0 %v3756, 64
    %v3759 = vpop.permute.xlu0 %3758
    %3761 = vst.msk [vmem:[#allocation3] sm:$0x30] %vm2388, %v3759
    %v3762 = vrot.slane %v3756, 4
    %3763 = vrot.lane.b32.xlu0 %v3762, 64
    %v3764 = vpop.permute.xlu0 %3763
    %v3765 = vsel %vm1951, %v3764, 0
    %3767 = vmatprep.subr.mxu0 0.0
    %3768 = vmatpush1.msra.mxu0 %v3288
    %3769 = vmatprep.subr.mxu0 0.0
    %3770 = vmatpush1.msra.mxu0 %v3289
    %3771 = vmatprep.subr.mxu0 0.0
    %3772 = vmatpush1.msra.mxu0 %v3290
    %3773 = vmatprep.subr.mxu0 0.0
    %3774 = vmatpush1.msra.mxu0 %v3291
    %3775 = vmatprep.subr.mxu0 0.0
    %3776 = vmatpush1.msra.mxu0 0.0
    %3777 = vmatprep.subr.mxu0 0.0
    %3778 = vmatpush1.msra.mxu0 0.0
    %3779 = vmatprep.subr.mxu0 0.0
    %3780 = vmatpush1.msra.mxu0 0.0
    %3781 = vmatprep.subr.mxu0 0.0
    %3782 = vmatpush1.msra.mxu0 0.0
    %3783 = vmatprep.subr.mxu0 0.0
    %3784 = vmatpush1.msra.mxu0 0.0
    %3785 = vmatprep.subr.mxu0 0.0
    %3786 = vmatpush1.msra.mxu0 0.0
    %3787 = vmatprep.subr.mxu0 0.0
    %3788 = vmatpush1.msra.mxu0 0.0
    %3789 = vmatprep.subr.mxu0 0.0
    %3790 = vmatpush1.msra.mxu0 0.0
    %3791 = vmatprep.subr.mxu0 0.0
    %3792 = vmatpush1.msra.mxu0 0.0
    %3793 = vmatprep.subr.mxu0 0.0
    %3794 = vmatpush1.msra.mxu0 0.0
    %3795 = vmatprep.subr.mxu0 0.0
    %3796 = vmatpush1.msra.mxu0 0.0
    %3797 = vmatprep.subr.mxu0 0.0
    %3798 = vmatpush1.msra.mxu0 0.0
    %3799 = vmatprep.subr.mxu0 0.0
    %3800 = vmatpush1.msra.mxu0 0.0
    %3801 = vmatprep.subr.mxu0 0.0
    %3802 = vmatpush1.msra.mxu0 0.0
    %3803 = vmatprep.subr.mxu0 0.0
    %3804 = vmatpush1.msra.mxu0 0.0
    %3805 = vmatprep.subr.mxu0 0.0
    %3806 = vmatpush1.msra.mxu0 0.0
    %3807 = vmatprep.subr.mxu0 0.0
    %3808 = vmatpush1.msra.mxu0 0.0
    %3809 = vmatprep.subr.mxu0 0.0
    %3810 = vmatpush1.msra.mxu0 0.0
    %3811 = vmatprep.subr.mxu0 0.0
    %3812 = vmatpush1.msra.mxu0 0.0
    %3813 = vmatprep.subr.mxu0 0.0
    %3814 = vmatpush1.msra.mxu0 0.0
    %3815 = vmatprep.subr.mxu0 0.0
    %3816 = vmatpush1.msra.mxu0 0.0
    %3817 = vmatprep.subr.mxu0 0.0
    %3818 = vmatpush1.msra.mxu0 0.0
    %3819 = vmatprep.subr.mxu0 0.0
    %3820 = vmatpush1.msra.mxu0 0.0
    %3821 = vmatprep.subr.mxu0 0.0
    %3822 = vmatpush1.msra.mxu0 0.0
    %3823 = vmatprep.subr.mxu0 0.0
    %3824 = vmatpush1.msra.mxu0 0.0
    %3825 = vmatprep.subr.mxu0 0.0
    %3826 = vmatpush1.msra.mxu0 0.0
    %3827 = vmatprep.subr.mxu0 0.0
    %3828 = vmatpush1.msra.mxu0 0.0
    %3829 = vmatprep.subr.mxu0 0.0
    %3830 = vmatpush1.msra.mxu0 0.0
    %3831 = vmatprep.mubr.f32.mxu0 0.0
    %3832 = vmatmul.mubr.f32.gmra.mrb[0].mxu0 %v3765
    %v3833 = vpop.f32.mrb[0].mxu0
    %v3834 = vadd.f32 %v3301, %v3833
    %v3835 = vpop.f32.mrb[0].mxu0
    %3836 = vdwg.mxu0
    %v3837 = vsel %vm2025, %v3834, 0.0
    %3838 = vadd.xlane.f32.xlu0 %v3837
    %v3839 = vpop.xlane.xlu0 %3838
    %v3840 = vmul.f32 %v3839, %v1901
    %v3841 = vsub.f32 %v3834, %v3840
    %v3842 = vmul.f32 %v3841, %v3841
    %v3843 = vsel %vm2025, %v3842, 0.0
    %3844 = vadd.xlane.f32.xlu0 %v3843
    %v3845 = vpop.xlane.xlu0 %3844
    %v3846 = vmul.f32 %v3845, %v1901
    %v3847 = vadd.f32 %v3846, 1e-05
    %v3848 = vrsqrt.pop %v3847
    %v3849 = vmul.f32 %v3841, %v3848
    %v3850 = vmul.f32 %v3849, %v3390
    %v3851 = vadd.f32 %v3850, %v3397
    %v3853 = vrot.slane %v3851, 2
    %v3855 = vadd.f32 %v3286, %v3853
    %v3856 = vxor.u32 %v3855, 2147483648
    %v3857 = vmul.f32 %v3856, 1.442695
    %v3858 = vpow.pop %v3857
    %v3859 = vadd.f32 %v3858, 1.0
    %v3860 = vrcp.pop %v3859
    %v3861 = vmul.f32 1.0, %v3860
    %v3862 = vtanh.pop %v3855
    %v3863 = vrot.slane %v3727, 6
    %v3865 = vmul.f32 %v3861, %v3863
    %3867 = vrot.lane.b32.xlu0 %v3862, 32
    %v3868 = vpop.permute.xlu0 %3867
    %v3870 = vmul.f32 %v3861, %v3868
    %3872 = vrot.lane.b32.xlu0 %v3870, 32
    %v3873 = vpop.permute.xlu0 %3872
    %v3875 = vadd.f32 %v3865, %v3873
    %3877 = vrot.lane.b32.xlu0 %v3875, 96
    %v3878 = vpop.permute.xlu0 %3877
    %v3880 = vsel %vm2537, %v3878, 0.0
    %3881 = vadd.xlane.f32.xlu0 %v3880
    %v3882 = vpop.xlane.xlu0 %3881
    %v3883 = vmul.f32 %v3882, %v2080
    %v3884 = vsub.f32 %v3875, %v3883
    %v3885 = vmul.f32 %v3884, %v3884
    %3887 = vrot.lane.b32.xlu0 %v3885, 96
    %v3888 = vpop.permute.xlu0 %3887
    %v3890 = vsel %vm2537, %v3888, 0.0
    %3891 = vadd.xlane.f32.xlu0 %v3890
    %v3892 = vpop.xlane.xlu0 %3891
    %v3893 = vmul.f32 %v3892, %v2080
    %v3894 = vadd.f32 %v3893, 1e-05
    %v3895 = vrsqrt.pop %v3894
    %v3896 = vmul.f32 %v3884, %v3895
    %v3897 = vmul.f32 %v3896, %v3446
    %v3898 = vadd.f32 %v3897, %v3455
    %v3899 = vtanh.pop %v3898
    %3901 = vrot.lane.b32.xlu0 %v3899, 32
    %v3902 = vpop.permute.xlu0 %3901
    %v3904 = vmul.f32 %v3861, %v3902
    %3906 = vrot.lane.b32.xlu0 %v3904, 64
    %v3907 = vpop.permute.xlu0 %3906
    %3909 = vst.msk [vmem:[#allocation3] sm:$0xc0] %vm2537, %v3907
    %v3910 = vrot.slane %v3904, 6
    %3911 = vrot.lane.b32.xlu0 %v3910, 64
    %v3912 = vpop.permute.xlu0 %3911
    %v3913 = vsel %vm1951, %v3912, 0
    %3915 = vmatprep.subr.mxu0 0.0
    %3916 = vmatpush1.msra.mxu0 %v3288
    %3917 = vmatprep.subr.mxu0 0.0
    %3918 = vmatpush1.msra.mxu0 %v3289
    %3919 = vmatprep.subr.mxu0 0.0
    %3920 = vmatpush1.msra.mxu0 %v3290
    %3921 = vmatprep.subr.mxu0 0.0
    %3922 = vmatpush1.msra.mxu0 %v3291
    %3923 = vmatprep.subr.mxu0 0.0
    %3924 = vmatpush1.msra.mxu0 0.0
    %3925 = vmatprep.subr.mxu0 0.0
    %3926 = vmatpush1.msra.mxu0 0.0
    %3927 = vmatprep.subr.mxu0 0.0
    %3928 = vmatpush1.msra.mxu0 0.0
    %3929 = vmatprep.subr.mxu0 0.0
    %3930 = vmatpush1.msra.mxu0 0.0
    %3931 = vmatprep.subr.mxu0 0.0
    %3932 = vmatpush1.msra.mxu0 0.0
    %3933 = vmatprep.subr.mxu0 0.0
    %3934 = vmatpush1.msra.mxu0 0.0
    %3935 = vmatprep.subr.mxu0 0.0
    %3936 = vmatpush1.msra.mxu0 0.0
    %3937 = vmatprep.subr.mxu0 0.0
    %3938 = vmatpush1.msra.mxu0 0.0
    %3939 = vmatprep.subr.mxu0 0.0
    %3940 = vmatpush1.msra.mxu0 0.0
    %3941 = vmatprep.subr.mxu0 0.0
    %3942 = vmatpush1.msra.mxu0 0.0
    %3943 = vmatprep.subr.mxu0 0.0
    %3944 = vmatpush1.msra.mxu0 0.0
    %3945 = vmatprep.subr.mxu0 0.0
    %3946 = vmatpush1.msra.mxu0 0.0
    %3947 = vmatprep.subr.mxu0 0.0
    %3948 = vmatpush1.msra.mxu0 0.0
    %3949 = vmatprep.subr.mxu0 0.0
    %3950 = vmatpush1.msra.mxu0 0.0
    %3951 = vmatprep.subr.mxu0 0.0
    %3952 = vmatpush1.msra.mxu0 0.0
    %3953 = vmatprep.subr.mxu0 0.0
    %3954 = vmatpush1.msra.mxu0 0.0
    %3955 = vmatprep.subr.mxu0 0.0
    %3956 = vmatpush1.msra.mxu0 0.0
    %3957 = vmatprep.subr.mxu0 0.0
    %3958 = vmatpush1.msra.mxu0 0.0
    %3959 = vmatprep.subr.mxu0 0.0
    %3960 = vmatpush1.msra.mxu0 0.0
    %3961 = vmatprep.subr.mxu0 0.0
    %3962 = vmatpush1.msra.mxu0 0.0
    %3963 = vmatprep.subr.mxu0 0.0
    %3964 = vmatpush1.msra.mxu0 0.0
    %3965 = vmatprep.subr.mxu0 0.0
    %3966 = vmatpush1.msra.mxu0 0.0
    %3967 = vmatprep.subr.mxu0 0.0
    %3968 = vmatpush1.msra.mxu0 0.0
    %3969 = vmatprep.subr.mxu0 0.0
    %3970 = vmatpush1.msra.mxu0 0.0
    %3971 = vmatprep.subr.mxu0 0.0
    %3972 = vmatpush1.msra.mxu0 0.0
    %3973 = vmatprep.subr.mxu0 0.0
    %3974 = vmatpush1.msra.mxu0 0.0
    %3975 = vmatprep.subr.mxu0 0.0
    %3976 = vmatpush1.msra.mxu0 0.0
    %3977 = vmatprep.subr.mxu0 0.0
    %3978 = vmatpush1.msra.mxu0 0.0
    %3979 = vmatprep.mubr.f32.mxu0 0.0
    %3980 = vmatmul.mubr.f32.gmra.mrb[0].mxu0 %v3913
    %v3981 = vpop.f32.mrb[0].mxu0
    %v3982 = vadd.f32 %v3301, %v3981
    %v3983 = vpop.f32.mrb[0].mxu0
    %3984 = vdwg.mxu0
    %v3985 = vsel %vm2025, %v3982, 0.0
    %3986 = vadd.xlane.f32.xlu0 %v3985
    %v3987 = vpop.xlane.xlu0 %3986
    %v3988 = vmul.f32 %v3987, %v1901
    %v3989 = vsub.f32 %v3982, %v3988
    %v3990 = vmul.f32 %v3989, %v3989
    %v3991 = vsel %vm2025, %v3990, 0.0
    %3992 = vadd.xlane.f32.xlu0 %v3991
    %v3993 = vpop.xlane.xlu0 %3992
    %v3994 = vmul.f32 %v3993, %v1901
    %v3995 = vadd.f32 %v3994, 1e-05
    %v3996 = vrsqrt.pop %v3995
    %v3997 = vmul.f32 %v3989, %v3996
    %v3998 = vmul.f32 %v3997, %v3390
    %v3999 = vadd.f32 %v3998, %v3397
    %v4000 = vadd.f32 %v3287, %v3999
    %v4001 = vxor.u32 %v4000, 2147483648
    %v4002 = vmul.f32 %v4001, 1.442695
    %v4003 = vpow.pop %v4002
    %v4004 = vadd.f32 %v4003, 1.0
    %v4005 = vrcp.pop %v4004
    %v4006 = vmul.f32 1.0, %v4005
    %v4007 = vtanh.pop %v4000
    %v4008 = vrot.slane %v3875, 6
    %v4010 = vmul.f32 %v4006, %v4008
    %4012 = vrot.lane.b32.xlu0 %v4007, 32
    %v4013 = vpop.permute.xlu0 %4012
    %v4015 = vmul.f32 %v4006, %v4013
    %4017 = vrot.lane.b32.xlu0 %v4015, 32
    %v4018 = vpop.permute.xlu0 %4017
    %v4020 = vadd.f32 %v4010, %v4018
    %4022 = vrot.lane.b32.xlu0 %v4020, 96
    %v4023 = vpop.permute.xlu0 %4022
    %v4025 = vsel %vm2076, %v4023, 0.0
    %4026 = vadd.xlane.f32.xlu0 %v4025
    %v4027 = vpop.xlane.xlu0 %4026
    %v4028 = vmul.f32 %v4027, %v2080
    %v4029 = vsub.f32 %v4020, %v4028
    %v4030 = vmul.f32 %v4029, %v4029
    %4032 = vrot.lane.b32.xlu0 %v4030, 96
    %v4033 = vpop.permute.xlu0 %4032
    %v4035 = vsel %vm2076, %v4033, 0.0
    %4036 = vadd.xlane.f32.xlu0 %v4035
    %v4037 = vpop.xlane.xlu0 %4036
    %v4038 = vmul.f32 %v4037, %v2080
    %v4039 = vadd.f32 %v4038, 1e-05
    %v4040 = vrsqrt.pop %v4039
    %v4041 = vmul.f32 %v4029, %v4040
    %v4042 = vmul.f32 %v4041, %v3446
    %v4043 = vadd.f32 %v4042, %v3455
    %v4044 = vtanh.pop %v4043
    %4046 = vrot.lane.b32.xlu0 %v4044, 32
    %v4047 = vpop.permute.xlu0 %4046
    %v4049 = vmul.f32 %v4006, %v4047
    %4051 = vrot.lane.b32.xlu0 %v4049, 64
    %v4052 = vpop.permute.xlu0 %4051
    %4054 = vst.msk [vmem:[#allocation3 + $0x8] sm:$0x3] %vm2076, %v4052
    %v4055 = vsel %vm1951, %v4052, 0
    %4057 = vmatprep.subr.mxu0 0.0
    %4058 = vmatpush1.msra.mxu0 %v3288
    %4059 = vmatprep.subr.mxu0 0.0
    %4060 = vmatpush1.msra.mxu0 %v3289
    %4061 = vmatprep.subr.mxu0 0.0
    %4062 = vmatpush1.msra.mxu0 %v3290
    %4063 = vmatprep.subr.mxu0 0.0
    %4064 = vmatpush1.msra.mxu0 %v3291
    %4065 = vmatprep.subr.mxu0 0.0
    %4066 = vmatpush1.msra.mxu0 0.0
    %4067 = vmatprep.subr.mxu0 0.0
    %4068 = vmatpush1.msra.mxu0 0.0
    %4069 = vmatprep.subr.mxu0 0.0
    %4070 = vmatpush1.msra.mxu0 0.0
    %4071 = vmatprep.subr.mxu0 0.0
    %4072 = vmatpush1.msra.mxu0 0.0
    %4073 = vmatprep.subr.mxu0 0.0
    %4074 = vmatpush1.msra.mxu0 0.0
    %4075 = vmatprep.subr.mxu0 0.0
    %4076 = vmatpush1.msra.mxu0 0.0
    %4077 = vmatprep.subr.mxu0 0.0
    %4078 = vmatpush1.msra.mxu0 0.0
    %4079 = vmatprep.subr.mxu0 0.0
    %4080 = vmatpush1.msra.mxu0 0.0
    %4081 = vmatprep.subr.mxu0 0.0
    %4082 = vmatpush1.msra.mxu0 0.0
    %4083 = vmatprep.subr.mxu0 0.0
    %4084 = vmatpush1.msra.mxu0 0.0
    %4085 = vmatprep.subr.mxu0 0.0
    %4086 = vmatpush1.msra.mxu0 0.0
    %4087 = vmatprep.subr.mxu0 0.0
    %4088 = vmatpush1.msra.mxu0 0.0
    %4089 = vmatprep.subr.mxu0 0.0
    %4090 = vmatpush1.msra.mxu0 0.0
    %4091 = vmatprep.subr.mxu0 0.0
    %4092 = vmatpush1.msra.mxu0 0.0
    %4093 = vmatprep.subr.mxu0 0.0
    %4094 = vmatpush1.msra.mxu0 0.0
    %4095 = vmatprep.subr.mxu0 0.0
    %4096 = vmatpush1.msra.mxu0 0.0
    %4097 = vmatprep.subr.mxu0 0.0
    %4098 = vmatpush1.msra.mxu0 0.0
    %4099 = vmatprep.subr.mxu0 0.0
    %4100 = vmatpush1.msra.mxu0 0.0
    %4101 = vmatprep.subr.mxu0 0.0
    %4102 = vmatpush1.msra.mxu0 0.0
    %4103 = vmatprep.subr.mxu0 0.0
    %4104 = vmatpush1.msra.mxu0 0.0
    %4105 = vmatprep.subr.mxu0 0.0
    %4106 = vmatpush1.msra.mxu0 0.0
    %4107 = vmatprep.subr.mxu0 0.0
    %4108 = vmatpush1.msra.mxu0 0.0
    %4109 = vmatprep.subr.mxu0 0.0
    %4110 = vmatpush1.msra.mxu0 0.0
    %4111 = vmatprep.subr.mxu0 0.0
    %4112 = vmatpush1.msra.mxu0 0.0
    %4113 = vmatprep.subr.mxu0 0.0
    %4114 = vmatpush1.msra.mxu0 0.0
    %4115 = vmatprep.subr.mxu0 0.0
    %4116 = vmatpush1.msra.mxu0 0.0
    %4117 = vmatprep.subr.mxu0 0.0
    %4118 = vmatpush1.msra.mxu0 0.0
    %4119 = vmatprep.subr.mxu0 0.0
    %4120 = vmatpush1.msra.mxu0 0.0
    %4121 = vmatprep.mubr.f32.mxu0 0.0
    %4122 = vmatmul.mubr.f32.gmra.mrb[0].mxu0 %v4055
    %v4123 = vpop.f32.mrb[0].mxu0
    %v4124 = vadd.f32 %v3301, %v4123
    %v4125 = vpop.f32.mrb[0].mxu0
    %4126 = vdwg.mxu0
    %v4127 = vsel %vm2025, %v4124, 0.0
    %4128 = vadd.xlane.f32.xlu0 %v4127
    %v4129 = vpop.xlane.xlu0 %4128
    %v4130 = vmul.f32 %v4129, %v1901
    %v4131 = vsub.f32 %v4124, %v4130
    %v4132 = vmul.f32 %v4131, %v4131
    %v4133 = vsel %vm2025, %v4132, 0.0
    %4134 = vadd.xlane.f32.xlu0 %v4133
    %v4135 = vpop.xlane.xlu0 %4134
    %v4136 = vmul.f32 %v4135, %v1901
    %v4137 = vadd.f32 %v4136, 1e-05
    %v4138 = vrsqrt.pop %v4137
    %v4139 = vmul.f32 %v4131, %v4138
    %v4140 = vmul.f32 %v4139, %v3390
    %v4141 = vadd.f32 %v4140, %v3397
    %v4143 = vrot.slane %v4141, 6
    %v4145 = vadd.f32 %v3287, %v4143
    %v4146 = vxor.u32 %v4145, 2147483648
    %v4147 = vmul.f32 %v4146, 1.442695
    %v4148 = vpow.pop %v4147
    %v4149 = vadd.f32 %v4148, 1.0
    %v4150 = vrcp.pop %v4149
    %v4151 = vmul.f32 1.0, %v4150
    %v4152 = vtanh.pop %v4145
    %v4153 = vrot.slane %v4020, 6
    %v4155 = vmul.f32 %v4151, %v4153
    %4157 = vrot.lane.b32.xlu0 %v4152, 32
    %v4158 = vpop.permute.xlu0 %4157
    %v4160 = vmul.f32 %v4151, %v4158
    %4162 = vrot.lane.b32.xlu0 %v4160, 32
    %v4163 = vpop.permute.xlu0 %4162
    %v4165 = vadd.f32 %v4155, %v4163
    %4167 = vrot.lane.b32.xlu0 %v4165, 96
    %v4168 = vpop.permute.xlu0 %4167
    %v4170 = vsel %vm2239, %v4168, 0.0
    %4171 = vadd.xlane.f32.xlu0 %v4170
    %v4172 = vpop.xlane.xlu0 %4171
    %v4173 = vmul.f32 %v4172, %v2080
    %v4174 = vsub.f32 %v4165, %v4173
    %v4175 = vmul.f32 %v4174, %v4174
    %4177 = vrot.lane.b32.xlu0 %v4175, 96
    %v4178 = vpop.permute.xlu0 %4177
    %v4180 = vsel %vm2239, %v4178, 0.0
    %4181 = vadd.xlane.f32.xlu0 %v4180
    %v4182 = vpop.xlane.xlu0 %4181
    %v4183 = vmul.f32 %v4182, %v2080
    %v4184 = vadd.f32 %v4183, 1e-05
    %v4185 = vrsqrt.pop %v4184
    %v4186 = vmul.f32 %v4174, %v4185
    %v4187 = vmul.f32 %v4186, %v3446
    %v4188 = vadd.f32 %v4187, %v3455
    %v4189 = vtanh.pop %v4188
    %4191 = vrot.lane.b32.xlu0 %v4189, 32
    %v4192 = vpop.permute.xlu0 %4191
    %v4194 = vmul.f32 %v4151, %v4192
    %4196 = vrot.lane.b32.xlu0 %v4194, 64
    %v4197 = vpop.permute.xlu0 %4196
    %4199 = vst.msk [vmem:[#allocation3 + $0x8] sm:$0xc] %vm2239, %v4197
    %v4200 = vrot.slane %v4194, 2
    %4201 = vrot.lane.b32.xlu0 %v4200, 64
    %v4202 = vpop.permute.xlu0 %4201
    %v4203 = vsel %vm1951, %v4202, 0
    %4205 = vmatprep.subr.mxu0 0.0
    %4206 = vmatpush1.msra.mxu0 %v3288
    %4207 = vmatprep.subr.mxu0 0.0
    %4208 = vmatpush1.msra.mxu0 %v3289
    %4209 = vmatprep.subr.mxu0 0.0
    %4210 = vmatpush1.msra.mxu0 %v3290
    %4211 = vmatprep.subr.mxu0 0.0
    %4212 = vmatpush1.msra.mxu0 %v3291
    %4213 = vmatprep.subr.mxu0 0.0
    %4214 = vmatpush1.msra.mxu0 0.0
    %4215 = vmatprep.subr.mxu0 0.0
    %4216 = vmatpush1.msra.mxu0 0.0
    %4217 = vmatprep.subr.mxu0 0.0
    %4218 = vmatpush1.msra.mxu0 0.0
    %4219 = vmatprep.subr.mxu0 0.0
    %4220 = vmatpush1.msra.mxu0 0.0
    %4221 = vmatprep.subr.mxu0 0.0
    %4222 = vmatpush1.msra.mxu0 0.0
    %4223 = vmatprep.subr.mxu0 0.0
    %4224 = vmatpush1.msra.mxu0 0.0
    %4225 = vmatprep.subr.mxu0 0.0
    %4226 = vmatpush1.msra.mxu0 0.0
    %4227 = vmatprep.subr.mxu0 0.0
    %4228 = vmatpush1.msra.mxu0 0.0
    %4229 = vmatprep.subr.mxu0 0.0
    %4230 = vmatpush1.msra.mxu0 0.0
    %4231 = vmatprep.subr.mxu0 0.0
    %4232 = vmatpush1.msra.mxu0 0.0
    %4233 = vmatprep.subr.mxu0 0.0
    %4234 = vmatpush1.msra.mxu0 0.0
    %4235 = vmatprep.subr.mxu0 0.0
    %4236 = vmatpush1.msra.mxu0 0.0
    %4237 = vmatprep.subr.mxu0 0.0
    %4238 = vmatpush1.msra.mxu0 0.0
    %4239 = vmatprep.subr.mxu0 0.0
    %4240 = vmatpush1.msra.mxu0 0.0
    %4241 = vmatprep.subr.mxu0 0.0
    %4242 = vmatpush1.msra.mxu0 0.0
    %4243 = vmatprep.subr.mxu0 0.0
    %4244 = vmatpush1.msra.mxu0 0.0
    %4245 = vmatprep.subr.mxu0 0.0
    %4246 = vmatpush1.msra.mxu0 0.0
    %4247 = vmatprep.subr.mxu0 0.0
    %4248 = vmatpush1.msra.mxu0 0.0
    %4249 = vmatprep.subr.mxu0 0.0
    %4250 = vmatpush1.msra.mxu0 0.0
    %4251 = vmatprep.subr.mxu0 0.0
    %4252 = vmatpush1.msra.mxu0 0.0
    %4253 = vmatprep.subr.mxu0 0.0
    %4254 = vmatpush1.msra.mxu0 0.0
    %4255 = vmatprep.subr.mxu0 0.0
    %4256 = vmatpush1.msra.mxu0 0.0
    %4257 = vmatprep.subr.mxu0 0.0
    %4258 = vmatpush1.msra.mxu0 0.0
    %4259 = vmatprep.subr.mxu0 0.0
    %4260 = vmatpush1.msra.mxu0 0.0
    %4261 = vmatprep.subr.mxu0 0.0
    %4262 = vmatpush1.msra.mxu0 0.0
    %4263 = vmatprep.subr.mxu0 0.0
    %4264 = vmatpush1.msra.mxu0 0.0
    %4265 = vmatprep.subr.mxu0 0.0
    %4266 = vmatpush1.msra.mxu0 0.0
    %4267 = vmatprep.subr.mxu0 0.0
    %4268 = vmatpush1.msra.mxu0 0.0
    %4269 = vmatprep.mubr.f32.mxu0 0.0
    %4270 = vmatmul.mubr.f32.gmra.mrb[0].mxu0 %v4203
    %v4271 = vpop.f32.mrb[0].mxu0
    %v4272 = vadd.f32 %v3301, %v4271
    %v4273 = vpop.f32.mrb[0].mxu0
    %4274 = vdwg.mxu0
    %v4275 = vsel %vm2025, %v4272, 0.0
    %4276 = vadd.xlane.f32.xlu0 %v4275
    %v4277 = vpop.xlane.xlu0 %4276
    %v4278 = vmul.f32 %v4277, %v1901
    %v4279 = vsub.f32 %v4272, %v4278
    %v4280 = vmul.f32 %v4279, %v4279
    %v4281 = vsel %vm2025, %v4280, 0.0
    %4282 = vadd.xlane.f32.xlu0 %v4281
    %v4283 = vpop.xlane.xlu0 %4282
    %v4284 = vmul.f32 %v4283, %v1901
    %v4285 = vadd.f32 %v4284, 1e-05
    %v4286 = vrsqrt.pop %v4285
    %v4287 = vmul.f32 %v4279, %v4286
    %v4288 = vmul.f32 %v4287, %v3390
    %v4289 = vadd.f32 %v4288, %v3397
    %v4291 = vrot.slane %v4289, 4
    %v4293 = vadd.f32 %v3287, %v4291
    %v4294 = vxor.u32 %v4293, 2147483648
    %v4295 = vmul.f32 %v4294, 1.442695
    %v4296 = vpow.pop %v4295
    %v4297 = vadd.f32 %v4296, 1.0
    %v4298 = vrcp.pop %v4297
    %v4299 = vmul.f32 1.0, %v4298
    %v4300 = vtanh.pop %v4293
    %v4301 = vrot.slane %v4165, 6
    %v4303 = vmul.f32 %v4299, %v4301
    %4305 = vrot.lane.b32.xlu0 %v4300, 32
    %v4306 = vpop.permute.xlu0 %4305
    %v4308 = vmul.f32 %v4299, %v4306
    %4310 = vrot.lane.b32.xlu0 %v4308, 32
    %v4311 = vpop.permute.xlu0 %4310
    %v4313 = vadd.f32 %v4303, %v4311
    %4315 = vrot.lane.b32.xlu0 %v4313, 96
    %v4316 = vpop.permute.xlu0 %4315
    %v4318 = vsel %vm2388, %v4316, 0.0
    %4319 = vadd.xlane.f32.xlu0 %v4318
    %v4320 = vpop.xlane.xlu0 %4319
    %v4321 = vmul.f32 %v4320, %v2080
    %v4322 = vsub.f32 %v4313, %v4321
    %v4323 = vmul.f32 %v4322, %v4322
    %4325 = vrot.lane.b32.xlu0 %v4323, 96
    %v4326 = vpop.permute.xlu0 %4325
    %v4328 = vsel %vm2388, %v4326, 0.0
    %4329 = vadd.xlane.f32.xlu0 %v4328
    %v4330 = vpop.xlane.xlu0 %4329
    %v4331 = vmul.f32 %v4330, %v2080
    %v4332 = vadd.f32 %v4331, 1e-05
    %v4333 = vrsqrt.pop %v4332
    %v4334 = vmul.f32 %v4322, %v4333
    %v4335 = vmul.f32 %v4334, %v3446
    %v4336 = vadd.f32 %v4335, %v3455
    %v4337 = vtanh.pop %v4336
    %4339 = vrot.lane.b32.xlu0 %v4337, 32
    %v4340 = vpop.permute.xlu0 %4339
    %v4342 = vmul.f32 %v4299, %v4340
    %4344 = vrot.lane.b32.xlu0 %v4342, 64
    %v4345 = vpop.permute.xlu0 %4344
    %4347 = vst.msk [vmem:[#allocation3 + $0x8] sm:$0x30] %vm2388, %v4345
    %v4348 = vrot.slane %v4342, 4
    %4349 = vrot.lane.b32.xlu0 %v4348, 64
    %v4350 = vpop.permute.xlu0 %4349
    %v4351 = vsel %vm1951, %v4350, 0
    %4353 = vmatprep.subr.mxu0 0.0
    %4354 = vmatpush1.msra.mxu0 %v3288
    %4355 = vmatprep.subr.mxu0 0.0
    %4356 = vmatpush1.msra.mxu0 %v3289
    %4357 = vmatprep.subr.mxu0 0.0
    %4358 = vmatpush1.msra.mxu0 %v3290
    %4359 = vmatprep.subr.mxu0 0.0
    %4360 = vmatpush1.msra.mxu0 %v3291
    %4361 = vmatprep.subr.mxu0 0.0
    %4362 = vmatpush1.msra.mxu0 0.0
    %4363 = vmatprep.subr.mxu0 0.0
    %4364 = vmatpush1.msra.mxu0 0.0
    %4365 = vmatprep.subr.mxu0 0.0
    %4366 = vmatpush1.msra.mxu0 0.0
    %4367 = vmatprep.subr.mxu0 0.0
    %4368 = vmatpush1.msra.mxu0 0.0
    %4369 = vmatprep.subr.mxu0 0.0
    %4370 = vmatpush1.msra.mxu0 0.0
    %4371 = vmatprep.subr.mxu0 0.0
    %4372 = vmatpush1.msra.mxu0 0.0
    %4373 = vmatprep.subr.mxu0 0.0
    %4374 = vmatpush1.msra.mxu0 0.0
    %4375 = vmatprep.subr.mxu0 0.0
    %4376 = vmatpush1.msra.mxu0 0.0
    %4377 = vmatprep.subr.mxu0 0.0
    %4378 = vmatpush1.msra.mxu0 0.0
    %4379 = vmatprep.subr.mxu0 0.0
    %4380 = vmatpush1.msra.mxu0 0.0
    %4381 = vmatprep.subr.mxu0 0.0
    %4382 = vmatpush1.msra.mxu0 0.0
    %4383 = vmatprep.subr.mxu0 0.0
    %4384 = vmatpush1.msra.mxu0 0.0
    %4385 = vmatprep.subr.mxu0 0.0
    %4386 = vmatpush1.msra.mxu0 0.0
    %4387 = vmatprep.subr.mxu0 0.0
    %4388 = vmatpush1.msra.mxu0 0.0
    %4389 = vmatprep.subr.mxu0 0.0
    %4390 = vmatpush1.msra.mxu0 0.0
    %4391 = vmatprep.subr.mxu0 0.0
    %4392 = vmatpush1.msra.mxu0 0.0
    %4393 = vmatprep.subr.mxu0 0.0
    %4394 = vmatpush1.msra.mxu0 0.0
    %4395 = vmatprep.subr.mxu0 0.0
    %4396 = vmatpush1.msra.mxu0 0.0
    %4397 = vmatprep.subr.mxu0 0.0
    %4398 = vmatpush1.msra.mxu0 0.0
    %4399 = vmatprep.subr.mxu0 0.0
    %4400 = vmatpush1.msra.mxu0 0.0
    %4401 = vmatprep.subr.mxu0 0.0
    %4402 = vmatpush1.msra.mxu0 0.0
    %4403 = vmatprep.subr.mxu0 0.0
    %4404 = vmatpush1.msra.mxu0 0.0
    %4405 = vmatprep.subr.mxu0 0.0
    %4406 = vmatpush1.msra.mxu0 0.0
    %4407 = vmatprep.subr.mxu0 0.0
    %4408 = vmatpush1.msra.mxu0 0.0
    %4409 = vmatprep.subr.mxu0 0.0
    %4410 = vmatpush1.msra.mxu0 0.0
    %4411 = vmatprep.subr.mxu0 0.0
    %4412 = vmatpush1.msra.mxu0 0.0
    %4413 = vmatprep.subr.mxu0 0.0
    %4414 = vmatpush1.msra.mxu0 0.0
    %4415 = vmatprep.subr.mxu0 0.0
    %4416 = vmatpush1.msra.mxu0 0.0
    %4417 = vmatprep.mubr.f32.mxu0 0.0
    %4418 = vmatmul.mubr.f32.gmra.mrb[0].mxu0 %v4351
    %v4419 = vpop.f32.mrb[0].mxu0
    %v4420 = vadd.f32 %v3301, %v4419
    %v4421 = vpop.f32.mrb[0].mxu0
    %4422 = vdwg.mxu0
    %v4423 = vsel %vm2025, %v4420, 0.0
    %4424 = vadd.xlane.f32.xlu0 %v4423
    %v4425 = vpop.xlane.xlu0 %4424
    %v4426 = vmul.f32 %v4425, %v1901
    %v4427 = vsub.f32 %v4420, %v4426
    %v4428 = vmul.f32 %v4427, %v4427
    %v4429 = vsel %vm2025, %v4428, 0.0
    %4430 = vadd.xlane.f32.xlu0 %v4429
    %v4431 = vpop.xlane.xlu0 %4430
    %v4432 = vmul.f32 %v4431, %v1901
    %v4433 = vadd.f32 %v4432, 1e-05
    %v4434 = vrsqrt.pop %v4433
    %v4435 = vmul.f32 %v4427, %v4434
    %v4436 = vmul.f32 %v4435, %v3390
    %v4437 = vadd.f32 %v4436, %v3397
    %v4439 = vrot.slane %v4437, 2
    %v4441 = vadd.f32 %v3287, %v4439
    %v4442 = vxor.u32 %v4441, 2147483648
    %v4443 = vmul.f32 %v4442, 1.442695
    %v4444 = vpow.pop %v4443
    %v4445 = vadd.f32 %v4444, 1.0
    %v4446 = vrcp.pop %v4445
    %v4447 = vmul.f32 1.0, %v4446
    %v4448 = vtanh.pop %v4441
    %v4449 = vrot.slane %v4313, 6
    %v4451 = vmul.f32 %v4447, %v4449
    %4453 = vrot.lane.b32.xlu0 %v4448, 32
    %v4454 = vpop.permute.xlu0 %4453
    %v4456 = vmul.f32 %v4447, %v4454
    %4458 = vrot.lane.b32.xlu0 %v4456, 32
    %v4459 = vpop.permute.xlu0 %4458
    %v4461 = vadd.f32 %v4451, %v4459
    %4463 = vrot.lane.b32.xlu0 %v4461, 96
    %v4464 = vpop.permute.xlu0 %4463
    %v4466 = vsel %vm2537, %v4464, 0.0
    %4467 = vadd.xlane.f32.xlu0 %v4466
    %v4468 = vpop.xlane.xlu0 %4467
    %v4469 = vmul.f32 %v4468, %v2080
    %v4470 = vsub.f32 %v4461, %v4469
    %v4471 = vmul.f32 %v4470, %v4470
    %4473 = vrot.lane.b32.xlu0 %v4471, 96
    %v4474 = vpop.permute.xlu0 %4473
    %v4476 = vsel %vm2537, %v4474, 0.0
    %4477 = vadd.xlane.f32.xlu0 %v4476
    %v4478 = vpop.xlane.xlu0 %4477
    %v4479 = vmul.f32 %v4478, %v2080
    %v4480 = vadd.f32 %v4479, 1e-05
    %v4481 = vrsqrt.pop %v4480
    %v4482 = vmul.f32 %v4470, %v4481
    %v4483 = vmul.f32 %v4482, %v3446
    %v4484 = vadd.f32 %v4483, %v3455
    %v4485 = vtanh.pop %v4484
    %4487 = vrot.lane.b32.xlu0 %v4485, 32
    %v4488 = vpop.permute.xlu0 %4487
    %v4490 = vmul.f32 %v4447, %v4488
    %4492 = vrot.lane.b32.xlu0 %v4490, 64
    %v4493 = vpop.permute.xlu0 %4492
    %4495 = vst.msk [vmem:[#allocation3 + $0x8] sm:$0xc0] %vm2537, %v4493
    %v4496 = vld [vmem:[#allocation3] sm:$0xff]
    %v4497 = vld [vmem:[#allocation3 + $0x8] sm:$0xff]
    %v4498 = vld [vmem:[%s59] sm:$0xff]
    %v4499 = vld [vmem:[%s59 + $0x8] sm:$0xff]
    %v4500 = vld [vmem:[%s59 + $0x10] sm:$0xff]
    %v4501 = vld [vmem:[%s59 + $0x18] sm:$0xff]
    %v4502 = vld [vmem:[#allocation6] sm:$0x1]
    %v4504 = vlaneseq
    %v4505 = vshrl.u32 %v4504, 7
    %v4506 = vsub.s32 0, %v4505
    %v4507 = vrot.slane %v4502, %v4506
    %v4510 = vsel %vm1951, %v4496, 0
    %v4513 = vsel %vm1951, %v4497, 0
    %4515 = vmatprep.subr.mxu0 0.0
    %4516 = vmatpush1.msra.mxu0 %v4498
    %4517 = vmatprep.subr.mxu0 0.0
    %4518 = vmatpush1.msra.mxu0 %v4499
    %4519 = vmatprep.subr.mxu0 0.0
    %4520 = vmatpush1.msra.mxu0 %v4500
    %4521 = vmatprep.subr.mxu0 0.0
    %4522 = vmatpush1.msra.mxu0 %v4501
    %4523 = vmatprep.subr.mxu0 0.0
    %4524 = vmatpush1.msra.mxu0 0.0
    %4525 = vmatprep.subr.mxu0 0.0
    %4526 = vmatpush1.msra.mxu0 0.0
    %4527 = vmatprep.subr.mxu0 0.0
    %4528 = vmatpush1.msra.mxu0 0.0
    %4529 = vmatprep.subr.mxu0 0.0
    %4530 = vmatpush1.msra.mxu0 0.0
    %4531 = vmatprep.subr.mxu0 0.0
    %4532 = vmatpush1.msra.mxu0 0.0
    %4533 = vmatprep.subr.mxu0 0.0
    %4534 = vmatpush1.msra.mxu0 0.0
    %4535 = vmatprep.subr.mxu0 0.0
    %4536 = vmatpush1.msra.mxu0 0.0
    %4537 = vmatprep.subr.mxu0 0.0
    %4538 = vmatpush1.msra.mxu0 0.0
    %4539 = vmatprep.subr.mxu0 0.0
    %4540 = vmatpush1.msra.mxu0 0.0
    %4541 = vmatprep.subr.mxu0 0.0
    %4542 = vmatpush1.msra.mxu0 0.0
    %4543 = vmatprep.subr.mxu0 0.0
    %4544 = vmatpush1.msra.mxu0 0.0
    %4545 = vmatprep.subr.mxu0 0.0
    %4546 = vmatpush1.msra.mxu0 0.0
    %4547 = vmatprep.subr.mxu0 0.0
    %4548 = vmatpush1.msra.mxu0 0.0
    %4549 = vmatprep.subr.mxu0 0.0
    %4550 = vmatpush1.msra.mxu0 0.0
    %4551 = vmatprep.subr.mxu0 0.0
    %4552 = vmatpush1.msra.mxu0 0.0
    %4553 = vmatprep.subr.mxu0 0.0
    %4554 = vmatpush1.msra.mxu0 0.0
    %4555 = vmatprep.subr.mxu0 0.0
    %4556 = vmatpush1.msra.mxu0 0.0
    %4557 = vmatprep.subr.mxu0 0.0
    %4558 = vmatpush1.msra.mxu0 0.0
    %4559 = vmatprep.subr.mxu0 0.0
    %4560 = vmatpush1.msra.mxu0 0.0
    %4561 = vmatprep.subr.mxu0 0.0
    %4562 = vmatpush1.msra.mxu0 0.0
    %4563 = vmatprep.subr.mxu0 0.0
    %4564 = vmatpush1.msra.mxu0 0.0
    %4565 = vmatprep.subr.mxu0 0.0
    %4566 = vmatpush1.msra.mxu0 0.0
    %4567 = vmatprep.subr.mxu0 0.0
    %4568 = vmatpush1.msra.mxu0 0.0
    %4569 = vmatprep.subr.mxu0 0.0
    %4570 = vmatpush1.msra.mxu0 0.0
    %4571 = vmatprep.subr.mxu0 0.0
    %4572 = vmatpush1.msra.mxu0 0.0
    %4573 = vmatprep.subr.mxu0 0.0
    %4574 = vmatpush1.msra.mxu0 0.0
    %4575 = vmatprep.subr.mxu0 0.0
    %4576 = vmatpush1.msra.mxu0 0.0
    %4577 = vmatprep.subr.mxu0 0.0
    %4578 = vmatpush1.msra.mxu0 0.0
    %4579 = vmatprep.mubr.f32.mxu0 0.0
    %4580 = vmatmul.mubr.f32.gmra.mrb[0].mxu0 %v4510
    %v4581 = vpop.f32.mrb[0].mxu0
    %v4582 = vadd.f32 %v4507, %v4581
    %v4583 = vpop.f32.mrb[0].mxu0
    %4584 = vmatprep.mubr.f32.mxu0 0.0
    %4585 = vmatmul.mubr.f32.gmra.mrb[0].mxu0 %v4513
    %v4586 = vpop.f32.mrb[0].mxu0
    %v4587 = vadd.f32 %v4507, %v4586
    %v4588 = vpop.f32.mrb[0].mxu0
    %4589 = vdwg.mxu0
    %v4590 = vld [vmem:[%s63] sm:$0xff]
    %v4591 = vld [vmem:[%s63 + $0x8] sm:$0xff]
    %v4593 = vsel %vm188, %v4590, 0
    %v4596 = vsel %vm188, %v4591, 0
    %4598 = vmatprep.subr.mxu0 0.0
    %4599 = vmatpush1.msra.mxu0 %v4582
    %4600 = vmatprep.subr.mxu0 0.0
    %4601 = vmatpush1.msra.mxu0 %v4587
    %4602 = vmatprep.subr.mxu0 0.0
    %4603 = vmatpush1.msra.mxu0 0.0
    %4604 = vmatprep.subr.mxu0 0.0
    %4605 = vmatpush1.msra.mxu0 0.0
    %4606 = vmatprep.subr.mxu0 0.0
    %4607 = vmatpush1.msra.mxu0 0.0
    %4608 = vmatprep.subr.mxu0 0.0
    %4609 = vmatpush1.msra.mxu0 0.0
    %4610 = vmatprep.subr.mxu0 0.0
    %4611 = vmatpush1.msra.mxu0 0.0
    %4612 = vmatprep.subr.mxu0 0.0
    %4613 = vmatpush1.msra.mxu0 0.0
    %4614 = vmatprep.subr.mxu0 0.0
    %4615 = vmatpush1.msra.mxu0 0.0
    %4616 = vmatprep.subr.mxu0 0.0
    %4617 = vmatpush1.msra.mxu0 0.0
    %4618 = vmatprep.subr.mxu0 0.0
    %4619 = vmatpush1.msra.mxu0 0.0
    %4620 = vmatprep.subr.mxu0 0.0
    %4621 = vmatpush1.msra.mxu0 0.0
    %4622 = vmatprep.subr.mxu0 0.0
    %4623 = vmatpush1.msra.mxu0 0.0
    %4624 = vmatprep.subr.mxu0 0.0
    %4625 = vmatpush1.msra.mxu0 0.0
    %4626 = vmatprep.subr.mxu0 0.0
    %4627 = vmatpush1.msra.mxu0 0.0
    %4628 = vmatprep.subr.mxu0 0.0
    %4629 = vmatpush1.msra.mxu0 0.0
    %4630 = vmatprep.subr.mxu0 0.0
    %4631 = vmatpush1.msra.mxu0 0.0
    %4632 = vmatprep.subr.mxu0 0.0
    %4633 = vmatpush1.msra.mxu0 0.0
    %4634 = vmatprep.subr.mxu0 0.0
    %4635 = vmatpush1.msra.mxu0 0.0
    %4636 = vmatprep.subr.mxu0 0.0
    %4637 = vmatpush1.msra.mxu0 0.0
    %4638 = vmatprep.subr.mxu0 0.0
    %4639 = vmatpush1.msra.mxu0 0.0
    %4640 = vmatprep.subr.mxu0 0.0
    %4641 = vmatpush1.msra.mxu0 0.0
    %4642 = vmatprep.subr.mxu0 0.0
    %4643 = vmatpush1.msra.mxu0 0.0
    %4644 = vmatprep.subr.mxu0 0.0
    %4645 = vmatpush1.msra.mxu0 0.0
    %4646 = vmatprep.subr.mxu0 0.0
    %4647 = vmatpush1.msra.mxu0 0.0
    %4648 = vmatprep.subr.mxu0 0.0
    %4649 = vmatpush1.msra.mxu0 0.0
    %4650 = vmatprep.subr.mxu0 0.0
    %4651 = vmatpush1.msra.mxu0 0.0
    %4652 = vmatprep.subr.mxu0 0.0
    %4653 = vmatpush1.msra.mxu0 0.0
    %4654 = vmatprep.subr.mxu0 0.0
    %4655 = vmatpush1.msra.mxu0 0.0
    %4656 = vmatprep.subr.mxu0 0.0
    %4657 = vmatpush1.msra.mxu0 0.0
    %4658 = vmatprep.subr.mxu0 0.0
    %4659 = vmatpush1.msra.mxu0 0.0
    %4660 = vmatprep.subr.mxu0 0.0
    %4661 = vmatpush1.msra.mxu0 0.0
    %4662 = vmatprep.mubr.f32.mxu0 0.0
    %4663 = vmatmul.mubr.f32.gmra.mrb[0].mxu0 %v4593
    %v4664 = vpop.f32.mrb[0].mxu0
    %v4665 = vadd.f32 0.0, %v4664
    %v4666 = vpop.f32.mrb[0].mxu0
    %4667 = vmatprep.mubr.f32.mxu0 0.0
    %4668 = vmatmul.mubr.f32.gmra.mrb[0].mxu0 %v4596
    %v4669 = vpop.f32.mrb[0].mxu0
    %v4670 = vadd.f32 0.0, %v4669
    %v4671 = vpop.f32.mrb[0].mxu0
    %4672 = vdwg.mxu0
    %4673 = vst.msk [vmem:[%s65] sm:$0xff] %vm1800, %v4665
    %4674 = vst.msk [vmem:[%s65 + $0x8] sm:$0xff] %vm1800, %v4670
    // Predicated region
    $region138: #{gcn_lstm_forward.1} parent=1 // pred_check
      _
    $region139: #{gcn_lstm_forward.1} parent=1 // pred_check_branch
      %4676 = sbr.rel (0) target = $region141
    $region140: #{gcn_lstm_forward.1} parent=1 // pred_region
      _
    $region141: #{gcn_lstm_forward.1} parent=1 // pred_fallthru
      _
    // Predicated region
    $region142: #{gcn_lstm_forward.1} parent=1 // pred_check
      _
    $region143: #{gcn_lstm_forward.1} parent=1 // pred_check_branch
      %4678 = sbr.rel (0) target = $region145
    $region144: #{gcn_lstm_forward.1} parent=1 // pred_region
      _
    $region145: #{gcn_lstm_forward.1} parent=1 // pred_fallthru
      _
    %4679 = vsyncpa [#allocation5], 1
    %4680 = vsyncpa [#allocation7], 1

</llo_original>
